<compile_context>
chip_gen: v7x
topology: tpu7x:2x2x1
jax: 0.10.0
libtpu: 0.0.40
codegen_flags: <defaults>
</compile_context>

<pallas_src>
import functools

import jax
import jax.numpy as jnp
from jax import lax
from jax.experimental import pallas as pl
from jax.experimental.pallas import tpu as pltpu


_VMEM_LIMIT_CACHE = None


def _vmem_limit():
    """Scoped-VMEM budget per chip generation: big budget on 128 MiB chips (v5e/v6e),
    conservative 32 MiB on 64 MiB-per-TC chips (v7x) or if the query fails."""
    global _VMEM_LIMIT_CACHE
    if _VMEM_LIMIT_CACHE is None:
        try:
            cap = int(pltpu.get_tpu_info().vmem_capacity_bytes)
        except Exception:
            cap = 64 * 1024 * 1024
        _VMEM_LIMIT_CACHE = (96 * 1024 * 1024 if cap >= 100 * 1024 * 1024
                             else 32 * 1024 * 1024)
    return _VMEM_LIMIT_CACHE


def _div_tile(dim, target, align):
    """Largest tile <= target that divides `dim` and is a multiple of `align`;
    falls back to the full dimension (full-extent blocks are always legal)."""
    t = min(target, dim)
    t -= t % align
    while t >= align:
        if dim % t == 0:
            return t
        t -= align
    return dim


# ----------------------------- Pallas kernels ------------------------------


def _adaln_kernel(c_ref, w_ref, b_ref, o_ref):
    # SiLU in f32 (VPU/EUP); bf16 weights, f32 accumulation on the MXU.
    c = c_ref[...].astype(jnp.float32)
    c = c * (1.0 / (1.0 + jnp.exp(-c)))
    y = jnp.dot(c.astype(jnp.bfloat16), w_ref[...],
                preferred_element_type=jnp.float32)
    o_ref[...] = (y + b_ref[...].astype(jnp.float32)).astype(o_ref.dtype)


def _ln_mod_linear_kernel(x_ref, sh_ref, sc_ref, *refs, n_out, act):
    # Fused LayerNorm (two-pass variance) + adaLN modulate, cached in VMEM at the first
    # column step, followed by n_out parallel Linear projections (+ optional GELU).
    w_refs = refs[:n_out]
    b_refs = refs[n_out:2 * n_out]
    o_refs = refs[2 * n_out:3 * n_out]
    xm_sc = refs[3 * n_out]
    j = pl.program_id(2)

    @pl.when(j == 0)
    def _():
        x = x_ref[0].astype(jnp.float32)                        # (tr, H)
        mean = jnp.mean(x, axis=-1, keepdims=True)
        xc = x - mean
        var = jnp.mean(xc * xc, axis=-1, keepdims=True)         # mean-subtracted variance
        xn = xc * lax.rsqrt(var + 1e-6)
        xm = xn * (1.0 + sc_ref[0].astype(jnp.float32)) + sh_ref[0].astype(jnp.float32)
        xm_sc[...] = xm.astype(jnp.bfloat16)

    xm = xm_sc[...]                                             # bf16 (tr, H)
    for t in range(n_out):
        y = jnp.dot(xm, w_refs[t][...], preferred_element_type=jnp.float32)
        y = y + b_refs[t][...].astype(jnp.float32)
        if act == "gelu_tanh":
            y = 0.5 * y * (1.0 + jnp.tanh(
                0.7978845608028654 * (y + 0.044715 * y * y * y)))
        o_refs[t][0] = y.astype(o_refs[t].dtype)


def _linear_kernel(x_ref, w_ref, b_ref, *args, has_res):
    # K-tiled matmul with f32 VMEM accumulator; bias (+ optional residual) fused into the
    # finalize step.  Weights arrive pre-cast to bf16.
    if has_res:
        res_ref, o_ref, acc_ref = args
    else:
        o_ref, acc_ref = args
    kk = pl.program_id(3)

    @pl.when(kk == 0)
    def _():
        acc_ref[...] = jnp.zeros_like(acc_ref)

    acc_ref[...] += jnp.dot(x_ref[0].astype(jnp.bfloat16), w_ref[...],
                            preferred_element_type=jnp.float32)

    @pl.when(kk == pl.num_programs(3) - 1)
    def _():
        y = acc_ref[...] + b_ref[...].astype(jnp.float32)
        if has_res:
            y = y + res_ref[0].astype(jnp.float32)
        o_ref[0] = y.astype(o_ref.dtype)


def _flash_attn_kernel(q_ref, k_ref, v_ref, o_ref, m_sc, l_sc, acc_sc, *, heads, d):
    # Flash-style online softmax over the KV grid axis, operating directly on the
    # head-interleaved [1, tile, heads*d] layout (no JAX-level head transposes).
    kv = pl.program_id(2)

    @pl.when(kv == 0)
    def _():
        m_sc[...] = jnp.full_like(m_sc, -jnp.inf)
        l_sc[...] = jnp.zeros_like(l_sc)
        acc_sc[...] = jnp.zeros_like(acc_sc)

    for h in range(heads):
        sl = slice(h * d, (h + 1) * d)
        qh = q_ref[0, :, sl]              # (tq, d) bf16, softmax scale folded into weights
        kh = k_ref[0, :, sl]              # (tk, d) bf16
        vh = v_ref[0, :, sl]
        s = lax.dot_general(qh, kh, (((1,), (1,)), ((), ())),
                            preferred_element_type=jnp.float32)       # (tq, tk)
        m_prev = m_sc[h]
        m_new = jnp.maximum(m_prev, jnp.max(s, axis=-1, keepdims=True))
        alpha = jnp.exp(m_prev - m_new)
        p = jnp.exp(s - m_new)
        l_sc[h] = alpha * l_sc[h] + jnp.sum(p, axis=-1, keepdims=True)
        acc_sc[h] = alpha * acc_sc[h] + jnp.dot(p.astype(jnp.bfloat16), vh,
                                                preferred_element_type=jnp.float32)
        m_sc[h] = m_new

    @pl.when(kv == pl.num_programs(2) - 1)
    def _():
        for h in range(heads):
            # exact normalization (runs once per q tile)
            o_ref[0, :, h * d:(h + 1) * d] = (acc_sc[h] / l_sc[h]).astype(o_ref.dtype)


# ----------------------------- kernel wrappers ------------------------------


def adaln(c, w, b, *, col_tile=1024):
    B, H = c.shape
    OUT = w.shape[1]
    tc = _div_tile(OUT, col_tile, 128)
    return pl.pallas_call(
        _adaln_kernel,
        out_shape=jax.ShapeDtypeStruct((B, OUT), jnp.float32),
        grid=(OUT // tc,),
        in_specs=[
            pl.BlockSpec((B, H), lambda j: (0, 0)),
            pl.BlockSpec((H, tc), lambda j: (0, j)),
            pl.BlockSpec((1, tc), lambda j: (0, j)),
        ],
        out_specs=pl.BlockSpec((B, tc), lambda j: (0, j)),
        compiler_params=pltpu.CompilerParams(
            dimension_semantics=("parallel",),
            vmem_limit_bytes=_vmem_limit()),
    )(c, w, b)


def ln_mod_linear(x, shift, scale, weights, biases, *, act=None,
                  out_dtype=jnp.bfloat16, row_tile=512, col_tile=1024):
    """Fused LN + modulate + N parallel projections sharing one normalization pass."""
    B, N, H = x.shape
    n = len(weights)
    OUT = weights[0].shape[1]
    biases = [jnp.zeros((1, OUT), jnp.float32) if b is None else b for b in biases]
    tr = _div_tile(N, row_tile, 8)
    tc = _div_tile(OUT, col_tile, 128)

    est = 2 * (tr * H * x.dtype.itemsize
               + n * (H * tc * 2 + tc * 4
                      + tr * tc * jnp.dtype(out_dtype).itemsize)) + tr * H * 2
    assert est <= _vmem_limit(), (
        f"ln_mod_linear: tile config needs ~{est >> 20} MiB VMEM > scoped limit")

    in_specs = [
        pl.BlockSpec((1, tr, H), lambda bb, i, j: (bb, i, 0)),
        pl.BlockSpec((1, 1, H), lambda bb, i, j: (bb, 0, 0)),
        pl.BlockSpec((1, 1, H), lambda bb, i, j: (bb, 0, 0)),
    ]
    in_specs += [pl.BlockSpec((H, tc), lambda bb, i, j: (0, j)) for _ in range(n)]
    in_specs += [pl.BlockSpec((1, tc), lambda bb, i, j: (0, j)) for _ in range(n)]

    if n == 1:
        out_shape = jax.ShapeDtypeStruct((B, N, OUT), out_dtype)
        out_specs = pl.BlockSpec((1, tr, tc), lambda bb, i, j: (bb, i, j))
    else:
        out_shape = tuple(jax.ShapeDtypeStruct((B, N, OUT), out_dtype) for _ in range(n))
        out_specs = tuple(pl.BlockSpec((1, tr, tc), lambda bb, i, j: (bb, i, j))
                          for _ in range(n))

    return pl.pallas_call(
        functools.partial(_ln_mod_linear_kernel, n_out=n, act=act),
        out_shape=out_shape,
        grid=(B, N // tr, OUT // tc),
        in_specs=in_specs,
        out_specs=out_specs,
        scratch_shapes=[pltpu.VMEM((tr, H), jnp.bfloat16)],     # cached LN+modulate
        compiler_params=pltpu.CompilerParams(
            # column axis 'arbitrary' so the xm cache sweeps j=0..J-1 per row tile
            dimension_semantics=("parallel", "parallel", "arbitrary"),
            vmem_limit_bytes=_vmem_limit()),
    )(x, shift.reshape(B, 1, H), scale.reshape(B, 1, H), *weights, *biases)


def linear(x, w, b=None, residual=None, *, out_dtype=jnp.bfloat16,
           row_tile=512, col_tile=1024, k_tile=1024):
    B, N, K = x.shape
    OUT = w.shape[1]
    if b is None:
        b = jnp.zeros((1, OUT), jnp.float32)
    has_res = residual is not None
    tr = _div_tile(N, row_tile, 8)
    tc = _div_tile(OUT, col_tile, 128)
    tk = _div_tile(K, k_tile, 128)

    est = (2 * (tr * tk * x.dtype.itemsize + tk * tc * w.dtype.itemsize + tc * 4
                + tr * tc * jnp.dtype(out_dtype).itemsize
                + (tr * tc * residual.dtype.itemsize if has_res else 0))
           + tr * tc * 4)
    assert est <= _vmem_limit(), (
        f"linear: tile config needs ~{est >> 20} MiB VMEM > scoped limit")

    in_specs = [
        pl.BlockSpec((1, tr, tk), lambda bb, i, j, kk: (bb, i, kk)),
        pl.BlockSpec((tk, tc), lambda bb, i, j, kk: (kk, j)),
        pl.BlockSpec((1, tc), lambda bb, i, j, kk: (0, j)),
    ]
    args = [x, w, b]
    if has_res:
        in_specs.append(pl.BlockSpec((1, tr, tc), lambda bb, i, j, kk: (bb, i, j)))
        args.append(residual)

    return pl.pallas_call(
        functools.partial(_linear_kernel, has_res=has_res),
        out_shape=jax.ShapeDtypeStruct((B, N, OUT), out_dtype),
        grid=(B, N // tr, OUT // tc, K // tk),
        in_specs=in_specs,
        out_specs=pl.BlockSpec((1, tr, tc), lambda bb, i, j, kk: (bb, i, j)),
        scratch_shapes=[pltpu.VMEM((tr, tc), jnp.float32)],
        compiler_params=pltpu.CompilerParams(
            dimension_semantics=("parallel", "parallel", "parallel", "arbitrary"),
            vmem_limit_bytes=_vmem_limit()),
    )(*args)


def attention(q, k, v, *, num_heads, q_tile=256, kv_tile=256, out_dtype=jnp.bfloat16):
    """q: [B, Nq, heads*d]; k, v: [B, Nk, heads*d]; output in the same layout.
    Softmax scale must already be folded into the q projection."""
    B, Nq, Hq = q.shape
    Nk = k.shape[1]
    d = Hq // num_heads
    tq = _div_tile(Nq, q_tile, 8)
    tk = _div_tile(Nk, kv_tile, 8)
    return pl.pallas_call(
        functools.partial(_flash_attn_kernel, heads=num_heads, d=d),
        out_shape=jax.ShapeDtypeStruct((B, Nq, Hq), out_dtype),
        grid=(B, Nq // tq, Nk // tk),
        in_specs=[
            pl.BlockSpec((1, tq, Hq), lambda b, i, j: (b, i, 0)),
            pl.BlockSpec((1, tk, Hq), lambda b, i, j: (b, j, 0)),
            pl.BlockSpec((1, tk, Hq), lambda b, i, j: (b, j, 0)),
        ],
        out_specs=pl.BlockSpec((1, tq, Hq), lambda b, i, j: (b, i, 0)),
        scratch_shapes=[
            pltpu.VMEM((num_heads, tq, 1), jnp.float32),   # running max
            pltpu.VMEM((num_heads, tq, 1), jnp.float32),   # running sum
            pltpu.VMEM((num_heads, tq, d), jnp.float32),   # output accumulator
        ],
        compiler_params=pltpu.CompilerParams(
            dimension_semantics=("parallel", "parallel", "arbitrary"),
            vmem_limit_bytes=_vmem_limit()),
    )(q, k, v)


# ----------------------------- parameter prep ------------------------------


def prepare_params(p, *, num_heads, dim_head=64):
    """One-time (outside jit) conversion into the kernel-friendly layout: bf16 weights,
    (1, OUT) f32 bias rows, qkv pre-split into q/k/v, attention softmax scales folded
    into the q projection weights."""
    H = p["qkv_w"].shape[0]
    d = H // num_heads
    bf16 = jnp.bfloat16
    row = lambda b: b.reshape(1, -1).astype(jnp.float32)
    qkv_w, qkv_b = p["qkv_w"], p["qkv_b"]
    self_scale = d ** (-0.5)
    cross_scale = dim_head ** (-0.5)
    return {
        "ada_w": p["ada_w"].astype(bf16), "ada_b": row(p["ada_b"]),
        "wq": (qkv_w[:, :H] * self_scale).astype(bf16),
        "wk": qkv_w[:, H:2 * H].astype(bf16),
        "wv": qkv_w[:, 2 * H:].astype(bf16),
        "bq": row(qkv_b[:H] * self_scale),
        "bk": row(qkv_b[H:2 * H]),
        "bv": row(qkv_b[2 * H:]),
        "proj_w": p["proj_w"].astype(bf16), "proj_b": row(p["proj_b"]),
        "ctx_w": p["ctx_w"].astype(bf16), "ctx_b": row(p["ctx_b"]),
        "q_w": (p["q_w"] * cross_scale).astype(bf16),
        "k_w": p["k_w"].astype(bf16), "v_w": p["v_w"].astype(bf16),
        "out_w": p["out_w"].astype(bf16), "out_b": row(p["out_b"]),
        "fc1_w": p["fc1_w"].astype(bf16), "fc1_b": row(p["fc1_b"]),
        "fc2_w": p["fc2_w"].astype(bf16), "fc2_b": row(p["fc2_b"]),
    }


# ----------------------------- DiTBlock forward ------------------------------


def dit_block_forward(x, c, text_embed, kp, *, num_heads, dim_head=64):
    # adaLN_modulation: SiLU(c) @ W + b -> 6 modulation vectors
    ada = adaln(c, kp["ada_w"], kp["ada_b"])                              # [B, 6H] f32
    (shift_msa, scale_msa, shift_cross, scale_cross,
     shift_mlp, scale_mlp) = jnp.split(ada, 6, axis=-1)

    # ---- self attention: LN+mod+q/k/v fused (one LN pass); head-interleaved layout ----
    q, k, v = ln_mod_linear(x, shift_msa, scale_msa,
                            [kp["wq"], kp["wk"], kp["wv"]],
                            [kp["bq"], kp["bk"], kp["bv"]])               # 3x [B,N,H] bf16
    o = attention(q, k, v, num_heads=num_heads)                           # [B,N,H] bf16
    x = linear(o, kp["proj_w"], kp["proj_b"], residual=x, out_dtype=jnp.float32)

    # ---- cross attention ----
    ctx = linear(text_embed, kp["ctx_w"], kp["ctx_b"])                    # [B,M,H] bf16
    qc = ln_mod_linear(x, shift_cross, scale_cross, [kp["q_w"]], [None])  # [B,N,inner]
    kc = linear(ctx, kp["k_w"])                                           # [B,M,inner]
    vc = linear(ctx, kp["v_w"])
    oc = attention(qc, kc, vc, num_heads=num_heads)                       # [B,N,inner]
    x = linear(oc, kp["out_w"], kp["out_b"], residual=x, out_dtype=jnp.float32)

    # ---- MLP: LN+mod+fc1+GELU fused; fc2+bias+residual fused (K-tiled) ----
    h = ln_mod_linear(x, shift_mlp, scale_mlp, [kp["fc1_w"]], [kp["fc1_b"]],
                      act="gelu_tanh")                                    # [B,N,4H] bf16
    x = linear(h, kp["fc2_w"], kp["fc2_b"], residual=x, out_dtype=jnp.float32)
    return x


# ----------------------------- pure-JAX reference ------------------------------


def dit_block_reference(x, c, text_embed, p, *, num_heads, dim_head=64):
    B, N, H = x.shape
    M = text_embed.shape[1]
    d = H // num_heads
    inner = num_heads * dim_head

    def ln(v):
        m = v.mean(-1, keepdims=True)
        var = ((v - m) ** 2).mean(-1, keepdims=True)
        return (v - m) / jnp.sqrt(var + 1e-6)

    def mod(v, sh, sc):
        return v * (1.0 + sc[:, None, :]) + sh[:, None, :]

    silu = lambda v: v * jax.nn.sigmoid(v)
    ada = silu(c) @ p["ada_w"] + p["ada_b"]
    sh1, sc1, sh2, sc2, sh3, sc3 = jnp.split(ada, 6, axis=-1)

    # self attention
    xm = mod(ln(x), sh1, sc1)
    qkv = (xm @ p["qkv_w"] + p["qkv_b"]).reshape(B, N, 3, num_heads, d)
    q, k, v = [qkv[:, :, i].transpose(0, 2, 1, 3) for i in range(3)]
    a = jax.nn.softmax(jnp.einsum("bhid,bhjd->bhij", q, k) * d ** (-0.5), axis=-1)
    o = jnp.einsum("bhij,bhjd->bhid", a, v).transpose(0, 2, 1, 3).reshape(B, N, H)
    x = x + (o @ p["proj_w"] + p["proj_b"])

    # cross attention
    xm = mod(ln(x), sh2, sc2)
    ctx = text_embed @ p["ctx_w"] + p["ctx_b"]
    q = (xm @ p["q_w"]).reshape(B, N, num_heads, dim_head).transpose(0, 2, 1, 3)
    k = (ctx @ p["k_w"]).reshape(B, M, num_heads, dim_head).transpose(0, 2, 1, 3)
    v = (ctx @ p["v_w"]).reshape(B, M, num_heads, dim_head).transpose(0, 2, 1, 3)
    a = jax.nn.softmax(jnp.einsum("bhid,bhjd->bhij", q, k) * dim_head ** (-0.5), axis=-1)
    o = jnp.einsum("bhij,bhjd->bhid", a, v).transpose(0, 2, 1, 3).reshape(B, N, inner)
    x = x + (o @ p["out_w"] + p["out_b"])

    # MLP
    xm = mod(ln(x), sh3, sc3)
    h = xm @ p["fc1_w"] + p["fc1_b"]
    h = 0.5 * h * (1.0 + jnp.tanh(0.7978845608028654 * (h + 0.044715 * h ** 3)))
    x = x + (h @ p["fc2_w"] + p["fc2_b"])
    return x


# ----------------------------- main ------------------------------


if __name__ == "__main__":
    # Small shapes consistent with DiTBlock semantics.
    B, N, H = 2, 8, 32          # batch, tokens, hidden_size
    num_heads = 4               # H % num_heads == 0
    mlp_ratio = 4.0
    Dm = int(H * mlp_ratio)     # 128
    text_dim = 48
    M_text = 6                  # text sequence length
    dim_head = 64               # CrossAttention default
    inner = num_heads * dim_head

    key = jax.random.PRNGKey(0)
    ks = iter(jax.random.split(key, 32))

    def nrm(shape, s=0.02):
        return (s * jax.random.normal(next(ks), shape)).astype(jnp.float32)

    params = {
        # adaLN_modulation (Linear(H, 6H))
        "ada_w": nrm((H, 6 * H)), "ada_b": nrm((6 * H,)),
        # self attention (timm Attention, qkv_bias=True)
        "qkv_w": nrm((H, 3 * H)), "qkv_b": nrm((3 * H,)),
        "proj_w": nrm((H, H)), "proj_b": nrm((H,)),
        # cross attention
        "ctx_w": nrm((text_dim, H)), "ctx_b": nrm((H,)),
        "q_w": nrm((H, inner)), "k_w": nrm((H, inner)), "v_w": nrm((H, inner)),
        "out_w": nrm((inner, H)), "out_b": nrm((H,)),
        # MLP
        "fc1_w": nrm((H, Dm)), "fc1_b": nrm((Dm,)),
        "fc2_w": nrm((Dm, H)), "fc2_b": nrm((H,)),
    }

    x = jax.random.normal(next(ks), (B, N, H), jnp.float32)
    c = jax.random.normal(next(ks), (B, H), jnp.float32)
    text_embed = jax.random.normal(next(ks), (B, M_text, text_dim), jnp.float32)

    # one-time weight prep (bf16 cast, qkv split, scale folding) OUTSIDE jit
    kparams = prepare_params(params, num_heads=num_heads, dim_head=dim_head)

    fwd = jax.jit(functools.partial(dit_block_forward, num_heads=num_heads,
                                    dim_head=dim_head))
    out = fwd(x, c, text_embed, kparams)
    jax.block_until_ready(out)

    ref = dit_block_reference(x, c, text_embed, params,
                              num_heads=num_heads, dim_head=dim_head)
    assert out.shape == (B, N, H)
    max_err = float(jnp.max(jnp.abs(out - ref)))
    # bf16 MXU operands -> tolerance loosened vs. pure-f32 reference
    assert jnp.allclose(out, ref, atol=2e-2, rtol=2e-2), max_err

    print("KERNEL_OK")
</pallas_src>

<mosaic_0001>
module attributes {stable_mosaic.version = 11 : i64} {
  func.func @_adaln_kernel(%arg0: i32, %arg1: memref<2x32xf32, #tpu.memory_space<vmem>>, %arg2: memref<32x192xbf16, #tpu.memory_space<vmem>>, %arg3: memref<1x192xf32, #tpu.memory_space<vmem>>, %arg4: memref<2x192xf32, #tpu.memory_space<vmem>>) attributes {dimension_semantics = [#tpu.dimension_semantics<parallel>], iteration_bounds = array<i64: 1>, scalar_prefetch = 0 : i64, scratch_operands = 0 : i64, tpu.core_type = #tpu.core_type<tc>, window_params = [{pipeline_mode = #tpu.pipeline_mode<synchronous>, transform_indices = @transform_0, window_bounds = array<i64: 2, 32>}, {transform_indices = @transform_1, window_bounds = array<i64: 32, 192>}, {transform_indices = @transform_2, window_bounds = array<i64: 1, 192>}, {transform_indices = @transform_3, window_bounds = array<i64: 2, 192>}]} {
    %c0 = arith.constant 0 : index
    %c0_0 = arith.constant 0 : index
    %0 = vector.load %arg1[%c0, %c0_0] : memref<2x32xf32, #tpu.memory_space<vmem>>, vector<2x32xf32>
    %cst = arith.constant 0.000000e+00 : f32
    %1 = vector.broadcast %cst : f32 to vector<2x32xf32>
    %2 = arith.subf %1, %0 : vector<2x32xf32>
    %3 = math.exp %2 : vector<2x32xf32>
    %cst_1 = arith.constant 1.000000e+00 : f32
    %4 = vector.broadcast %cst_1 : f32 to vector<2x32xf32>
    %5 = arith.addf %4, %3 : vector<2x32xf32>
    %cst_2 = arith.constant 1.000000e+00 : f32
    %6 = vector.broadcast %cst_2 : f32 to vector<2x32xf32>
    %7 = arith.divf %6, %5 : vector<2x32xf32>
    %8 = arith.mulf %0, %7 : vector<2x32xf32>
    %9 = arith.truncf %8 : vector<2x32xf32> to vector<2x32xbf16>
    %c0_3 = arith.constant 0 : index
    %c0_4 = arith.constant 0 : index
    %10 = vector.load %arg2[%c0_3, %c0_4] : memref<32x192xbf16, #tpu.memory_space<vmem>>, vector<32x192xbf16>
    %cst_5 = arith.constant dense<0.000000e+00> : vector<2x192xf32>
    %11 = tpu.matmul %9, %10, %cst_5 {dimension_numbers = #tpu.dot_dimension_numbers<[1], [0], [0], [1], [0, 0, 1, 1], [], []>} : vector<2x32xbf16>, vector<32x192xbf16>, vector<2x192xf32> -> vector<2x192xf32>
    %c0_6 = arith.constant 0 : index
    %c0_7 = arith.constant 0 : index
    %12 = vector.load %arg3[%c0_6, %c0_7] : memref<1x192xf32, #tpu.memory_space<vmem>>, vector<1x192xf32>
    %13 = vector.broadcast %12 : vector<1x192xf32> to vector<2x192xf32>
    %14 = arith.addf %11, %13 : vector<2x192xf32>
    %c0_8 = arith.constant 0 : index
    %c0_9 = arith.constant 0 : index
    %15 = vector.load %arg4[%c0_8, %c0_9] : memref<2x192xf32, #tpu.memory_space<vmem>>, vector<2x192xf32>
    tpu.vector_store %arg4[%c0_8, %c0_9], %14 {strides = array<i32>} : memref<2x192xf32, #tpu.memory_space<vmem>>, vector<2x192xf32>,
    return
  }
  func.func @transform_0(%arg0: i32) -> (i32, i32) {
    %c0_i32 = arith.constant 0 : i32
    %c0_i32_0 = arith.constant 0 : i32
    %c0_i32_1 = arith.constant 0 : i32
    return %c0_i32, %c0_i32_0 : i32, i32
  }
  func.func @transform_1(%arg0: i32) -> (i32, i32) {
    %c0_i32 = arith.constant 0 : i32
    %c0_i32_0 = arith.constant 0 : i32
    return %c0_i32, %arg0 : i32, i32
  }
  func.func @transform_2(%arg0: i32) -> (i32, i32) {
    %c0_i32 = arith.constant 0 : i32
    %c0_i32_0 = arith.constant 0 : i32
    return %c0_i32, %arg0 : i32, i32
  }
  func.func @transform_3(%arg0: i32) -> (i32, i32) {
    %c0_i32 = arith.constant 0 : i32
    %c0_i32_0 = arith.constant 0 : i32
    return %c0_i32, %arg0 : i32, i32
  }
}

module attributes {stable_mosaic.version = 11 : i64} {
  func.func @_ln_mod_linear_kernel(%arg0: i32, %arg1: i32, %arg2: i32, %arg3: memref<1x8x32xf32, #tpu.memory_space<vmem>>, %arg4: memref<1x1x32xf32, #tpu.memory_space<vmem>>, %arg5: memref<1x1x32xf32, #tpu.memory_space<vmem>>, %arg6: memref<32x32xbf16, #tpu.memory_space<vmem>>, %arg7: memref<32x32xbf16, #tpu.memory_space<vmem>>, %arg8: memref<32x32xbf16, #tpu.memory_space<vmem>>, %arg9: memref<1x32xf32, #tpu.memory_space<vmem>>, %arg10: memref<1x32xf32, #tpu.memory_space<vmem>>, %arg11: memref<1x32xf32, #tpu.memory_space<vmem>>, %arg12: memref<1x8x32xbf16, #tpu.memory_space<vmem>>, %arg13: memref<1x8x32xbf16, #tpu.memory_space<vmem>>, %arg14: memref<1x8x32xbf16, #tpu.memory_space<vmem>>, %arg15: memref<8x32xbf16, #tpu.memory_space<vmem>>) attributes {dimension_semantics = [#tpu.dimension_semantics<parallel>, #tpu.dimension_semantics<parallel>, #tpu.dimension_semantics<arbitrary>], iteration_bounds = array<i64: 2, 1, 1>, scalar_prefetch = 0 : i64, scratch_operands = 1 : i64, tpu.core_type = #tpu.core_type<tc>, window_params = [{transform_indices = @transform_0, window_bounds = array<i64: 1, 8, 32>}, {transform_indices = @transform_1, window_bounds = array<i64: 1, 1, 32>}, {transform_indices = @transform_2, window_bounds = array<i64: 1, 1, 32>}, {transform_indices = @transform_3, window_bounds = array<i64: 32, 32>}, {transform_indices = @transform_4, window_bounds = array<i64: 32, 32>}, {transform_indices = @transform_5, window_bounds = array<i64: 32, 32>}, {transform_indices = @transform_6, window_bounds = array<i64: 1, 32>}, {transform_indices = @transform_7, window_bounds = array<i64: 1, 32>}, {transform_indices = @transform_8, window_bounds = array<i64: 1, 32>}, {transform_indices = @transform_9, window_bounds = array<i64: 1, 8, 32>}, {transform_indices = @transform_10, window_bounds = array<i64: 1, 8, 32>}, {transform_indices = @transform_11, window_bounds = array<i64: 1, 8, 32>}]} {
    %c0_i32 = arith.constant 0 : i32
    %0 = arith.cmpi eq, %arg2, %c0_i32 : i32
    %1 = arith.extui %0 : i1 to i32
    %c0_i32_0 = arith.constant 0 : i32
    %2 = arith.cmpi ne, %1, %c0_i32_0 : i32
    scf.if %2 {
      %c0_25 = arith.constant 0 : index
      %c0_26 = arith.constant 0 : index
      %c0_27 = arith.constant 0 : index
      %31 = vector.load %arg3[%c0_25, %c0_26, %c0_27] : memref<1x8x32xf32, #tpu.memory_space<vmem>>, vector<1x8x32xf32>
      %32 = vector.shape_cast %31 : vector<1x8x32xf32> to vector<8x32xf32>
      %cst_28 = arith.constant dense<0.000000e+00> : vector<8xf32>
      %33 = vector.multi_reduction <add>, %32, %cst_28 [1] : vector<8x32xf32> to vector<8xf32>
      %34 = vector.shape_cast %33 : vector<8xf32> to vector<8x1xf32>
      %cst_29 = arith.constant 3.200000e+01 : f32
      %35 = vector.broadcast %cst_29 : f32 to vector<8x1xf32>
      %36 = arith.divf %34, %35 : vector<8x1xf32>
      %37 = vector.broadcast %36 : vector<8x1xf32> to vector<8x32xf32>
      %38 = arith.subf %32, %37 : vector<8x32xf32>
      %39 = arith.mulf %38, %38 : vector<8x32xf32>
      %cst_30 = arith.constant dense<0.000000e+00> : vector<8xf32>
      %40 = vector.multi_reduction <add>, %39, %cst_30 [1] : vector<8x32xf32> to vector<8xf32>
      %41 = vector.shape_cast %40 : vector<8xf32> to vector<8x1xf32>
      %cst_31 = arith.constant 3.200000e+01 : f32
      %42 = vector.broadcast %cst_31 : f32 to vector<8x1xf32>
      %43 = arith.divf %41, %42 : vector<8x1xf32>
      %cst_32 = arith.constant 9.99999997E-7 : f32
      %44 = vector.broadcast %cst_32 : f32 to vector<8x1xf32>
      %45 = arith.addf %43, %44 : vector<8x1xf32>
      %46 = math.rsqrt %45 : vector<8x1xf32>
      %47 = vector.broadcast %46 : vector<8x1xf32> to vector<8x32xf32>
      %48 = arith.mulf %38, %47 : vector<8x32xf32>
      %c0_33 = arith.constant 0 : index
      %c0_34 = arith.constant 0 : index
      %c0_35 = arith.constant 0 : index
      %49 = vector.load %arg5[%c0_33, %c0_34, %c0_35] : memref<1x1x32xf32, #tpu.memory_space<vmem>>, vector<1x1x32xf32>
      %50 = vector.shape_cast %49 : vector<1x1x32xf32> to vector<1x32xf32>
      %cst_36 = arith.constant 1.000000e+00 : f32
      %51 = vector.broadcast %cst_36 : f32 to vector<1x32xf32>
      %52 = arith.addf %51, %50 : vector<1x32xf32>
      %53 = vector.broadcast %52 : vector<1x32xf32> to vector<8x32xf32>
      %54 = arith.mulf %48, %53 : vector<8x32xf32>
      %c0_37 = arith.constant 0 : index
      %c0_38 = arith.constant 0 : index
      %c0_39 = arith.constant 0 : index
      %55 = vector.load %arg4[%c0_37, %c0_38, %c0_39] : memref<1x1x32xf32, #tpu.memory_space<vmem>>, vector<1x1x32xf32>
      %56 = vector.shape_cast %55 : vector<1x1x32xf32> to vector<1x32xf32>
      %57 = vector.broadcast %56 : vector<1x32xf32> to vector<8x32xf32>
      %58 = arith.addf %54, %57 : vector<8x32xf32>
      %59 = arith.truncf %58 : vector<8x32xf32> to vector<8x32xbf16>
      %c0_40 = arith.constant 0 : index
      %c0_41 = arith.constant 0 : index
      %60 = vector.load %arg15[%c0_40, %c0_41] : memref<8x32xbf16, #tpu.memory_space<vmem>>, vector<8x32xbf16>
      tpu.vector_store %arg15[%c0_40, %c0_41], %59 {strides = array<i32>} : memref<8x32xbf16, #tpu.memory_space<vmem>>, vector<8x32xbf16>,
    } else {
    }
    %c0 = arith.constant 0 : index
    %c0_1 = arith.constant 0 : index
    %3 = vector.load %arg15[%c0, %c0_1] : memref<8x32xbf16, #tpu.memory_space<vmem>>, vector<8x32xbf16>
    %c0_2 = arith.constant 0 : index
    %c0_3 = arith.constant 0 : index
    %4 = vector.load %arg6[%c0_2, %c0_3] : memref<32x32xbf16, #tpu.memory_space<vmem>>, vector<32x32xbf16>
    %cst = arith.constant dense<0.000000e+00> : vector<8x32xf32>
    %5 = tpu.matmul %3, %4, %cst {dimension_numbers = #tpu.dot_dimension_numbers<[1], [0], [0], [1], [0, 0, 1, 1], [], []>} : vector<8x32xbf16>, vector<32x32xbf16>, vector<8x32xf32> -> vector<8x32xf32>
    %c0_4 = arith.constant 0 : index
    %c0_5 = arith.constant 0 : index
    %6 = vector.load %arg9[%c0_4, %c0_5] : memref<1x32xf32, #tpu.memory_space<vmem>>, vector<1x32xf32>
    %7 = vector.broadcast %6 : vector<1x32xf32> to vector<8x32xf32>
    %8 = arith.addf %5, %7 : vector<8x32xf32>
    %9 = arith.truncf %8 : vector<8x32xf32> to vector<8x32xbf16>
    %c0_6 = arith.constant 0 : index
    %c0_7 = arith.constant 0 : index
    %c0_8 = arith.constant 0 : index
    %10 = vector.load %arg12[%c0_6, %c0_7, %c0_8] : memref<1x8x32xbf16, #tpu.memory_space<vmem>>, vector<1x8x32xbf16>
    %11 = vector.shape_cast %10 : vector<1x8x32xbf16> to vector<8x32xbf16>
    %12 = vector.shape_cast %9 : vector<8x32xbf16> to vector<1x8x32xbf16>
    tpu.vector_store %arg12[%c0_6, %c0_7, %c0_8], %12 {strides = array<i32>} : memref<1x8x32xbf16, #tpu.memory_space<vmem>>, vector<1x8x32xbf16>,
    %c0_9 = arith.constant 0 : index
    %c0_10 = arith.constant 0 : index
    %13 = vector.load %arg7[%c0_9, %c0_10] : memref<32x32xbf16, #tpu.memory_space<vmem>>, vector<32x32xbf16>
    %cst_11 = arith.constant dense<0.000000e+00> : vector<8x32xf32>
    %14 = tpu.matmul %3, %13, %cst_11 {dimension_numbers = #tpu.dot_dimension_numbers<[1], [0], [0], [1], [0, 0, 1, 1], [], []>} : vector<8x32xbf16>, vector<32x32xbf16>, vector<8x32xf32> -> vector<8x32xf32>
    %c0_12 = arith.constant 0 : index
    %c0_13 = arith.constant 0 : index
    %15 = vector.load %arg10[%c0_12, %c0_13] : memref<1x32xf32, #tpu.memory_space<vmem>>, vector<1x32xf32>
    %16 = vector.broadcast %15 : vector<1x32xf32> to vector<8x32xf32>
    %17 = arith.addf %14, %16 : vector<8x32xf32>
    %18 = arith.truncf %17 : vector<8x32xf32> to vector<8x32xbf16>
    %c0_14 = arith.constant 0 : index
    %c0_15 = arith.constant 0 : index
    %c0_16 = arith.constant 0 : index
    %19 = vector.load %arg13[%c0_14, %c0_15, %c0_16] : memref<1x8x32xbf16, #tpu.memory_space<vmem>>, vector<1x8x32xbf16>
    %20 = vector.shape_cast %19 : vector<1x8x32xbf16> to vector<8x32xbf16>
    %21 = vector.shape_cast %18 : vector<8x32xbf16> to vector<1x8x32xbf16>
    tpu.vector_store %arg13[%c0_14, %c0_15, %c0_16], %21 {strides = array<i32>} : memref<1x8x32xbf16, #tpu.memory_space<vmem>>, vector<1x8x32xbf16>,
    %c0_17 = arith.constant 0 : index
    %c0_18 = arith.constant 0 : index
    %22 = vector.load %arg8[%c0_17, %c0_18] : memref<32x32xbf16, #tpu.memory_space<vmem>>, vector<32x32xbf16>
    %cst_19 = arith.constant dense<0.000000e+00> : vector<8x32xf32>
    %23 = tpu.matmul %3, %22, %cst_19 {dimension_numbers = #tpu.dot_dimension_numbers<[1], [0], [0], [1], [0, 0, 1, 1], [], []>} : vector<8x32xbf16>, vector<32x32xbf16>, vector<8x32xf32> -> vector<8x32xf32>
    %c0_20 = arith.constant 0 : index
    %c0_21 = arith.constant 0 : index
    %24 = vector.load %arg11[%c0_20, %c0_21] : memref<1x32xf32, #tpu.memory_space<vmem>>, vector<1x32xf32>
    %25 = vector.broadcast %24 : vector<1x32xf32> to vector<8x32xf32>
    %26 = arith.addf %23, %25 : vector<8x32xf32>
    %27 = arith.truncf %26 : vector<8x32xf32> to vector<8x32xbf16>
    %c0_22 = arith.constant 0 : index
    %c0_23 = arith.constant 0 : index
    %c0_24 = arith.constant 0 : index
    %28 = vector.load %arg14[%c0_22, %c0_23, %c0_24] : memref<1x8x32xbf16, #tpu.memory_space<vmem>>, vector<1x8x32xbf16>
    %29 = vector.shape_cast %28 : vector<1x8x32xbf16> to vector<8x32xbf16>
    %30 = vector.shape_cast %27 : vector<8x32xbf16> to vector<1x8x32xbf16>
    tpu.vector_store %arg14[%c0_22, %c0_23, %c0_24], %30 {strides = array<i32>} : memref<1x8x32xbf16, #tpu.memory_space<vmem>>, vector<1x8x32xbf16>,
    return
  }
  func.func @transform_0(%arg0: i32, %arg1: i32, %arg2: i32) -> (i32, i32, i32) {
    %c0_i32 = arith.constant 0 : i32
    %c0_i32_0 = arith.constant 0 : i32
    return %arg0, %arg1, %c0_i32 : i32, i32, i32
  }
  func.func @transform_1(%arg0: i32, %arg1: i32, %arg2: i32) -> (i32, i32, i32) {
    %c0_i32 = arith.constant 0 : i32
    %c0_i32_0 = arith.constant 0 : i32
    %c0_i32_1 = arith.constant 0 : i32
    return %arg0, %c0_i32, %c0_i32_0 : i32, i32, i32
  }
  func.func @transform_2(%arg0: i32, %arg1: i32, %arg2: i32) -> (i32, i32, i32) {
    %c0_i32 = arith.constant 0 : i32
    %c0_i32_0 = arith.constant 0 : i32
    %c0_i32_1 = arith.constant 0 : i32
    return %arg0, %c0_i32, %c0_i32_0 : i32, i32, i32
  }
  func.func @transform_3(%arg0: i32, %arg1: i32, %arg2: i32) -> (i32, i32) {
    %c0_i32 = arith.constant 0 : i32
    %c0_i32_0 = arith.constant 0 : i32
    return %c0_i32, %arg2 : i32, i32
  }
  func.func @transform_4(%arg0: i32, %arg1: i32, %arg2: i32) -> (i32, i32) {
    %c0_i32 = arith.constant 0 : i32
    %c0_i32_0 = arith.constant 0 : i32
    return %c0_i32, %arg2 : i32, i32
  }
  func.func @transform_5(%arg0: i32, %arg1: i32, %arg2: i32) -> (i32, i32) {
    %c0_i32 = arith.constant 0 : i32
    %c0_i32_0 = arith.constant 0 : i32
    return %c0_i32, %arg2 : i32, i32
  }
  func.func @transform_6(%arg0: i32, %arg1: i32, %arg2: i32) -> (i32, i32) {
    %c0_i32 = arith.constant 0 : i32
    %c0_i32_0 = arith.constant 0 : i32
    return %c0_i32, %arg2 : i32, i32
  }
  func.func @transform_7(%arg0: i32, %arg1: i32, %arg2: i32) -> (i32, i32) {
    %c0_i32 = arith.constant 0 : i32
    %c0_i32_0 = arith.constant 0 : i32
    return %c0_i32, %arg2 : i32, i32
  }
  func.func @transform_8(%arg0: i32, %arg1: i32, %arg2: i32) -> (i32, i32) {
    %c0_i32 = arith.constant 0 : i32
    %c0_i32_0 = arith.constant 0 : i32
    return %c0_i32, %arg2 : i32, i32
  }
  func.func @transform_9(%arg0: i32, %arg1: i32, %arg2: i32) -> (i32, i32, i32) {
    %c0_i32 = arith.constant 0 : i32
    return %arg0, %arg1, %arg2 : i32, i32, i32
  }
  func.func @transform_10(%arg0: i32, %arg1: i32, %arg2: i32) -> (i32, i32, i32) {
    %c0_i32 = arith.constant 0 : i32
    return %arg0, %arg1, %arg2 : i32, i32, i32
  }
  func.func @transform_11(%arg0: i32, %arg1: i32, %arg2: i32) -> (i32, i32, i32) {
    %c0_i32 = arith.constant 0 : i32
    return %arg0, %arg1, %arg2 : i32, i32, i32
  }
}

module attributes {stable_mosaic.version = 11 : i64} {
  func.func @_flash_attn_kernel(%arg0: i32, %arg1: i32, %arg2: i32, %arg3: memref<1x8x32xbf16, #tpu.memory_space<vmem>>, %arg4: memref<1x8x32xbf16, #tpu.memory_space<vmem>>, %arg5: memref<1x8x32xbf16, #tpu.memory_space<vmem>>, %arg6: memref<1x8x32xbf16, #tpu.memory_space<vmem>>, %arg7: memref<4x8x1xf32, #tpu.memory_space<vmem>>, %arg8: memref<4x8x1xf32, #tpu.memory_space<vmem>>, %arg9: memref<4x8x8xf32, #tpu.memory_space<vmem>>) attributes {dimension_semantics = [#tpu.dimension_semantics<parallel>, #tpu.dimension_semantics<parallel>, #tpu.dimension_semantics<arbitrary>], iteration_bounds = array<i64: 2, 1, 1>, scalar_prefetch = 0 : i64, scratch_operands = 3 : i64, tpu.core_type = #tpu.core_type<tc>, window_params = [{transform_indices = @transform_0, window_bounds = array<i64: 1, 8, 32>}, {transform_indices = @transform_1, window_bounds = array<i64: 1, 8, 32>}, {transform_indices = @transform_2, window_bounds = array<i64: 1, 8, 32>}, {transform_indices = @transform_3, window_bounds = array<i64: 1, 8, 32>}]} {
    %c0_i32 = arith.constant 0 : i32
    %0 = arith.cmpi eq, %arg2, %c0_i32 : i32
    %1 = arith.extui %0 : i1 to i32
    %c0_i32_0 = arith.constant 0 : i32
    %2 = arith.cmpi ne, %1, %c0_i32_0 : i32
    scf.if %2 {
      %cst_119 = arith.constant 0xFF800000 : f32
      %162 = vector.broadcast %cst_119 : f32 to vector<4x8x1xf32>
      %c0_120 = arith.constant 0 : index
      %c0_121 = arith.constant 0 : index
      %c0_122 = arith.constant 0 : index
      %163 = vector.load %arg7[%c0_120, %c0_121, %c0_122] : memref<4x8x1xf32, #tpu.memory_space<vmem>>, vector<4x8x1xf32>
      tpu.vector_store %arg7[%c0_120, %c0_121, %c0_122], %162 {strides = array<i32>} : memref<4x8x1xf32, #tpu.memory_space<vmem>>, vector<4x8x1xf32>,
      %cst_123 = arith.constant 0.000000e+00 : f32
      %164 = vector.broadcast %cst_123 : f32 to vector<4x8x1xf32>
      %c0_124 = arith.constant 0 : index
      %c0_125 = arith.constant 0 : index
      %c0_126 = arith.constant 0 : index
      %165 = vector.load %arg8[%c0_124, %c0_125, %c0_126] : memref<4x8x1xf32, #tpu.memory_space<vmem>>, vector<4x8x1xf32>
      tpu.vector_store %arg8[%c0_124, %c0_125, %c0_126], %164 {strides = array<i32>} : memref<4x8x1xf32, #tpu.memory_space<vmem>>, vector<4x8x1xf32>,
      %cst_127 = arith.constant 0.000000e+00 : f32
      %166 = vector.broadcast %cst_127 : f32 to vector<4x8x8xf32>
      %c0_128 = arith.constant 0 : index
      %c0_129 = arith.constant 0 : index
      %c0_130 = arith.constant 0 : index
      %167 = vector.load %arg9[%c0_128, %c0_129, %c0_130] : memref<4x8x8xf32, #tpu.memory_space<vmem>>, vector<4x8x8xf32>
      tpu.vector_store %arg9[%c0_128, %c0_129, %c0_130], %166 {strides = array<i32>} : memref<4x8x8xf32, #tpu.memory_space<vmem>>, vector<4x8x8xf32>,
    } else {
    }
    %c0 = arith.constant 0 : index
    %c0_1 = arith.constant 0 : index
    %c0_2 = arith.constant 0 : index
    %3 = vector.load %arg3[%c0, %c0_1, %c0_2] : memref<1x8x32xbf16, #tpu.memory_space<vmem>>, vector<1x8x8xbf16>
    %4 = vector.shape_cast %3 : vector<1x8x8xbf16> to vector<8x8xbf16>
    %c0_3 = arith.constant 0 : index
    %c0_4 = arith.constant 0 : index
    %c0_5 = arith.constant 0 : index
    %5 = vector.load %arg4[%c0_3, %c0_4, %c0_5] : memref<1x8x32xbf16, #tpu.memory_space<vmem>>, vector<1x8x8xbf16>
    %6 = vector.shape_cast %5 : vector<1x8x8xbf16> to vector<8x8xbf16>
    %c0_6 = arith.constant 0 : index
    %c0_7 = arith.constant 0 : index
    %c0_8 = arith.constant 0 : index
    %7 = vector.load %arg5[%c0_6, %c0_7, %c0_8] : memref<1x8x32xbf16, #tpu.memory_space<vmem>>, vector<1x8x8xbf16>
    %8 = vector.shape_cast %7 : vector<1x8x8xbf16> to vector<8x8xbf16>
    %cst = arith.constant dense<0.000000e+00> : vector<8x8xf32>
    %9 = tpu.matmul %4, %6, %cst {dimension_numbers = #tpu.dot_dimension_numbers<[1], [1], [0], [0], [0, 0, 1, 0], [], []>} : vector<8x8xbf16>, vector<8x8xbf16>, vector<8x8xf32> -> vector<8x8xf32>
    %c0_9 = arith.constant 0 : index
    %c0_10 = arith.constant 0 : index
    %c0_11 = arith.constant 0 : index
    %10 = vector.load %arg7[%c0_9, %c0_10, %c0_11] : memref<4x8x1xf32, #tpu.memory_space<vmem>>, vector<1x8x1xf32>
    %11 = vector.shape_cast %10 : vector<1x8x1xf32> to vector<8x1xf32>
    %cst_12 = arith.constant dense<0xFF800000> : vector<8xf32>
    %12 = vector.multi_reduction <maximumf>, %9, %cst_12 [1] : vector<8x8xf32> to vector<8xf32>
    %13 = vector.shape_cast %12 : vector<8xf32> to vector<8x1xf32>
    %14 = arith.maximumf %11, %13 : vector<8x1xf32>
    %15 = arith.subf %11, %14 : vector<8x1xf32>
    %16 = math.exp %15 : vector<8x1xf32>
    %17 = vector.broadcast %14 : vector<8x1xf32> to vector<8x8xf32>
    %18 = arith.subf %9, %17 : vector<8x8xf32>
    %19 = math.exp %18 : vector<8x8xf32>
    %c0_13 = arith.constant 0 : index
    %c0_14 = arith.constant 0 : index
    %c0_15 = arith.constant 0 : index
    %20 = vector.load %arg8[%c0_13, %c0_14, %c0_15] : memref<4x8x1xf32, #tpu.memory_space<vmem>>, vector<1x8x1xf32>
    %21 = vector.shape_cast %20 : vector<1x8x1xf32> to vector<8x1xf32>
    %22 = arith.mulf %16, %21 : vector<8x1xf32>
    %cst_16 = arith.constant dense<0.000000e+00> : vector<8xf32>
    %23 = vector.multi_reduction <add>, %19, %cst_16 [1] : vector<8x8xf32> to vector<8xf32>
    %24 = vector.shape_cast %23 : vector<8xf32> to vector<8x1xf32>
    %25 = arith.addf %22, %24 : vector<8x1xf32>
    %c0_17 = arith.constant 0 : index
    %c0_18 = arith.constant 0 : index
    %c0_19 = arith.constant 0 : index
    %26 = vector.load %arg8[%c0_17, %c0_18, %c0_19] : memref<4x8x1xf32, #tpu.memory_space<vmem>>, vector<1x8x1xf32>
    %27 = vector.shape_cast %26 : vector<1x8x1xf32> to vector<8x1xf32>
    %28 = vector.shape_cast %25 : vector<8x1xf32> to vector<1x8x1xf32>
    tpu.vector_store %arg8[%c0_17, %c0_18, %c0_19], %28 {strides = array<i32>} : memref<4x8x1xf32, #tpu.memory_space<vmem>>, vector<1x8x1xf32>,
    %c0_20 = arith.constant 0 : index
    %c0_21 = arith.constant 0 : index
    %c0_22 = arith.constant 0 : index
    %29 = vector.load %arg9[%c0_20, %c0_21, %c0_22] : memref<4x8x8xf32, #tpu.memory_space<vmem>>, vector<1x8x8xf32>
    %30 = vector.shape_cast %29 : vector<1x8x8xf32> to vector<8x8xf32>
    %31 = vector.broadcast %16 : vector<8x1xf32> to vector<8x8xf32>
    %32 = arith.mulf %31, %30 : vector<8x8xf32>
    %33 = arith.truncf %19 : vector<8x8xf32> to vector<8x8xbf16>
    %cst_23 = arith.constant dense<0.000000e+00> : vector<8x8xf32>
    %34 = tpu.matmul %33, %8, %cst_23 {dimension_numbers = #tpu.dot_dimension_numbers<[1], [0], [0], [1], [0, 0, 1, 1], [], []>} : vector<8x8xbf16>, vector<8x8xbf16>, vector<8x8xf32> -> vector<8x8xf32>
    %35 = arith.addf %32, %34 : vector<8x8xf32>
    %c0_24 = arith.constant 0 : index
    %c0_25 = arith.constant 0 : index
    %c0_26 = arith.constant 0 : index
    %36 = vector.load %arg9[%c0_24, %c0_25, %c0_26] : memref<4x8x8xf32, #tpu.memory_space<vmem>>, vector<1x8x8xf32>
    %37 = vector.shape_cast %36 : vector<1x8x8xf32> to vector<8x8xf32>
    %38 = vector.shape_cast %35 : vector<8x8xf32> to vector<1x8x8xf32>
    tpu.vector_store %arg9[%c0_24, %c0_25, %c0_26], %38 {strides = array<i32>} : memref<4x8x8xf32, #tpu.memory_space<vmem>>, vector<1x8x8xf32>,
    %c0_27 = arith.constant 0 : index
    %c0_28 = arith.constant 0 : index
    %c0_29 = arith.constant 0 : index
    %39 = vector.load %arg7[%c0_27, %c0_28, %c0_29] : memref<4x8x1xf32, #tpu.memory_space<vmem>>, vector<1x8x1xf32>
    %40 = vector.shape_cast %39 : vector<1x8x1xf32> to vector<8x1xf32>
    %41 = vector.shape_cast %14 : vector<8x1xf32> to vector<1x8x1xf32>
    tpu.vector_store %arg7[%c0_27, %c0_28, %c0_29], %41 {strides = array<i32>} : memref<4x8x1xf32, #tpu.memory_space<vmem>>, vector<1x8x1xf32>,
    %c0_30 = arith.constant 0 : index
    %c0_31 = arith.constant 0 : index
    %c8 = arith.constant 8 : index
    %42 = vector.load %arg3[%c0_30, %c0_31, %c8] : memref<1x8x32xbf16, #tpu.memory_space<vmem>>, vector<1x8x8xbf16>
    %43 = vector.shape_cast %42 : vector<1x8x8xbf16> to vector<8x8xbf16>
    %c0_32 = arith.constant 0 : index
    %c0_33 = arith.constant 0 : index
    %c8_34 = arith.constant 8 : index
    %44 = vector.load %arg4[%c0_32, %c0_33, %c8_34] : memref<1x8x32xbf16, #tpu.memory_space<vmem>>, vector<1x8x8xbf16>
    %45 = vector.shape_cast %44 : vector<1x8x8xbf16> to vector<8x8xbf16>
    %c0_35 = arith.constant 0 : index
    %c0_36 = arith.constant 0 : index
    %c8_37 = arith.constant 8 : index
    %46 = vector.load %arg5[%c0_35, %c0_36, %c8_37] : memref<1x8x32xbf16, #tpu.memory_space<vmem>>, vector<1x8x8xbf16>
    %47 = vector.shape_cast %46 : vector<1x8x8xbf16> to vector<8x8xbf16>
    %cst_38 = arith.constant dense<0.000000e+00> : vector<8x8xf32>
    %48 = tpu.matmul %43, %45, %cst_38 {dimension_numbers = #tpu.dot_dimension_numbers<[1], [1], [0], [0], [0, 0, 1, 0], [], []>} : vector<8x8xbf16>, vector<8x8xbf16>, vector<8x8xf32> -> vector<8x8xf32>
    %c1 = arith.constant 1 : index
    %c0_39 = arith.constant 0 : index
    %c0_40 = arith.constant 0 : index
    %49 = vector.load %arg7[%c1, %c0_39, %c0_40] : memref<4x8x1xf32, #tpu.memory_space<vmem>>, vector<1x8x1xf32>
    %50 = vector.shape_cast %49 : vector<1x8x1xf32> to vector<8x1xf32>
    %cst_41 = arith.constant dense<0xFF800000> : vector<8xf32>
    %51 = vector.multi_reduction <maximumf>, %48, %cst_41 [1] : vector<8x8xf32> to vector<8xf32>
    %52 = vector.shape_cast %51 : vector<8xf32> to vector<8x1xf32>
    %53 = arith.maximumf %50, %52 : vector<8x1xf32>
    %54 = arith.subf %50, %53 : vector<8x1xf32>
    %55 = math.exp %54 : vector<8x1xf32>
    %56 = vector.broadcast %53 : vector<8x1xf32> to vector<8x8xf32>
    %57 = arith.subf %48, %56 : vector<8x8xf32>
    %58 = math.exp %57 : vector<8x8xf32>
    %c1_42 = arith.constant 1 : index
    %c0_43 = arith.constant 0 : index
    %c0_44 = arith.constant 0 : index
    %59 = vector.load %arg8[%c1_42, %c0_43, %c0_44] : memref<4x8x1xf32, #tpu.memory_space<vmem>>, vector<1x8x1xf32>
    %60 = vector.shape_cast %59 : vector<1x8x1xf32> to vector<8x1xf32>
    %61 = arith.mulf %55, %60 : vector<8x1xf32>
    %cst_45 = arith.constant dense<0.000000e+00> : vector<8xf32>
    %62 = vector.multi_reduction <add>, %58, %cst_45 [1] : vector<8x8xf32> to vector<8xf32>
    %63 = vector.shape_cast %62 : vector<8xf32> to vector<8x1xf32>
    %64 = arith.addf %61, %63 : vector<8x1xf32>
    %c1_46 = arith.constant 1 : index
    %c0_47 = arith.constant 0 : index
    %c0_48 = arith.constant 0 : index
    %65 = vector.load %arg8[%c1_46, %c0_47, %c0_48] : memref<4x8x1xf32, #tpu.memory_space<vmem>>, vector<1x8x1xf32>
    %66 = vector.shape_cast %65 : vector<1x8x1xf32> to vector<8x1xf32>
    %67 = vector.shape_cast %64 : vector<8x1xf32> to vector<1x8x1xf32>
    tpu.vector_store %arg8[%c1_46, %c0_47, %c0_48], %67 {strides = array<i32>} : memref<4x8x1xf32, #tpu.memory_space<vmem>>, vector<1x8x1xf32>,
    %c1_49 = arith.constant 1 : index
    %c0_50 = arith.constant 0 : index
    %c0_51 = arith.constant 0 : index
    %68 = vector.load %arg9[%c1_49, %c0_50, %c0_51] : memref<4x8x8xf32, #tpu.memory_space<vmem>>, vector<1x8x8xf32>
    %69 = vector.shape_cast %68 : vector<1x8x8xf32> to vector<8x8xf32>
    %70 = vector.broadcast %55 : vector<8x1xf32> to vector<8x8xf32>
    %71 = arith.mulf %70, %69 : vector<8x8xf32>
    %72 = arith.truncf %58 : vector<8x8xf32> to vector<8x8xbf16>
    %cst_52 = arith.constant dense<0.000000e+00> : vector<8x8xf32>
    %73 = tpu.matmul %72, %47, %cst_52 {dimension_numbers = #tpu.dot_dimension_numbers<[1], [0], [0], [1], [0, 0, 1, 1], [], []>} : vector<8x8xbf16>, vector<8x8xbf16>, vector<8x8xf32> -> vector<8x8xf32>
    %74 = arith.addf %71, %73 : vector<8x8xf32>
    %c1_53 = arith.constant 1 : index
    %c0_54 = arith.constant 0 : index
    %c0_55 = arith.constant 0 : index
    %75 = vector.load %arg9[%c1_53, %c0_54, %c0_55] : memref<4x8x8xf32, #tpu.memory_space<vmem>>, vector<1x8x8xf32>
    %76 = vector.shape_cast %75 : vector<1x8x8xf32> to vector<8x8xf32>
    %77 = vector.shape_cast %74 : vector<8x8xf32> to vector<1x8x8xf32>
    tpu.vector_store %arg9[%c1_53, %c0_54, %c0_55], %77 {strides = array<i32>} : memref<4x8x8xf32, #tpu.memory_space<vmem>>, vector<1x8x8xf32>,
    %c1_56 = arith.constant 1 : index
    %c0_57 = arith.constant 0 : index
    %c0_58 = arith.constant 0 : index
    %78 = vector.load %arg7[%c1_56, %c0_57, %c0_58] : memref<4x8x1xf32, #tpu.memory_space<vmem>>, vector<1x8x1xf32>
    %79 = vector.shape_cast %78 : vector<1x8x1xf32> to vector<8x1xf32>
    %80 = vector.shape_cast %53 : vector<8x1xf32> to vector<1x8x1xf32>
    tpu.vector_store %arg7[%c1_56, %c0_57, %c0_58], %80 {strides = array<i32>} : memref<4x8x1xf32, #tpu.memory_space<vmem>>, vector<1x8x1xf32>,
    %c0_59 = arith.constant 0 : index
    %c0_60 = arith.constant 0 : index
    %c16 = arith.constant 16 : index
    %81 = vector.load %arg3[%c0_59, %c0_60, %c16] : memref<1x8x32xbf16, #tpu.memory_space<vmem>>, vector<1x8x8xbf16>
    %82 = vector.shape_cast %81 : vector<1x8x8xbf16> to vector<8x8xbf16>
    %c0_61 = arith.constant 0 : index
    %c0_62 = arith.constant 0 : index
    %c16_63 = arith.constant 16 : index
    %83 = vector.load %arg4[%c0_61, %c0_62, %c16_63] : memref<1x8x32xbf16, #tpu.memory_space<vmem>>, vector<1x8x8xbf16>
    %84 = vector.shape_cast %83 : vector<1x8x8xbf16> to vector<8x8xbf16>
    %c0_64 = arith.constant 0 : index
    %c0_65 = arith.constant 0 : index
    %c16_66 = arith.constant 16 : index
    %85 = vector.load %arg5[%c0_64, %c0_65, %c16_66] : memref<1x8x32xbf16, #tpu.memory_space<vmem>>, vector<1x8x8xbf16>
    %86 = vector.shape_cast %85 : vector<1x8x8xbf16> to vector<8x8xbf16>
    %cst_67 = arith.constant dense<0.000000e+00> : vector<8x8xf32>
    %87 = tpu.matmul %82, %84, %cst_67 {dimension_numbers = #tpu.dot_dimension_numbers<[1], [1], [0], [0], [0, 0, 1, 0], [], []>} : vector<8x8xbf16>, vector<8x8xbf16>, vector<8x8xf32> -> vector<8x8xf32>
    %c2 = arith.constant 2 : index
    %c0_68 = arith.constant 0 : index
    %c0_69 = arith.constant 0 : index
    %88 = vector.load %arg7[%c2, %c0_68, %c0_69] : memref<4x8x1xf32, #tpu.memory_space<vmem>>, vector<1x8x1xf32>
    %89 = vector.shape_cast %88 : vector<1x8x1xf32> to vector<8x1xf32>
    %cst_70 = arith.constant dense<0xFF800000> : vector<8xf32>
    %90 = vector.multi_reduction <maximumf>, %87, %cst_70 [1] : vector<8x8xf32> to vector<8xf32>
    %91 = vector.shape_cast %90 : vector<8xf32> to vector<8x1xf32>
    %92 = arith.maximumf %89, %91 : vector<8x1xf32>
    %93 = arith.subf %89, %92 : vector<8x1xf32>
    %94 = math.exp %93 : vector<8x1xf32>
    %95 = vector.broadcast %92 : vector<8x1xf32> to vector<8x8xf32>
    %96 = arith.subf %87, %95 : vector<8x8xf32>
    %97 = math.exp %96 : vector<8x8xf32>
    %c2_71 = arith.constant 2 : index
    %c0_72 = arith.constant 0 : index
    %c0_73 = arith.constant 0 : index
    %98 = vector.load %arg8[%c2_71, %c0_72, %c0_73] : memref<4x8x1xf32, #tpu.memory_space<vmem>>, vector<1x8x1xf32>
    %99 = vector.shape_cast %98 : vector<1x8x1xf32> to vector<8x1xf32>
    %100 = arith.mulf %94, %99 : vector<8x1xf32>
    %cst_74 = arith.constant dense<0.000000e+00> : vector<8xf32>
    %101 = vector.multi_reduction <add>, %97, %cst_74 [1] : vector<8x8xf32> to vector<8xf32>
    %102 = vector.shape_cast %101 : vector<8xf32> to vector<8x1xf32>
    %103 = arith.addf %100, %102 : vector<8x1xf32>
    %c2_75 = arith.constant 2 : index
    %c0_76 = arith.constant 0 : index
    %c0_77 = arith.constant 0 : index
    %104 = vector.load %arg8[%c2_75, %c0_76, %c0_77] : memref<4x8x1xf32, #tpu.memory_space<vmem>>, vector<1x8x1xf32>
    %105 = vector.shape_cast %104 : vector<1x8x1xf32> to vector<8x1xf32>
    %106 = vector.shape_cast %103 : vector<8x1xf32> to vector<1x8x1xf32>
    tpu.vector_store %arg8[%c2_75, %c0_76, %c0_77], %106 {strides = array<i32>} : memref<4x8x1xf32, #tpu.memory_space<vmem>>, vector<1x8x1xf32>,
    %c2_78 = arith.constant 2 : index
    %c0_79 = arith.constant 0 : index
    %c0_80 = arith.constant 0 : index
    %107 = vector.load %arg9[%c2_78, %c0_79, %c0_80] : memref<4x8x8xf32, #tpu.memory_space<vmem>>, vector<1x8x8xf32>
    %108 = vector.shape_cast %107 : vector<1x8x8xf32> to vector<8x8xf32>
    %109 = vector.broadcast %94 : vector<8x1xf32> to vector<8x8xf32>
    %110 = arith.mulf %109, %108 : vector<8x8xf32>
    %111 = arith.truncf %97 : vector<8x8xf32> to vector<8x8xbf16>
    %cst_81 = arith.constant dense<0.000000e+00> : vector<8x8xf32>
    %112 = tpu.matmul %111, %86, %cst_81 {dimension_numbers = #tpu.dot_dimension_numbers<[1], [0], [0], [1], [0, 0, 1, 1], [], []>} : vector<8x8xbf16>, vector<8x8xbf16>, vector<8x8xf32> -> vector<8x8xf32>
    %113 = arith.addf %110, %112 : vector<8x8xf32>
    %c2_82 = arith.constant 2 : index
    %c0_83 = arith.constant 0 : index
    %c0_84 = arith.constant 0 : index
    %114 = vector.load %arg9[%c2_82, %c0_83, %c0_84] : memref<4x8x8xf32, #tpu.memory_space<vmem>>, vector<1x8x8xf32>
    %115 = vector.shape_cast %114 : vector<1x8x8xf32> to vector<8x8xf32>
    %116 = vector.shape_cast %113 : vector<8x8xf32> to vector<1x8x8xf32>
    tpu.vector_store %arg9[%c2_82, %c0_83, %c0_84], %116 {strides = array<i32>} : memref<4x8x8xf32, #tpu.memory_space<vmem>>, vector<1x8x8xf32>,
    %c2_85 = arith.constant 2 : index
    %c0_86 = arith.constant 0 : index
    %c0_87 = arith.constant 0 : index
    %117 = vector.load %arg7[%c2_85, %c0_86, %c0_87] : memref<4x8x1xf32, #tpu.memory_space<vmem>>, vector<1x8x1xf32>
    %118 = vector.shape_cast %117 : vector<1x8x1xf32> to vector<8x1xf32>
    %119 = vector.shape_cast %92 : vector<8x1xf32> to vector<1x8x1xf32>
    tpu.vector_store %arg7[%c2_85, %c0_86, %c0_87], %119 {strides = array<i32>} : memref<4x8x1xf32, #tpu.memory_space<vmem>>, vector<1x8x1xf32>,
    %c0_88 = arith.constant 0 : index
    %c0_89 = arith.constant 0 : index
    %c24 = arith.constant 24 : index
    %120 = vector.load %arg3[%c0_88, %c0_89, %c24] : memref<1x8x32xbf16, #tpu.memory_space<vmem>>, vector<1x8x8xbf16>
    %121 = vector.shape_cast %120 : vector<1x8x8xbf16> to vector<8x8xbf16>
    %c0_90 = arith.constant 0 : index
    %c0_91 = arith.constant 0 : index
    %c24_92 = arith.constant 24 : index
    %122 = vector.load %arg4[%c0_90, %c0_91, %c24_92] : memref<1x8x32xbf16, #tpu.memory_space<vmem>>, vector<1x8x8xbf16>
    %123 = vector.shape_cast %122 : vector<1x8x8xbf16> to vector<8x8xbf16>
    %c0_93 = arith.constant 0 : index
    %c0_94 = arith.constant 0 : index
    %c24_95 = arith.constant 24 : index
    %124 = vector.load %arg5[%c0_93, %c0_94, %c24_95] : memref<1x8x32xbf16, #tpu.memory_space<vmem>>, vector<1x8x8xbf16>
    %125 = vector.shape_cast %124 : vector<1x8x8xbf16> to vector<8x8xbf16>
    %cst_96 = arith.constant dense<0.000000e+00> : vector<8x8xf32>
    %126 = tpu.matmul %121, %123, %cst_96 {dimension_numbers = #tpu.dot_dimension_numbers<[1], [1], [0], [0], [0, 0, 1, 0], [], []>} : vector<8x8xbf16>, vector<8x8xbf16>, vector<8x8xf32> -> vector<8x8xf32>
    %c3 = arith.constant 3 : index
    %c0_97 = arith.constant 0 : index
    %c0_98 = arith.constant 0 : index
    %127 = vector.load %arg7[%c3, %c0_97, %c0_98] : memref<4x8x1xf32, #tpu.memory_space<vmem>>, vector<1x8x1xf32>
    %128 = vector.shape_cast %127 : vector<1x8x1xf32> to vector<8x1xf32>
    %cst_99 = arith.constant dense<0xFF800000> : vector<8xf32>
    %129 = vector.multi_reduction <maximumf>, %126, %cst_99 [1] : vector<8x8xf32> to vector<8xf32>
    %130 = vector.shape_cast %129 : vector<8xf32> to vector<8x1xf32>
    %131 = arith.maximumf %128, %130 : vector<8x1xf32>
    %132 = arith.subf %128, %131 : vector<8x1xf32>
    %133 = math.exp %132 : vector<8x1xf32>
    %134 = vector.broadcast %131 : vector<8x1xf32> to vector<8x8xf32>
    %135 = arith.subf %126, %134 : vector<8x8xf32>
    %136 = math.exp %135 : vector<8x8xf32>
    %c3_100 = arith.constant 3 : index
    %c0_101 = arith.constant 0 : index
    %c0_102 = arith.constant 0 : index
    %137 = vector.load %arg8[%c3_100, %c0_101, %c0_102] : memref<4x8x1xf32, #tpu.memory_space<vmem>>, vector<1x8x1xf32>
    %138 = vector.shape_cast %137 : vector<1x8x1xf32> to vector<8x1xf32>
    %139 = arith.mulf %133, %138 : vector<8x1xf32>
    %cst_103 = arith.constant dense<0.000000e+00> : vector<8xf32>
    %140 = vector.multi_reduction <add>, %136, %cst_103 [1] : vector<8x8xf32> to vector<8xf32>
    %141 = vector.shape_cast %140 : vector<8xf32> to vector<8x1xf32>
    %142 = arith.addf %139, %141 : vector<8x1xf32>
    %c3_104 = arith.constant 3 : index
    %c0_105 = arith.constant 0 : index
    %c0_106 = arith.constant 0 : index
    %143 = vector.load %arg8[%c3_104, %c0_105, %c0_106] : memref<4x8x1xf32, #tpu.memory_space<vmem>>, vector<1x8x1xf32>
    %144 = vector.shape_cast %143 : vector<1x8x1xf32> to vector<8x1xf32>
    %145 = vector.shape_cast %142 : vector<8x1xf32> to vector<1x8x1xf32>
    tpu.vector_store %arg8[%c3_104, %c0_105, %c0_106], %145 {strides = array<i32>} : memref<4x8x1xf32, #tpu.memory_space<vmem>>, vector<1x8x1xf32>,
    %c3_107 = arith.constant 3 : index
    %c0_108 = arith.constant 0 : index
    %c0_109 = arith.constant 0 : index
    %146 = vector.load %arg9[%c3_107, %c0_108, %c0_109] : memref<4x8x8xf32, #tpu.memory_space<vmem>>, vector<1x8x8xf32>
    %147 = vector.shape_cast %146 : vector<1x8x8xf32> to vector<8x8xf32>
    %148 = vector.broadcast %133 : vector<8x1xf32> to vector<8x8xf32>
    %149 = arith.mulf %148, %147 : vector<8x8xf32>
    %150 = arith.truncf %136 : vector<8x8xf32> to vector<8x8xbf16>
    %cst_110 = arith.constant dense<0.000000e+00> : vector<8x8xf32>
    %151 = tpu.matmul %150, %125, %cst_110 {dimension_numbers = #tpu.dot_dimension_numbers<[1], [0], [0], [1], [0, 0, 1, 1], [], []>} : vector<8x8xbf16>, vector<8x8xbf16>, vector<8x8xf32> -> vector<8x8xf32>
    %152 = arith.addf %149, %151 : vector<8x8xf32>
    %c3_111 = arith.constant 3 : index
    %c0_112 = arith.constant 0 : index
    %c0_113 = arith.constant 0 : index
    %153 = vector.load %arg9[%c3_111, %c0_112, %c0_113] : memref<4x8x8xf32, #tpu.memory_space<vmem>>, vector<1x8x8xf32>
    %154 = vector.shape_cast %153 : vector<1x8x8xf32> to vector<8x8xf32>
    %155 = vector.shape_cast %152 : vector<8x8xf32> to vector<1x8x8xf32>
    tpu.vector_store %arg9[%c3_111, %c0_112, %c0_113], %155 {strides = array<i32>} : memref<4x8x8xf32, #tpu.memory_space<vmem>>, vector<1x8x8xf32>,
    %c3_114 = arith.constant 3 : index
    %c0_115 = arith.constant 0 : index
    %c0_116 = arith.constant 0 : index
    %156 = vector.load %arg7[%c3_114, %c0_115, %c0_116] : memref<4x8x1xf32, #tpu.memory_space<vmem>>, vector<1x8x1xf32>
    %157 = vector.shape_cast %156 : vector<1x8x1xf32> to vector<8x1xf32>
    %158 = vector.shape_cast %131 : vector<8x1xf32> to vector<1x8x1xf32>
    tpu.vector_store %arg7[%c3_114, %c0_115, %c0_116], %158 {strides = array<i32>} : memref<4x8x1xf32, #tpu.memory_space<vmem>>, vector<1x8x1xf32>,
    %c0_i32_117 = arith.constant 0 : i32
    %159 = arith.cmpi eq, %arg2, %c0_i32_117 : i32
    %160 = arith.extui %159 : i1 to i32
    %c0_i32_118 = arith.constant 0 : i32
    %161 = arith.cmpi ne, %160, %c0_i32_118 : i32
    scf.if %161 {
      %c0_119 = arith.constant 0 : index
      %c0_120 = arith.constant 0 : index
      %c0_121 = arith.constant 0 : index
      %162 = vector.load %arg9[%c0_119, %c0_120, %c0_121] : memref<4x8x8xf32, #tpu.memory_space<vmem>>, vector<1x8x8xf32>
      %163 = vector.shape_cast %162 : vector<1x8x8xf32> to vector<8x8xf32>
      %c0_122 = arith.constant 0 : index
      %c0_123 = arith.constant 0 : index
      %c0_124 = arith.constant 0 : index
      %164 = vector.load %arg8[%c0_122, %c0_123, %c0_124] : memref<4x8x1xf32, #tpu.memory_space<vmem>>, vector<1x8x1xf32>
      %165 = vector.shape_cast %164 : vector<1x8x1xf32> to vector<8x1xf32>
      %166 = vector.broadcast %165 : vector<8x1xf32> to vector<8x8xf32>
      %167 = arith.divf %163, %166 : vector<8x8xf32>
      %168 = arith.truncf %167 : vector<8x8xf32> to vector<8x8xbf16>
      %c0_125 = arith.constant 0 : index
      %c0_126 = arith.constant 0 : index
      %c0_127 = arith.constant 0 : index
      %169 = vector.load %arg6[%c0_125, %c0_126, %c0_127] : memref<1x8x32xbf16, #tpu.memory_space<vmem>>, vector<1x8x8xbf16>
      %170 = vector.shape_cast %169 : vector<1x8x8xbf16> to vector<8x8xbf16>
      %171 = vector.shape_cast %168 : vector<8x8xbf16> to vector<1x8x8xbf16>
      tpu.vector_store %arg6[%c0_125, %c0_126, %c0_127], %171 {strides = array<i32>} : memref<1x8x32xbf16, #tpu.memory_space<vmem>>, vector<1x8x8xbf16>,
      %c1_128 = arith.constant 1 : index
      %c0_129 = arith.constant 0 : index
      %c0_130 = arith.constant 0 : index
      %172 = vector.load %arg9[%c1_128, %c0_129, %c0_130] : memref<4x8x8xf32, #tpu.memory_space<vmem>>, vector<1x8x8xf32>
      %173 = vector.shape_cast %172 : vector<1x8x8xf32> to vector<8x8xf32>
      %c1_131 = arith.constant 1 : index
      %c0_132 = arith.constant 0 : index
      %c0_133 = arith.constant 0 : index
      %174 = vector.load %arg8[%c1_131, %c0_132, %c0_133] : memref<4x8x1xf32, #tpu.memory_space<vmem>>, vector<1x8x1xf32>
      %175 = vector.shape_cast %174 : vector<1x8x1xf32> to vector<8x1xf32>
      %176 = vector.broadcast %175 : vector<8x1xf32> to vector<8x8xf32>
      %177 = arith.divf %173, %176 : vector<8x8xf32>
      %178 = arith.truncf %177 : vector<8x8xf32> to vector<8x8xbf16>
      %c0_134 = arith.constant 0 : index
      %c0_135 = arith.constant 0 : index
      %c8_136 = arith.constant 8 : index
      %179 = vector.load %arg6[%c0_134, %c0_135, %c8_136] : memref<1x8x32xbf16, #tpu.memory_space<vmem>>, vector<1x8x8xbf16>
      %180 = vector.shape_cast %179 : vector<1x8x8xbf16> to vector<8x8xbf16>
      %181 = vector.shape_cast %178 : vector<8x8xbf16> to vector<1x8x8xbf16>
      tpu.vector_store %arg6[%c0_134, %c0_135, %c8_136], %181 {strides = array<i32>} : memref<1x8x32xbf16, #tpu.memory_space<vmem>>, vector<1x8x8xbf16>,
      %c2_137 = arith.constant 2 : index
      %c0_138 = arith.constant 0 : index
      %c0_139 = arith.constant 0 : index
      %182 = vector.load %arg9[%c2_137, %c0_138, %c0_139] : memref<4x8x8xf32, #tpu.memory_space<vmem>>, vector<1x8x8xf32>
      %183 = vector.shape_cast %182 : vector<1x8x8xf32> to vector<8x8xf32>
      %c2_140 = arith.constant 2 : index
      %c0_141 = arith.constant 0 : index
      %c0_142 = arith.constant 0 : index
      %184 = vector.load %arg8[%c2_140, %c0_141, %c0_142] : memref<4x8x1xf32, #tpu.memory_space<vmem>>, vector<1x8x1xf32>
      %185 = vector.shape_cast %184 : vector<1x8x1xf32> to vector<8x1xf32>
      %186 = vector.broadcast %185 : vector<8x1xf32> to vector<8x8xf32>
      %187 = arith.divf %183, %186 : vector<8x8xf32>
      %188 = arith.truncf %187 : vector<8x8xf32> to vector<8x8xbf16>
      %c0_143 = arith.constant 0 : index
      %c0_144 = arith.constant 0 : index
      %c16_145 = arith.constant 16 : index
      %189 = vector.load %arg6[%c0_143, %c0_144, %c16_145] : memref<1x8x32xbf16, #tpu.memory_space<vmem>>, vector<1x8x8xbf16>
      %190 = vector.shape_cast %189 : vector<1x8x8xbf16> to vector<8x8xbf16>
      %191 = vector.shape_cast %188 : vector<8x8xbf16> to vector<1x8x8xbf16>
      tpu.vector_store %arg6[%c0_143, %c0_144, %c16_145], %191 {strides = array<i32>} : memref<1x8x32xbf16, #tpu.memory_space<vmem>>, vector<1x8x8xbf16>,
      %c3_146 = arith.constant 3 : index
      %c0_147 = arith.constant 0 : index
      %c0_148 = arith.constant 0 : index
      %192 = vector.load %arg9[%c3_146, %c0_147, %c0_148] : memref<4x8x8xf32, #tpu.memory_space<vmem>>, vector<1x8x8xf32>
      %193 = vector.shape_cast %192 : vector<1x8x8xf32> to vector<8x8xf32>
      %c3_149 = arith.constant 3 : index
      %c0_150 = arith.constant 0 : index
      %c0_151 = arith.constant 0 : index
      %194 = vector.load %arg8[%c3_149, %c0_150, %c0_151] : memref<4x8x1xf32, #tpu.memory_space<vmem>>, vector<1x8x1xf32>
      %195 = vector.shape_cast %194 : vector<1x8x1xf32> to vector<8x1xf32>
      %196 = vector.broadcast %195 : vector<8x1xf32> to vector<8x8xf32>
      %197 = arith.divf %193, %196 : vector<8x8xf32>
      %198 = arith.truncf %197 : vector<8x8xf32> to vector<8x8xbf16>
      %c0_152 = arith.constant 0 : index
      %c0_153 = arith.constant 0 : index
      %c24_154 = arith.constant 24 : index
      %199 = vector.load %arg6[%c0_152, %c0_153, %c24_154] : memref<1x8x32xbf16, #tpu.memory_space<vmem>>, vector<1x8x8xbf16>
      %200 = vector.shape_cast %199 : vector<1x8x8xbf16> to vector<8x8xbf16>
      %201 = vector.shape_cast %198 : vector<8x8xbf16> to vector<1x8x8xbf16>
      tpu.vector_store %arg6[%c0_152, %c0_153, %c24_154], %201 {strides = array<i32>} : memref<1x8x32xbf16, #tpu.memory_space<vmem>>, vector<1x8x8xbf16>,
    } else {
    }
    return
  }
  func.func @transform_0(%arg0: i32, %arg1: i32, %arg2: i32) -> (i32, i32, i32) {
    %c0_i32 = arith.constant 0 : i32
    %c0_i32_0 = arith.constant 0 : i32
    return %arg0, %arg1, %c0_i32 : i32, i32, i32
  }
  func.func @transform_1(%arg0: i32, %arg1: i32, %arg2: i32) -> (i32, i32, i32) {
    %c0_i32 = arith.constant 0 : i32
    %c0_i32_0 = arith.constant 0 : i32
    return %arg0, %arg2, %c0_i32 : i32, i32, i32
  }
  func.func @transform_2(%arg0: i32, %arg1: i32, %arg2: i32) -> (i32, i32, i32) {
    %c0_i32 = arith.constant 0 : i32
    %c0_i32_0 = arith.constant 0 : i32
    return %arg0, %arg2, %c0_i32 : i32, i32, i32
  }
  func.func @transform_3(%arg0: i32, %arg1: i32, %arg2: i32) -> (i32, i32, i32) {
    %c0_i32 = arith.constant 0 : i32
    %c0_i32_0 = arith.constant 0 : i32
    return %arg0, %arg1, %c0_i32 : i32, i32, i32
  }
}

module attributes {stable_mosaic.version = 11 : i64} {
  func.func @_linear_kernel(%arg0: i32, %arg1: i32, %arg2: i32, %arg3: i32, %arg4: memref<1x8x32xbf16, #tpu.memory_space<vmem>>, %arg5: memref<32x32xbf16, #tpu.memory_space<vmem>>, %arg6: memref<1x32xf32, #tpu.memory_space<vmem>>, %arg7: memref<1x8x32xf32, #tpu.memory_space<vmem>>, %arg8: memref<1x8x32xf32, #tpu.memory_space<vmem>>, %arg9: memref<8x32xf32, #tpu.memory_space<vmem>>) attributes {dimension_semantics = [#tpu.dimension_semantics<parallel>, #tpu.dimension_semantics<parallel>, #tpu.dimension_semantics<parallel>, #tpu.dimension_semantics<arbitrary>], iteration_bounds = array<i64: 2, 1, 1, 1>, scalar_prefetch = 0 : i64, scratch_operands = 1 : i64, tpu.core_type = #tpu.core_type<tc>, window_params = [{transform_indices = @transform_0, window_bounds = array<i64: 1, 8, 32>}, {transform_indices = @transform_1, window_bounds = array<i64: 32, 32>}, {transform_indices = @transform_2, window_bounds = array<i64: 1, 32>}, {transform_indices = @transform_3, window_bounds = array<i64: 1, 8, 32>}, {transform_indices = @transform_4, window_bounds = array<i64: 1, 8, 32>}]} {
    %c0_i32 = arith.constant 0 : i32
    %0 = arith.cmpi eq, %arg3, %c0_i32 : i32
    %1 = arith.extui %0 : i1 to i32
    %c0_i32_0 = arith.constant 0 : i32
    %2 = arith.cmpi ne, %1, %c0_i32_0 : i32
    scf.if %2 {
      %cst_11 = arith.constant 0.000000e+00 : f32
      %13 = vector.broadcast %cst_11 : f32 to vector<8x32xf32>
      %c0_12 = arith.constant 0 : index
      %c0_13 = arith.constant 0 : index
      %14 = vector.load %arg9[%c0_12, %c0_13] : memref<8x32xf32, #tpu.memory_space<vmem>>, vector<8x32xf32>
      tpu.vector_store %arg9[%c0_12, %c0_13], %13 {strides = array<i32>} : memref<8x32xf32, #tpu.memory_space<vmem>>, vector<8x32xf32>,
    } else {
    }
    %c0 = arith.constant 0 : index
    %c0_1 = arith.constant 0 : index
    %3 = vector.load %arg9[%c0, %c0_1] : memref<8x32xf32, #tpu.memory_space<vmem>>, vector<8x32xf32>
    %c0_2 = arith.constant 0 : index
    %c0_3 = arith.constant 0 : index
    %c0_4 = arith.constant 0 : index
    %4 = vector.load %arg4[%c0_2, %c0_3, %c0_4] : memref<1x8x32xbf16, #tpu.memory_space<vmem>>, vector<1x8x32xbf16>
    %5 = vector.shape_cast %4 : vector<1x8x32xbf16> to vector<8x32xbf16>
    %c0_5 = arith.constant 0 : index
    %c0_6 = arith.constant 0 : index
    %6 = vector.load %arg5[%c0_5, %c0_6] : memref<32x32xbf16, #tpu.memory_space<vmem>>, vector<32x32xbf16>
    %cst = arith.constant dense<0.000000e+00> : vector<8x32xf32>
    %7 = tpu.matmul %5, %6, %cst {dimension_numbers = #tpu.dot_dimension_numbers<[1], [0], [0], [1], [0, 0, 1, 1], [], []>} : vector<8x32xbf16>, vector<32x32xbf16>, vector<8x32xf32> -> vector<8x32xf32>
    %8 = arith.addf %3, %7 : vector<8x32xf32>
    %c0_7 = arith.constant 0 : index
    %c0_8 = arith.constant 0 : index
    %9 = vector.load %arg9[%c0_7, %c0_8] : memref<8x32xf32, #tpu.memory_space<vmem>>, vector<8x32xf32>
    tpu.vector_store %arg9[%c0_7, %c0_8], %8 {strides = array<i32>} : memref<8x32xf32, #tpu.memory_space<vmem>>, vector<8x32xf32>,
    %c0_i32_9 = arith.constant 0 : i32
    %10 = arith.cmpi eq, %arg3, %c0_i32_9 : i32
    %11 = arith.extui %10 : i1 to i32
    %c0_i32_10 = arith.constant 0 : i32
    %12 = arith.cmpi ne, %11, %c0_i32_10 : i32
    scf.if %12 {
      %c0_11 = arith.constant 0 : index
      %c0_12 = arith.constant 0 : index
      %13 = vector.load %arg9[%c0_11, %c0_12] : memref<8x32xf32, #tpu.memory_space<vmem>>, vector<8x32xf32>
      %c0_13 = arith.constant 0 : index
      %c0_14 = arith.constant 0 : index
      %14 = vector.load %arg6[%c0_13, %c0_14] : memref<1x32xf32, #tpu.memory_space<vmem>>, vector<1x32xf32>
      %15 = vector.broadcast %14 : vector<1x32xf32> to vector<8x32xf32>
      %16 = arith.addf %13, %15 : vector<8x32xf32>
      %c0_15 = arith.constant 0 : index
      %c0_16 = arith.constant 0 : index
      %c0_17 = arith.constant 0 : index
      %17 = vector.load %arg7[%c0_15, %c0_16, %c0_17] : memref<1x8x32xf32, #tpu.memory_space<vmem>>, vector<1x8x32xf32>
      %18 = vector.shape_cast %17 : vector<1x8x32xf32> to vector<8x32xf32>
      %19 = arith.addf %16, %18 : vector<8x32xf32>
      %c0_18 = arith.constant 0 : index
      %c0_19 = arith.constant 0 : index
      %c0_20 = arith.constant 0 : index
      %20 = vector.load %arg8[%c0_18, %c0_19, %c0_20] : memref<1x8x32xf32, #tpu.memory_space<vmem>>, vector<1x8x32xf32>
      %21 = vector.shape_cast %20 : vector<1x8x32xf32> to vector<8x32xf32>
      %22 = vector.shape_cast %19 : vector<8x32xf32> to vector<1x8x32xf32>
      tpu.vector_store %arg8[%c0_18, %c0_19, %c0_20], %22 {strides = array<i32>} : memref<1x8x32xf32, #tpu.memory_space<vmem>>, vector<1x8x32xf32>,
    } else {
    }
    return
  }
  func.func @transform_0(%arg0: i32, %arg1: i32, %arg2: i32, %arg3: i32) -> (i32, i32, i32) {
    %c0_i32 = arith.constant 0 : i32
    return %arg0, %arg1, %arg3 : i32, i32, i32
  }
  func.func @transform_1(%arg0: i32, %arg1: i32, %arg2: i32, %arg3: i32) -> (i32, i32) {
    %c0_i32 = arith.constant 0 : i32
    return %arg3, %arg2 : i32, i32
  }
  func.func @transform_2(%arg0: i32, %arg1: i32, %arg2: i32, %arg3: i32) -> (i32, i32) {
    %c0_i32 = arith.constant 0 : i32
    %c0_i32_0 = arith.constant 0 : i32
    return %c0_i32, %arg2 : i32, i32
  }
  func.func @transform_3(%arg0: i32, %arg1: i32, %arg2: i32, %arg3: i32) -> (i32, i32, i32) {
    %c0_i32 = arith.constant 0 : i32
    return %arg0, %arg1, %arg2 : i32, i32, i32
  }
  func.func @transform_4(%arg0: i32, %arg1: i32, %arg2: i32, %arg3: i32) -> (i32, i32, i32) {
    %c0_i32 = arith.constant 0 : i32
    return %arg0, %arg1, %arg2 : i32, i32, i32
  }
}

module attributes {stable_mosaic.version = 11 : i64} {
  func.func @_ln_mod_linear_kernel(%arg0: i32, %arg1: i32, %arg2: i32, %arg3: memref<1x8x32xf32, #tpu.memory_space<vmem>>, %arg4: memref<1x1x32xf32, #tpu.memory_space<vmem>>, %arg5: memref<1x1x32xf32, #tpu.memory_space<vmem>>, %arg6: memref<32x256xbf16, #tpu.memory_space<vmem>>, %arg7: memref<1x256xf32, #tpu.memory_space<vmem>>, %arg8: memref<1x8x256xbf16, #tpu.memory_space<vmem>>, %arg9: memref<8x32xbf16, #tpu.memory_space<vmem>>) attributes {dimension_semantics = [#tpu.dimension_semantics<parallel>, #tpu.dimension_semantics<parallel>, #tpu.dimension_semantics<arbitrary>], iteration_bounds = array<i64: 2, 1, 1>, scalar_prefetch = 0 : i64, scratch_operands = 1 : i64, tpu.core_type = #tpu.core_type<tc>, window_params = [{transform_indices = @transform_0, window_bounds = array<i64: 1, 8, 32>}, {transform_indices = @transform_1, window_bounds = array<i64: 1, 1, 32>}, {transform_indices = @transform_2, window_bounds = array<i64: 1, 1, 32>}, {transform_indices = @transform_3, window_bounds = array<i64: 32, 256>}, {transform_indices = @transform_4, window_bounds = array<i64: 1, 256>}, {transform_indices = @transform_5, window_bounds = array<i64: 1, 8, 256>}]} {
    %c0_i32 = arith.constant 0 : i32
    %0 = arith.cmpi eq, %arg2, %c0_i32 : i32
    %1 = arith.extui %0 : i1 to i32
    %c0_i32_0 = arith.constant 0 : i32
    %2 = arith.cmpi ne, %1, %c0_i32_0 : i32
    scf.if %2 {
      %c0_9 = arith.constant 0 : index
      %c0_10 = arith.constant 0 : index
      %c0_11 = arith.constant 0 : index
      %13 = vector.load %arg3[%c0_9, %c0_10, %c0_11] : memref<1x8x32xf32, #tpu.memory_space<vmem>>, vector<1x8x32xf32>
      %14 = vector.shape_cast %13 : vector<1x8x32xf32> to vector<8x32xf32>
      %cst_12 = arith.constant dense<0.000000e+00> : vector<8xf32>
      %15 = vector.multi_reduction <add>, %14, %cst_12 [1] : vector<8x32xf32> to vector<8xf32>
      %16 = vector.shape_cast %15 : vector<8xf32> to vector<8x1xf32>
      %cst_13 = arith.constant 3.200000e+01 : f32
      %17 = vector.broadcast %cst_13 : f32 to vector<8x1xf32>
      %18 = arith.divf %16, %17 : vector<8x1xf32>
      %19 = vector.broadcast %18 : vector<8x1xf32> to vector<8x32xf32>
      %20 = arith.subf %14, %19 : vector<8x32xf32>
      %21 = arith.mulf %20, %20 : vector<8x32xf32>
      %cst_14 = arith.constant dense<0.000000e+00> : vector<8xf32>
      %22 = vector.multi_reduction <add>, %21, %cst_14 [1] : vector<8x32xf32> to vector<8xf32>
      %23 = vector.shape_cast %22 : vector<8xf32> to vector<8x1xf32>
      %cst_15 = arith.constant 3.200000e+01 : f32
      %24 = vector.broadcast %cst_15 : f32 to vector<8x1xf32>
      %25 = arith.divf %23, %24 : vector<8x1xf32>
      %cst_16 = arith.constant 9.99999997E-7 : f32
      %26 = vector.broadcast %cst_16 : f32 to vector<8x1xf32>
      %27 = arith.addf %25, %26 : vector<8x1xf32>
      %28 = math.rsqrt %27 : vector<8x1xf32>
      %29 = vector.broadcast %28 : vector<8x1xf32> to vector<8x32xf32>
      %30 = arith.mulf %20, %29 : vector<8x32xf32>
      %c0_17 = arith.constant 0 : index
      %c0_18 = arith.constant 0 : index
      %c0_19 = arith.constant 0 : index
      %31 = vector.load %arg5[%c0_17, %c0_18, %c0_19] : memref<1x1x32xf32, #tpu.memory_space<vmem>>, vector<1x1x32xf32>
      %32 = vector.shape_cast %31 : vector<1x1x32xf32> to vector<1x32xf32>
      %cst_20 = arith.constant 1.000000e+00 : f32
      %33 = vector.broadcast %cst_20 : f32 to vector<1x32xf32>
      %34 = arith.addf %33, %32 : vector<1x32xf32>
      %35 = vector.broadcast %34 : vector<1x32xf32> to vector<8x32xf32>
      %36 = arith.mulf %30, %35 : vector<8x32xf32>
      %c0_21 = arith.constant 0 : index
      %c0_22 = arith.constant 0 : index
      %c0_23 = arith.constant 0 : index
      %37 = vector.load %arg4[%c0_21, %c0_22, %c0_23] : memref<1x1x32xf32, #tpu.memory_space<vmem>>, vector<1x1x32xf32>
      %38 = vector.shape_cast %37 : vector<1x1x32xf32> to vector<1x32xf32>
      %39 = vector.broadcast %38 : vector<1x32xf32> to vector<8x32xf32>
      %40 = arith.addf %36, %39 : vector<8x32xf32>
      %41 = arith.truncf %40 : vector<8x32xf32> to vector<8x32xbf16>
      %c0_24 = arith.constant 0 : index
      %c0_25 = arith.constant 0 : index
      %42 = vector.load %arg9[%c0_24, %c0_25] : memref<8x32xbf16, #tpu.memory_space<vmem>>, vector<8x32xbf16>
      tpu.vector_store %arg9[%c0_24, %c0_25], %41 {strides = array<i32>} : memref<8x32xbf16, #tpu.memory_space<vmem>>, vector<8x32xbf16>,
    } else {
    }
    %c0 = arith.constant 0 : index
    %c0_1 = arith.constant 0 : index
    %3 = vector.load %arg9[%c0, %c0_1] : memref<8x32xbf16, #tpu.memory_space<vmem>>, vector<8x32xbf16>
    %c0_2 = arith.constant 0 : index
    %c0_3 = arith.constant 0 : index
    %4 = vector.load %arg6[%c0_2, %c0_3] : memref<32x256xbf16, #tpu.memory_space<vmem>>, vector<32x256xbf16>
    %cst = arith.constant dense<0.000000e+00> : vector<8x256xf32>
    %5 = tpu.matmul %3, %4, %cst {dimension_numbers = #tpu.dot_dimension_numbers<[1], [0], [0], [1], [0, 0, 1, 1], [], []>} : vector<8x32xbf16>, vector<32x256xbf16>, vector<8x256xf32> -> vector<8x256xf32>
    %c0_4 = arith.constant 0 : index
    %c0_5 = arith.constant 0 : index
    %6 = vector.load %arg7[%c0_4, %c0_5] : memref<1x256xf32, #tpu.memory_space<vmem>>, vector<1x256xf32>
    %7 = vector.broadcast %6 : vector<1x256xf32> to vector<8x256xf32>
    %8 = arith.addf %5, %7 : vector<8x256xf32>
    %9 = arith.truncf %8 : vector<8x256xf32> to vector<8x256xbf16>
    %c0_6 = arith.constant 0 : index
    %c0_7 = arith.constant 0 : index
    %c0_8 = arith.constant 0 : index
    %10 = vector.load %arg8[%c0_6, %c0_7, %c0_8] : memref<1x8x256xbf16, #tpu.memory_space<vmem>>, vector<1x8x256xbf16>
    %11 = vector.shape_cast %10 : vector<1x8x256xbf16> to vector<8x256xbf16>
    %12 = vector.shape_cast %9 : vector<8x256xbf16> to vector<1x8x256xbf16>
    tpu.vector_store %arg8[%c0_6, %c0_7, %c0_8], %12 {strides = array<i32>} : memref<1x8x256xbf16, #tpu.memory_space<vmem>>, vector<1x8x256xbf16>,
    return
  }
  func.func @transform_0(%arg0: i32, %arg1: i32, %arg2: i32) -> (i32, i32, i32) {
    %c0_i32 = arith.constant 0 : i32
    %c0_i32_0 = arith.constant 0 : i32
    return %arg0, %arg1, %c0_i32 : i32, i32, i32
  }
  func.func @transform_1(%arg0: i32, %arg1: i32, %arg2: i32) -> (i32, i32, i32) {
    %c0_i32 = arith.constant 0 : i32
    %c0_i32_0 = arith.constant 0 : i32
    %c0_i32_1 = arith.constant 0 : i32
    return %arg0, %c0_i32, %c0_i32_0 : i32, i32, i32
  }
  func.func @transform_2(%arg0: i32, %arg1: i32, %arg2: i32) -> (i32, i32, i32) {
    %c0_i32 = arith.constant 0 : i32
    %c0_i32_0 = arith.constant 0 : i32
    %c0_i32_1 = arith.constant 0 : i32
    return %arg0, %c0_i32, %c0_i32_0 : i32, i32, i32
  }
  func.func @transform_3(%arg0: i32, %arg1: i32, %arg2: i32) -> (i32, i32) {
    %c0_i32 = arith.constant 0 : i32
    %c0_i32_0 = arith.constant 0 : i32
    return %c0_i32, %arg2 : i32, i32
  }
  func.func @transform_4(%arg0: i32, %arg1: i32, %arg2: i32) -> (i32, i32) {
    %c0_i32 = arith.constant 0 : i32
    %c0_i32_0 = arith.constant 0 : i32
    return %c0_i32, %arg2 : i32, i32
  }
  func.func @transform_5(%arg0: i32, %arg1: i32, %arg2: i32) -> (i32, i32, i32) {
    %c0_i32 = arith.constant 0 : i32
    return %arg0, %arg1, %arg2 : i32, i32, i32
  }
}

module attributes {stable_mosaic.version = 11 : i64} {
  func.func @_linear_kernel(%arg0: i32, %arg1: i32, %arg2: i32, %arg3: i32, %arg4: memref<1x6x48xf32, #tpu.memory_space<vmem>>, %arg5: memref<48x32xbf16, #tpu.memory_space<vmem>>, %arg6: memref<1x32xf32, #tpu.memory_space<vmem>>, %arg7: memref<1x6x32xbf16, #tpu.memory_space<vmem>>, %arg8: memref<6x32xf32, #tpu.memory_space<vmem>>) attributes {dimension_semantics = [#tpu.dimension_semantics<parallel>, #tpu.dimension_semantics<parallel>, #tpu.dimension_semantics<parallel>, #tpu.dimension_semantics<arbitrary>], iteration_bounds = array<i64: 2, 1, 1, 1>, scalar_prefetch = 0 : i64, scratch_operands = 1 : i64, tpu.core_type = #tpu.core_type<tc>, window_params = [{transform_indices = @transform_0, window_bounds = array<i64: 1, 6, 48>}, {transform_indices = @transform_1, window_bounds = array<i64: 48, 32>}, {transform_indices = @transform_2, window_bounds = array<i64: 1, 32>}, {transform_indices = @transform_3, window_bounds = array<i64: 1, 6, 32>}]} {
    %c0_i32 = arith.constant 0 : i32
    %0 = arith.cmpi eq, %arg3, %c0_i32 : i32
    %1 = arith.extui %0 : i1 to i32
    %c0_i32_0 = arith.constant 0 : i32
    %2 = arith.cmpi ne, %1, %c0_i32_0 : i32
    scf.if %2 {
      %cst_11 = arith.constant 0.000000e+00 : f32
      %14 = vector.broadcast %cst_11 : f32 to vector<6x32xf32>
      %c0_12 = arith.constant 0 : index
      %c0_13 = arith.constant 0 : index
      %15 = vector.load %arg8[%c0_12, %c0_13] : memref<6x32xf32, #tpu.memory_space<vmem>>, vector<6x32xf32>
      tpu.vector_store %arg8[%c0_12, %c0_13], %14 {strides = array<i32>} : memref<6x32xf32, #tpu.memory_space<vmem>>, vector<6x32xf32>,
    } else {
    }
    %c0 = arith.constant 0 : index
    %c0_1 = arith.constant 0 : index
    %3 = vector.load %arg8[%c0, %c0_1] : memref<6x32xf32, #tpu.memory_space<vmem>>, vector<6x32xf32>
    %c0_2 = arith.constant 0 : index
    %c0_3 = arith.constant 0 : index
    %c0_4 = arith.constant 0 : index
    %4 = vector.load %arg4[%c0_2, %c0_3, %c0_4] : memref<1x6x48xf32, #tpu.memory_space<vmem>>, vector<1x6x48xf32>
    %5 = vector.shape_cast %4 : vector<1x6x48xf32> to vector<6x48xf32>
    %6 = arith.truncf %5 : vector<6x48xf32> to vector<6x48xbf16>
    %c0_5 = arith.constant 0 : index
    %c0_6 = arith.constant 0 : index
    %7 = vector.load %arg5[%c0_5, %c0_6] : memref<48x32xbf16, #tpu.memory_space<vmem>>, vector<48x32xbf16>
    %cst = arith.constant dense<0.000000e+00> : vector<6x32xf32>
    %8 = tpu.matmul %6, %7, %cst {dimension_numbers = #tpu.dot_dimension_numbers<[1], [0], [0], [1], [0, 0, 1, 1], [], []>} : vector<6x48xbf16>, vector<48x32xbf16>, vector<6x32xf32> -> vector<6x32xf32>
    %9 = arith.addf %3, %8 : vector<6x32xf32>
    %c0_7 = arith.constant 0 : index
    %c0_8 = arith.constant 0 : index
    %10 = vector.load %arg8[%c0_7, %c0_8] : memref<6x32xf32, #tpu.memory_space<vmem>>, vector<6x32xf32>
    tpu.vector_store %arg8[%c0_7, %c0_8], %9 {strides = array<i32>} : memref<6x32xf32, #tpu.memory_space<vmem>>, vector<6x32xf32>,
    %c0_i32_9 = arith.constant 0 : i32
    %11 = arith.cmpi eq, %arg3, %c0_i32_9 : i32
    %12 = arith.extui %11 : i1 to i32
    %c0_i32_10 = arith.constant 0 : i32
    %13 = arith.cmpi ne, %12, %c0_i32_10 : i32
    scf.if %13 {
      %c0_11 = arith.constant 0 : index
      %c0_12 = arith.constant 0 : index
      %14 = vector.load %arg8[%c0_11, %c0_12] : memref<6x32xf32, #tpu.memory_space<vmem>>, vector<6x32xf32>
      %c0_13 = arith.constant 0 : index
      %c0_14 = arith.constant 0 : index
      %15 = vector.load %arg6[%c0_13, %c0_14] : memref<1x32xf32, #tpu.memory_space<vmem>>, vector<1x32xf32>
      %16 = vector.broadcast %15 : vector<1x32xf32> to vector<6x32xf32>
      %17 = arith.addf %14, %16 : vector<6x32xf32>
      %18 = arith.truncf %17 : vector<6x32xf32> to vector<6x32xbf16>
      %c0_15 = arith.constant 0 : index
      %c0_16 = arith.constant 0 : index
      %c0_17 = arith.constant 0 : index
      %19 = vector.load %arg7[%c0_15, %c0_16, %c0_17] : memref<1x6x32xbf16, #tpu.memory_space<vmem>>, vector<1x6x32xbf16>
      %20 = vector.shape_cast %19 : vector<1x6x32xbf16> to vector<6x32xbf16>
      %21 = vector.shape_cast %18 : vector<6x32xbf16> to vector<1x6x32xbf16>
      tpu.vector_store %arg7[%c0_15, %c0_16, %c0_17], %21 {strides = array<i32>} : memref<1x6x32xbf16, #tpu.memory_space<vmem>>, vector<1x6x32xbf16>,
    } else {
    }
    return
  }
  func.func @transform_0(%arg0: i32, %arg1: i32, %arg2: i32, %arg3: i32) -> (i32, i32, i32) {
    %c0_i32 = arith.constant 0 : i32
    return %arg0, %arg1, %arg3 : i32, i32, i32
  }
  func.func @transform_1(%arg0: i32, %arg1: i32, %arg2: i32, %arg3: i32) -> (i32, i32) {
    %c0_i32 = arith.constant 0 : i32
    return %arg3, %arg2 : i32, i32
  }
  func.func @transform_2(%arg0: i32, %arg1: i32, %arg2: i32, %arg3: i32) -> (i32, i32) {
    %c0_i32 = arith.constant 0 : i32
    %c0_i32_0 = arith.constant 0 : i32
    return %c0_i32, %arg2 : i32, i32
  }
  func.func @transform_3(%arg0: i32, %arg1: i32, %arg2: i32, %arg3: i32) -> (i32, i32, i32) {
    %c0_i32 = arith.constant 0 : i32
    return %arg0, %arg1, %arg2 : i32, i32, i32
  }
}

module attributes {stable_mosaic.version = 11 : i64} {
  func.func @_linear_kernel(%arg0: i32, %arg1: i32, %arg2: i32, %arg3: i32, %arg4: memref<1x6x32xbf16, #tpu.memory_space<vmem>>, %arg5: memref<32x256xbf16, #tpu.memory_space<vmem>>, %arg6: memref<1x256xf32, #tpu.memory_space<vmem>>, %arg7: memref<1x6x256xbf16, #tpu.memory_space<vmem>>, %arg8: memref<6x256xf32, #tpu.memory_space<vmem>>) attributes {dimension_semantics = [#tpu.dimension_semantics<parallel>, #tpu.dimension_semantics<parallel>, #tpu.dimension_semantics<parallel>, #tpu.dimension_semantics<arbitrary>], iteration_bounds = array<i64: 2, 1, 1, 1>, scalar_prefetch = 0 : i64, scratch_operands = 1 : i64, tpu.core_type = #tpu.core_type<tc>, window_params = [{transform_indices = @transform_0, window_bounds = array<i64: 1, 6, 32>}, {transform_indices = @transform_1, window_bounds = array<i64: 32, 256>}, {transform_indices = @transform_2, window_bounds = array<i64: 1, 256>}, {transform_indices = @transform_3, window_bounds = array<i64: 1, 6, 256>}]} {
    %c0_i32 = arith.constant 0 : i32
    %0 = arith.cmpi eq, %arg3, %c0_i32 : i32
    %1 = arith.extui %0 : i1 to i32
    %c0_i32_0 = arith.constant 0 : i32
    %2 = arith.cmpi ne, %1, %c0_i32_0 : i32
    scf.if %2 {
      %cst_11 = arith.constant 0.000000e+00 : f32
      %13 = vector.broadcast %cst_11 : f32 to vector<6x256xf32>
      %c0_12 = arith.constant 0 : index
      %c0_13 = arith.constant 0 : index
      %14 = vector.load %arg8[%c0_12, %c0_13] : memref<6x256xf32, #tpu.memory_space<vmem>>, vector<6x256xf32>
      tpu.vector_store %arg8[%c0_12, %c0_13], %13 {strides = array<i32>} : memref<6x256xf32, #tpu.memory_space<vmem>>, vector<6x256xf32>,
    } else {
    }
    %c0 = arith.constant 0 : index
    %c0_1 = arith.constant 0 : index
    %3 = vector.load %arg8[%c0, %c0_1] : memref<6x256xf32, #tpu.memory_space<vmem>>, vector<6x256xf32>
    %c0_2 = arith.constant 0 : index
    %c0_3 = arith.constant 0 : index
    %c0_4 = arith.constant 0 : index
    %4 = vector.load %arg4[%c0_2, %c0_3, %c0_4] : memref<1x6x32xbf16, #tpu.memory_space<vmem>>, vector<1x6x32xbf16>
    %5 = vector.shape_cast %4 : vector<1x6x32xbf16> to vector<6x32xbf16>
    %c0_5 = arith.constant 0 : index
    %c0_6 = arith.constant 0 : index
    %6 = vector.load %arg5[%c0_5, %c0_6] : memref<32x256xbf16, #tpu.memory_space<vmem>>, vector<32x256xbf16>
    %cst = arith.constant dense<0.000000e+00> : vector<6x256xf32>
    %7 = tpu.matmul %5, %6, %cst {dimension_numbers = #tpu.dot_dimension_numbers<[1], [0], [0], [1], [0, 0, 1, 1], [], []>} : vector<6x32xbf16>, vector<32x256xbf16>, vector<6x256xf32> -> vector<6x256xf32>
    %8 = arith.addf %3, %7 : vector<6x256xf32>
    %c0_7 = arith.constant 0 : index
    %c0_8 = arith.constant 0 : index
    %9 = vector.load %arg8[%c0_7, %c0_8] : memref<6x256xf32, #tpu.memory_space<vmem>>, vector<6x256xf32>
    tpu.vector_store %arg8[%c0_7, %c0_8], %8 {strides = array<i32>} : memref<6x256xf32, #tpu.memory_space<vmem>>, vector<6x256xf32>,
    %c0_i32_9 = arith.constant 0 : i32
    %10 = arith.cmpi eq, %arg3, %c0_i32_9 : i32
    %11 = arith.extui %10 : i1 to i32
    %c0_i32_10 = arith.constant 0 : i32
    %12 = arith.cmpi ne, %11, %c0_i32_10 : i32
    scf.if %12 {
      %c0_11 = arith.constant 0 : index
      %c0_12 = arith.constant 0 : index
      %13 = vector.load %arg8[%c0_11, %c0_12] : memref<6x256xf32, #tpu.memory_space<vmem>>, vector<6x256xf32>
      %c0_13 = arith.constant 0 : index
      %c0_14 = arith.constant 0 : index
      %14 = vector.load %arg6[%c0_13, %c0_14] : memref<1x256xf32, #tpu.memory_space<vmem>>, vector<1x256xf32>
      %15 = vector.broadcast %14 : vector<1x256xf32> to vector<6x256xf32>
      %16 = arith.addf %13, %15 : vector<6x256xf32>
      %17 = arith.truncf %16 : vector<6x256xf32> to vector<6x256xbf16>
      %c0_15 = arith.constant 0 : index
      %c0_16 = arith.constant 0 : index
      %c0_17 = arith.constant 0 : index
      %18 = vector.load %arg7[%c0_15, %c0_16, %c0_17] : memref<1x6x256xbf16, #tpu.memory_space<vmem>>, vector<1x6x256xbf16>
      %19 = vector.shape_cast %18 : vector<1x6x256xbf16> to vector<6x256xbf16>
      %20 = vector.shape_cast %17 : vector<6x256xbf16> to vector<1x6x256xbf16>
      tpu.vector_store %arg7[%c0_15, %c0_16, %c0_17], %20 {strides = array<i32>} : memref<1x6x256xbf16, #tpu.memory_space<vmem>>, vector<1x6x256xbf16>,
    } else {
    }
    return
  }
  func.func @transform_0(%arg0: i32, %arg1: i32, %arg2: i32, %arg3: i32) -> (i32, i32, i32) {
    %c0_i32 = arith.constant 0 : i32
    return %arg0, %arg1, %arg3 : i32, i32, i32
  }
  func.func @transform_1(%arg0: i32, %arg1: i32, %arg2: i32, %arg3: i32) -> (i32, i32) {
    %c0_i32 = arith.constant 0 : i32
    return %arg3, %arg2 : i32, i32
  }
  func.func @transform_2(%arg0: i32, %arg1: i32, %arg2: i32, %arg3: i32) -> (i32, i32) {
    %c0_i32 = arith.constant 0 : i32
    %c0_i32_0 = arith.constant 0 : i32
    return %c0_i32, %arg2 : i32, i32
  }
  func.func @transform_3(%arg0: i32, %arg1: i32, %arg2: i32, %arg3: i32) -> (i32, i32, i32) {
    %c0_i32 = arith.constant 0 : i32
    return %arg0, %arg1, %arg2 : i32, i32, i32
  }
}

module attributes {stable_mosaic.version = 11 : i64} {
  func.func @_flash_attn_kernel(%arg0: i32, %arg1: i32, %arg2: i32, %arg3: memref<1x8x256xbf16, #tpu.memory_space<vmem>>, %arg4: memref<1x6x256xbf16, #tpu.memory_space<vmem>>, %arg5: memref<1x6x256xbf16, #tpu.memory_space<vmem>>, %arg6: memref<1x8x256xbf16, #tpu.memory_space<vmem>>, %arg7: memref<4x8x1xf32, #tpu.memory_space<vmem>>, %arg8: memref<4x8x1xf32, #tpu.memory_space<vmem>>, %arg9: memref<4x8x64xf32, #tpu.memory_space<vmem>>) attributes {dimension_semantics = [#tpu.dimension_semantics<parallel>, #tpu.dimension_semantics<parallel>, #tpu.dimension_semantics<arbitrary>], iteration_bounds = array<i64: 2, 1, 1>, scalar_prefetch = 0 : i64, scratch_operands = 3 : i64, tpu.core_type = #tpu.core_type<tc>, window_params = [{transform_indices = @transform_0, window_bounds = array<i64: 1, 8, 256>}, {transform_indices = @transform_1, window_bounds = array<i64: 1, 6, 256>}, {transform_indices = @transform_2, window_bounds = array<i64: 1, 6, 256>}, {transform_indices = @transform_3, window_bounds = array<i64: 1, 8, 256>}]} {
    %c0_i32 = arith.constant 0 : i32
    %0 = arith.cmpi eq, %arg2, %c0_i32 : i32
    %1 = arith.extui %0 : i1 to i32
    %c0_i32_0 = arith.constant 0 : i32
    %2 = arith.cmpi ne, %1, %c0_i32_0 : i32
    scf.if %2 {
      %cst_119 = arith.constant 0xFF800000 : f32
      %162 = vector.broadcast %cst_119 : f32 to vector<4x8x1xf32>
      %c0_120 = arith.constant 0 : index
      %c0_121 = arith.constant 0 : index
      %c0_122 = arith.constant 0 : index
      %163 = vector.load %arg7[%c0_120, %c0_121, %c0_122] : memref<4x8x1xf32, #tpu.memory_space<vmem>>, vector<4x8x1xf32>
      tpu.vector_store %arg7[%c0_120, %c0_121, %c0_122], %162 {strides = array<i32>} : memref<4x8x1xf32, #tpu.memory_space<vmem>>, vector<4x8x1xf32>,
      %cst_123 = arith.constant 0.000000e+00 : f32
      %164 = vector.broadcast %cst_123 : f32 to vector<4x8x1xf32>
      %c0_124 = arith.constant 0 : index
      %c0_125 = arith.constant 0 : index
      %c0_126 = arith.constant 0 : index
      %165 = vector.load %arg8[%c0_124, %c0_125, %c0_126] : memref<4x8x1xf32, #tpu.memory_space<vmem>>, vector<4x8x1xf32>
      tpu.vector_store %arg8[%c0_124, %c0_125, %c0_126], %164 {strides = array<i32>} : memref<4x8x1xf32, #tpu.memory_space<vmem>>, vector<4x8x1xf32>,
      %cst_127 = arith.constant 0.000000e+00 : f32
      %166 = vector.broadcast %cst_127 : f32 to vector<4x8x64xf32>
      %c0_128 = arith.constant 0 : index
      %c0_129 = arith.constant 0 : index
      %c0_130 = arith.constant 0 : index
      %167 = vector.load %arg9[%c0_128, %c0_129, %c0_130] : memref<4x8x64xf32, #tpu.memory_space<vmem>>, vector<4x8x64xf32>
      tpu.vector_store %arg9[%c0_128, %c0_129, %c0_130], %166 {strides = array<i32>} : memref<4x8x64xf32, #tpu.memory_space<vmem>>, vector<4x8x64xf32>,
    } else {
    }
    %c0 = arith.constant 0 : index
    %c0_1 = arith.constant 0 : index
    %c0_2 = arith.constant 0 : index
    %3 = vector.load %arg3[%c0, %c0_1, %c0_2] : memref<1x8x256xbf16, #tpu.memory_space<vmem>>, vector<1x8x64xbf16>
    %4 = vector.shape_cast %3 : vector<1x8x64xbf16> to vector<8x64xbf16>
    %c0_3 = arith.constant 0 : index
    %c0_4 = arith.constant 0 : index
    %c0_5 = arith.constant 0 : index
    %5 = vector.load %arg4[%c0_3, %c0_4, %c0_5] : memref<1x6x256xbf16, #tpu.memory_space<vmem>>, vector<1x6x64xbf16>
    %6 = vector.shape_cast %5 : vector<1x6x64xbf16> to vector<6x64xbf16>
    %c0_6 = arith.constant 0 : index
    %c0_7 = arith.constant 0 : index
    %c0_8 = arith.constant 0 : index
    %7 = vector.load %arg5[%c0_6, %c0_7, %c0_8] : memref<1x6x256xbf16, #tpu.memory_space<vmem>>, vector<1x6x64xbf16>
    %8 = vector.shape_cast %7 : vector<1x6x64xbf16> to vector<6x64xbf16>
    %cst = arith.constant dense<0.000000e+00> : vector<8x6xf32>
    %9 = tpu.matmul %4, %6, %cst {dimension_numbers = #tpu.dot_dimension_numbers<[1], [1], [0], [0], [0, 0, 1, 0], [], []>} : vector<8x64xbf16>, vector<6x64xbf16>, vector<8x6xf32> -> vector<8x6xf32>
    %c0_9 = arith.constant 0 : index
    %c0_10 = arith.constant 0 : index
    %c0_11 = arith.constant 0 : index
    %10 = vector.load %arg7[%c0_9, %c0_10, %c0_11] : memref<4x8x1xf32, #tpu.memory_space<vmem>>, vector<1x8x1xf32>
    %11 = vector.shape_cast %10 : vector<1x8x1xf32> to vector<8x1xf32>
    %cst_12 = arith.constant dense<0xFF800000> : vector<8xf32>
    %12 = vector.multi_reduction <maximumf>, %9, %cst_12 [1] : vector<8x6xf32> to vector<8xf32>
    %13 = vector.shape_cast %12 : vector<8xf32> to vector<8x1xf32>
    %14 = arith.maximumf %11, %13 : vector<8x1xf32>
    %15 = arith.subf %11, %14 : vector<8x1xf32>
    %16 = math.exp %15 : vector<8x1xf32>
    %17 = vector.broadcast %14 : vector<8x1xf32> to vector<8x6xf32>
    %18 = arith.subf %9, %17 : vector<8x6xf32>
    %19 = math.exp %18 : vector<8x6xf32>
    %c0_13 = arith.constant 0 : index
    %c0_14 = arith.constant 0 : index
    %c0_15 = arith.constant 0 : index
    %20 = vector.load %arg8[%c0_13, %c0_14, %c0_15] : memref<4x8x1xf32, #tpu.memory_space<vmem>>, vector<1x8x1xf32>
    %21 = vector.shape_cast %20 : vector<1x8x1xf32> to vector<8x1xf32>
    %22 = arith.mulf %16, %21 : vector<8x1xf32>
    %cst_16 = arith.constant dense<0.000000e+00> : vector<8xf32>
    %23 = vector.multi_reduction <add>, %19, %cst_16 [1] : vector<8x6xf32> to vector<8xf32>
    %24 = vector.shape_cast %23 : vector<8xf32> to vector<8x1xf32>
    %25 = arith.addf %22, %24 : vector<8x1xf32>
    %c0_17 = arith.constant 0 : index
    %c0_18 = arith.constant 0 : index
    %c0_19 = arith.constant 0 : index
    %26 = vector.load %arg8[%c0_17, %c0_18, %c0_19] : memref<4x8x1xf32, #tpu.memory_space<vmem>>, vector<1x8x1xf32>
    %27 = vector.shape_cast %26 : vector<1x8x1xf32> to vector<8x1xf32>
    %28 = vector.shape_cast %25 : vector<8x1xf32> to vector<1x8x1xf32>
    tpu.vector_store %arg8[%c0_17, %c0_18, %c0_19], %28 {strides = array<i32>} : memref<4x8x1xf32, #tpu.memory_space<vmem>>, vector<1x8x1xf32>,
    %c0_20 = arith.constant 0 : index
    %c0_21 = arith.constant 0 : index
    %c0_22 = arith.constant 0 : index
    %29 = vector.load %arg9[%c0_20, %c0_21, %c0_22] : memref<4x8x64xf32, #tpu.memory_space<vmem>>, vector<1x8x64xf32>
    %30 = vector.shape_cast %29 : vector<1x8x64xf32> to vector<8x64xf32>
    %31 = vector.broadcast %16 : vector<8x1xf32> to vector<8x64xf32>
    %32 = arith.mulf %31, %30 : vector<8x64xf32>
    %33 = arith.truncf %19 : vector<8x6xf32> to vector<8x6xbf16>
    %cst_23 = arith.constant dense<0.000000e+00> : vector<8x64xf32>
    %34 = tpu.matmul %33, %8, %cst_23 {dimension_numbers = #tpu.dot_dimension_numbers<[1], [0], [0], [1], [0, 0, 1, 1], [], []>} : vector<8x6xbf16>, vector<6x64xbf16>, vector<8x64xf32> -> vector<8x64xf32>
    %35 = arith.addf %32, %34 : vector<8x64xf32>
    %c0_24 = arith.constant 0 : index
    %c0_25 = arith.constant 0 : index
    %c0_26 = arith.constant 0 : index
    %36 = vector.load %arg9[%c0_24, %c0_25, %c0_26] : memref<4x8x64xf32, #tpu.memory_space<vmem>>, vector<1x8x64xf32>
    %37 = vector.shape_cast %36 : vector<1x8x64xf32> to vector<8x64xf32>
    %38 = vector.shape_cast %35 : vector<8x64xf32> to vector<1x8x64xf32>
    tpu.vector_store %arg9[%c0_24, %c0_25, %c0_26], %38 {strides = array<i32>} : memref<4x8x64xf32, #tpu.memory_space<vmem>>, vector<1x8x64xf32>,
    %c0_27 = arith.constant 0 : index
    %c0_28 = arith.constant 0 : index
    %c0_29 = arith.constant 0 : index
    %39 = vector.load %arg7[%c0_27, %c0_28, %c0_29] : memref<4x8x1xf32, #tpu.memory_space<vmem>>, vector<1x8x1xf32>
    %40 = vector.shape_cast %39 : vector<1x8x1xf32> to vector<8x1xf32>
    %41 = vector.shape_cast %14 : vector<8x1xf32> to vector<1x8x1xf32>
    tpu.vector_store %arg7[%c0_27, %c0_28, %c0_29], %41 {strides = array<i32>} : memref<4x8x1xf32, #tpu.memory_space<vmem>>, vector<1x8x1xf32>,
    %c0_30 = arith.constant 0 : index
    %c0_31 = arith.constant 0 : index
    %c64 = arith.constant 64 : index
    %42 = vector.load %arg3[%c0_30, %c0_31, %c64] : memref<1x8x256xbf16, #tpu.memory_space<vmem>>, vector<1x8x64xbf16>
    %43 = vector.shape_cast %42 : vector<1x8x64xbf16> to vector<8x64xbf16>
    %c0_32 = arith.constant 0 : index
    %c0_33 = arith.constant 0 : index
    %c64_34 = arith.constant 64 : index
    %44 = vector.load %arg4[%c0_32, %c0_33, %c64_34] : memref<1x6x256xbf16, #tpu.memory_space<vmem>>, vector<1x6x64xbf16>
    %45 = vector.shape_cast %44 : vector<1x6x64xbf16> to vector<6x64xbf16>
    %c0_35 = arith.constant 0 : index
    %c0_36 = arith.constant 0 : index
    %c64_37 = arith.constant 64 : index
    %46 = vector.load %arg5[%c0_35, %c0_36, %c64_37] : memref<1x6x256xbf16, #tpu.memory_space<vmem>>, vector<1x6x64xbf16>
    %47 = vector.shape_cast %46 : vector<1x6x64xbf16> to vector<6x64xbf16>
    %cst_38 = arith.constant dense<0.000000e+00> : vector<8x6xf32>
    %48 = tpu.matmul %43, %45, %cst_38 {dimension_numbers = #tpu.dot_dimension_numbers<[1], [1], [0], [0], [0, 0, 1, 0], [], []>} : vector<8x64xbf16>, vector<6x64xbf16>, vector<8x6xf32> -> vector<8x6xf32>
    %c1 = arith.constant 1 : index
    %c0_39 = arith.constant 0 : index
    %c0_40 = arith.constant 0 : index
    %49 = vector.load %arg7[%c1, %c0_39, %c0_40] : memref<4x8x1xf32, #tpu.memory_space<vmem>>, vector<1x8x1xf32>
    %50 = vector.shape_cast %49 : vector<1x8x1xf32> to vector<8x1xf32>
    %cst_41 = arith.constant dense<0xFF800000> : vector<8xf32>
    %51 = vector.multi_reduction <maximumf>, %48, %cst_41 [1] : vector<8x6xf32> to vector<8xf32>
    %52 = vector.shape_cast %51 : vector<8xf32> to vector<8x1xf32>
    %53 = arith.maximumf %50, %52 : vector<8x1xf32>
    %54 = arith.subf %50, %53 : vector<8x1xf32>
    %55 = math.exp %54 : vector<8x1xf32>
    %56 = vector.broadcast %53 : vector<8x1xf32> to vector<8x6xf32>
    %57 = arith.subf %48, %56 : vector<8x6xf32>
    %58 = math.exp %57 : vector<8x6xf32>
    %c1_42 = arith.constant 1 : index
    %c0_43 = arith.constant 0 : index
    %c0_44 = arith.constant 0 : index
    %59 = vector.load %arg8[%c1_42, %c0_43, %c0_44] : memref<4x8x1xf32, #tpu.memory_space<vmem>>, vector<1x8x1xf32>
    %60 = vector.shape_cast %59 : vector<1x8x1xf32> to vector<8x1xf32>
    %61 = arith.mulf %55, %60 : vector<8x1xf32>
    %cst_45 = arith.constant dense<0.000000e+00> : vector<8xf32>
    %62 = vector.multi_reduction <add>, %58, %cst_45 [1] : vector<8x6xf32> to vector<8xf32>
    %63 = vector.shape_cast %62 : vector<8xf32> to vector<8x1xf32>
    %64 = arith.addf %61, %63 : vector<8x1xf32>
    %c1_46 = arith.constant 1 : index
    %c0_47 = arith.constant 0 : index
    %c0_48 = arith.constant 0 : index
    %65 = vector.load %arg8[%c1_46, %c0_47, %c0_48] : memref<4x8x1xf32, #tpu.memory_space<vmem>>, vector<1x8x1xf32>
    %66 = vector.shape_cast %65 : vector<1x8x1xf32> to vector<8x1xf32>
    %67 = vector.shape_cast %64 : vector<8x1xf32> to vector<1x8x1xf32>
    tpu.vector_store %arg8[%c1_46, %c0_47, %c0_48], %67 {strides = array<i32>} : memref<4x8x1xf32, #tpu.memory_space<vmem>>, vector<1x8x1xf32>,
    %c1_49 = arith.constant 1 : index
    %c0_50 = arith.constant 0 : index
    %c0_51 = arith.constant 0 : index
    %68 = vector.load %arg9[%c1_49, %c0_50, %c0_51] : memref<4x8x64xf32, #tpu.memory_space<vmem>>, vector<1x8x64xf32>
    %69 = vector.shape_cast %68 : vector<1x8x64xf32> to vector<8x64xf32>
    %70 = vector.broadcast %55 : vector<8x1xf32> to vector<8x64xf32>
    %71 = arith.mulf %70, %69 : vector<8x64xf32>
    %72 = arith.truncf %58 : vector<8x6xf32> to vector<8x6xbf16>
    %cst_52 = arith.constant dense<0.000000e+00> : vector<8x64xf32>
    %73 = tpu.matmul %72, %47, %cst_52 {dimension_numbers = #tpu.dot_dimension_numbers<[1], [0], [0], [1], [0, 0, 1, 1], [], []>} : vector<8x6xbf16>, vector<6x64xbf16>, vector<8x64xf32> -> vector<8x64xf32>
    %74 = arith.addf %71, %73 : vector<8x64xf32>
    %c1_53 = arith.constant 1 : index
    %c0_54 = arith.constant 0 : index
    %c0_55 = arith.constant 0 : index
    %75 = vector.load %arg9[%c1_53, %c0_54, %c0_55] : memref<4x8x64xf32, #tpu.memory_space<vmem>>, vector<1x8x64xf32>
    %76 = vector.shape_cast %75 : vector<1x8x64xf32> to vector<8x64xf32>
    %77 = vector.shape_cast %74 : vector<8x64xf32> to vector<1x8x64xf32>
    tpu.vector_store %arg9[%c1_53, %c0_54, %c0_55], %77 {strides = array<i32>} : memref<4x8x64xf32, #tpu.memory_space<vmem>>, vector<1x8x64xf32>,
    %c1_56 = arith.constant 1 : index
    %c0_57 = arith.constant 0 : index
    %c0_58 = arith.constant 0 : index
    %78 = vector.load %arg7[%c1_56, %c0_57, %c0_58] : memref<4x8x1xf32, #tpu.memory_space<vmem>>, vector<1x8x1xf32>
    %79 = vector.shape_cast %78 : vector<1x8x1xf32> to vector<8x1xf32>
    %80 = vector.shape_cast %53 : vector<8x1xf32> to vector<1x8x1xf32>
    tpu.vector_store %arg7[%c1_56, %c0_57, %c0_58], %80 {strides = array<i32>} : memref<4x8x1xf32, #tpu.memory_space<vmem>>, vector<1x8x1xf32>,
    %c0_59 = arith.constant 0 : index
    %c0_60 = arith.constant 0 : index
    %c128 = arith.constant 128 : index
    %81 = vector.load %arg3[%c0_59, %c0_60, %c128] : memref<1x8x256xbf16, #tpu.memory_space<vmem>>, vector<1x8x64xbf16>
    %82 = vector.shape_cast %81 : vector<1x8x64xbf16> to vector<8x64xbf16>
    %c0_61 = arith.constant 0 : index
    %c0_62 = arith.constant 0 : index
    %c128_63 = arith.constant 128 : index
    %83 = vector.load %arg4[%c0_61, %c0_62, %c128_63] : memref<1x6x256xbf16, #tpu.memory_space<vmem>>, vector<1x6x64xbf16>
    %84 = vector.shape_cast %83 : vector<1x6x64xbf16> to vector<6x64xbf16>
    %c0_64 = arith.constant 0 : index
    %c0_65 = arith.constant 0 : index
    %c128_66 = arith.constant 128 : index
    %85 = vector.load %arg5[%c0_64, %c0_65, %c128_66] : memref<1x6x256xbf16, #tpu.memory_space<vmem>>, vector<1x6x64xbf16>
    %86 = vector.shape_cast %85 : vector<1x6x64xbf16> to vector<6x64xbf16>
    %cst_67 = arith.constant dense<0.000000e+00> : vector<8x6xf32>
    %87 = tpu.matmul %82, %84, %cst_67 {dimension_numbers = #tpu.dot_dimension_numbers<[1], [1], [0], [0], [0, 0, 1, 0], [], []>} : vector<8x64xbf16>, vector<6x64xbf16>, vector<8x6xf32> -> vector<8x6xf32>
    %c2 = arith.constant 2 : index
    %c0_68 = arith.constant 0 : index
    %c0_69 = arith.constant 0 : index
    %88 = vector.load %arg7[%c2, %c0_68, %c0_69] : memref<4x8x1xf32, #tpu.memory_space<vmem>>, vector<1x8x1xf32>
    %89 = vector.shape_cast %88 : vector<1x8x1xf32> to vector<8x1xf32>
    %cst_70 = arith.constant dense<0xFF800000> : vector<8xf32>
    %90 = vector.multi_reduction <maximumf>, %87, %cst_70 [1] : vector<8x6xf32> to vector<8xf32>
    %91 = vector.shape_cast %90 : vector<8xf32> to vector<8x1xf32>
    %92 = arith.maximumf %89, %91 : vector<8x1xf32>
    %93 = arith.subf %89, %92 : vector<8x1xf32>
    %94 = math.exp %93 : vector<8x1xf32>
    %95 = vector.broadcast %92 : vector<8x1xf32> to vector<8x6xf32>
    %96 = arith.subf %87, %95 : vector<8x6xf32>
    %97 = math.exp %96 : vector<8x6xf32>
    %c2_71 = arith.constant 2 : index
    %c0_72 = arith.constant 0 : index
    %c0_73 = arith.constant 0 : index
    %98 = vector.load %arg8[%c2_71, %c0_72, %c0_73] : memref<4x8x1xf32, #tpu.memory_space<vmem>>, vector<1x8x1xf32>
    %99 = vector.shape_cast %98 : vector<1x8x1xf32> to vector<8x1xf32>
    %100 = arith.mulf %94, %99 : vector<8x1xf32>
    %cst_74 = arith.constant dense<0.000000e+00> : vector<8xf32>
    %101 = vector.multi_reduction <add>, %97, %cst_74 [1] : vector<8x6xf32> to vector<8xf32>
    %102 = vector.shape_cast %101 : vector<8xf32> to vector<8x1xf32>
    %103 = arith.addf %100, %102 : vector<8x1xf32>
    %c2_75 = arith.constant 2 : index
    %c0_76 = arith.constant 0 : index
    %c0_77 = arith.constant 0 : index
    %104 = vector.load %arg8[%c2_75, %c0_76, %c0_77] : memref<4x8x1xf32, #tpu.memory_space<vmem>>, vector<1x8x1xf32>
    %105 = vector.shape_cast %104 : vector<1x8x1xf32> to vector<8x1xf32>
    %106 = vector.shape_cast %103 : vector<8x1xf32> to vector<1x8x1xf32>
    tpu.vector_store %arg8[%c2_75, %c0_76, %c0_77], %106 {strides = array<i32>} : memref<4x8x1xf32, #tpu.memory_space<vmem>>, vector<1x8x1xf32>,
    %c2_78 = arith.constant 2 : index
    %c0_79 = arith.constant 0 : index
    %c0_80 = arith.constant 0 : index
    %107 = vector.load %arg9[%c2_78, %c0_79, %c0_80] : memref<4x8x64xf32, #tpu.memory_space<vmem>>, vector<1x8x64xf32>
    %108 = vector.shape_cast %107 : vector<1x8x64xf32> to vector<8x64xf32>
    %109 = vector.broadcast %94 : vector<8x1xf32> to vector<8x64xf32>
    %110 = arith.mulf %109, %108 : vector<8x64xf32>
    %111 = arith.truncf %97 : vector<8x6xf32> to vector<8x6xbf16>
    %cst_81 = arith.constant dense<0.000000e+00> : vector<8x64xf32>
    %112 = tpu.matmul %111, %86, %cst_81 {dimension_numbers = #tpu.dot_dimension_numbers<[1], [0], [0], [1], [0, 0, 1, 1], [], []>} : vector<8x6xbf16>, vector<6x64xbf16>, vector<8x64xf32> -> vector<8x64xf32>
    %113 = arith.addf %110, %112 : vector<8x64xf32>
    %c2_82 = arith.constant 2 : index
    %c0_83 = arith.constant 0 : index
    %c0_84 = arith.constant 0 : index
    %114 = vector.load %arg9[%c2_82, %c0_83, %c0_84] : memref<4x8x64xf32, #tpu.memory_space<vmem>>, vector<1x8x64xf32>
    %115 = vector.shape_cast %114 : vector<1x8x64xf32> to vector<8x64xf32>
    %116 = vector.shape_cast %113 : vector<8x64xf32> to vector<1x8x64xf32>
    tpu.vector_store %arg9[%c2_82, %c0_83, %c0_84], %116 {strides = array<i32>} : memref<4x8x64xf32, #tpu.memory_space<vmem>>, vector<1x8x64xf32>,
    %c2_85 = arith.constant 2 : index
    %c0_86 = arith.constant 0 : index
    %c0_87 = arith.constant 0 : index
    %117 = vector.load %arg7[%c2_85, %c0_86, %c0_87] : memref<4x8x1xf32, #tpu.memory_space<vmem>>, vector<1x8x1xf32>
    %118 = vector.shape_cast %117 : vector<1x8x1xf32> to vector<8x1xf32>
    %119 = vector.shape_cast %92 : vector<8x1xf32> to vector<1x8x1xf32>
    tpu.vector_store %arg7[%c2_85, %c0_86, %c0_87], %119 {strides = array<i32>} : memref<4x8x1xf32, #tpu.memory_space<vmem>>, vector<1x8x1xf32>,
    %c0_88 = arith.constant 0 : index
    %c0_89 = arith.constant 0 : index
    %c192 = arith.constant 192 : index
    %120 = vector.load %arg3[%c0_88, %c0_89, %c192] : memref<1x8x256xbf16, #tpu.memory_space<vmem>>, vector<1x8x64xbf16>
    %121 = vector.shape_cast %120 : vector<1x8x64xbf16> to vector<8x64xbf16>
    %c0_90 = arith.constant 0 : index
    %c0_91 = arith.constant 0 : index
    %c192_92 = arith.constant 192 : index
    %122 = vector.load %arg4[%c0_90, %c0_91, %c192_92] : memref<1x6x256xbf16, #tpu.memory_space<vmem>>, vector<1x6x64xbf16>
    %123 = vector.shape_cast %122 : vector<1x6x64xbf16> to vector<6x64xbf16>
    %c0_93 = arith.constant 0 : index
    %c0_94 = arith.constant 0 : index
    %c192_95 = arith.constant 192 : index
    %124 = vector.load %arg5[%c0_93, %c0_94, %c192_95] : memref<1x6x256xbf16, #tpu.memory_space<vmem>>, vector<1x6x64xbf16>
    %125 = vector.shape_cast %124 : vector<1x6x64xbf16> to vector<6x64xbf16>
    %cst_96 = arith.constant dense<0.000000e+00> : vector<8x6xf32>
    %126 = tpu.matmul %121, %123, %cst_96 {dimension_numbers = #tpu.dot_dimension_numbers<[1], [1], [0], [0], [0, 0, 1, 0], [], []>} : vector<8x64xbf16>, vector<6x64xbf16>, vector<8x6xf32> -> vector<8x6xf32>
    %c3 = arith.constant 3 : index
    %c0_97 = arith.constant 0 : index
    %c0_98 = arith.constant 0 : index
    %127 = vector.load %arg7[%c3, %c0_97, %c0_98] : memref<4x8x1xf32, #tpu.memory_space<vmem>>, vector<1x8x1xf32>
    %128 = vector.shape_cast %127 : vector<1x8x1xf32> to vector<8x1xf32>
    %cst_99 = arith.constant dense<0xFF800000> : vector<8xf32>
    %129 = vector.multi_reduction <maximumf>, %126, %cst_99 [1] : vector<8x6xf32> to vector<8xf32>
    %130 = vector.shape_cast %129 : vector<8xf32> to vector<8x1xf32>
    %131 = arith.maximumf %128, %130 : vector<8x1xf32>
    %132 = arith.subf %128, %131 : vector<8x1xf32>
    %133 = math.exp %132 : vector<8x1xf32>
    %134 = vector.broadcast %131 : vector<8x1xf32> to vector<8x6xf32>
    %135 = arith.subf %126, %134 : vector<8x6xf32>
    %136 = math.exp %135 : vector<8x6xf32>
    %c3_100 = arith.constant 3 : index
    %c0_101 = arith.constant 0 : index
    %c0_102 = arith.constant 0 : index
    %137 = vector.load %arg8[%c3_100, %c0_101, %c0_102] : memref<4x8x1xf32, #tpu.memory_space<vmem>>, vector<1x8x1xf32>
    %138 = vector.shape_cast %137 : vector<1x8x1xf32> to vector<8x1xf32>
    %139 = arith.mulf %133, %138 : vector<8x1xf32>
    %cst_103 = arith.constant dense<0.000000e+00> : vector<8xf32>
    %140 = vector.multi_reduction <add>, %136, %cst_103 [1] : vector<8x6xf32> to vector<8xf32>
    %141 = vector.shape_cast %140 : vector<8xf32> to vector<8x1xf32>
    %142 = arith.addf %139, %141 : vector<8x1xf32>
    %c3_104 = arith.constant 3 : index
    %c0_105 = arith.constant 0 : index
    %c0_106 = arith.constant 0 : index
    %143 = vector.load %arg8[%c3_104, %c0_105, %c0_106] : memref<4x8x1xf32, #tpu.memory_space<vmem>>, vector<1x8x1xf32>
    %144 = vector.shape_cast %143 : vector<1x8x1xf32> to vector<8x1xf32>
    %145 = vector.shape_cast %142 : vector<8x1xf32> to vector<1x8x1xf32>
    tpu.vector_store %arg8[%c3_104, %c0_105, %c0_106], %145 {strides = array<i32>} : memref<4x8x1xf32, #tpu.memory_space<vmem>>, vector<1x8x1xf32>,
    %c3_107 = arith.constant 3 : index
    %c0_108 = arith.constant 0 : index
    %c0_109 = arith.constant 0 : index
    %146 = vector.load %arg9[%c3_107, %c0_108, %c0_109] : memref<4x8x64xf32, #tpu.memory_space<vmem>>, vector<1x8x64xf32>
    %147 = vector.shape_cast %146 : vector<1x8x64xf32> to vector<8x64xf32>
    %148 = vector.broadcast %133 : vector<8x1xf32> to vector<8x64xf32>
    %149 = arith.mulf %148, %147 : vector<8x64xf32>
    %150 = arith.truncf %136 : vector<8x6xf32> to vector<8x6xbf16>
    %cst_110 = arith.constant dense<0.000000e+00> : vector<8x64xf32>
    %151 = tpu.matmul %150, %125, %cst_110 {dimension_numbers = #tpu.dot_dimension_numbers<[1], [0], [0], [1], [0, 0, 1, 1], [], []>} : vector<8x6xbf16>, vector<6x64xbf16>, vector<8x64xf32> -> vector<8x64xf32>
    %152 = arith.addf %149, %151 : vector<8x64xf32>
    %c3_111 = arith.constant 3 : index
    %c0_112 = arith.constant 0 : index
    %c0_113 = arith.constant 0 : index
    %153 = vector.load %arg9[%c3_111, %c0_112, %c0_113] : memref<4x8x64xf32, #tpu.memory_space<vmem>>, vector<1x8x64xf32>
    %154 = vector.shape_cast %153 : vector<1x8x64xf32> to vector<8x64xf32>
    %155 = vector.shape_cast %152 : vector<8x64xf32> to vector<1x8x64xf32>
    tpu.vector_store %arg9[%c3_111, %c0_112, %c0_113], %155 {strides = array<i32>} : memref<4x8x64xf32, #tpu.memory_space<vmem>>, vector<1x8x64xf32>,
    %c3_114 = arith.constant 3 : index
    %c0_115 = arith.constant 0 : index
    %c0_116 = arith.constant 0 : index
    %156 = vector.load %arg7[%c3_114, %c0_115, %c0_116] : memref<4x8x1xf32, #tpu.memory_space<vmem>>, vector<1x8x1xf32>
    %157 = vector.shape_cast %156 : vector<1x8x1xf32> to vector<8x1xf32>
    %158 = vector.shape_cast %131 : vector<8x1xf32> to vector<1x8x1xf32>
    tpu.vector_store %arg7[%c3_114, %c0_115, %c0_116], %158 {strides = array<i32>} : memref<4x8x1xf32, #tpu.memory_space<vmem>>, vector<1x8x1xf32>,
    %c0_i32_117 = arith.constant 0 : i32
    %159 = arith.cmpi eq, %arg2, %c0_i32_117 : i32
    %160 = arith.extui %159 : i1 to i32
    %c0_i32_118 = arith.constant 0 : i32
    %161 = arith.cmpi ne, %160, %c0_i32_118 : i32
    scf.if %161 {
      %c0_119 = arith.constant 0 : index
      %c0_120 = arith.constant 0 : index
      %c0_121 = arith.constant 0 : index
      %162 = vector.load %arg9[%c0_119, %c0_120, %c0_121] : memref<4x8x64xf32, #tpu.memory_space<vmem>>, vector<1x8x64xf32>
      %163 = vector.shape_cast %162 : vector<1x8x64xf32> to vector<8x64xf32>
      %c0_122 = arith.constant 0 : index
      %c0_123 = arith.constant 0 : index
      %c0_124 = arith.constant 0 : index
      %164 = vector.load %arg8[%c0_122, %c0_123, %c0_124] : memref<4x8x1xf32, #tpu.memory_space<vmem>>, vector<1x8x1xf32>
      %165 = vector.shape_cast %164 : vector<1x8x1xf32> to vector<8x1xf32>
      %166 = vector.broadcast %165 : vector<8x1xf32> to vector<8x64xf32>
      %167 = arith.divf %163, %166 : vector<8x64xf32>
      %168 = arith.truncf %167 : vector<8x64xf32> to vector<8x64xbf16>
      %c0_125 = arith.constant 0 : index
      %c0_126 = arith.constant 0 : index
      %c0_127 = arith.constant 0 : index
      %169 = vector.load %arg6[%c0_125, %c0_126, %c0_127] : memref<1x8x256xbf16, #tpu.memory_space<vmem>>, vector<1x8x64xbf16>
      %170 = vector.shape_cast %169 : vector<1x8x64xbf16> to vector<8x64xbf16>
      %171 = vector.shape_cast %168 : vector<8x64xbf16> to vector<1x8x64xbf16>
      tpu.vector_store %arg6[%c0_125, %c0_126, %c0_127], %171 {strides = array<i32>} : memref<1x8x256xbf16, #tpu.memory_space<vmem>>, vector<1x8x64xbf16>,
      %c1_128 = arith.constant 1 : index
      %c0_129 = arith.constant 0 : index
      %c0_130 = arith.constant 0 : index
      %172 = vector.load %arg9[%c1_128, %c0_129, %c0_130] : memref<4x8x64xf32, #tpu.memory_space<vmem>>, vector<1x8x64xf32>
      %173 = vector.shape_cast %172 : vector<1x8x64xf32> to vector<8x64xf32>
      %c1_131 = arith.constant 1 : index
      %c0_132 = arith.constant 0 : index
      %c0_133 = arith.constant 0 : index
      %174 = vector.load %arg8[%c1_131, %c0_132, %c0_133] : memref<4x8x1xf32, #tpu.memory_space<vmem>>, vector<1x8x1xf32>
      %175 = vector.shape_cast %174 : vector<1x8x1xf32> to vector<8x1xf32>
      %176 = vector.broadcast %175 : vector<8x1xf32> to vector<8x64xf32>
      %177 = arith.divf %173, %176 : vector<8x64xf32>
      %178 = arith.truncf %177 : vector<8x64xf32> to vector<8x64xbf16>
      %c0_134 = arith.constant 0 : index
      %c0_135 = arith.constant 0 : index
      %c64_136 = arith.constant 64 : index
      %179 = vector.load %arg6[%c0_134, %c0_135, %c64_136] : memref<1x8x256xbf16, #tpu.memory_space<vmem>>, vector<1x8x64xbf16>
      %180 = vector.shape_cast %179 : vector<1x8x64xbf16> to vector<8x64xbf16>
      %181 = vector.shape_cast %178 : vector<8x64xbf16> to vector<1x8x64xbf16>
      tpu.vector_store %arg6[%c0_134, %c0_135, %c64_136], %181 {strides = array<i32>} : memref<1x8x256xbf16, #tpu.memory_space<vmem>>, vector<1x8x64xbf16>,
      %c2_137 = arith.constant 2 : index
      %c0_138 = arith.constant 0 : index
      %c0_139 = arith.constant 0 : index
      %182 = vector.load %arg9[%c2_137, %c0_138, %c0_139] : memref<4x8x64xf32, #tpu.memory_space<vmem>>, vector<1x8x64xf32>
      %183 = vector.shape_cast %182 : vector<1x8x64xf32> to vector<8x64xf32>
      %c2_140 = arith.constant 2 : index
      %c0_141 = arith.constant 0 : index
      %c0_142 = arith.constant 0 : index
      %184 = vector.load %arg8[%c2_140, %c0_141, %c0_142] : memref<4x8x1xf32, #tpu.memory_space<vmem>>, vector<1x8x1xf32>
      %185 = vector.shape_cast %184 : vector<1x8x1xf32> to vector<8x1xf32>
      %186 = vector.broadcast %185 : vector<8x1xf32> to vector<8x64xf32>
      %187 = arith.divf %183, %186 : vector<8x64xf32>
      %188 = arith.truncf %187 : vector<8x64xf32> to vector<8x64xbf16>
      %c0_143 = arith.constant 0 : index
      %c0_144 = arith.constant 0 : index
      %c128_145 = arith.constant 128 : index
      %189 = vector.load %arg6[%c0_143, %c0_144, %c128_145] : memref<1x8x256xbf16, #tpu.memory_space<vmem>>, vector<1x8x64xbf16>
      %190 = vector.shape_cast %189 : vector<1x8x64xbf16> to vector<8x64xbf16>
      %191 = vector.shape_cast %188 : vector<8x64xbf16> to vector<1x8x64xbf16>
      tpu.vector_store %arg6[%c0_143, %c0_144, %c128_145], %191 {strides = array<i32>} : memref<1x8x256xbf16, #tpu.memory_space<vmem>>, vector<1x8x64xbf16>,
      %c3_146 = arith.constant 3 : index
      %c0_147 = arith.constant 0 : index
      %c0_148 = arith.constant 0 : index
      %192 = vector.load %arg9[%c3_146, %c0_147, %c0_148] : memref<4x8x64xf32, #tpu.memory_space<vmem>>, vector<1x8x64xf32>
      %193 = vector.shape_cast %192 : vector<1x8x64xf32> to vector<8x64xf32>
      %c3_149 = arith.constant 3 : index
      %c0_150 = arith.constant 0 : index
      %c0_151 = arith.constant 0 : index
      %194 = vector.load %arg8[%c3_149, %c0_150, %c0_151] : memref<4x8x1xf32, #tpu.memory_space<vmem>>, vector<1x8x1xf32>
      %195 = vector.shape_cast %194 : vector<1x8x1xf32> to vector<8x1xf32>
      %196 = vector.broadcast %195 : vector<8x1xf32> to vector<8x64xf32>
      %197 = arith.divf %193, %196 : vector<8x64xf32>
      %198 = arith.truncf %197 : vector<8x64xf32> to vector<8x64xbf16>
      %c0_152 = arith.constant 0 : index
      %c0_153 = arith.constant 0 : index
      %c192_154 = arith.constant 192 : index
      %199 = vector.load %arg6[%c0_152, %c0_153, %c192_154] : memref<1x8x256xbf16, #tpu.memory_space<vmem>>, vector<1x8x64xbf16>
      %200 = vector.shape_cast %199 : vector<1x8x64xbf16> to vector<8x64xbf16>
      %201 = vector.shape_cast %198 : vector<8x64xbf16> to vector<1x8x64xbf16>
      tpu.vector_store %arg6[%c0_152, %c0_153, %c192_154], %201 {strides = array<i32>} : memref<1x8x256xbf16, #tpu.memory_space<vmem>>, vector<1x8x64xbf16>,
    } else {
    }
    return
  }
  func.func @transform_0(%arg0: i32, %arg1: i32, %arg2: i32) -> (i32, i32, i32) {
    %c0_i32 = arith.constant 0 : i32
    %c0_i32_0 = arith.constant 0 : i32
    return %arg0, %arg1, %c0_i32 : i32, i32, i32
  }
  func.func @transform_1(%arg0: i32, %arg1: i32, %arg2: i32) -> (i32, i32, i32) {
    %c0_i32 = arith.constant 0 : i32
    %c0_i32_0 = arith.constant 0 : i32
    return %arg0, %arg2, %c0_i32 : i32, i32, i32
  }
  func.func @transform_2(%arg0: i32, %arg1: i32, %arg2: i32) -> (i32, i32, i32) {
    %c0_i32 = arith.constant 0 : i32
    %c0_i32_0 = arith.constant 0 : i32
    return %arg0, %arg2, %c0_i32 : i32, i32, i32
  }
  func.func @transform_3(%arg0: i32, %arg1: i32, %arg2: i32) -> (i32, i32, i32) {
    %c0_i32 = arith.constant 0 : i32
    %c0_i32_0 = arith.constant 0 : i32
    return %arg0, %arg1, %c0_i32 : i32, i32, i32
  }
}

module attributes {stable_mosaic.version = 11 : i64} {
  func.func @_linear_kernel(%arg0: i32, %arg1: i32, %arg2: i32, %arg3: i32, %arg4: memref<1x8x256xbf16, #tpu.memory_space<vmem>>, %arg5: memref<256x32xbf16, #tpu.memory_space<vmem>>, %arg6: memref<1x32xf32, #tpu.memory_space<vmem>>, %arg7: memref<1x8x32xf32, #tpu.memory_space<vmem>>, %arg8: memref<1x8x32xf32, #tpu.memory_space<vmem>>, %arg9: memref<8x32xf32, #tpu.memory_space<vmem>>) attributes {dimension_semantics = [#tpu.dimension_semantics<parallel>, #tpu.dimension_semantics<parallel>, #tpu.dimension_semantics<parallel>, #tpu.dimension_semantics<arbitrary>], iteration_bounds = array<i64: 2, 1, 1, 1>, scalar_prefetch = 0 : i64, scratch_operands = 1 : i64, tpu.core_type = #tpu.core_type<tc>, window_params = [{transform_indices = @transform_0, window_bounds = array<i64: 1, 8, 256>}, {transform_indices = @transform_1, window_bounds = array<i64: 256, 32>}, {transform_indices = @transform_2, window_bounds = array<i64: 1, 32>}, {transform_indices = @transform_3, window_bounds = array<i64: 1, 8, 32>}, {transform_indices = @transform_4, window_bounds = array<i64: 1, 8, 32>}]} {
    %c0_i32 = arith.constant 0 : i32
    %0 = arith.cmpi eq, %arg3, %c0_i32 : i32
    %1 = arith.extui %0 : i1 to i32
    %c0_i32_0 = arith.constant 0 : i32
    %2 = arith.cmpi ne, %1, %c0_i32_0 : i32
    scf.if %2 {
      %cst_11 = arith.constant 0.000000e+00 : f32
      %13 = vector.broadcast %cst_11 : f32 to vector<8x32xf32>
      %c0_12 = arith.constant 0 : index
      %c0_13 = arith.constant 0 : index
      %14 = vector.load %arg9[%c0_12, %c0_13] : memref<8x32xf32, #tpu.memory_space<vmem>>, vector<8x32xf32>
      tpu.vector_store %arg9[%c0_12, %c0_13], %13 {strides = array<i32>} : memref<8x32xf32, #tpu.memory_space<vmem>>, vector<8x32xf32>,
    } else {
    }
    %c0 = arith.constant 0 : index
    %c0_1 = arith.constant 0 : index
    %3 = vector.load %arg9[%c0, %c0_1] : memref<8x32xf32, #tpu.memory_space<vmem>>, vector<8x32xf32>
    %c0_2 = arith.constant 0 : index
    %c0_3 = arith.constant 0 : index
    %c0_4 = arith.constant 0 : index
    %4 = vector.load %arg4[%c0_2, %c0_3, %c0_4] : memref<1x8x256xbf16, #tpu.memory_space<vmem>>, vector<1x8x256xbf16>
    %5 = vector.shape_cast %4 : vector<1x8x256xbf16> to vector<8x256xbf16>
    %c0_5 = arith.constant 0 : index
    %c0_6 = arith.constant 0 : index
    %6 = vector.load %arg5[%c0_5, %c0_6] : memref<256x32xbf16, #tpu.memory_space<vmem>>, vector<256x32xbf16>
    %cst = arith.constant dense<0.000000e+00> : vector<8x32xf32>
    %7 = tpu.matmul %5, %6, %cst {dimension_numbers = #tpu.dot_dimension_numbers<[1], [0], [0], [1], [0, 0, 1, 1], [], []>} : vector<8x256xbf16>, vector<256x32xbf16>, vector<8x32xf32> -> vector<8x32xf32>
    %8 = arith.addf %3, %7 : vector<8x32xf32>
    %c0_7 = arith.constant 0 : index
    %c0_8 = arith.constant 0 : index
    %9 = vector.load %arg9[%c0_7, %c0_8] : memref<8x32xf32, #tpu.memory_space<vmem>>, vector<8x32xf32>
    tpu.vector_store %arg9[%c0_7, %c0_8], %8 {strides = array<i32>} : memref<8x32xf32, #tpu.memory_space<vmem>>, vector<8x32xf32>,
    %c0_i32_9 = arith.constant 0 : i32
    %10 = arith.cmpi eq, %arg3, %c0_i32_9 : i32
    %11 = arith.extui %10 : i1 to i32
    %c0_i32_10 = arith.constant 0 : i32
    %12 = arith.cmpi ne, %11, %c0_i32_10 : i32
    scf.if %12 {
      %c0_11 = arith.constant 0 : index
      %c0_12 = arith.constant 0 : index
      %13 = vector.load %arg9[%c0_11, %c0_12] : memref<8x32xf32, #tpu.memory_space<vmem>>, vector<8x32xf32>
      %c0_13 = arith.constant 0 : index
      %c0_14 = arith.constant 0 : index
      %14 = vector.load %arg6[%c0_13, %c0_14] : memref<1x32xf32, #tpu.memory_space<vmem>>, vector<1x32xf32>
      %15 = vector.broadcast %14 : vector<1x32xf32> to vector<8x32xf32>
      %16 = arith.addf %13, %15 : vector<8x32xf32>
      %c0_15 = arith.constant 0 : index
      %c0_16 = arith.constant 0 : index
      %c0_17 = arith.constant 0 : index
      %17 = vector.load %arg7[%c0_15, %c0_16, %c0_17] : memref<1x8x32xf32, #tpu.memory_space<vmem>>, vector<1x8x32xf32>
      %18 = vector.shape_cast %17 : vector<1x8x32xf32> to vector<8x32xf32>
      %19 = arith.addf %16, %18 : vector<8x32xf32>
      %c0_18 = arith.constant 0 : index
      %c0_19 = arith.constant 0 : index
      %c0_20 = arith.constant 0 : index
      %20 = vector.load %arg8[%c0_18, %c0_19, %c0_20] : memref<1x8x32xf32, #tpu.memory_space<vmem>>, vector<1x8x32xf32>
      %21 = vector.shape_cast %20 : vector<1x8x32xf32> to vector<8x32xf32>
      %22 = vector.shape_cast %19 : vector<8x32xf32> to vector<1x8x32xf32>
      tpu.vector_store %arg8[%c0_18, %c0_19, %c0_20], %22 {strides = array<i32>} : memref<1x8x32xf32, #tpu.memory_space<vmem>>, vector<1x8x32xf32>,
    } else {
    }
    return
  }
  func.func @transform_0(%arg0: i32, %arg1: i32, %arg2: i32, %arg3: i32) -> (i32, i32, i32) {
    %c0_i32 = arith.constant 0 : i32
    return %arg0, %arg1, %arg3 : i32, i32, i32
  }
  func.func @transform_1(%arg0: i32, %arg1: i32, %arg2: i32, %arg3: i32) -> (i32, i32) {
    %c0_i32 = arith.constant 0 : i32
    return %arg3, %arg2 : i32, i32
  }
  func.func @transform_2(%arg0: i32, %arg1: i32, %arg2: i32, %arg3: i32) -> (i32, i32) {
    %c0_i32 = arith.constant 0 : i32
    %c0_i32_0 = arith.constant 0 : i32
    return %c0_i32, %arg2 : i32, i32
  }
  func.func @transform_3(%arg0: i32, %arg1: i32, %arg2: i32, %arg3: i32) -> (i32, i32, i32) {
    %c0_i32 = arith.constant 0 : i32
    return %arg0, %arg1, %arg2 : i32, i32, i32
  }
  func.func @transform_4(%arg0: i32, %arg1: i32, %arg2: i32, %arg3: i32) -> (i32, i32, i32) {
    %c0_i32 = arith.constant 0 : i32
    return %arg0, %arg1, %arg2 : i32, i32, i32
  }
}

module attributes {stable_mosaic.version = 11 : i64} {
  func.func @_ln_mod_linear_kernel(%arg0: i32, %arg1: i32, %arg2: i32, %arg3: memref<1x8x32xf32, #tpu.memory_space<vmem>>, %arg4: memref<1x1x32xf32, #tpu.memory_space<vmem>>, %arg5: memref<1x1x32xf32, #tpu.memory_space<vmem>>, %arg6: memref<32x128xbf16, #tpu.memory_space<vmem>>, %arg7: memref<1x128xf32, #tpu.memory_space<vmem>>, %arg8: memref<1x8x128xbf16, #tpu.memory_space<vmem>>, %arg9: memref<8x32xbf16, #tpu.memory_space<vmem>>) attributes {dimension_semantics = [#tpu.dimension_semantics<parallel>, #tpu.dimension_semantics<parallel>, #tpu.dimension_semantics<arbitrary>], iteration_bounds = array<i64: 2, 1, 1>, scalar_prefetch = 0 : i64, scratch_operands = 1 : i64, tpu.core_type = #tpu.core_type<tc>, window_params = [{transform_indices = @transform_0, window_bounds = array<i64: 1, 8, 32>}, {transform_indices = @transform_1, window_bounds = array<i64: 1, 1, 32>}, {transform_indices = @transform_2, window_bounds = array<i64: 1, 1, 32>}, {transform_indices = @transform_3, window_bounds = array<i64: 32, 128>}, {transform_indices = @transform_4, window_bounds = array<i64: 1, 128>}, {transform_indices = @transform_5, window_bounds = array<i64: 1, 8, 128>}]} {
    %c0_i32 = arith.constant 0 : i32
    %0 = arith.cmpi eq, %arg2, %c0_i32 : i32
    %1 = arith.extui %0 : i1 to i32
    %c0_i32_0 = arith.constant 0 : i32
    %2 = arith.cmpi ne, %1, %c0_i32_0 : i32
    scf.if %2 {
      %c0_13 = arith.constant 0 : index
      %c0_14 = arith.constant 0 : index
      %c0_15 = arith.constant 0 : index
      %26 = vector.load %arg3[%c0_13, %c0_14, %c0_15] : memref<1x8x32xf32, #tpu.memory_space<vmem>>, vector<1x8x32xf32>
      %27 = vector.shape_cast %26 : vector<1x8x32xf32> to vector<8x32xf32>
      %cst_16 = arith.constant dense<0.000000e+00> : vector<8xf32>
      %28 = vector.multi_reduction <add>, %27, %cst_16 [1] : vector<8x32xf32> to vector<8xf32>
      %29 = vector.shape_cast %28 : vector<8xf32> to vector<8x1xf32>
      %cst_17 = arith.constant 3.200000e+01 : f32
      %30 = vector.broadcast %cst_17 : f32 to vector<8x1xf32>
      %31 = arith.divf %29, %30 : vector<8x1xf32>
      %32 = vector.broadcast %31 : vector<8x1xf32> to vector<8x32xf32>
      %33 = arith.subf %27, %32 : vector<8x32xf32>
      %34 = arith.mulf %33, %33 : vector<8x32xf32>
      %cst_18 = arith.constant dense<0.000000e+00> : vector<8xf32>
      %35 = vector.multi_reduction <add>, %34, %cst_18 [1] : vector<8x32xf32> to vector<8xf32>
      %36 = vector.shape_cast %35 : vector<8xf32> to vector<8x1xf32>
      %cst_19 = arith.constant 3.200000e+01 : f32
      %37 = vector.broadcast %cst_19 : f32 to vector<8x1xf32>
      %38 = arith.divf %36, %37 : vector<8x1xf32>
      %cst_20 = arith.constant 9.99999997E-7 : f32
      %39 = vector.broadcast %cst_20 : f32 to vector<8x1xf32>
      %40 = arith.addf %38, %39 : vector<8x1xf32>
      %41 = math.rsqrt %40 : vector<8x1xf32>
      %42 = vector.broadcast %41 : vector<8x1xf32> to vector<8x32xf32>
      %43 = arith.mulf %33, %42 : vector<8x32xf32>
      %c0_21 = arith.constant 0 : index
      %c0_22 = arith.constant 0 : index
      %c0_23 = arith.constant 0 : index
      %44 = vector.load %arg5[%c0_21, %c0_22, %c0_23] : memref<1x1x32xf32, #tpu.memory_space<vmem>>, vector<1x1x32xf32>
      %45 = vector.shape_cast %44 : vector<1x1x32xf32> to vector<1x32xf32>
      %cst_24 = arith.constant 1.000000e+00 : f32
      %46 = vector.broadcast %cst_24 : f32 to vector<1x32xf32>
      %47 = arith.addf %46, %45 : vector<1x32xf32>
      %48 = vector.broadcast %47 : vector<1x32xf32> to vector<8x32xf32>
      %49 = arith.mulf %43, %48 : vector<8x32xf32>
      %c0_25 = arith.constant 0 : index
      %c0_26 = arith.constant 0 : index
      %c0_27 = arith.constant 0 : index
      %50 = vector.load %arg4[%c0_25, %c0_26, %c0_27] : memref<1x1x32xf32, #tpu.memory_space<vmem>>, vector<1x1x32xf32>
      %51 = vector.shape_cast %50 : vector<1x1x32xf32> to vector<1x32xf32>
      %52 = vector.broadcast %51 : vector<1x32xf32> to vector<8x32xf32>
      %53 = arith.addf %49, %52 : vector<8x32xf32>
      %54 = arith.truncf %53 : vector<8x32xf32> to vector<8x32xbf16>
      %c0_28 = arith.constant 0 : index
      %c0_29 = arith.constant 0 : index
      %55 = vector.load %arg9[%c0_28, %c0_29] : memref<8x32xbf16, #tpu.memory_space<vmem>>, vector<8x32xbf16>
      tpu.vector_store %arg9[%c0_28, %c0_29], %54 {strides = array<i32>} : memref<8x32xbf16, #tpu.memory_space<vmem>>, vector<8x32xbf16>,
    } else {
    }
    %c0 = arith.constant 0 : index
    %c0_1 = arith.constant 0 : index
    %3 = vector.load %arg9[%c0, %c0_1] : memref<8x32xbf16, #tpu.memory_space<vmem>>, vector<8x32xbf16>
    %c0_2 = arith.constant 0 : index
    %c0_3 = arith.constant 0 : index
    %4 = vector.load %arg6[%c0_2, %c0_3] : memref<32x128xbf16, #tpu.memory_space<vmem>>, vector<32x128xbf16>
    %cst = arith.constant dense<0.000000e+00> : vector<8x128xf32>
    %5 = tpu.matmul %3, %4, %cst {dimension_numbers = #tpu.dot_dimension_numbers<[1], [0], [0], [1], [0, 0, 1, 1], [], []>} : vector<8x32xbf16>, vector<32x128xbf16>, vector<8x128xf32> -> vector<8x128xf32>
    %c0_4 = arith.constant 0 : index
    %c0_5 = arith.constant 0 : index
    %6 = vector.load %arg7[%c0_4, %c0_5] : memref<1x128xf32, #tpu.memory_space<vmem>>, vector<1x128xf32>
    %7 = vector.broadcast %6 : vector<1x128xf32> to vector<8x128xf32>
    %8 = arith.addf %5, %7 : vector<8x128xf32>
    %cst_6 = arith.constant 5.000000e-01 : f32
    %9 = vector.broadcast %cst_6 : f32 to vector<8x128xf32>
    %10 = arith.mulf %9, %8 : vector<8x128xf32>
    %cst_7 = arith.constant 4.471500e-02 : f32
    %11 = vector.broadcast %cst_7 : f32 to vector<8x128xf32>
    %12 = arith.mulf %11, %8 : vector<8x128xf32>
    %13 = arith.mulf %12, %8 : vector<8x128xf32>
    %14 = arith.mulf %13, %8 : vector<8x128xf32>
    %15 = arith.addf %8, %14 : vector<8x128xf32>
    %cst_8 = arith.constant 0.797884583 : f32
    %16 = vector.broadcast %cst_8 : f32 to vector<8x128xf32>
    %17 = arith.mulf %16, %15 : vector<8x128xf32>
    %18 = math.tanh %17 : vector<8x128xf32>
    %cst_9 = arith.constant 1.000000e+00 : f32
    %19 = vector.broadcast %cst_9 : f32 to vector<8x128xf32>
    %20 = arith.addf %19, %18 : vector<8x128xf32>
    %21 = arith.mulf %10, %20 : vector<8x128xf32>
    %22 = arith.truncf %21 : vector<8x128xf32> to vector<8x128xbf16>
    %c0_10 = arith.constant 0 : index
    %c0_11 = arith.constant 0 : index
    %c0_12 = arith.constant 0 : index
    %23 = vector.load %arg8[%c0_10, %c0_11, %c0_12] : memref<1x8x128xbf16, #tpu.memory_space<vmem>>, vector<1x8x128xbf16>
    %24 = vector.shape_cast %23 : vector<1x8x128xbf16> to vector<8x128xbf16>
    %25 = vector.shape_cast %22 : vector<8x128xbf16> to vector<1x8x128xbf16>
    tpu.vector_store %arg8[%c0_10, %c0_11, %c0_12], %25 {strides = array<i32>} : memref<1x8x128xbf16, #tpu.memory_space<vmem>>, vector<1x8x128xbf16>,
    return
  }
  func.func @transform_0(%arg0: i32, %arg1: i32, %arg2: i32) -> (i32, i32, i32) {
    %c0_i32 = arith.constant 0 : i32
    %c0_i32_0 = arith.constant 0 : i32
    return %arg0, %arg1, %c0_i32 : i32, i32, i32
  }
  func.func @transform_1(%arg0: i32, %arg1: i32, %arg2: i32) -> (i32, i32, i32) {
    %c0_i32 = arith.constant 0 : i32
    %c0_i32_0 = arith.constant 0 : i32
    %c0_i32_1 = arith.constant 0 : i32
    return %arg0, %c0_i32, %c0_i32_0 : i32, i32, i32
  }
  func.func @transform_2(%arg0: i32, %arg1: i32, %arg2: i32) -> (i32, i32, i32) {
    %c0_i32 = arith.constant 0 : i32
    %c0_i32_0 = arith.constant 0 : i32
    %c0_i32_1 = arith.constant 0 : i32
    return %arg0, %c0_i32, %c0_i32_0 : i32, i32, i32
  }
  func.func @transform_3(%arg0: i32, %arg1: i32, %arg2: i32) -> (i32, i32) {
    %c0_i32 = arith.constant 0 : i32
    %c0_i32_0 = arith.constant 0 : i32
    return %c0_i32, %arg2 : i32, i32
  }
  func.func @transform_4(%arg0: i32, %arg1: i32, %arg2: i32) -> (i32, i32) {
    %c0_i32 = arith.constant 0 : i32
    %c0_i32_0 = arith.constant 0 : i32
    return %c0_i32, %arg2 : i32, i32
  }
  func.func @transform_5(%arg0: i32, %arg1: i32, %arg2: i32) -> (i32, i32, i32) {
    %c0_i32 = arith.constant 0 : i32
    return %arg0, %arg1, %arg2 : i32, i32, i32
  }
}

module attributes {stable_mosaic.version = 11 : i64} {
  func.func @_linear_kernel(%arg0: i32, %arg1: i32, %arg2: i32, %arg3: i32, %arg4: memref<1x8x128xbf16, #tpu.memory_space<vmem>>, %arg5: memref<128x32xbf16, #tpu.memory_space<vmem>>, %arg6: memref<1x32xf32, #tpu.memory_space<vmem>>, %arg7: memref<1x8x32xf32, #tpu.memory_space<vmem>>, %arg8: memref<1x8x32xf32, #tpu.memory_space<vmem>>, %arg9: memref<8x32xf32, #tpu.memory_space<vmem>>) attributes {dimension_semantics = [#tpu.dimension_semantics<parallel>, #tpu.dimension_semantics<parallel>, #tpu.dimension_semantics<parallel>, #tpu.dimension_semantics<arbitrary>], iteration_bounds = array<i64: 2, 1, 1, 1>, scalar_prefetch = 0 : i64, scratch_operands = 1 : i64, tpu.core_type = #tpu.core_type<tc>, window_params = [{transform_indices = @transform_0, window_bounds = array<i64: 1, 8, 128>}, {transform_indices = @transform_1, window_bounds = array<i64: 128, 32>}, {transform_indices = @transform_2, window_bounds = array<i64: 1, 32>}, {transform_indices = @transform_3, window_bounds = array<i64: 1, 8, 32>}, {transform_indices = @transform_4, window_bounds = array<i64: 1, 8, 32>}]} {
    %c0_i32 = arith.constant 0 : i32
    %0 = arith.cmpi eq, %arg3, %c0_i32 : i32
    %1 = arith.extui %0 : i1 to i32
    %c0_i32_0 = arith.constant 0 : i32
    %2 = arith.cmpi ne, %1, %c0_i32_0 : i32
    scf.if %2 {
      %cst_11 = arith.constant 0.000000e+00 : f32
      %13 = vector.broadcast %cst_11 : f32 to vector<8x32xf32>
      %c0_12 = arith.constant 0 : index
      %c0_13 = arith.constant 0 : index
      %14 = vector.load %arg9[%c0_12, %c0_13] : memref<8x32xf32, #tpu.memory_space<vmem>>, vector<8x32xf32>
      tpu.vector_store %arg9[%c0_12, %c0_13], %13 {strides = array<i32>} : memref<8x32xf32, #tpu.memory_space<vmem>>, vector<8x32xf32>,
    } else {
    }
    %c0 = arith.constant 0 : index
    %c0_1 = arith.constant 0 : index
    %3 = vector.load %arg9[%c0, %c0_1] : memref<8x32xf32, #tpu.memory_space<vmem>>, vector<8x32xf32>
    %c0_2 = arith.constant 0 : index
    %c0_3 = arith.constant 0 : index
    %c0_4 = arith.constant 0 : index
    %4 = vector.load %arg4[%c0_2, %c0_3, %c0_4] : memref<1x8x128xbf16, #tpu.memory_space<vmem>>, vector<1x8x128xbf16>
    %5 = vector.shape_cast %4 : vector<1x8x128xbf16> to vector<8x128xbf16>
    %c0_5 = arith.constant 0 : index
    %c0_6 = arith.constant 0 : index
    %6 = vector.load %arg5[%c0_5, %c0_6] : memref<128x32xbf16, #tpu.memory_space<vmem>>, vector<128x32xbf16>
    %cst = arith.constant dense<0.000000e+00> : vector<8x32xf32>
    %7 = tpu.matmul %5, %6, %cst {dimension_numbers = #tpu.dot_dimension_numbers<[1], [0], [0], [1], [0, 0, 1, 1], [], []>} : vector<8x128xbf16>, vector<128x32xbf16>, vector<8x32xf32> -> vector<8x32xf32>
    %8 = arith.addf %3, %7 : vector<8x32xf32>
    %c0_7 = arith.constant 0 : index
    %c0_8 = arith.constant 0 : index
    %9 = vector.load %arg9[%c0_7, %c0_8] : memref<8x32xf32, #tpu.memory_space<vmem>>, vector<8x32xf32>
    tpu.vector_store %arg9[%c0_7, %c0_8], %8 {strides = array<i32>} : memref<8x32xf32, #tpu.memory_space<vmem>>, vector<8x32xf32>,
    %c0_i32_9 = arith.constant 0 : i32
    %10 = arith.cmpi eq, %arg3, %c0_i32_9 : i32
    %11 = arith.extui %10 : i1 to i32
    %c0_i32_10 = arith.constant 0 : i32
    %12 = arith.cmpi ne, %11, %c0_i32_10 : i32
    scf.if %12 {
      %c0_11 = arith.constant 0 : index
      %c0_12 = arith.constant 0 : index
      %13 = vector.load %arg9[%c0_11, %c0_12] : memref<8x32xf32, #tpu.memory_space<vmem>>, vector<8x32xf32>
      %c0_13 = arith.constant 0 : index
      %c0_14 = arith.constant 0 : index
      %14 = vector.load %arg6[%c0_13, %c0_14] : memref<1x32xf32, #tpu.memory_space<vmem>>, vector<1x32xf32>
      %15 = vector.broadcast %14 : vector<1x32xf32> to vector<8x32xf32>
      %16 = arith.addf %13, %15 : vector<8x32xf32>
      %c0_15 = arith.constant 0 : index
      %c0_16 = arith.constant 0 : index
      %c0_17 = arith.constant 0 : index
      %17 = vector.load %arg7[%c0_15, %c0_16, %c0_17] : memref<1x8x32xf32, #tpu.memory_space<vmem>>, vector<1x8x32xf32>
      %18 = vector.shape_cast %17 : vector<1x8x32xf32> to vector<8x32xf32>
      %19 = arith.addf %16, %18 : vector<8x32xf32>
      %c0_18 = arith.constant 0 : index
      %c0_19 = arith.constant 0 : index
      %c0_20 = arith.constant 0 : index
      %20 = vector.load %arg8[%c0_18, %c0_19, %c0_20] : memref<1x8x32xf32, #tpu.memory_space<vmem>>, vector<1x8x32xf32>
      %21 = vector.shape_cast %20 : vector<1x8x32xf32> to vector<8x32xf32>
      %22 = vector.shape_cast %19 : vector<8x32xf32> to vector<1x8x32xf32>
      tpu.vector_store %arg8[%c0_18, %c0_19, %c0_20], %22 {strides = array<i32>} : memref<1x8x32xf32, #tpu.memory_space<vmem>>, vector<1x8x32xf32>,
    } else {
    }
    return
  }
  func.func @transform_0(%arg0: i32, %arg1: i32, %arg2: i32, %arg3: i32) -> (i32, i32, i32) {
    %c0_i32 = arith.constant 0 : i32
    return %arg0, %arg1, %arg3 : i32, i32, i32
  }
  func.func @transform_1(%arg0: i32, %arg1: i32, %arg2: i32, %arg3: i32) -> (i32, i32) {
    %c0_i32 = arith.constant 0 : i32
    return %arg3, %arg2 : i32, i32
  }
  func.func @transform_2(%arg0: i32, %arg1: i32, %arg2: i32, %arg3: i32) -> (i32, i32) {
    %c0_i32 = arith.constant 0 : i32
    %c0_i32_0 = arith.constant 0 : i32
    return %c0_i32, %arg2 : i32, i32
  }
  func.func @transform_3(%arg0: i32, %arg1: i32, %arg2: i32, %arg3: i32) -> (i32, i32, i32) {
    %c0_i32 = arith.constant 0 : i32
    return %arg0, %arg1, %arg2 : i32, i32, i32
  }
  func.func @transform_4(%arg0: i32, %arg1: i32, %arg2: i32, %arg3: i32) -> (i32, i32, i32) {
    %c0_i32 = arith.constant 0 : i32
    return %arg0, %arg1, %arg2 : i32, i32, i32
  }
}

</mosaic_0001>

<llo_original>
// kernel: dit_block_forward.12
$region0: #{dit_block_forward.12}
  #allocation0 [shape = 'u32[]', space=smem, size = 0x4, offset = 0x4, fixed_abs, tag = 'smem constant byte address 0x4 - core index']
  #allocation1 [shape = 'u32[144,128]{1,0:T(1,128)}', space=vmem, size = 0x12000, scoped, tag = 'internal scratch']
  %s0 = inlined_call_operand.vmem [shape: f32[2,32], index: 0, kind: input, shape index: {}]
  %s1 = inlined_call_operand.vmem [shape: bf16[32,192], index: 1, kind: input, shape index: {}]
  %s2 = inlined_call_operand.vmem [shape: f32[1,192], index: 2, kind: input, shape index: {}]
  %s3 = inlined_call_operand.vmem [shape: f32[2,192], index: 3, kind: output, shape index: {}]
  %s4 = sld [smem:[#allocation0]]
  $region22: #{dit_block_forward.12} parent=0
    _
  %s6 = ssub.s32 1, %s4
  %s7 = scalar_select 0, %s6, %s4
  // Predicated region
  $region2: #{dit_block_forward.12} parent=0 // pred_check
    _
  $region3: #{dit_block_forward.12} parent=0 // pred_check_branch
    %9 = sbr.rel (0) target = $region5
  $region4: #{dit_block_forward.12} parent=0 // pred_region
    _
  $region5: #{dit_block_forward.12} parent=0 // pred_fallthru
    _
  // Predicated region
  $region6: #{dit_block_forward.12} parent=0 // pred_check
    _
  $region7: #{dit_block_forward.12} parent=0 // pred_check_branch
    %11 = sbr.rel (0) target = $region9
  $region8: #{dit_block_forward.12} parent=0 // pred_region
    _
  $region9: #{dit_block_forward.12} parent=0 // pred_fallthru
    _
  // Predicated region
  $region10: #{dit_block_forward.12} parent=0 // pred_check
    _
  $region11: #{dit_block_forward.12} parent=0 // pred_check_branch
    %13 = sbr.rel (0) target = $region13
  $region12: #{dit_block_forward.12} parent=0 // pred_region
    _
  $region13: #{dit_block_forward.12} parent=0 // pred_fallthru
    _
  %v15 = vld [vmem:[%s0] sm:$0x3]
  %v16 = vsub.f32 0.0, %v15
  %v17 = vmul.f32 %v16, 1.442695
  %v18 = vpow.pop %v17
  %v19 = vadd.f32 %v18, 1.0
  %v20 = vrcp.pop %v19
  %v21 = vmul.f32 1.0, %v20
  %v22 = vmul.f32 %v15, %v21
  %v23 = vpack.c.bf16 %v22, %v22
  %v24 = vld [vmem:[%s1] sm:$0xff]
  %v25 = vld [vmem:[%s1 + $0x8] sm:$0xff]
  %v26 = vld [vmem:[%s1 + $0x10] sm:$0xff]
  %v27 = vld [vmem:[%s1 + $0x18] sm:$0xff]
  %v28 = vld [vmem:[%s2] sm:$0x3]
  %v30 = vlaneseq
  %v31 = vshrl.u32 %v30, 7
  %v32 = vsub.s32 0, %v31
  %v33 = vrot.slane %v28, %v32
  %v34 = vlaneseq
  %v35 = vshrl.u32 %v34, 7
  %v36 = vsub.s32 1, %v35
  %v37 = vrot.slane %v28, %v36
  %v44 = vunpack.c.l.b16 %v24
  %v45 = vunpack.c.h.b16 %v24
  %v46 = vunpack.c.l.b16 %v25
  %v47 = vunpack.c.h.b16 %v25
  %v48 = vunpack.c.l.b16 %v26
  %v49 = vunpack.c.h.b16 %v26
  %v50 = vunpack.c.l.b16 %v27
  %v51 = vunpack.c.h.b16 %v27
  %v52 = vpack.c.b16 %v46, %v44
  %v53 = vpack.c.b16 %v47, %v45
  %v54 = vpack.c.b16 %v50, %v48
  %v55 = vpack.c.b16 %v51, %v49
  %vm60 = vcmask 261120
  %v62 = vsel %vm60, %v23, 0
  %64 = vmatprep.subr.bf16.mxu0 %v53
  %65 = vmatpush1.bf16.msra.mxu0 %v52
  %66 = vmatprep.subr.bf16.mxu0 %v55
  %67 = vmatpush1.bf16.msra.mxu0 %v54
  %68 = vmatprep.subr.bf16.mxu0 0
  %69 = vmatpush1.bf16.msra.mxu0 0
  %70 = vmatprep.subr.bf16.mxu0 0
  %71 = vmatpush1.bf16.msra.mxu0 0
  %72 = vmatprep.subr.bf16.mxu0 0
  %73 = vmatpush1.bf16.msra.mxu0 0
  %74 = vmatprep.subr.bf16.mxu0 0
  %75 = vmatpush1.bf16.msra.mxu0 0
  %76 = vmatprep.subr.bf16.mxu0 0
  %77 = vmatpush1.bf16.msra.mxu0 0
  %78 = vmatprep.subr.bf16.mxu0 0
  %79 = vmatpush1.bf16.msra.mxu0 0
  %80 = vmatprep.subr.bf16.mxu0 0
  %81 = vmatpush1.bf16.msra.mxu0 0
  %82 = vmatprep.subr.bf16.mxu0 0
  %83 = vmatpush1.bf16.msra.mxu0 0
  %84 = vmatprep.subr.bf16.mxu0 0
  %85 = vmatpush1.bf16.msra.mxu0 0
  %86 = vmatprep.subr.bf16.mxu0 0
  %87 = vmatpush1.bf16.msra.mxu0 0
  %88 = vmatprep.subr.bf16.mxu0 0
  %89 = vmatpush1.bf16.msra.mxu0 0
  %90 = vmatprep.subr.bf16.mxu0 0
  %91 = vmatpush1.bf16.msra.mxu0 0
  %92 = vmatprep.subr.bf16.mxu0 0
  %93 = vmatpush1.bf16.msra.mxu0 0
  %94 = vmatprep.subr.bf16.mxu0 0
  %95 = vmatpush1.bf16.msra.mxu0 0
  %96 = vmatprep.mubr.bf16.mxu0 0
  %97 = vmatmul.mubr.bf16.gmra.mrb[0].mxu0 %v62
  %v98 = vpop.f32.mrb[0].mxu0
  %v99 = vadd.f32 %v33, %v98
  %v100 = vpop.f32.mrb[0].mxu0
  %v101 = vadd.f32 %v37, %v100
  %v102 = vpop.f32.mrb[0].mxu0
  %v103 = vpop.f32.mrb[0].mxu0
  %104 = vdwg.mxu0
  %v107 = vcombine.low %v99, %v101
  %v109 = vunpack.c.l.s4 1983009808
  %v110 = vunpack.c.0.s8 %v109
  %v111 = vlaneseq
  %v112 = vshrl.u32 %v111, 7
  %v113 = vsub.s32 %v110, %v112
  %v114 = vrot.slane %v107, %v113
  %vm116 = vcmask 1041408
  %vm117 = vcmask 519170
  %vm118 = vmor %vm117, %vm116
  %119 = vst.msk [vmem:[%s3] sm:$0xf] %vm118, %v114
  // Predicated region
  $region14: #{dit_block_forward.12} parent=0 // pred_check
    _
  $region15: #{dit_block_forward.12} parent=0 // pred_check_branch
    %121 = sbr.rel (0) target = $region17
  $region16: #{dit_block_forward.12} parent=0 // pred_region
    _
  $region17: #{dit_block_forward.12} parent=0 // pred_fallthru
    _
  // Predicated region
  $region18: #{dit_block_forward.12} parent=0 // pred_check
    _
  $region19: #{dit_block_forward.12} parent=0 // pred_check_branch
    %123 = sbr.rel (0) target = $region21
  $region20: #{dit_block_forward.12} parent=0 // pred_region
    _
  $region21: #{dit_block_forward.12} parent=0 // pred_fallthru
    _

// kernel: dit_block_forward.13
$region0: #{dit_block_forward.13}
  #allocation0 [shape = 'u32[]', space=smem, size = 0x4, offset = 0x4, fixed_abs, tag = 'smem constant byte address 0x4 - core index']
  #allocation1 [shape = 'u32[144,128]{1,0:T(1,128)}', space=vmem, size = 0x12000, scoped, tag = 'internal scratch']
  #allocation2 [shape = 'bf16[8,32]{1,0:T(8,128)(2,1)}', space=vmem, size = 0x800, scoped, tag = 'scratch operand']
  %s0 = inlined_call_operand.vmem [shape: f32[2,8,32], index: 0, kind: input, shape index: {}]
  %s1 = inlined_call_operand.vmem [shape: f32[2,1,32], index: 1, kind: input, shape index: {}]
  %s2 = inlined_call_operand.vmem [shape: f32[2,1,32], index: 2, kind: input, shape index: {}]
  %s3 = inlined_call_operand.vmem [shape: bf16[32,32], index: 3, kind: input, shape index: {}]
  %s4 = inlined_call_operand.vmem [shape: bf16[32,32], index: 4, kind: input, shape index: {}]
  %s5 = inlined_call_operand.vmem [shape: bf16[32,32], index: 5, kind: input, shape index: {}]
  %s6 = inlined_call_operand.vmem [shape: f32[1,32], index: 6, kind: input, shape index: {}]
  %s7 = inlined_call_operand.vmem [shape: f32[1,32], index: 7, kind: input, shape index: {}]
  %s8 = inlined_call_operand.vmem [shape: f32[1,32], index: 8, kind: input, shape index: {}]
  %s9 = inlined_call_operand.vmem [shape: bf16[2,8,32], index: 9, kind: output, shape index: {0}]
  %s10 = inlined_call_operand.vmem [shape: bf16[2,8,32], index: 10, kind: output, shape index: {1}]
  %s11 = inlined_call_operand.vmem [shape: bf16[2,8,32], index: 11, kind: output, shape index: {2}]
  %12 = xla_tuple %s9, %s10, %s11
  %s13 = sld [smem:[#allocation0]]
  $region89: #{dit_block_forward.13} parent=0
    _
  %s15 = ssub.s32 1, %s13
  %s16 = scalar_select 0, %s15, %s13
  loop: start=0, step=1, limit=4
  $region2: #{dit_block_forward.13} parent=0 // loop_pre_header
    _
  $region3: #{dit_block_forward.13} parent=0 // loop_header
    %s18 = sphi 0, %s22
    %p19 = scmp.ge.s32.totalorder %s18, 4
    %s25 = sphi 0, %s44
    %s26 = sphi 0, %s40
    %s27 = sphi 0, %s36
    %s28 = sphi 0, %s25
    %s29 = sphi 0, %s26
    %s30 = sphi 0, %s27
    %s31 = sphi 0, %s28
    %s32 = sphi 0, %s29
    %s33 = sphi 0, %s30
    %s49 = sphi 0, %s51
    %s52 = sphi 0, %s49
    %s53 = sphi 0, %s52
    %s69 = sphi 0, %s53
    %s75 = sphi 0, %s77
    %s78 = sphi 0, %s75
    %s79 = sphi 0, %s78
    %s95 = sphi 0, %s79
    %s101 = sphi 0, %s103
    %s104 = sphi 0, %s101
    %s105 = sphi 0, %s104
    %s121 = sphi 0, %s105
    %s127 = sphi 0, %s129
    %s130 = sphi 0, %s127
    %s131 = sphi 0, %s130
    %s147 = sphi 0, %s131
    %s153 = sphi 0, %s155
    %s156 = sphi 0, %s153
    %s157 = sphi 0, %s156
    %s173 = sphi 0, %s157
    %s179 = sphi 0, %s181
    %s182 = sphi 0, %s179
    %s183 = sphi 0, %s182
    %s199 = sphi 0, %s183
    %s205 = sphi 0, %s207
    %s208 = sphi 0, %s205
    %s209 = sphi 0, %s208
    %s225 = sphi 0, %s209
    %s231 = sphi 0, %s233
    %s234 = sphi 0, %s231
    %s235 = sphi 0, %s234
    %s251 = sphi 0, %s235
    %s257 = sphi 0, %s259
    %s260 = sphi 0, %s257
    %s261 = sphi 0, %s260
    %s277 = sphi 0, %s261
    %s287 = sphi 0, %s289
    %s290 = sphi 0, %s287
    %s291 = sphi 0, %s290
    %s307 = sphi 0, %s291
    %s317 = sphi 0, %s319
    %s320 = sphi 0, %s317
    %s321 = sphi 0, %s320
    %s337 = sphi 0, %s321
    %s347 = sphi 0, %s349
    %s350 = sphi 0, %s347
    %s351 = sphi 0, %s350
    %s367 = sphi 0, %s351
  $region4: #{dit_block_forward.13} parent=0 // loop_header_branch
    %21 = sbr.rel (%p19) target = $region8
  $region5: #{dit_block_forward.13} parent=0 // loop_body
    %s23 = ssub.s32 %s18, 1
    %s24 = ssub.s32 %s18, 2
    %s34 = sadd.s32 1, %s27
    %p35 = scmp.ge.s32.totalorder %s34, 1
    %s36 = scalar_select %p35, 0, %s34
    %s37 = sadd.s32 1, %s26
    %s38 = scalar_select %p35, %s37, %s26
    %p39 = scmp.ge.s32.totalorder %s38, 1
    %s40 = scalar_select %p39, 0, %s38
    %s41 = sadd.s32 1, %s25
    %s42 = scalar_select %p39, %s41, %s25
    %p43 = scmp.ge.s32.totalorder %s42, 2
    %s44 = scalar_select %p43, 0, %s42
    %s45 = ssub.s32 %s25, %s44
    %s46 = ssub.s32 %s26, %s40
    %s47 = sor.u32 %s45, %s46
    %p48 = scmp.eq.s32.totalorder %s47, 0
    %s50 = sadd.s32 %s49, 1
    %s51 = scalar_select %p48, %s49, %s50
    %p54 = pneg %p48
    %p55 = scmp.eq.s32.totalorder %s18, 1
    %p56 = por %p54, %p55
    %p57 = scmp.ne.s32.totalorder %s49, %s52
    %p58 = scmp.eq.s32.totalorder %s18, 0
    %p59 = por %p57, %p58
    %p60 = scmp.ne.s32.totalorder %s49, %s52
    %p61 = scmp.eq.s32.totalorder %s23, 1
    %p62 = por %p60, %p61
    %p63 = scmp.ne.s32.totalorder %s52, %s53
    %p64 = scmp.eq.s32.totalorder %s23, 0
    %p65 = por %p63, %p64
    %p66 = scmp.ne.s32.totalorder %s52, %s53
    %p67 = scmp.eq.s32.totalorder %s24, 1
    %p68 = por %p66, %p67
    %p70 = scmp.ne.s32.totalorder %s53, %s69
    %p71 = scmp.eq.s32.totalorder %s24, 0
    %p72 = por %p70, %p71
    %s73 = ssub.s32 %s25, %s44
    %p74 = scmp.eq.s32.totalorder %s73, 0
    %s76 = sadd.s32 %s75, 1
    %s77 = scalar_select %p74, %s75, %s76
    %p80 = pneg %p74
    %p81 = scmp.eq.s32.totalorder %s18, 1
    %p82 = por %p80, %p81
    %p83 = scmp.ne.s32.totalorder %s75, %s78
    %p84 = scmp.eq.s32.totalorder %s18, 0
    %p85 = por %p83, %p84
    %p86 = scmp.ne.s32.totalorder %s75, %s78
    %p87 = scmp.eq.s32.totalorder %s23, 1
    %p88 = por %p86, %p87
    %p89 = scmp.ne.s32.totalorder %s78, %s79
    %p90 = scmp.eq.s32.totalorder %s23, 0
    %p91 = por %p89, %p90
    %p92 = scmp.ne.s32.totalorder %s78, %s79
    %p93 = scmp.eq.s32.totalorder %s24, 1
    %p94 = por %p92, %p93
    %p96 = scmp.ne.s32.totalorder %s79, %s95
    %p97 = scmp.eq.s32.totalorder %s24, 0
    %p98 = por %p96, %p97
    %s99 = ssub.s32 %s25, %s44
    %p100 = scmp.eq.s32.totalorder %s99, 0
    %s102 = sadd.s32 %s101, 1
    %s103 = scalar_select %p100, %s101, %s102
    %p106 = pneg %p100
    %p107 = scmp.eq.s32.totalorder %s18, 1
    %p108 = por %p106, %p107
    %p109 = scmp.ne.s32.totalorder %s101, %s104
    %p110 = scmp.eq.s32.totalorder %s18, 0
    %p111 = por %p109, %p110
    %p112 = scmp.ne.s32.totalorder %s101, %s104
    %p113 = scmp.eq.s32.totalorder %s23, 1
    %p114 = por %p112, %p113
    %p115 = scmp.ne.s32.totalorder %s104, %s105
    %p116 = scmp.eq.s32.totalorder %s23, 0
    %p117 = por %p115, %p116
    %p118 = scmp.ne.s32.totalorder %s104, %s105
    %p119 = scmp.eq.s32.totalorder %s24, 1
    %p120 = por %p118, %p119
    %p122 = scmp.ne.s32.totalorder %s105, %s121
    %p123 = scmp.eq.s32.totalorder %s24, 0
    %p124 = por %p122, %p123
    %s125 = ssub.s32 %s27, %s36
    %p126 = scmp.eq.s32.totalorder %s125, 0
    %s128 = sadd.s32 %s127, 1
    %s129 = scalar_select %p126, %s127, %s128
    %p132 = pneg %p126
    %p133 = scmp.eq.s32.totalorder %s18, 1
    %p134 = por %p132, %p133
    %p135 = scmp.ne.s32.totalorder %s127, %s130
    %p136 = scmp.eq.s32.totalorder %s18, 0
    %p137 = por %p135, %p136
    %p138 = scmp.ne.s32.totalorder %s127, %s130
    %p139 = scmp.eq.s32.totalorder %s23, 1
    %p140 = por %p138, %p139
    %p141 = scmp.ne.s32.totalorder %s130, %s131
    %p142 = scmp.eq.s32.totalorder %s23, 0
    %p143 = por %p141, %p142
    %p144 = scmp.ne.s32.totalorder %s130, %s131
    %p145 = scmp.eq.s32.totalorder %s24, 1
    %p146 = por %p144, %p145
    %p148 = scmp.ne.s32.totalorder %s131, %s147
    %p149 = scmp.eq.s32.totalorder %s24, 0
    %p150 = por %p148, %p149
    %s151 = ssub.s32 %s27, %s36
    %p152 = scmp.eq.s32.totalorder %s151, 0
    %s154 = sadd.s32 %s153, 1
    %s155 = scalar_select %p152, %s153, %s154
    %p158 = pneg %p152
    %p159 = scmp.eq.s32.totalorder %s18, 1
    %p160 = por %p158, %p159
    %p161 = scmp.ne.s32.totalorder %s153, %s156
    %p162 = scmp.eq.s32.totalorder %s18, 0
    %p163 = por %p161, %p162
    %p164 = scmp.ne.s32.totalorder %s153, %s156
    %p165 = scmp.eq.s32.totalorder %s23, 1
    %p166 = por %p164, %p165
    %p167 = scmp.ne.s32.totalorder %s156, %s157
    %p168 = scmp.eq.s32.totalorder %s23, 0
    %p169 = por %p167, %p168
    %p170 = scmp.ne.s32.totalorder %s156, %s157
    %p171 = scmp.eq.s32.totalorder %s24, 1
    %p172 = por %p170, %p171
    %p174 = scmp.ne.s32.totalorder %s157, %s173
    %p175 = scmp.eq.s32.totalorder %s24, 0
    %p176 = por %p174, %p175
    %s177 = ssub.s32 %s27, %s36
    %p178 = scmp.eq.s32.totalorder %s177, 0
    %s180 = sadd.s32 %s179, 1
    %s181 = scalar_select %p178, %s179, %s180
    %p184 = pneg %p178
    %p185 = scmp.eq.s32.totalorder %s18, 1
    %p186 = por %p184, %p185
    %p187 = scmp.ne.s32.totalorder %s179, %s182
    %p188 = scmp.eq.s32.totalorder %s18, 0
    %p189 = por %p187, %p188
    %p190 = scmp.ne.s32.totalorder %s179, %s182
    %p191 = scmp.eq.s32.totalorder %s23, 1
    %p192 = por %p190, %p191
    %p193 = scmp.ne.s32.totalorder %s182, %s183
    %p194 = scmp.eq.s32.totalorder %s23, 0
    %p195 = por %p193, %p194
    %p196 = scmp.ne.s32.totalorder %s182, %s183
    %p197 = scmp.eq.s32.totalorder %s24, 1
    %p198 = por %p196, %p197
    %p200 = scmp.ne.s32.totalorder %s183, %s199
    %p201 = scmp.eq.s32.totalorder %s24, 0
    %p202 = por %p200, %p201
    %s203 = ssub.s32 %s27, %s36
    %p204 = scmp.eq.s32.totalorder %s203, 0
    %s206 = sadd.s32 %s205, 1
    %s207 = scalar_select %p204, %s205, %s206
    %p210 = pneg %p204
    %p211 = scmp.eq.s32.totalorder %s18, 1
    %p212 = por %p210, %p211
    %p213 = scmp.ne.s32.totalorder %s205, %s208
    %p214 = scmp.eq.s32.totalorder %s18, 0
    %p215 = por %p213, %p214
    %p216 = scmp.ne.s32.totalorder %s205, %s208
    %p217 = scmp.eq.s32.totalorder %s23, 1
    %p218 = por %p216, %p217
    %p219 = scmp.ne.s32.totalorder %s208, %s209
    %p220 = scmp.eq.s32.totalorder %s23, 0
    %p221 = por %p219, %p220
    %p222 = scmp.ne.s32.totalorder %s208, %s209
    %p223 = scmp.eq.s32.totalorder %s24, 1
    %p224 = por %p222, %p223
    %p226 = scmp.ne.s32.totalorder %s209, %s225
    %p227 = scmp.eq.s32.totalorder %s24, 0
    %p228 = por %p226, %p227
    %s229 = ssub.s32 %s27, %s36
    %p230 = scmp.eq.s32.totalorder %s229, 0
    %s232 = sadd.s32 %s231, 1
    %s233 = scalar_select %p230, %s231, %s232
    %p236 = pneg %p230
    %p237 = scmp.eq.s32.totalorder %s18, 1
    %p238 = por %p236, %p237
    %p239 = scmp.ne.s32.totalorder %s231, %s234
    %p240 = scmp.eq.s32.totalorder %s18, 0
    %p241 = por %p239, %p240
    %p242 = scmp.ne.s32.totalorder %s231, %s234
    %p243 = scmp.eq.s32.totalorder %s23, 1
    %p244 = por %p242, %p243
    %p245 = scmp.ne.s32.totalorder %s234, %s235
    %p246 = scmp.eq.s32.totalorder %s23, 0
    %p247 = por %p245, %p246
    %p248 = scmp.ne.s32.totalorder %s234, %s235
    %p249 = scmp.eq.s32.totalorder %s24, 1
    %p250 = por %p248, %p249
    %p252 = scmp.ne.s32.totalorder %s235, %s251
    %p253 = scmp.eq.s32.totalorder %s24, 0
    %p254 = por %p252, %p253
    %s255 = ssub.s32 %s27, %s36
    %p256 = scmp.eq.s32.totalorder %s255, 0
    %s258 = sadd.s32 %s257, 1
    %s259 = scalar_select %p256, %s257, %s258
    %p262 = pneg %p256
    %p263 = scmp.eq.s32.totalorder %s18, 1
    %p264 = por %p262, %p263
    %p265 = scmp.ne.s32.totalorder %s257, %s260
    %p266 = scmp.eq.s32.totalorder %s18, 0
    %p267 = por %p265, %p266
    %p268 = scmp.ne.s32.totalorder %s257, %s260
    %p269 = scmp.eq.s32.totalorder %s23, 1
    %p270 = por %p268, %p269
    %p271 = scmp.ne.s32.totalorder %s260, %s261
    %p272 = scmp.eq.s32.totalorder %s23, 0
    %p273 = por %p271, %p272
    %p274 = scmp.ne.s32.totalorder %s260, %s261
    %p275 = scmp.eq.s32.totalorder %s24, 1
    %p276 = por %p274, %p275
    %p278 = scmp.ne.s32.totalorder %s261, %s277
    %p279 = scmp.eq.s32.totalorder %s24, 0
    %p280 = por %p278, %p279
    %s281 = ssub.s32 %s25, %s44
    %s282 = ssub.s32 %s26, %s40
    %s283 = sor.u32 %s281, %s282
    %s284 = ssub.s32 %s27, %s36
    %s285 = sor.u32 %s283, %s284
    %p286 = scmp.eq.s32.totalorder %s285, 0
    %s288 = sadd.s32 %s287, 1
    %s289 = scalar_select %p286, %s287, %s288
    %p292 = pneg %p286
    %p293 = scmp.eq.s32.totalorder %s18, 1
    %p294 = por %p292, %p293
    %p295 = scmp.ne.s32.totalorder %s287, %s290
    %p296 = scmp.eq.s32.totalorder %s18, 0
    %p297 = por %p295, %p296
    %p298 = scmp.ne.s32.totalorder %s287, %s290
    %p299 = scmp.eq.s32.totalorder %s23, 1
    %p300 = por %p298, %p299
    %p301 = scmp.ne.s32.totalorder %s290, %s291
    %p302 = scmp.eq.s32.totalorder %s23, 0
    %p303 = por %p301, %p302
    %p304 = scmp.ne.s32.totalorder %s290, %s291
    %p305 = scmp.eq.s32.totalorder %s24, 1
    %p306 = por %p304, %p305
    %p308 = scmp.ne.s32.totalorder %s291, %s307
    %p309 = scmp.eq.s32.totalorder %s24, 0
    %p310 = por %p308, %p309
    %s311 = ssub.s32 %s25, %s44
    %s312 = ssub.s32 %s26, %s40
    %s313 = sor.u32 %s311, %s312
    %s314 = ssub.s32 %s27, %s36
    %s315 = sor.u32 %s313, %s314
    %p316 = scmp.eq.s32.totalorder %s315, 0
    %s318 = sadd.s32 %s317, 1
    %s319 = scalar_select %p316, %s317, %s318
    %p322 = pneg %p316
    %p323 = scmp.eq.s32.totalorder %s18, 1
    %p324 = por %p322, %p323
    %p325 = scmp.ne.s32.totalorder %s317, %s320
    %p326 = scmp.eq.s32.totalorder %s18, 0
    %p327 = por %p325, %p326
    %p328 = scmp.ne.s32.totalorder %s317, %s320
    %p329 = scmp.eq.s32.totalorder %s23, 1
    %p330 = por %p328, %p329
    %p331 = scmp.ne.s32.totalorder %s320, %s321
    %p332 = scmp.eq.s32.totalorder %s23, 0
    %p333 = por %p331, %p332
    %p334 = scmp.ne.s32.totalorder %s320, %s321
    %p335 = scmp.eq.s32.totalorder %s24, 1
    %p336 = por %p334, %p335
    %p338 = scmp.ne.s32.totalorder %s321, %s337
    %p339 = scmp.eq.s32.totalorder %s24, 0
    %p340 = por %p338, %p339
    %s341 = ssub.s32 %s25, %s44
    %s342 = ssub.s32 %s26, %s40
    %s343 = sor.u32 %s341, %s342
    %s344 = ssub.s32 %s27, %s36
    %s345 = sor.u32 %s343, %s344
    %p346 = scmp.eq.s32.totalorder %s345, 0
    %s348 = sadd.s32 %s347, 1
    %s349 = scalar_select %p346, %s347, %s348
    %p352 = pneg %p346
    %p353 = scmp.eq.s32.totalorder %s18, 1
    %p354 = por %p352, %p353
    %p355 = scmp.ne.s32.totalorder %s347, %s350
    %p356 = scmp.eq.s32.totalorder %s18, 0
    %p357 = por %p355, %p356
    %p358 = scmp.ne.s32.totalorder %s347, %s350
    %p359 = scmp.eq.s32.totalorder %s23, 1
    %p360 = por %p358, %p359
    %p361 = scmp.ne.s32.totalorder %s350, %s351
    %p362 = scmp.eq.s32.totalorder %s23, 0
    %p363 = por %p361, %p362
    %p364 = scmp.ne.s32.totalorder %s350, %s351
    %p365 = scmp.eq.s32.totalorder %s24, 1
    %p366 = por %p364, %p365
    %p368 = scmp.ne.s32.totalorder %s351, %s367
    %p369 = scmp.eq.s32.totalorder %s24, 0
    %p370 = por %p368, %p369
    %p371 = scmp.le.s32.totalorder 1, %s18
    %p372 = scmp.lt.s32.totalorder %s18, 3
    %p373 = pnand %p371, %p372
    %p374 = pneg %p373
    // Predicated region
    $region9: #{dit_block_forward.13} parent=5 // pred_check
      _
    $region10: #{dit_block_forward.13} parent=5 // pred_check_branch
      %376 = sbr.rel (%p373) target = $region12
    $region11: #{dit_block_forward.13} parent=5 // pred_region
      %s377 = ssub.s32 %s18, 1
      // Predicated region
      $region13: #{dit_block_forward.13} parent=11 // pred_check
        %p378 = pneg %p143
      $region14: #{dit_block_forward.13} parent=11 // pred_check_branch
        %380 = sbr.rel (%p378) target = $region16
      $region15: #{dit_block_forward.13} parent=11 // pred_region
        %p381 = scmp.lt.s32.totalorder %s30, 0
        %s382 = scalar_select %p381, %s30, 0
        %s383 = smul.addr %s382, 4
        %s384 = scalar_lea.vmem %s3, %s383
      $region16: #{dit_block_forward.13} parent=11 // pred_fallthru
        _
      // Predicated region
      $region17: #{dit_block_forward.13} parent=11 // pred_check
        %p385 = pneg %p169
      $region18: #{dit_block_forward.13} parent=11 // pred_check_branch
        %387 = sbr.rel (%p385) target = $region20
      $region19: #{dit_block_forward.13} parent=11 // pred_region
        %p388 = scmp.lt.s32.totalorder %s30, 0
        %s389 = scalar_select %p388, %s30, 0
        %s390 = smul.addr %s389, 4
        %s391 = scalar_lea.vmem %s4, %s390
      $region20: #{dit_block_forward.13} parent=11 // pred_fallthru
        _
      // Predicated region
      $region21: #{dit_block_forward.13} parent=11 // pred_check
        %p392 = pneg %p195
      $region22: #{dit_block_forward.13} parent=11 // pred_check_branch
        %394 = sbr.rel (%p392) target = $region24
      $region23: #{dit_block_forward.13} parent=11 // pred_region
        %p395 = scmp.lt.s32.totalorder %s30, 0
        %s396 = scalar_select %p395, %s30, 0
        %s397 = smul.addr %s396, 4
        %s398 = scalar_lea.vmem %s5, %s397
      $region24: #{dit_block_forward.13} parent=11 // pred_fallthru
        _
      // Predicated region
      $region25: #{dit_block_forward.13} parent=11 // pred_check
        %p399 = pneg %p221
      $region26: #{dit_block_forward.13} parent=11 // pred_check_branch
        %401 = sbr.rel (%p399) target = $region28
      $region27: #{dit_block_forward.13} parent=11 // pred_region
        %p402 = scmp.lt.s32.totalorder %s30, 0
        %s403 = scalar_select %p402, %s30, 0
        %s404 = scalar_lea.vmem %s6, %s403
      $region28: #{dit_block_forward.13} parent=11 // pred_fallthru
        _
      // Predicated region
      $region29: #{dit_block_forward.13} parent=11 // pred_check
        %p405 = pneg %p247
      $region30: #{dit_block_forward.13} parent=11 // pred_check_branch
        %407 = sbr.rel (%p405) target = $region32
      $region31: #{dit_block_forward.13} parent=11 // pred_region
        %p408 = scmp.lt.s32.totalorder %s30, 0
        %s409 = scalar_select %p408, %s30, 0
        %s410 = scalar_lea.vmem %s7, %s409
      $region32: #{dit_block_forward.13} parent=11 // pred_fallthru
        _
      // Predicated region
      $region33: #{dit_block_forward.13} parent=11 // pred_check
        %p411 = pneg %p273
      $region34: #{dit_block_forward.13} parent=11 // pred_check_branch
        %413 = sbr.rel (%p411) target = $region36
      $region35: #{dit_block_forward.13} parent=11 // pred_region
        %p414 = scmp.lt.s32.totalorder %s30, 0
        %s415 = scalar_select %p414, %s30, 0
        %s416 = scalar_lea.vmem %s8, %s415
      $region36: #{dit_block_forward.13} parent=11 // pred_fallthru
        _
    $region12: #{dit_block_forward.13} parent=5 // pred_fallthru
      _
    %p417 = scmp.lt.s32.totalorder %s18, 2
    // Predicated region
    $region37: #{dit_block_forward.13} parent=5 // pred_check
      %p418 = pneg %p417
    $region38: #{dit_block_forward.13} parent=5 // pred_check_branch
      %420 = sbr.rel (%p418) target = $region40
    $region39: #{dit_block_forward.13} parent=5 // pred_region
      // Predicated region
      $region41: #{dit_block_forward.13} parent=39 // pred_check
        %p421 = pneg %p59
      $region42: #{dit_block_forward.13} parent=39 // pred_check_branch
        %423 = sbr.rel (%p421) target = $region44
      $region43: #{dit_block_forward.13} parent=39 // pred_region
        %p424 = scmp.lt.s32.totalorder %s25, 1
        %s425 = scalar_select %p424, %s25, 1
        %p426 = scmp.lt.s32.totalorder %s26, 0
        %s427 = scalar_select %p426, %s26, 0
        %s428 = sadd.s32 %s427, %s425
        %s429 = smul.addr %s428, 8
        %s430 = scalar_lea.vmem %s0, %s429
      $region44: #{dit_block_forward.13} parent=39 // pred_fallthru
        _
      // Predicated region
      $region45: #{dit_block_forward.13} parent=39 // pred_check
        %p431 = pneg %p85
      $region46: #{dit_block_forward.13} parent=39 // pred_check_branch
        %433 = sbr.rel (%p431) target = $region48
      $region47: #{dit_block_forward.13} parent=39 // pred_region
        %p434 = scmp.lt.s32.totalorder %s25, 1
        %s435 = scalar_select %p434, %s25, 1
        %s436 = scalar_lea.vmem %s1, %s435
      $region48: #{dit_block_forward.13} parent=39 // pred_fallthru
        _
      // Predicated region
      $region49: #{dit_block_forward.13} parent=39 // pred_check
        %p437 = pneg %p111
      $region50: #{dit_block_forward.13} parent=39 // pred_check_branch
        %439 = sbr.rel (%p437) target = $region52
      $region51: #{dit_block_forward.13} parent=39 // pred_region
        %p440 = scmp.lt.s32.totalorder %s25, 1
        %s441 = scalar_select %p440, %s25, 1
        %s442 = scalar_lea.vmem %s2, %s441
      $region52: #{dit_block_forward.13} parent=39 // pred_fallthru
        _
    $region40: #{dit_block_forward.13} parent=5 // pred_fallthru
      _
    %p443 = scmp.le.s32.totalorder 1, %s18
    %p444 = scmp.lt.s32.totalorder %s18, 3
    %p445 = pnand %p443, %p444
    %p446 = pneg %p445
    // Predicated region
    $region53: #{dit_block_forward.13} parent=5 // pred_check
      _
    $region54: #{dit_block_forward.13} parent=5 // pred_check_branch
      %448 = sbr.rel (%p445) target = $region56
    $region55: #{dit_block_forward.13} parent=5 // pred_region
      %s449 = ssub.s32 %s18, 1
      %p450 = scmp.lt.s32.totalorder %s28, 1
      %s451 = scalar_select %p450, %s28, 1
      %p452 = scmp.lt.s32.totalorder %s29, 0
      %s453 = scalar_select %p452, %s29, 0
      %s454 = sadd.s32 %s453, %s451
      %s455 = smul.addr %s454, 8
      %s456 = scalar_lea.vmem %s0, %s455
      %p457 = pneg %p65
      %p458 = pneg %p62
      %p459 = scmp.lt.s32.totalorder %s28, 1
      %s460 = scalar_select %p459, %s28, 1
      %s461 = scalar_lea.vmem %s1, %s460
      %p462 = pneg %p91
      %p463 = pneg %p88
      %p464 = scmp.lt.s32.totalorder %s28, 1
      %s465 = scalar_select %p464, %s28, 1
      %s466 = scalar_lea.vmem %s2, %s465
      %p467 = pneg %p117
      %p468 = pneg %p114
      %p469 = scmp.lt.s32.totalorder %s30, 0
      %s470 = scalar_select %p469, %s30, 0
      %s471 = smul.addr %s470, 4
      %s472 = scalar_lea.vmem %s3, %s471
      %p473 = pneg %p143
      %p474 = pneg %p140
      %p475 = scmp.lt.s32.totalorder %s30, 0
      %s476 = scalar_select %p475, %s30, 0
      %s477 = smul.addr %s476, 4
      %s478 = scalar_lea.vmem %s4, %s477
      %p479 = pneg %p169
      %p480 = pneg %p166
      %p481 = scmp.lt.s32.totalorder %s30, 0
      %s482 = scalar_select %p481, %s30, 0
      %s483 = smul.addr %s482, 4
      %s484 = scalar_lea.vmem %s5, %s483
      %p485 = pneg %p195
      %p486 = pneg %p192
      %p487 = scmp.lt.s32.totalorder %s30, 0
      %s488 = scalar_select %p487, %s30, 0
      %s489 = scalar_lea.vmem %s6, %s488
      %p490 = pneg %p221
      %p491 = pneg %p218
      %p492 = scmp.lt.s32.totalorder %s30, 0
      %s493 = scalar_select %p492, %s30, 0
      %s494 = scalar_lea.vmem %s7, %s493
      %p495 = pneg %p247
      %p496 = pneg %p244
      %p497 = scmp.lt.s32.totalorder %s30, 0
      %s498 = scalar_select %p497, %s30, 0
      %s499 = scalar_lea.vmem %s8, %s498
      %p500 = pneg %p273
      %p501 = pneg %p270
      %p502 = pneg %p303
      %p503 = pneg %p300
      %p504 = scmp.lt.s32.totalorder %s28, 1
      %s505 = scalar_select %p504, %s28, 1
      %p506 = scmp.lt.s32.totalorder %s29, 0
      %s507 = scalar_select %p506, %s29, 0
      %p508 = scmp.lt.s32.totalorder %s30, 0
      %s509 = scalar_select %p508, %s30, 0
      %s510 = sadd.s32 %s509, %s507
      %s511 = sadd.s32 %s510, %s505
      %s512 = smul.addr %s511, 4
      %s513 = scalar_lea.vmem %s9, %s512
      %p514 = pneg %p333
      %p515 = pneg %p330
      %p516 = scmp.lt.s32.totalorder %s28, 1
      %s517 = scalar_select %p516, %s28, 1
      %p518 = scmp.lt.s32.totalorder %s29, 0
      %s519 = scalar_select %p518, %s29, 0
      %p520 = scmp.lt.s32.totalorder %s30, 0
      %s521 = scalar_select %p520, %s30, 0
      %s522 = sadd.s32 %s521, %s519
      %s523 = sadd.s32 %s522, %s517
      %s524 = smul.addr %s523, 4
      %s525 = scalar_lea.vmem %s10, %s524
      %p526 = pneg %p363
      %p527 = pneg %p360
      %p528 = scmp.lt.s32.totalorder %s28, 1
      %s529 = scalar_select %p528, %s28, 1
      %p530 = scmp.lt.s32.totalorder %s29, 0
      %s531 = scalar_select %p530, %s29, 0
      %p532 = scmp.lt.s32.totalorder %s30, 0
      %s533 = scalar_select %p532, %s30, 0
      %s534 = sadd.s32 %s533, %s531
      %s535 = sadd.s32 %s534, %s529
      %s536 = smul.addr %s535, 4
      %s537 = scalar_lea.vmem %s11, %s536
      %p538 = scmp.lt.s32.totalorder %s28, 1
      %s539 = scalar_select %p538, %s28, 1
      %p540 = scmp.lt.s32.totalorder %s29, 0
      %s541 = scalar_select %p540, %s29, 0
      %s542 = sadd.s32 %s541, %s539
      %s543 = smul.addr %s542, 8
      %s544 = scalar_lea.vmem %s0, %s543
      %p545 = scmp.lt.s32.totalorder %s28, 1
      %s546 = scalar_select %p545, %s28, 1
      %s547 = scalar_lea.vmem %s1, %s546
      %p548 = scmp.lt.s32.totalorder %s28, 1
      %s549 = scalar_select %p548, %s28, 1
      %s550 = scalar_lea.vmem %s2, %s549
      %p551 = scmp.lt.s32.totalorder %s30, 0
      %s552 = scalar_select %p551, %s30, 0
      %s553 = smul.addr %s552, 4
      %s554 = scalar_lea.vmem %s3, %s553
      %p555 = scmp.lt.s32.totalorder %s30, 0
      %s556 = scalar_select %p555, %s30, 0
      %s557 = smul.addr %s556, 4
      %s558 = scalar_lea.vmem %s4, %s557
      %p559 = scmp.lt.s32.totalorder %s30, 0
      %s560 = scalar_select %p559, %s30, 0
      %s561 = smul.addr %s560, 4
      %s562 = scalar_lea.vmem %s5, %s561
      %p563 = scmp.lt.s32.totalorder %s30, 0
      %s564 = scalar_select %p563, %s30, 0
      %s565 = scalar_lea.vmem %s6, %s564
      %p566 = scmp.lt.s32.totalorder %s30, 0
      %s567 = scalar_select %p566, %s30, 0
      %s568 = scalar_lea.vmem %s7, %s567
      %p569 = scmp.lt.s32.totalorder %s30, 0
      %s570 = scalar_select %p569, %s30, 0
      %s571 = scalar_lea.vmem %s8, %s570
      %p572 = scmp.lt.s32.totalorder %s28, 1
      %s573 = scalar_select %p572, %s28, 1
      %p574 = scmp.lt.s32.totalorder %s29, 0
      %s575 = scalar_select %p574, %s29, 0
      %p576 = scmp.lt.s32.totalorder %s30, 0
      %s577 = scalar_select %p576, %s30, 0
      %s578 = sadd.s32 %s577, %s575
      %s579 = sadd.s32 %s578, %s573
      %s580 = smul.addr %s579, 4
      %s581 = scalar_lea.vmem %s9, %s580
      %p582 = scmp.lt.s32.totalorder %s28, 1
      %s583 = scalar_select %p582, %s28, 1
      %p584 = scmp.lt.s32.totalorder %s29, 0
      %s585 = scalar_select %p584, %s29, 0
      %p586 = scmp.lt.s32.totalorder %s30, 0
      %s587 = scalar_select %p586, %s30, 0
      %s588 = sadd.s32 %s587, %s585
      %s589 = sadd.s32 %s588, %s583
      %s590 = smul.addr %s589, 4
      %s591 = scalar_lea.vmem %s10, %s590
      %p592 = scmp.lt.s32.totalorder %s28, 1
      %s593 = scalar_select %p592, %s28, 1
      %p594 = scmp.lt.s32.totalorder %s29, 0
      %s595 = scalar_select %p594, %s29, 0
      %p596 = scmp.lt.s32.totalorder %s30, 0
      %s597 = scalar_select %p596, %s30, 0
      %s598 = sadd.s32 %s597, %s595
      %s599 = sadd.s32 %s598, %s593
      %s600 = smul.addr %s599, 4
      %s601 = scalar_lea.vmem %s11, %s600
      %p603 = scmp.eq.s32.totalorder %s30, 0
      // Predicated region
      $region57: #{dit_block_forward.13} parent=55 // pred_check
        %p604 = pneg %p603
      $region58: #{dit_block_forward.13} parent=55 // pred_check_branch
        %606 = sbr.rel (%p604) target = $region60
      $region59: #{dit_block_forward.13} parent=55 // pred_region
        %v607 = vld [vmem:[%s544] sm:$0xff]
        %vm608 = vcmask 261120
        %v609 = vsel %vm608, %v607, 0.0
        %610 = vadd.xlane.f32.xlu0 %v609
        %v611 = vpop.xlane.xlu0 %610
        %v612 = vrcp.pop 32.0
        %v613 = vmul.f32 %v611, %v612
        %v614 = vsub.f32 %v607, %v613
        %v615 = vmul.f32 %v614, %v614
        %v616 = vsel %vm608, %v615, 0.0
        %617 = vadd.xlane.f32.xlu0 %v616
        %v618 = vpop.xlane.xlu0 %617
        %v619 = vmul.f32 %v618, %v612
        %v620 = vadd.f32 %v619, 1e-06
        %v621 = vrsqrt.pop %v620
        %v622 = vmul.f32 %v614, %v621
        %v623 = vld [vmem:[%s550] sm:$0x1]
        %v624 = vadd.f32 %v623, 1.0
        %v626 = vlaneseq
        %v627 = vshrl.u32 %v626, 7
        %v628 = vsub.s32 0, %v627
        %v629 = vrot.slane %v624, %v628
        %v631 = vmul.f32 %v622, %v629
        %v632 = vld [vmem:[%s547] sm:$0x1]
        %v634 = vlaneseq
        %v635 = vshrl.u32 %v634, 7
        %v636 = vsub.s32 0, %v635
        %v637 = vrot.slane %v632, %v636
        %v639 = vadd.f32 %v631, %v637
        %v640 = vpack.c.bf16 %v639, %v639
        %vm641 = vcmask 257024
        %642 = vst.msk [vmem:[#allocation2] sm:$0xf] %vm641, %v640
      $region60: #{dit_block_forward.13} parent=55 // pred_fallthru
        _
      %v643 = vld [vmem:[#allocation2] sm:$0xf]
      %v644 = vld [vmem:[%s554] sm:$0xf]
      %v645 = vld [vmem:[%s554 + $0x4] sm:$0xf]
      %v646 = vld [vmem:[%s554 + $0x8] sm:$0xf]
      %v647 = vld [vmem:[%s554 + $0xc] sm:$0xf]
      %v648 = vld [vmem:[%s565] sm:$0x1]
      %v650 = vlaneseq
      %v651 = vshrl.u32 %v650, 7
      %v652 = vsub.s32 0, %v651
      %v653 = vrot.slane %v648, %v652
      %v659 = vunpack.c.l.b16 %v644
      %v660 = vunpack.c.l.b16 %v645
      %v661 = vunpack.c.l.b16 %v646
      %v662 = vunpack.c.l.b16 %v647
      %v663 = vpack.c.b16 %v660, %v659
      %v664 = vpack.c.b16 %v662, %v661
      %vm667 = vcmask 261120
      %v669 = vsel %vm667, %v643, 0
      %671 = vmatprep.subr.bf16.mxu0 0
      %672 = vmatpush1.bf16.msra.mxu0 %v663
      %673 = vmatprep.subr.bf16.mxu0 0
      %674 = vmatpush1.bf16.msra.mxu0 %v664
      %675 = vmatprep.subr.bf16.mxu0 0
      %676 = vmatpush1.bf16.msra.mxu0 0
      %677 = vmatprep.subr.bf16.mxu0 0
      %678 = vmatpush1.bf16.msra.mxu0 0
      %679 = vmatprep.subr.bf16.mxu0 0
      %680 = vmatpush1.bf16.msra.mxu0 0
      %681 = vmatprep.subr.bf16.mxu0 0
      %682 = vmatpush1.bf16.msra.mxu0 0
      %683 = vmatprep.subr.bf16.mxu0 0
      %684 = vmatpush1.bf16.msra.mxu0 0
      %685 = vmatprep.subr.bf16.mxu0 0
      %686 = vmatpush1.bf16.msra.mxu0 0
      %687 = vmatprep.subr.bf16.mxu0 0
      %688 = vmatpush1.bf16.msra.mxu0 0
      %689 = vmatprep.subr.bf16.mxu0 0
      %690 = vmatpush1.bf16.msra.mxu0 0
      %691 = vmatprep.subr.bf16.mxu0 0
      %692 = vmatpush1.bf16.msra.mxu0 0
      %693 = vmatprep.subr.bf16.mxu0 0
      %694 = vmatpush1.bf16.msra.mxu0 0
      %695 = vmatprep.subr.bf16.mxu0 0
      %696 = vmatpush1.bf16.msra.mxu0 0
      %697 = vmatprep.subr.bf16.mxu0 0
      %698 = vmatpush1.bf16.msra.mxu0 0
      %699 = vmatprep.subr.bf16.mxu0 0
      %700 = vmatpush1.bf16.msra.mxu0 0
      %701 = vmatprep.subr.bf16.mxu0 0
      %702 = vmatpush1.bf16.msra.mxu0 0
      %703 = vmatprep.mubr.bf16.mxu0 0
      %704 = vmatmul.mubr.bf16.gmra.mrb[0].mxu0 %v669
      %v705 = vpop.f32.mrb[0].mxu0
      %v706 = vadd.f32 %v653, %v705
      %v707 = vpop.f32.mrb[0].mxu0
      %v708 = vpop.f32.mrb[0].mxu0
      %v709 = vpop.f32.mrb[0].mxu0
      %710 = vdwg.mxu0
      %v711 = vpack.c.bf16 %v706, %v706
      %vm712 = vcmask 257024
      %713 = vst.msk [vmem:[%s581] sm:$0xf] %vm712, %v711
      %v714 = vld [vmem:[%s558] sm:$0xf]
      %v715 = vld [vmem:[%s558 + $0x4] sm:$0xf]
      %v716 = vld [vmem:[%s558 + $0x8] sm:$0xf]
      %v717 = vld [vmem:[%s558 + $0xc] sm:$0xf]
      %v718 = vld [vmem:[%s568] sm:$0x1]
      %v720 = vlaneseq
      %v721 = vshrl.u32 %v720, 7
      %v722 = vsub.s32 0, %v721
      %v723 = vrot.slane %v718, %v722
      %v729 = vunpack.c.l.b16 %v714
      %v730 = vunpack.c.l.b16 %v715
      %v731 = vunpack.c.l.b16 %v716
      %v732 = vunpack.c.l.b16 %v717
      %v733 = vpack.c.b16 %v730, %v729
      %v734 = vpack.c.b16 %v732, %v731
      %737 = vmatprep.subr.bf16.mxu0 0
      %738 = vmatpush1.bf16.msra.mxu0 %v733
      %739 = vmatprep.subr.bf16.mxu0 0
      %740 = vmatpush1.bf16.msra.mxu0 %v734
      %741 = vmatprep.subr.bf16.mxu0 0
      %742 = vmatpush1.bf16.msra.mxu0 0
      %743 = vmatprep.subr.bf16.mxu0 0
      %744 = vmatpush1.bf16.msra.mxu0 0
      %745 = vmatprep.subr.bf16.mxu0 0
      %746 = vmatpush1.bf16.msra.mxu0 0
      %747 = vmatprep.subr.bf16.mxu0 0
      %748 = vmatpush1.bf16.msra.mxu0 0
      %749 = vmatprep.subr.bf16.mxu0 0
      %750 = vmatpush1.bf16.msra.mxu0 0
      %751 = vmatprep.subr.bf16.mxu0 0
      %752 = vmatpush1.bf16.msra.mxu0 0
      %753 = vmatprep.subr.bf16.mxu0 0
      %754 = vmatpush1.bf16.msra.mxu0 0
      %755 = vmatprep.subr.bf16.mxu0 0
      %756 = vmatpush1.bf16.msra.mxu0 0
      %757 = vmatprep.subr.bf16.mxu0 0
      %758 = vmatpush1.bf16.msra.mxu0 0
      %759 = vmatprep.subr.bf16.mxu0 0
      %760 = vmatpush1.bf16.msra.mxu0 0
      %761 = vmatprep.subr.bf16.mxu0 0
      %762 = vmatpush1.bf16.msra.mxu0 0
      %763 = vmatprep.subr.bf16.mxu0 0
      %764 = vmatpush1.bf16.msra.mxu0 0
      %765 = vmatprep.subr.bf16.mxu0 0
      %766 = vmatpush1.bf16.msra.mxu0 0
      %767 = vmatprep.subr.bf16.mxu0 0
      %768 = vmatpush1.bf16.msra.mxu0 0
      %769 = vmatprep.mubr.bf16.mxu0 0
      %770 = vmatmul.mubr.bf16.gmra.mrb[0].mxu0 %v669
      %v771 = vpop.f32.mrb[0].mxu0
      %v772 = vadd.f32 %v723, %v771
      %v773 = vpop.f32.mrb[0].mxu0
      %v774 = vpop.f32.mrb[0].mxu0
      %v775 = vpop.f32.mrb[0].mxu0
      %776 = vdwg.mxu0
      %v777 = vpack.c.bf16 %v772, %v772
      %778 = vst.msk [vmem:[%s591] sm:$0xf] %vm712, %v777
      %v779 = vld [vmem:[%s562] sm:$0xf]
      %v780 = vld [vmem:[%s562 + $0x4] sm:$0xf]
      %v781 = vld [vmem:[%s562 + $0x8] sm:$0xf]
      %v782 = vld [vmem:[%s562 + $0xc] sm:$0xf]
      %v783 = vld [vmem:[%s571] sm:$0x1]
      %v785 = vlaneseq
      %v786 = vshrl.u32 %v785, 7
      %v787 = vsub.s32 0, %v786
      %v788 = vrot.slane %v783, %v787
      %v794 = vunpack.c.l.b16 %v779
      %v795 = vunpack.c.l.b16 %v780
      %v796 = vunpack.c.l.b16 %v781
      %v797 = vunpack.c.l.b16 %v782
      %v798 = vpack.c.b16 %v795, %v794
      %v799 = vpack.c.b16 %v797, %v796
      %802 = vmatprep.subr.bf16.mxu0 0
      %803 = vmatpush1.bf16.msra.mxu0 %v798
      %804 = vmatprep.subr.bf16.mxu0 0
      %805 = vmatpush1.bf16.msra.mxu0 %v799
      %806 = vmatprep.subr.bf16.mxu0 0
      %807 = vmatpush1.bf16.msra.mxu0 0
      %808 = vmatprep.subr.bf16.mxu0 0
      %809 = vmatpush1.bf16.msra.mxu0 0
      %810 = vmatprep.subr.bf16.mxu0 0
      %811 = vmatpush1.bf16.msra.mxu0 0
      %812 = vmatprep.subr.bf16.mxu0 0
      %813 = vmatpush1.bf16.msra.mxu0 0
      %814 = vmatprep.subr.bf16.mxu0 0
      %815 = vmatpush1.bf16.msra.mxu0 0
      %816 = vmatprep.subr.bf16.mxu0 0
      %817 = vmatpush1.bf16.msra.mxu0 0
      %818 = vmatprep.subr.bf16.mxu0 0
      %819 = vmatpush1.bf16.msra.mxu0 0
      %820 = vmatprep.subr.bf16.mxu0 0
      %821 = vmatpush1.bf16.msra.mxu0 0
      %822 = vmatprep.subr.bf16.mxu0 0
      %823 = vmatpush1.bf16.msra.mxu0 0
      %824 = vmatprep.subr.bf16.mxu0 0
      %825 = vmatpush1.bf16.msra.mxu0 0
      %826 = vmatprep.subr.bf16.mxu0 0
      %827 = vmatpush1.bf16.msra.mxu0 0
      %828 = vmatprep.subr.bf16.mxu0 0
      %829 = vmatpush1.bf16.msra.mxu0 0
      %830 = vmatprep.subr.bf16.mxu0 0
      %831 = vmatpush1.bf16.msra.mxu0 0
      %832 = vmatprep.subr.bf16.mxu0 0
      %833 = vmatpush1.bf16.msra.mxu0 0
      %834 = vmatprep.mubr.bf16.mxu0 0
      %835 = vmatmul.mubr.bf16.gmra.mrb[0].mxu0 %v669
      %v836 = vpop.f32.mrb[0].mxu0
      %v837 = vadd.f32 %v788, %v836
      %v838 = vpop.f32.mrb[0].mxu0
      %v839 = vpop.f32.mrb[0].mxu0
      %v840 = vpop.f32.mrb[0].mxu0
      %841 = vdwg.mxu0
      %v842 = vpack.c.bf16 %v837, %v837
      %843 = vst.msk [vmem:[%s601] sm:$0xf] %vm712, %v842
      %p844 = scmp.lt.s32.totalorder %s28, 1
      %s845 = scalar_select %p844, %s28, 1
      %p846 = scmp.lt.s32.totalorder %s29, 0
      %s847 = scalar_select %p846, %s29, 0
      %p848 = scmp.lt.s32.totalorder %s30, 0
      %s849 = scalar_select %p848, %s30, 0
      %s850 = sadd.s32 %s849, %s847
      %s851 = sadd.s32 %s850, %s845
      %s852 = smul.addr %s851, 4
      %s853 = scalar_lea.vmem %s9, %s852
      %p854 = scmp.lt.s32.totalorder %s28, 1
      %s855 = scalar_select %p854, %s28, 1
      %p856 = scmp.lt.s32.totalorder %s29, 0
      %s857 = scalar_select %p856, %s29, 0
      %p858 = scmp.lt.s32.totalorder %s30, 0
      %s859 = scalar_select %p858, %s30, 0
      %s860 = sadd.s32 %s859, %s857
      %s861 = sadd.s32 %s860, %s855
      %s862 = smul.addr %s861, 4
      %s863 = scalar_lea.vmem %s10, %s862
      %p864 = scmp.lt.s32.totalorder %s28, 1
      %s865 = scalar_select %p864, %s28, 1
      %p866 = scmp.lt.s32.totalorder %s29, 0
      %s867 = scalar_select %p866, %s29, 0
      %p868 = scmp.lt.s32.totalorder %s30, 0
      %s869 = scalar_select %p868, %s30, 0
      %s870 = sadd.s32 %s869, %s867
      %s871 = sadd.s32 %s870, %s865
      %s872 = smul.addr %s871, 4
      %s873 = scalar_lea.vmem %s11, %s872
      // Predicated region
      $region61: #{dit_block_forward.13} parent=55 // pred_check
        %p874 = pneg %p300
      $region62: #{dit_block_forward.13} parent=55 // pred_check_branch
        %876 = sbr.rel (%p874) target = $region64
      $region63: #{dit_block_forward.13} parent=55 // pred_region
        _
      $region64: #{dit_block_forward.13} parent=55 // pred_fallthru
        _
      // Predicated region
      $region65: #{dit_block_forward.13} parent=55 // pred_check
        %p877 = pneg %p330
      $region66: #{dit_block_forward.13} parent=55 // pred_check_branch
        %879 = sbr.rel (%p877) target = $region68
      $region67: #{dit_block_forward.13} parent=55 // pred_region
        _
      $region68: #{dit_block_forward.13} parent=55 // pred_fallthru
        _
      // Predicated region
      $region69: #{dit_block_forward.13} parent=55 // pred_check
        %p880 = pneg %p360
      $region70: #{dit_block_forward.13} parent=55 // pred_check_branch
        %882 = sbr.rel (%p880) target = $region72
      $region71: #{dit_block_forward.13} parent=55 // pred_region
        _
      $region72: #{dit_block_forward.13} parent=55 // pred_fallthru
        _
    $region56: #{dit_block_forward.13} parent=5 // pred_fallthru
      _
    %p883 = scmp.le.s32.totalorder 2, %s18
    // Predicated region
    $region73: #{dit_block_forward.13} parent=5 // pred_check
      %p884 = pneg %p883
    $region74: #{dit_block_forward.13} parent=5 // pred_check_branch
      %886 = sbr.rel (%p884) target = $region76
    $region75: #{dit_block_forward.13} parent=5 // pred_region
      %s887 = ssub.s32 %s18, 2
      // Predicated region
      $region77: #{dit_block_forward.13} parent=75 // pred_check
        %p888 = pneg %p306
      $region78: #{dit_block_forward.13} parent=75 // pred_check_branch
        %890 = sbr.rel (%p888) target = $region80
      $region79: #{dit_block_forward.13} parent=75 // pred_region
        %p891 = scmp.lt.s32.totalorder %s31, 1
        %s892 = scalar_select %p891, %s31, 1
        %p893 = scmp.lt.s32.totalorder %s32, 0
        %s894 = scalar_select %p893, %s32, 0
        %p895 = scmp.lt.s32.totalorder %s33, 0
        %s896 = scalar_select %p895, %s33, 0
        %s897 = sadd.s32 %s896, %s894
        %s898 = sadd.s32 %s897, %s892
        %s899 = smul.addr %s898, 4
        %s900 = scalar_lea.vmem %s9, %s899
      $region80: #{dit_block_forward.13} parent=75 // pred_fallthru
        _
      // Predicated region
      $region81: #{dit_block_forward.13} parent=75 // pred_check
        %p901 = pneg %p336
      $region82: #{dit_block_forward.13} parent=75 // pred_check_branch
        %903 = sbr.rel (%p901) target = $region84
      $region83: #{dit_block_forward.13} parent=75 // pred_region
        %p904 = scmp.lt.s32.totalorder %s31, 1
        %s905 = scalar_select %p904, %s31, 1
        %p906 = scmp.lt.s32.totalorder %s32, 0
        %s907 = scalar_select %p906, %s32, 0
        %p908 = scmp.lt.s32.totalorder %s33, 0
        %s909 = scalar_select %p908, %s33, 0
        %s910 = sadd.s32 %s909, %s907
        %s911 = sadd.s32 %s910, %s905
        %s912 = smul.addr %s911, 4
        %s913 = scalar_lea.vmem %s10, %s912
      $region84: #{dit_block_forward.13} parent=75 // pred_fallthru
        _
      // Predicated region
      $region85: #{dit_block_forward.13} parent=75 // pred_check
        %p914 = pneg %p366
      $region86: #{dit_block_forward.13} parent=75 // pred_check_branch
        %916 = sbr.rel (%p914) target = $region88
      $region87: #{dit_block_forward.13} parent=75 // pred_region
        %p917 = scmp.lt.s32.totalorder %s31, 1
        %s918 = scalar_select %p917, %s31, 1
        %p919 = scmp.lt.s32.totalorder %s32, 0
        %s920 = scalar_select %p919, %s32, 0
        %p921 = scmp.lt.s32.totalorder %s33, 0
        %s922 = scalar_select %p921, %s33, 0
        %s923 = sadd.s32 %s922, %s920
        %s924 = sadd.s32 %s923, %s918
        %s925 = smul.addr %s924, 4
        %s926 = scalar_lea.vmem %s11, %s925
      $region88: #{dit_block_forward.13} parent=75 // pred_fallthru
        _
    $region76: #{dit_block_forward.13} parent=5 // pred_fallthru
      _
  $region6: #{dit_block_forward.13} parent=0 // loop_footer
    %s22 = sadd.s32 1, %s18
  $region7: #{dit_block_forward.13} parent=0 // loop_footer_branch
    %17 = sbr.rel target = $region3
  $region8: #{dit_block_forward.13} parent=0 // loop_exit
    _

// kernel: dit_block_forward.15
$region0: #{dit_block_forward.15}
  #allocation0 [shape = 'u32[]', space=smem, size = 0x4, offset = 0x4, fixed_abs, tag = 'smem constant byte address 0x4 - core index']
  #allocation1 [shape = 'u32[144,128]{1,0:T(1,128)}', space=vmem, size = 0x12000, scoped, tag = 'internal scratch']
  #allocation2 [shape = 'f32[8,32]{1,0:T(8,128)}', space=vmem, size = 0x1000, scoped, tag = 'scratch operand']
  %s0 = inlined_call_operand.vmem [shape: bf16[2,8,32], index: 0, kind: input, shape index: {}]
  %s1 = inlined_call_operand.vmem [shape: bf16[32,32], index: 1, kind: input, shape index: {}]
  %s2 = inlined_call_operand.vmem [shape: f32[1,32], index: 2, kind: input, shape index: {}]
  %s3 = inlined_call_operand.vmem [shape: f32[2,8,32], index: 3, kind: input, shape index: {}]
  %s4 = inlined_call_operand.vmem [shape: f32[2,8,32], index: 4, kind: output, shape index: {}]
  %s5 = sld [smem:[#allocation0]]
  $region57: #{dit_block_forward.15} parent=0
    _
  %s7 = ssub.s32 1, %s5
  %s8 = scalar_select 0, %s7, %s5
  loop: start=0, step=1, limit=4
  $region2: #{dit_block_forward.15} parent=0 // loop_pre_header
    _
  $region3: #{dit_block_forward.15} parent=0 // loop_header
    %s10 = sphi 0, %s14
    %p11 = scmp.ge.s32.totalorder %s10, 4
    %s17 = sphi 0, %s43
    %s18 = sphi 0, %s39
    %s19 = sphi 0, %s35
    %s20 = sphi 0, %s31
    %s21 = sphi 0, %s17
    %s22 = sphi 0, %s18
    %s23 = sphi 0, %s19
    %s24 = sphi 0, %s20
    %s25 = sphi 0, %s21
    %s26 = sphi 0, %s22
    %s27 = sphi 0, %s23
    %s28 = sphi 0, %s24
    %s50 = sphi 0, %s52
    %s53 = sphi 0, %s50
    %s54 = sphi 0, %s53
    %s70 = sphi 0, %s54
    %s78 = sphi 0, %s80
    %s81 = sphi 0, %s78
    %s82 = sphi 0, %s81
    %s98 = sphi 0, %s82
    %s104 = sphi 0, %s106
    %s107 = sphi 0, %s104
    %s108 = sphi 0, %s107
    %s124 = sphi 0, %s108
    %s134 = sphi 0, %s136
    %s137 = sphi 0, %s134
    %s138 = sphi 0, %s137
    %s154 = sphi 0, %s138
    %s164 = sphi 0, %s166
    %s167 = sphi 0, %s164
    %s168 = sphi 0, %s167
    %s184 = sphi 0, %s168
  $region4: #{dit_block_forward.15} parent=0 // loop_header_branch
    %13 = sbr.rel (%p11) target = $region8
  $region5: #{dit_block_forward.15} parent=0 // loop_body
    %s15 = ssub.s32 %s10, 1
    %s16 = ssub.s32 %s10, 2
    %s29 = sadd.s32 1, %s20
    %p30 = scmp.ge.s32.totalorder %s29, 1
    %s31 = scalar_select %p30, 0, %s29
    %s32 = sadd.s32 1, %s19
    %s33 = scalar_select %p30, %s32, %s19
    %p34 = scmp.ge.s32.totalorder %s33, 1
    %s35 = scalar_select %p34, 0, %s33
    %s36 = sadd.s32 1, %s18
    %s37 = scalar_select %p34, %s36, %s18
    %p38 = scmp.ge.s32.totalorder %s37, 1
    %s39 = scalar_select %p38, 0, %s37
    %s40 = sadd.s32 1, %s17
    %s41 = scalar_select %p38, %s40, %s17
    %p42 = scmp.ge.s32.totalorder %s41, 2
    %s43 = scalar_select %p42, 0, %s41
    %s44 = ssub.s32 %s17, %s43
    %s45 = ssub.s32 %s18, %s39
    %s46 = sor.u32 %s44, %s45
    %s47 = ssub.s32 %s20, %s31
    %s48 = sor.u32 %s46, %s47
    %p49 = scmp.eq.s32.totalorder %s48, 0
    %s51 = sadd.s32 %s50, 1
    %s52 = scalar_select %p49, %s50, %s51
    %p55 = pneg %p49
    %p56 = scmp.eq.s32.totalorder %s10, 1
    %p57 = por %p55, %p56
    %p58 = scmp.ne.s32.totalorder %s50, %s53
    %p59 = scmp.eq.s32.totalorder %s10, 0
    %p60 = por %p58, %p59
    %p61 = scmp.ne.s32.totalorder %s50, %s53
    %p62 = scmp.eq.s32.totalorder %s15, 1
    %p63 = por %p61, %p62
    %p64 = scmp.ne.s32.totalorder %s53, %s54
    %p65 = scmp.eq.s32.totalorder %s15, 0
    %p66 = por %p64, %p65
    %p67 = scmp.ne.s32.totalorder %s53, %s54
    %p68 = scmp.eq.s32.totalorder %s16, 1
    %p69 = por %p67, %p68
    %p71 = scmp.ne.s32.totalorder %s54, %s70
    %p72 = scmp.eq.s32.totalorder %s16, 0
    %p73 = por %p71, %p72
    %s74 = ssub.s32 %s20, %s31
    %s75 = ssub.s32 %s19, %s35
    %s76 = sor.u32 %s74, %s75
    %p77 = scmp.eq.s32.totalorder %s76, 0
    %s79 = sadd.s32 %s78, 1
    %s80 = scalar_select %p77, %s78, %s79
    %p83 = pneg %p77
    %p84 = scmp.eq.s32.totalorder %s10, 1
    %p85 = por %p83, %p84
    %p86 = scmp.ne.s32.totalorder %s78, %s81
    %p87 = scmp.eq.s32.totalorder %s10, 0
    %p88 = por %p86, %p87
    %p89 = scmp.ne.s32.totalorder %s78, %s81
    %p90 = scmp.eq.s32.totalorder %s15, 1
    %p91 = por %p89, %p90
    %p92 = scmp.ne.s32.totalorder %s81, %s82
    %p93 = scmp.eq.s32.totalorder %s15, 0
    %p94 = por %p92, %p93
    %p95 = scmp.ne.s32.totalorder %s81, %s82
    %p96 = scmp.eq.s32.totalorder %s16, 1
    %p97 = por %p95, %p96
    %p99 = scmp.ne.s32.totalorder %s82, %s98
    %p100 = scmp.eq.s32.totalorder %s16, 0
    %p101 = por %p99, %p100
    %s102 = ssub.s32 %s19, %s35
    %p103 = scmp.eq.s32.totalorder %s102, 0
    %s105 = sadd.s32 %s104, 1
    %s106 = scalar_select %p103, %s104, %s105
    %p109 = pneg %p103
    %p110 = scmp.eq.s32.totalorder %s10, 1
    %p111 = por %p109, %p110
    %p112 = scmp.ne.s32.totalorder %s104, %s107
    %p113 = scmp.eq.s32.totalorder %s10, 0
    %p114 = por %p112, %p113
    %p115 = scmp.ne.s32.totalorder %s104, %s107
    %p116 = scmp.eq.s32.totalorder %s15, 1
    %p117 = por %p115, %p116
    %p118 = scmp.ne.s32.totalorder %s107, %s108
    %p119 = scmp.eq.s32.totalorder %s15, 0
    %p120 = por %p118, %p119
    %p121 = scmp.ne.s32.totalorder %s107, %s108
    %p122 = scmp.eq.s32.totalorder %s16, 1
    %p123 = por %p121, %p122
    %p125 = scmp.ne.s32.totalorder %s108, %s124
    %p126 = scmp.eq.s32.totalorder %s16, 0
    %p127 = por %p125, %p126
    %s128 = ssub.s32 %s17, %s43
    %s129 = ssub.s32 %s18, %s39
    %s130 = sor.u32 %s128, %s129
    %s131 = ssub.s32 %s19, %s35
    %s132 = sor.u32 %s130, %s131
    %p133 = scmp.eq.s32.totalorder %s132, 0
    %s135 = sadd.s32 %s134, 1
    %s136 = scalar_select %p133, %s134, %s135
    %p139 = pneg %p133
    %p140 = scmp.eq.s32.totalorder %s10, 1
    %p141 = por %p139, %p140
    %p142 = scmp.ne.s32.totalorder %s134, %s137
    %p143 = scmp.eq.s32.totalorder %s10, 0
    %p144 = por %p142, %p143
    %p145 = scmp.ne.s32.totalorder %s134, %s137
    %p146 = scmp.eq.s32.totalorder %s15, 1
    %p147 = por %p145, %p146
    %p148 = scmp.ne.s32.totalorder %s137, %s138
    %p149 = scmp.eq.s32.totalorder %s15, 0
    %p150 = por %p148, %p149
    %p151 = scmp.ne.s32.totalorder %s137, %s138
    %p152 = scmp.eq.s32.totalorder %s16, 1
    %p153 = por %p151, %p152
    %p155 = scmp.ne.s32.totalorder %s138, %s154
    %p156 = scmp.eq.s32.totalorder %s16, 0
    %p157 = por %p155, %p156
    %s158 = ssub.s32 %s17, %s43
    %s159 = ssub.s32 %s18, %s39
    %s160 = sor.u32 %s158, %s159
    %s161 = ssub.s32 %s19, %s35
    %s162 = sor.u32 %s160, %s161
    %p163 = scmp.eq.s32.totalorder %s162, 0
    %s165 = sadd.s32 %s164, 1
    %s166 = scalar_select %p163, %s164, %s165
    %p169 = pneg %p163
    %p170 = scmp.eq.s32.totalorder %s10, 1
    %p171 = por %p169, %p170
    %p172 = scmp.ne.s32.totalorder %s164, %s167
    %p173 = scmp.eq.s32.totalorder %s10, 0
    %p174 = por %p172, %p173
    %p175 = scmp.ne.s32.totalorder %s164, %s167
    %p176 = scmp.eq.s32.totalorder %s15, 1
    %p177 = por %p175, %p176
    %p178 = scmp.ne.s32.totalorder %s167, %s168
    %p179 = scmp.eq.s32.totalorder %s15, 0
    %p180 = por %p178, %p179
    %p181 = scmp.ne.s32.totalorder %s167, %s168
    %p182 = scmp.eq.s32.totalorder %s16, 1
    %p183 = por %p181, %p182
    %p185 = scmp.ne.s32.totalorder %s168, %s184
    %p186 = scmp.eq.s32.totalorder %s16, 0
    %p187 = por %p185, %p186
    %p188 = scmp.le.s32.totalorder 1, %s10
    %p189 = scmp.lt.s32.totalorder %s10, 3
    %p190 = pnand %p188, %p189
    %p191 = pneg %p190
    // Predicated region
    $region9: #{dit_block_forward.15} parent=5 // pred_check
      _
    $region10: #{dit_block_forward.15} parent=5 // pred_check_branch
      %193 = sbr.rel (%p190) target = $region12
    $region11: #{dit_block_forward.15} parent=5 // pred_region
      %s194 = ssub.s32 %s10, 1
      // Predicated region
      $region13: #{dit_block_forward.15} parent=11 // pred_check
        %p195 = pneg %p94
      $region14: #{dit_block_forward.15} parent=11 // pred_check_branch
        %197 = sbr.rel (%p195) target = $region16
      $region15: #{dit_block_forward.15} parent=11 // pred_region
        %s198 = smul.u32 4, %s24
        %p199 = scmp.lt.s32.totalorder %s198, 3
        %s200 = scalar_select %p199, %s198, 3
        %p201 = scmp.lt.s32.totalorder %s23, 0
        %s202 = scalar_select %p201, %s23, 0
        %s203 = sadd.s32 %s202, %s200
        %s204 = smul.addr %s203, 4
        %s205 = scalar_lea.vmem %s1, %s204
        %s206 = smul.u32 4, %s24
      $region16: #{dit_block_forward.15} parent=11 // pred_fallthru
        _
      // Predicated region
      $region17: #{dit_block_forward.15} parent=11 // pred_check
        %p207 = pneg %p120
      $region18: #{dit_block_forward.15} parent=11 // pred_check_branch
        %209 = sbr.rel (%p207) target = $region20
      $region19: #{dit_block_forward.15} parent=11 // pred_region
        %p210 = scmp.lt.s32.totalorder %s23, 0
        %s211 = scalar_select %p210, %s23, 0
        %s212 = scalar_lea.vmem %s2, %s211
      $region20: #{dit_block_forward.15} parent=11 // pred_fallthru
        _
    $region12: #{dit_block_forward.15} parent=5 // pred_fallthru
      _
    %p213 = scmp.lt.s32.totalorder %s10, 2
    // Predicated region
    $region21: #{dit_block_forward.15} parent=5 // pred_check
      %p214 = pneg %p213
    $region22: #{dit_block_forward.15} parent=5 // pred_check_branch
      %216 = sbr.rel (%p214) target = $region24
    $region23: #{dit_block_forward.15} parent=5 // pred_region
      // Predicated region
      $region25: #{dit_block_forward.15} parent=23 // pred_check
        %p217 = pneg %p60
      $region26: #{dit_block_forward.15} parent=23 // pred_check_branch
        %219 = sbr.rel (%p217) target = $region28
      $region27: #{dit_block_forward.15} parent=23 // pred_region
        %p220 = scmp.lt.s32.totalorder %s17, 1
        %s221 = scalar_select %p220, %s17, 1
        %p222 = scmp.lt.s32.totalorder %s18, 0
        %s223 = scalar_select %p222, %s18, 0
        %p224 = scmp.lt.s32.totalorder %s20, 0
        %s225 = scalar_select %p224, %s20, 0
        %s226 = sadd.s32 %s225, %s223
        %s227 = sadd.s32 %s226, %s221
        %s228 = smul.addr %s227, 4
        %s229 = scalar_lea.vmem %s0, %s228
      $region28: #{dit_block_forward.15} parent=23 // pred_fallthru
        _
      // Predicated region
      $region29: #{dit_block_forward.15} parent=23 // pred_check
        %p230 = pneg %p144
      $region30: #{dit_block_forward.15} parent=23 // pred_check_branch
        %232 = sbr.rel (%p230) target = $region32
      $region31: #{dit_block_forward.15} parent=23 // pred_region
        %p233 = scmp.lt.s32.totalorder %s17, 1
        %s234 = scalar_select %p233, %s17, 1
        %p235 = scmp.lt.s32.totalorder %s18, 0
        %s236 = scalar_select %p235, %s18, 0
        %p237 = scmp.lt.s32.totalorder %s19, 0
        %s238 = scalar_select %p237, %s19, 0
        %s239 = sadd.s32 %s238, %s236
        %s240 = sadd.s32 %s239, %s234
        %s241 = smul.addr %s240, 8
        %s242 = scalar_lea.vmem %s3, %s241
      $region32: #{dit_block_forward.15} parent=23 // pred_fallthru
        _
    $region24: #{dit_block_forward.15} parent=5 // pred_fallthru
      _
    %p243 = scmp.le.s32.totalorder 1, %s10
    %p244 = scmp.lt.s32.totalorder %s10, 3
    %p245 = pnand %p243, %p244
    %p246 = pneg %p245
    // Predicated region
    $region33: #{dit_block_forward.15} parent=5 // pred_check
      _
    $region34: #{dit_block_forward.15} parent=5 // pred_check_branch
      %248 = sbr.rel (%p245) target = $region36
    $region35: #{dit_block_forward.15} parent=5 // pred_region
      %s249 = ssub.s32 %s10, 1
      %p250 = scmp.lt.s32.totalorder %s21, 1
      %s251 = scalar_select %p250, %s21, 1
      %p252 = scmp.lt.s32.totalorder %s22, 0
      %s253 = scalar_select %p252, %s22, 0
      %p254 = scmp.lt.s32.totalorder %s24, 0
      %s255 = scalar_select %p254, %s24, 0
      %s256 = sadd.s32 %s255, %s253
      %s257 = sadd.s32 %s256, %s251
      %s258 = smul.addr %s257, 4
      %s259 = scalar_lea.vmem %s0, %s258
      %p260 = pneg %p66
      %p261 = pneg %p63
      %s262 = smul.u32 4, %s24
      %p263 = scmp.lt.s32.totalorder %s262, 3
      %s264 = scalar_select %p263, %s262, 3
      %p265 = scmp.lt.s32.totalorder %s23, 0
      %s266 = scalar_select %p265, %s23, 0
      %s267 = sadd.s32 %s266, %s264
      %s268 = smul.addr %s267, 4
      %s269 = scalar_lea.vmem %s1, %s268
      %p270 = pneg %p94
      %p271 = pneg %p91
      %p272 = scmp.lt.s32.totalorder %s23, 0
      %s273 = scalar_select %p272, %s23, 0
      %s274 = scalar_lea.vmem %s2, %s273
      %p275 = pneg %p120
      %p276 = pneg %p117
      %p277 = scmp.lt.s32.totalorder %s21, 1
      %s278 = scalar_select %p277, %s21, 1
      %p279 = scmp.lt.s32.totalorder %s22, 0
      %s280 = scalar_select %p279, %s22, 0
      %p281 = scmp.lt.s32.totalorder %s23, 0
      %s282 = scalar_select %p281, %s23, 0
      %s283 = sadd.s32 %s282, %s280
      %s284 = sadd.s32 %s283, %s278
      %s285 = smul.addr %s284, 8
      %s286 = scalar_lea.vmem %s3, %s285
      %p287 = pneg %p150
      %p288 = pneg %p147
      %p289 = pneg %p180
      %p290 = pneg %p177
      %p291 = scmp.lt.s32.totalorder %s21, 1
      %s292 = scalar_select %p291, %s21, 1
      %p293 = scmp.lt.s32.totalorder %s22, 0
      %s294 = scalar_select %p293, %s22, 0
      %p295 = scmp.lt.s32.totalorder %s23, 0
      %s296 = scalar_select %p295, %s23, 0
      %s297 = sadd.s32 %s296, %s294
      %s298 = sadd.s32 %s297, %s292
      %s299 = smul.addr %s298, 8
      %s300 = scalar_lea.vmem %s4, %s299
      %p301 = scmp.lt.s32.totalorder %s21, 1
      %s302 = scalar_select %p301, %s21, 1
      %p303 = scmp.lt.s32.totalorder %s22, 0
      %s304 = scalar_select %p303, %s22, 0
      %p305 = scmp.lt.s32.totalorder %s24, 0
      %s306 = scalar_select %p305, %s24, 0
      %s307 = sadd.s32 %s306, %s304
      %s308 = sadd.s32 %s307, %s302
      %s309 = smul.addr %s308, 4
      %s310 = scalar_lea.vmem %s0, %s309
      %s311 = smul.u32 4, %s24
      %p312 = scmp.lt.s32.totalorder %s311, 3
      %s313 = scalar_select %p312, %s311, 3
      %p314 = scmp.lt.s32.totalorder %s23, 0
      %s315 = scalar_select %p314, %s23, 0
      %s316 = sadd.s32 %s315, %s313
      %s317 = smul.addr %s316, 4
      %s318 = scalar_lea.vmem %s1, %s317
      %s319 = smul.u32 4, %s24
      %p320 = scmp.lt.s32.totalorder %s23, 0
      %s321 = scalar_select %p320, %s23, 0
      %s322 = scalar_lea.vmem %s2, %s321
      %p323 = scmp.lt.s32.totalorder %s21, 1
      %s324 = scalar_select %p323, %s21, 1
      %p325 = scmp.lt.s32.totalorder %s22, 0
      %s326 = scalar_select %p325, %s22, 0
      %p327 = scmp.lt.s32.totalorder %s23, 0
      %s328 = scalar_select %p327, %s23, 0
      %s329 = sadd.s32 %s328, %s326
      %s330 = sadd.s32 %s329, %s324
      %s331 = smul.addr %s330, 8
      %s332 = scalar_lea.vmem %s3, %s331
      %p333 = scmp.lt.s32.totalorder %s21, 1
      %s334 = scalar_select %p333, %s21, 1
      %p335 = scmp.lt.s32.totalorder %s22, 0
      %s336 = scalar_select %p335, %s22, 0
      %p337 = scmp.lt.s32.totalorder %s23, 0
      %s338 = scalar_select %p337, %s23, 0
      %s339 = sadd.s32 %s338, %s336
      %s340 = sadd.s32 %s339, %s334
      %s341 = smul.addr %s340, 8
      %s342 = scalar_lea.vmem %s4, %s341
      %p344 = scmp.eq.s32.totalorder %s24, 0
      // Predicated region
      $region37: #{dit_block_forward.15} parent=35 // pred_check
        %p345 = pneg %p344
      $region38: #{dit_block_forward.15} parent=35 // pred_check_branch
        %347 = sbr.rel (%p345) target = $region40
      $region39: #{dit_block_forward.15} parent=35 // pred_region
        %vm348 = vcmask 261120
        %349 = vst.msk [vmem:[#allocation2] sm:$0xff] %vm348, 0.0
      $region40: #{dit_block_forward.15} parent=35 // pred_fallthru
        _
      %v350 = vld [vmem:[#allocation2] sm:$0xff]
      %v351 = vld [vmem:[%s310] sm:$0xf]
      %v352 = vld [vmem:[%s318] sm:$0xf]
      %v353 = vld [vmem:[%s318 + $0x4] sm:$0xf]
      %v354 = vld [vmem:[%s318 + $0x8] sm:$0xf]
      %v355 = vld [vmem:[%s318 + $0xc] sm:$0xf]
      %v360 = vunpack.c.l.b16 %v352
      %v361 = vunpack.c.l.b16 %v353
      %v362 = vunpack.c.l.b16 %v354
      %v363 = vunpack.c.l.b16 %v355
      %v364 = vpack.c.b16 %v361, %v360
      %v365 = vpack.c.b16 %v363, %v362
      %vm368 = vcmask 261120
      %v370 = vsel %vm368, %v351, 0
      %372 = vmatprep.subr.bf16.mxu0 0
      %373 = vmatpush1.bf16.msra.mxu0 %v364
      %374 = vmatprep.subr.bf16.mxu0 0
      %375 = vmatpush1.bf16.msra.mxu0 %v365
      %376 = vmatprep.subr.bf16.mxu0 0
      %377 = vmatpush1.bf16.msra.mxu0 0
      %378 = vmatprep.subr.bf16.mxu0 0
      %379 = vmatpush1.bf16.msra.mxu0 0
      %380 = vmatprep.subr.bf16.mxu0 0
      %381 = vmatpush1.bf16.msra.mxu0 0
      %382 = vmatprep.subr.bf16.mxu0 0
      %383 = vmatpush1.bf16.msra.mxu0 0
      %384 = vmatprep.subr.bf16.mxu0 0
      %385 = vmatpush1.bf16.msra.mxu0 0
      %386 = vmatprep.subr.bf16.mxu0 0
      %387 = vmatpush1.bf16.msra.mxu0 0
      %388 = vmatprep.subr.bf16.mxu0 0
      %389 = vmatpush1.bf16.msra.mxu0 0
      %390 = vmatprep.subr.bf16.mxu0 0
      %391 = vmatpush1.bf16.msra.mxu0 0
      %392 = vmatprep.subr.bf16.mxu0 0
      %393 = vmatpush1.bf16.msra.mxu0 0
      %394 = vmatprep.subr.bf16.mxu0 0
      %395 = vmatpush1.bf16.msra.mxu0 0
      %396 = vmatprep.subr.bf16.mxu0 0
      %397 = vmatpush1.bf16.msra.mxu0 0
      %398 = vmatprep.subr.bf16.mxu0 0
      %399 = vmatpush1.bf16.msra.mxu0 0
      %400 = vmatprep.subr.bf16.mxu0 0
      %401 = vmatpush1.bf16.msra.mxu0 0
      %402 = vmatprep.subr.bf16.mxu0 0
      %403 = vmatpush1.bf16.msra.mxu0 0
      %404 = vmatprep.mubr.bf16.mxu0 0
      %405 = vmatmul.mubr.bf16.gmra.mrb[0].mxu0 %v370
      %v406 = vpop.f32.mrb[0].mxu0
      %v407 = vadd.f32 0.0, %v406
      %v408 = vpop.f32.mrb[0].mxu0
      %v409 = vpop.f32.mrb[0].mxu0
      %v410 = vpop.f32.mrb[0].mxu0
      %411 = vdwg.mxu0
      %v412 = vadd.f32 %v350, %v407
      %413 = vst.msk [vmem:[#allocation2] sm:$0xff] %vm368, %v412
      // Predicated region
      $region41: #{dit_block_forward.15} parent=35 // pred_check
        %p414 = pneg %p344
      $region42: #{dit_block_forward.15} parent=35 // pred_check_branch
        %416 = sbr.rel (%p414) target = $region44
      $region43: #{dit_block_forward.15} parent=35 // pred_region
        %v417 = vld [vmem:[#allocation2] sm:$0xff]
        %v418 = vld [vmem:[%s322] sm:$0x1]
        %v420 = vlaneseq
        %v421 = vshrl.u32 %v420, 7
        %v422 = vsub.s32 0, %v421
        %v423 = vrot.slane %v418, %v422
        %v425 = vadd.f32 %v417, %v423
        %v426 = vld [vmem:[%s332] sm:$0xff]
        %v427 = vadd.f32 %v425, %v426
        %428 = vst.msk [vmem:[%s342] sm:$0xff] %vm368, %v427
      $region44: #{dit_block_forward.15} parent=35 // pred_fallthru
        _
      %p429 = scmp.lt.s32.totalorder %s21, 1
      %s430 = scalar_select %p429, %s21, 1
      %p431 = scmp.lt.s32.totalorder %s22, 0
      %s432 = scalar_select %p431, %s22, 0
      %p433 = scmp.lt.s32.totalorder %s23, 0
      %s434 = scalar_select %p433, %s23, 0
      %s435 = sadd.s32 %s434, %s432
      %s436 = sadd.s32 %s435, %s430
      %s437 = smul.addr %s436, 8
      %s438 = scalar_lea.vmem %s4, %s437
      // Predicated region
      $region45: #{dit_block_forward.15} parent=35 // pred_check
        %p439 = pneg %p177
      $region46: #{dit_block_forward.15} parent=35 // pred_check_branch
        %441 = sbr.rel (%p439) target = $region48
      $region47: #{dit_block_forward.15} parent=35 // pred_region
        _
      $region48: #{dit_block_forward.15} parent=35 // pred_fallthru
        _
    $region36: #{dit_block_forward.15} parent=5 // pred_fallthru
      _
    %p442 = scmp.le.s32.totalorder 2, %s10
    // Predicated region
    $region49: #{dit_block_forward.15} parent=5 // pred_check
      %p443 = pneg %p442
    $region50: #{dit_block_forward.15} parent=5 // pred_check_branch
      %445 = sbr.rel (%p443) target = $region52
    $region51: #{dit_block_forward.15} parent=5 // pred_region
      %s446 = ssub.s32 %s10, 2
      // Predicated region
      $region53: #{dit_block_forward.15} parent=51 // pred_check
        %p447 = pneg %p183
      $region54: #{dit_block_forward.15} parent=51 // pred_check_branch
        %449 = sbr.rel (%p447) target = $region56
      $region55: #{dit_block_forward.15} parent=51 // pred_region
        %p450 = scmp.lt.s32.totalorder %s25, 1
        %s451 = scalar_select %p450, %s25, 1
        %p452 = scmp.lt.s32.totalorder %s26, 0
        %s453 = scalar_select %p452, %s26, 0
        %p454 = scmp.lt.s32.totalorder %s27, 0
        %s455 = scalar_select %p454, %s27, 0
        %s456 = sadd.s32 %s455, %s453
        %s457 = sadd.s32 %s456, %s451
        %s458 = smul.addr %s457, 8
        %s459 = scalar_lea.vmem %s4, %s458
      $region56: #{dit_block_forward.15} parent=51 // pred_fallthru
        _
    $region52: #{dit_block_forward.15} parent=5 // pred_fallthru
      _
  $region6: #{dit_block_forward.15} parent=0 // loop_footer
    %s14 = sadd.s32 1, %s10
  $region7: #{dit_block_forward.15} parent=0 // loop_footer_branch
    %9 = sbr.rel target = $region3
  $region8: #{dit_block_forward.15} parent=0 // loop_exit
    _

// kernel: dit_block_forward.14
$region0: #{dit_block_forward.14}
  #allocation0 [shape = 'u32[]', space=smem, size = 0x4, offset = 0x4, fixed_abs, tag = 'smem constant byte address 0x4 - core index']
  #allocation1 [shape = 'u32[144,128]{1,0:T(1,128)}', space=vmem, size = 0x12000, scoped, tag = 'internal scratch']
  #allocation2 [shape = 'f32[4,8,1]{2,1,0:T(8,128)}', space=vmem, size = 0x4000, scoped, tag = 'scratch operand']
  #allocation3 [shape = 'f32[4,8,1]{2,1,0:T(8,128)}', space=vmem, size = 0x4000, scoped, tag = 'scratch operand']
  #allocation4 [shape = 'f32[4,8,8]{2,1,0:T(8,128)}', space=vmem, size = 0x4000, scoped, tag = 'scratch operand']
  %s0 = inlined_call_operand.vmem [shape: bf16[2,8,32], index: 0, kind: input, shape index: {}]
  %s1 = inlined_call_operand.vmem [shape: bf16[2,8,32], index: 1, kind: input, shape index: {}]
  %s2 = inlined_call_operand.vmem [shape: bf16[2,8,32], index: 2, kind: input, shape index: {}]
  %s3 = inlined_call_operand.vmem [shape: bf16[2,8,32], index: 3, kind: output, shape index: {}]
  %s4 = sld [smem:[#allocation0]]
  $region53: #{dit_block_forward.14} parent=0
    _
  %s6 = ssub.s32 1, %s4
  %s7 = scalar_select 0, %s6, %s4
  loop: start=0, step=1, limit=4
  $region2: #{dit_block_forward.14} parent=0 // loop_pre_header
    _
  $region3: #{dit_block_forward.14} parent=0 // loop_header
    %s9 = sphi 0, %s13
    %p10 = scmp.ge.s32.totalorder %s9, 4
    %s16 = sphi 0, %s35
    %s17 = sphi 0, %s31
    %s18 = sphi 0, %s27
    %s19 = sphi 0, %s16
    %s20 = sphi 0, %s17
    %s21 = sphi 0, %s18
    %s22 = sphi 0, %s19
    %s23 = sphi 0, %s20
    %s24 = sphi 0, %s21
    %s40 = sphi 0, %s42
    %s43 = sphi 0, %s40
    %s44 = sphi 0, %s43
    %s60 = sphi 0, %s44
    %s68 = sphi 0, %s70
    %s71 = sphi 0, %s68
    %s72 = sphi 0, %s71
    %s88 = sphi 0, %s72
    %s96 = sphi 0, %s98
    %s99 = sphi 0, %s96
    %s100 = sphi 0, %s99
    %s116 = sphi 0, %s100
    %s124 = sphi 0, %s126
    %s127 = sphi 0, %s124
    %s128 = sphi 0, %s127
    %s144 = sphi 0, %s128
  $region4: #{dit_block_forward.14} parent=0 // loop_header_branch
    %12 = sbr.rel (%p10) target = $region8
  $region5: #{dit_block_forward.14} parent=0 // loop_body
    %s14 = ssub.s32 %s9, 1
    %s15 = ssub.s32 %s9, 2
    %s25 = sadd.s32 1, %s18
    %p26 = scmp.ge.s32.totalorder %s25, 1
    %s27 = scalar_select %p26, 0, %s25
    %s28 = sadd.s32 1, %s17
    %s29 = scalar_select %p26, %s28, %s17
    %p30 = scmp.ge.s32.totalorder %s29, 1
    %s31 = scalar_select %p30, 0, %s29
    %s32 = sadd.s32 1, %s16
    %s33 = scalar_select %p30, %s32, %s16
    %p34 = scmp.ge.s32.totalorder %s33, 2
    %s35 = scalar_select %p34, 0, %s33
    %s36 = ssub.s32 %s16, %s35
    %s37 = ssub.s32 %s17, %s31
    %s38 = sor.u32 %s36, %s37
    %p39 = scmp.eq.s32.totalorder %s38, 0
    %s41 = sadd.s32 %s40, 1
    %s42 = scalar_select %p39, %s40, %s41
    %p45 = pneg %p39
    %p46 = scmp.eq.s32.totalorder %s9, 1
    %p47 = por %p45, %p46
    %p48 = scmp.ne.s32.totalorder %s40, %s43
    %p49 = scmp.eq.s32.totalorder %s9, 0
    %p50 = por %p48, %p49
    %p51 = scmp.ne.s32.totalorder %s40, %s43
    %p52 = scmp.eq.s32.totalorder %s14, 1
    %p53 = por %p51, %p52
    %p54 = scmp.ne.s32.totalorder %s43, %s44
    %p55 = scmp.eq.s32.totalorder %s14, 0
    %p56 = por %p54, %p55
    %p57 = scmp.ne.s32.totalorder %s43, %s44
    %p58 = scmp.eq.s32.totalorder %s15, 1
    %p59 = por %p57, %p58
    %p61 = scmp.ne.s32.totalorder %s44, %s60
    %p62 = scmp.eq.s32.totalorder %s15, 0
    %p63 = por %p61, %p62
    %s64 = ssub.s32 %s16, %s35
    %s65 = ssub.s32 %s18, %s27
    %s66 = sor.u32 %s64, %s65
    %p67 = scmp.eq.s32.totalorder %s66, 0
    %s69 = sadd.s32 %s68, 1
    %s70 = scalar_select %p67, %s68, %s69
    %p73 = pneg %p67
    %p74 = scmp.eq.s32.totalorder %s9, 1
    %p75 = por %p73, %p74
    %p76 = scmp.ne.s32.totalorder %s68, %s71
    %p77 = scmp.eq.s32.totalorder %s9, 0
    %p78 = por %p76, %p77
    %p79 = scmp.ne.s32.totalorder %s68, %s71
    %p80 = scmp.eq.s32.totalorder %s14, 1
    %p81 = por %p79, %p80
    %p82 = scmp.ne.s32.totalorder %s71, %s72
    %p83 = scmp.eq.s32.totalorder %s14, 0
    %p84 = por %p82, %p83
    %p85 = scmp.ne.s32.totalorder %s71, %s72
    %p86 = scmp.eq.s32.totalorder %s15, 1
    %p87 = por %p85, %p86
    %p89 = scmp.ne.s32.totalorder %s72, %s88
    %p90 = scmp.eq.s32.totalorder %s15, 0
    %p91 = por %p89, %p90
    %s92 = ssub.s32 %s16, %s35
    %s93 = ssub.s32 %s18, %s27
    %s94 = sor.u32 %s92, %s93
    %p95 = scmp.eq.s32.totalorder %s94, 0
    %s97 = sadd.s32 %s96, 1
    %s98 = scalar_select %p95, %s96, %s97
    %p101 = pneg %p95
    %p102 = scmp.eq.s32.totalorder %s9, 1
    %p103 = por %p101, %p102
    %p104 = scmp.ne.s32.totalorder %s96, %s99
    %p105 = scmp.eq.s32.totalorder %s9, 0
    %p106 = por %p104, %p105
    %p107 = scmp.ne.s32.totalorder %s96, %s99
    %p108 = scmp.eq.s32.totalorder %s14, 1
    %p109 = por %p107, %p108
    %p110 = scmp.ne.s32.totalorder %s99, %s100
    %p111 = scmp.eq.s32.totalorder %s14, 0
    %p112 = por %p110, %p111
    %p113 = scmp.ne.s32.totalorder %s99, %s100
    %p114 = scmp.eq.s32.totalorder %s15, 1
    %p115 = por %p113, %p114
    %p117 = scmp.ne.s32.totalorder %s100, %s116
    %p118 = scmp.eq.s32.totalorder %s15, 0
    %p119 = por %p117, %p118
    %s120 = ssub.s32 %s16, %s35
    %s121 = ssub.s32 %s17, %s31
    %s122 = sor.u32 %s120, %s121
    %p123 = scmp.eq.s32.totalorder %s122, 0
    %s125 = sadd.s32 %s124, 1
    %s126 = scalar_select %p123, %s124, %s125
    %p129 = pneg %p123
    %p130 = scmp.eq.s32.totalorder %s9, 1
    %p131 = por %p129, %p130
    %p132 = scmp.ne.s32.totalorder %s124, %s127
    %p133 = scmp.eq.s32.totalorder %s9, 0
    %p134 = por %p132, %p133
    %p135 = scmp.ne.s32.totalorder %s124, %s127
    %p136 = scmp.eq.s32.totalorder %s14, 1
    %p137 = por %p135, %p136
    %p138 = scmp.ne.s32.totalorder %s127, %s128
    %p139 = scmp.eq.s32.totalorder %s14, 0
    %p140 = por %p138, %p139
    %p141 = scmp.ne.s32.totalorder %s127, %s128
    %p142 = scmp.eq.s32.totalorder %s15, 1
    %p143 = por %p141, %p142
    %p145 = scmp.ne.s32.totalorder %s128, %s144
    %p146 = scmp.eq.s32.totalorder %s15, 0
    %p147 = por %p145, %p146
    %p148 = scmp.le.s32.totalorder 1, %s9
    %p149 = scmp.lt.s32.totalorder %s9, 3
    %p150 = pnand %p148, %p149
    %p151 = pneg %p150
    // Predicated region
    $region9: #{dit_block_forward.14} parent=5 // pred_check
      _
    $region10: #{dit_block_forward.14} parent=5 // pred_check_branch
      %153 = sbr.rel (%p150) target = $region12
    $region11: #{dit_block_forward.14} parent=5 // pred_region
      %s154 = ssub.s32 %s9, 1
    $region12: #{dit_block_forward.14} parent=5 // pred_fallthru
      _
    %p155 = scmp.lt.s32.totalorder %s9, 2
    // Predicated region
    $region13: #{dit_block_forward.14} parent=5 // pred_check
      %p156 = pneg %p155
    $region14: #{dit_block_forward.14} parent=5 // pred_check_branch
      %158 = sbr.rel (%p156) target = $region16
    $region15: #{dit_block_forward.14} parent=5 // pred_region
      // Predicated region
      $region17: #{dit_block_forward.14} parent=15 // pred_check
        %p159 = pneg %p50
      $region18: #{dit_block_forward.14} parent=15 // pred_check_branch
        %161 = sbr.rel (%p159) target = $region20
      $region19: #{dit_block_forward.14} parent=15 // pred_region
        %p162 = scmp.lt.s32.totalorder %s16, 1
        %s163 = scalar_select %p162, %s16, 1
        %p164 = scmp.lt.s32.totalorder %s17, 0
        %s165 = scalar_select %p164, %s17, 0
        %s166 = sadd.s32 %s165, %s163
        %s167 = smul.addr %s166, 4
        %s168 = scalar_lea.vmem %s0, %s167
      $region20: #{dit_block_forward.14} parent=15 // pred_fallthru
        _
      // Predicated region
      $region21: #{dit_block_forward.14} parent=15 // pred_check
        %p169 = pneg %p78
      $region22: #{dit_block_forward.14} parent=15 // pred_check_branch
        %171 = sbr.rel (%p169) target = $region24
      $region23: #{dit_block_forward.14} parent=15 // pred_region
        %p172 = scmp.lt.s32.totalorder %s16, 1
        %s173 = scalar_select %p172, %s16, 1
        %p174 = scmp.lt.s32.totalorder %s18, 0
        %s175 = scalar_select %p174, %s18, 0
        %s176 = sadd.s32 %s175, %s173
        %s177 = smul.addr %s176, 4
        %s178 = scalar_lea.vmem %s1, %s177
      $region24: #{dit_block_forward.14} parent=15 // pred_fallthru
        _
      // Predicated region
      $region25: #{dit_block_forward.14} parent=15 // pred_check
        %p179 = pneg %p106
      $region26: #{dit_block_forward.14} parent=15 // pred_check_branch
        %181 = sbr.rel (%p179) target = $region28
      $region27: #{dit_block_forward.14} parent=15 // pred_region
        %p182 = scmp.lt.s32.totalorder %s16, 1
        %s183 = scalar_select %p182, %s16, 1
        %p184 = scmp.lt.s32.totalorder %s18, 0
        %s185 = scalar_select %p184, %s18, 0
        %s186 = sadd.s32 %s185, %s183
        %s187 = smul.addr %s186, 4
        %s188 = scalar_lea.vmem %s2, %s187
      $region28: #{dit_block_forward.14} parent=15 // pred_fallthru
        _
    $region16: #{dit_block_forward.14} parent=5 // pred_fallthru
      _
    %p189 = scmp.le.s32.totalorder 1, %s9
    %p190 = scmp.lt.s32.totalorder %s9, 3
    %p191 = pnand %p189, %p190
    %p192 = pneg %p191
    // Predicated region
    $region29: #{dit_block_forward.14} parent=5 // pred_check
      _
    $region30: #{dit_block_forward.14} parent=5 // pred_check_branch
      %194 = sbr.rel (%p191) target = $region32
    $region31: #{dit_block_forward.14} parent=5 // pred_region
      %s195 = ssub.s32 %s9, 1
      %p196 = scmp.lt.s32.totalorder %s19, 1
      %s197 = scalar_select %p196, %s19, 1
      %p198 = scmp.lt.s32.totalorder %s20, 0
      %s199 = scalar_select %p198, %s20, 0
      %s200 = sadd.s32 %s199, %s197
      %s201 = smul.addr %s200, 4
      %s202 = scalar_lea.vmem %s0, %s201
      %p203 = pneg %p56
      %p204 = pneg %p53
      %p205 = scmp.lt.s32.totalorder %s19, 1
      %s206 = scalar_select %p205, %s19, 1
      %p207 = scmp.lt.s32.totalorder %s21, 0
      %s208 = scalar_select %p207, %s21, 0
      %s209 = sadd.s32 %s208, %s206
      %s210 = smul.addr %s209, 4
      %s211 = scalar_lea.vmem %s1, %s210
      %p212 = pneg %p84
      %p213 = pneg %p81
      %p214 = scmp.lt.s32.totalorder %s19, 1
      %s215 = scalar_select %p214, %s19, 1
      %p216 = scmp.lt.s32.totalorder %s21, 0
      %s217 = scalar_select %p216, %s21, 0
      %s218 = sadd.s32 %s217, %s215
      %s219 = smul.addr %s218, 4
      %s220 = scalar_lea.vmem %s2, %s219
      %p221 = pneg %p112
      %p222 = pneg %p109
      %p223 = pneg %p140
      %p224 = pneg %p137
      %p225 = scmp.lt.s32.totalorder %s19, 1
      %s226 = scalar_select %p225, %s19, 1
      %p227 = scmp.lt.s32.totalorder %s20, 0
      %s228 = scalar_select %p227, %s20, 0
      %s229 = sadd.s32 %s228, %s226
      %s230 = smul.addr %s229, 4
      %s231 = scalar_lea.vmem %s3, %s230
      %p232 = scmp.lt.s32.totalorder %s19, 1
      %s233 = scalar_select %p232, %s19, 1
      %p234 = scmp.lt.s32.totalorder %s20, 0
      %s235 = scalar_select %p234, %s20, 0
      %s236 = sadd.s32 %s235, %s233
      %s237 = smul.addr %s236, 4
      %s238 = scalar_lea.vmem %s0, %s237
      %p239 = scmp.lt.s32.totalorder %s19, 1
      %s240 = scalar_select %p239, %s19, 1
      %p241 = scmp.lt.s32.totalorder %s21, 0
      %s242 = scalar_select %p241, %s21, 0
      %s243 = sadd.s32 %s242, %s240
      %s244 = smul.addr %s243, 4
      %s245 = scalar_lea.vmem %s1, %s244
      %p246 = scmp.lt.s32.totalorder %s19, 1
      %s247 = scalar_select %p246, %s19, 1
      %p248 = scmp.lt.s32.totalorder %s21, 0
      %s249 = scalar_select %p248, %s21, 0
      %s250 = sadd.s32 %s249, %s247
      %s251 = smul.addr %s250, 4
      %s252 = scalar_lea.vmem %s2, %s251
      %p253 = scmp.lt.s32.totalorder %s19, 1
      %s254 = scalar_select %p253, %s19, 1
      %p255 = scmp.lt.s32.totalorder %s20, 0
      %s256 = scalar_select %p255, %s20, 0
      %s257 = sadd.s32 %s256, %s254
      %s258 = smul.addr %s257, 4
      %s259 = scalar_lea.vmem %s3, %s258
      %p261 = scmp.eq.s32.totalorder %s21, 0
      // Predicated region
      $region33: #{dit_block_forward.14} parent=31 // pred_check
        %p262 = pneg %p261
      $region34: #{dit_block_forward.14} parent=31 // pred_check_branch
        %264 = sbr.rel (%p262) target = $region36
      $region35: #{dit_block_forward.14} parent=31 // pred_region
        %vm265 = vcmask 7168
        %266 = vst.msk [vmem:[#allocation2] sm:$0xff] %vm265, -inf
        %267 = vst.msk [vmem:[#allocation2 + $0x8] sm:$0xff] %vm265, -inf
        %268 = vst.msk [vmem:[#allocation2 + $0x10] sm:$0xff] %vm265, -inf
        %269 = vst.msk [vmem:[#allocation2 + $0x18] sm:$0xff] %vm265, -inf
        %270 = vst.msk [vmem:[#allocation3] sm:$0xff] %vm265, 0.0
        %271 = vst.msk [vmem:[#allocation3 + $0x8] sm:$0xff] %vm265, 0.0
        %272 = vst.msk [vmem:[#allocation3 + $0x10] sm:$0xff] %vm265, 0.0
        %273 = vst.msk [vmem:[#allocation3 + $0x18] sm:$0xff] %vm265, 0.0
        %vm274 = vcmask 64512
        %275 = vst.msk [vmem:[#allocation4] sm:$0xff] %vm274, 0.0
        %276 = vst.msk [vmem:[#allocation4 + $0x8] sm:$0xff] %vm274, 0.0
        %277 = vst.msk [vmem:[#allocation4 + $0x10] sm:$0xff] %vm274, 0.0
        %278 = vst.msk [vmem:[#allocation4 + $0x18] sm:$0xff] %vm274, 0.0
      $region36: #{dit_block_forward.14} parent=31 // pred_fallthru
        _
      %v279 = vld [vmem:[%s238] sm:$0xf]
      %v280 = vld [vmem:[%s245] sm:$0xf]
      %v281 = vld [vmem:[%s252] sm:$0xf]
      %vm282 = vcmask 64512
      %v284 = vsel %vm282, %v279, 0
      %v287 = vsel %vm282, %v280, 0
      %289 = vmatprep.subr.bf16.mxu0 0
      %290 = vmatpush1.bf16.xpose.msra.mxu0 %v287
      %291 = vmatprep.subr.bf16.mxu0 0
      %292 = vmatpush1.bf16.xpose.msra.mxu0 0
      %293 = vmatprep.subr.bf16.mxu0 0
      %294 = vmatpush1.bf16.xpose.msra.mxu0 0
      %295 = vmatprep.subr.bf16.mxu0 0
      %296 = vmatpush1.bf16.xpose.msra.mxu0 0
      %297 = vmatprep.subr.bf16.mxu0 0
      %298 = vmatpush1.bf16.xpose.msra.mxu0 0
      %299 = vmatprep.subr.bf16.mxu0 0
      %300 = vmatpush1.bf16.xpose.msra.mxu0 0
      %301 = vmatprep.subr.bf16.mxu0 0
      %302 = vmatpush1.bf16.xpose.msra.mxu0 0
      %303 = vmatprep.subr.bf16.mxu0 0
      %304 = vmatpush1.bf16.xpose.msra.mxu0 0
      %305 = vmatprep.subr.bf16.mxu0 0
      %306 = vmatpush1.bf16.xpose.msra.mxu0 0
      %307 = vmatprep.subr.bf16.mxu0 0
      %308 = vmatpush1.bf16.xpose.msra.mxu0 0
      %309 = vmatprep.subr.bf16.mxu0 0
      %310 = vmatpush1.bf16.xpose.msra.mxu0 0
      %311 = vmatprep.subr.bf16.mxu0 0
      %312 = vmatpush1.bf16.xpose.msra.mxu0 0
      %313 = vmatprep.subr.bf16.mxu0 0
      %314 = vmatpush1.bf16.xpose.msra.mxu0 0
      %315 = vmatprep.subr.bf16.mxu0 0
      %316 = vmatpush1.bf16.xpose.msra.mxu0 0
      %317 = vmatprep.subr.bf16.mxu0 0
      %318 = vmatpush1.bf16.xpose.msra.mxu0 0
      %319 = vmatprep.subr.bf16.mxu0 0
      %320 = vmatpush1.bf16.xpose.msra.mxu0 0
      %321 = vmatprep.mubr.bf16.mxu0 0
      %322 = vmatmul.mubr.bf16.gmra.mrb[0].mxu0 %v284
      %v323 = vpop.f32.mrb[0].mxu0
      %v324 = vadd.f32 0.0, %v323
      %v325 = vpop.f32.mrb[0].mxu0
      %v326 = vpop.f32.mrb[0].mxu0
      %v327 = vpop.f32.mrb[0].mxu0
      %328 = vdwg.mxu0
      %v329 = vld [vmem:[#allocation2] sm:$0xff]
      %v330 = vsel %vm282, %v324, -inf
      %331 = vmax.xlane.f32.xlu0 %v330
      %v332 = vpop.xlane.xlu0 %331
      %v333 = vmax.f32 %v329, %v332
      %v334 = vsub.f32 %v329, %v333
      %v335 = vmul.f32 %v334, 1.442695
      %v336 = vpow.pop %v335
      %338 = vset.pattern.permute.xlu0 0
      %339 = vperm.xlu0 %338, %v333
      %v340 = vpop.permute.xlu0 %339
      %v342 = vsub.f32 %v324, %v340
      %v343 = vmul.f32 %v342, 1.442695
      %v344 = vpow.pop %v343
      %v345 = vld [vmem:[#allocation3] sm:$0xff]
      %v346 = vmul.f32 %v336, %v345
      %v347 = vsel %vm282, %v344, 0.0
      %348 = vadd.xlane.f32.xlu0 %v347
      %v349 = vpop.xlane.xlu0 %348
      %v350 = vadd.f32 %v346, %v349
      %vm351 = vcmask 7168
      %352 = vst.msk [vmem:[#allocation3] sm:$0xff] %vm351, %v350
      %v353 = vld [vmem:[#allocation4] sm:$0xff]
      %355 = vset.pattern.permute.xlu0 0
      %356 = vperm.xlu0 %355, %v336
      %v357 = vpop.permute.xlu0 %356
      %v359 = vmul.f32 %v357, %v353
      %v360 = vpack.c.bf16 %v344, %v344
      %v362 = vsel %vm282, %v360, 0
      %vm364 = vcmask 1043456
      %v366 = vsel %vm364, %v281, 0
      %368 = vmatprep.subr.bf16.mxu0 0
      %369 = vmatpush1.bf16.msra.mxu0 %v366
      %370 = vmatprep.subr.bf16.mxu0 0
      %371 = vmatpush1.bf16.msra.mxu0 0
      %372 = vmatprep.subr.bf16.mxu0 0
      %373 = vmatpush1.bf16.msra.mxu0 0
      %374 = vmatprep.subr.bf16.mxu0 0
      %375 = vmatpush1.bf16.msra.mxu0 0
      %376 = vmatprep.subr.bf16.mxu0 0
      %377 = vmatpush1.bf16.msra.mxu0 0
      %378 = vmatprep.subr.bf16.mxu0 0
      %379 = vmatpush1.bf16.msra.mxu0 0
      %380 = vmatprep.subr.bf16.mxu0 0
      %381 = vmatpush1.bf16.msra.mxu0 0
      %382 = vmatprep.subr.bf16.mxu0 0
      %383 = vmatpush1.bf16.msra.mxu0 0
      %384 = vmatprep.subr.bf16.mxu0 0
      %385 = vmatpush1.bf16.msra.mxu0 0
      %386 = vmatprep.subr.bf16.mxu0 0
      %387 = vmatpush1.bf16.msra.mxu0 0
      %388 = vmatprep.subr.bf16.mxu0 0
      %389 = vmatpush1.bf16.msra.mxu0 0
      %390 = vmatprep.subr.bf16.mxu0 0
      %391 = vmatpush1.bf16.msra.mxu0 0
      %392 = vmatprep.subr.bf16.mxu0 0
      %393 = vmatpush1.bf16.msra.mxu0 0
      %394 = vmatprep.subr.bf16.mxu0 0
      %395 = vmatpush1.bf16.msra.mxu0 0
      %396 = vmatprep.subr.bf16.mxu0 0
      %397 = vmatpush1.bf16.msra.mxu0 0
      %398 = vmatprep.subr.bf16.mxu0 0
      %399 = vmatpush1.bf16.msra.mxu0 0
      %400 = vmatprep.mubr.bf16.mxu0 0
      %401 = vmatmul.mubr.bf16.gmra.mrb[0].mxu0 %v362
      %v402 = vpop.f32.mrb[0].mxu0
      %v403 = vadd.f32 0.0, %v402
      %v404 = vpop.f32.mrb[0].mxu0
      %v405 = vpop.f32.mrb[0].mxu0
      %v406 = vpop.f32.mrb[0].mxu0
      %407 = vdwg.mxu0
      %v408 = vadd.f32 %v359, %v403
      %409 = vst.msk [vmem:[#allocation4] sm:$0xff] %vm282, %v408
      %410 = vst.msk [vmem:[#allocation2] sm:$0xff] %vm351, %v333
      %v411 = vld [vmem:[%s238] sm:$0xf]
      %v412 = vld [vmem:[%s245] sm:$0xf]
      %v413 = vld [vmem:[%s252] sm:$0xf]
      %v415 = vunpack.c.l.b16 %v411
      %v416 = vpack.c.b16 %v415, %v415
      %417 = vrot.lane.b32.xlu0 %v416, 120
      %v418 = vpop.permute.xlu0 %417
      %v420 = vunpack.c.l.b16 %v412
      %v421 = vpack.c.b16 %v420, %v420
      %422 = vrot.lane.b32.xlu0 %v421, 120
      %v423 = vpop.permute.xlu0 %422
      %v425 = vsel %vm282, %v418, 0
      %v428 = vsel %vm282, %v423, 0
      %430 = vmatprep.subr.bf16.mxu0 0
      %431 = vmatpush1.bf16.xpose.msra.mxu0 %v428
      %432 = vmatprep.subr.bf16.mxu0 0
      %433 = vmatpush1.bf16.xpose.msra.mxu0 0
      %434 = vmatprep.subr.bf16.mxu0 0
      %435 = vmatpush1.bf16.xpose.msra.mxu0 0
      %436 = vmatprep.subr.bf16.mxu0 0
      %437 = vmatpush1.bf16.xpose.msra.mxu0 0
      %438 = vmatprep.subr.bf16.mxu0 0
      %439 = vmatpush1.bf16.xpose.msra.mxu0 0
      %440 = vmatprep.subr.bf16.mxu0 0
      %441 = vmatpush1.bf16.xpose.msra.mxu0 0
      %442 = vmatprep.subr.bf16.mxu0 0
      %443 = vmatpush1.bf16.xpose.msra.mxu0 0
      %444 = vmatprep.subr.bf16.mxu0 0
      %445 = vmatpush1.bf16.xpose.msra.mxu0 0
      %446 = vmatprep.subr.bf16.mxu0 0
      %447 = vmatpush1.bf16.xpose.msra.mxu0 0
      %448 = vmatprep.subr.bf16.mxu0 0
      %449 = vmatpush1.bf16.xpose.msra.mxu0 0
      %450 = vmatprep.subr.bf16.mxu0 0
      %451 = vmatpush1.bf16.xpose.msra.mxu0 0
      %452 = vmatprep.subr.bf16.mxu0 0
      %453 = vmatpush1.bf16.xpose.msra.mxu0 0
      %454 = vmatprep.subr.bf16.mxu0 0
      %455 = vmatpush1.bf16.xpose.msra.mxu0 0
      %456 = vmatprep.subr.bf16.mxu0 0
      %457 = vmatpush1.bf16.xpose.msra.mxu0 0
      %458 = vmatprep.subr.bf16.mxu0 0
      %459 = vmatpush1.bf16.xpose.msra.mxu0 0
      %460 = vmatprep.subr.bf16.mxu0 0
      %461 = vmatpush1.bf16.xpose.msra.mxu0 0
      %462 = vmatprep.mubr.bf16.mxu0 0
      %463 = vmatmul.mubr.bf16.gmra.mrb[0].mxu0 %v425
      %v464 = vpop.f32.mrb[0].mxu0
      %v465 = vadd.f32 0.0, %v464
      %v466 = vpop.f32.mrb[0].mxu0
      %v467 = vpop.f32.mrb[0].mxu0
      %v468 = vpop.f32.mrb[0].mxu0
      %469 = vdwg.mxu0
      %s470 = scalar_lea.vmem [#allocation2], 8
      %v471 = vld [vmem:[%s470] sm:$0xff]
      %v472 = vsel %vm282, %v465, -inf
      %473 = vmax.xlane.f32.xlu0 %v472
      %v474 = vpop.xlane.xlu0 %473
      %v475 = vmax.f32 %v471, %v474
      %v476 = vsub.f32 %v471, %v475
      %v477 = vmul.f32 %v476, 1.442695
      %v478 = vpow.pop %v477
      %480 = vset.pattern.permute.xlu0 0
      %481 = vperm.xlu0 %480, %v475
      %v482 = vpop.permute.xlu0 %481
      %v484 = vsub.f32 %v465, %v482
      %v485 = vmul.f32 %v484, 1.442695
      %v486 = vpow.pop %v485
      %s487 = scalar_lea.vmem [#allocation3], 8
      %v488 = vld [vmem:[%s487] sm:$0xff]
      %v489 = vmul.f32 %v478, %v488
      %v490 = vsel %vm282, %v486, 0.0
      %491 = vadd.xlane.f32.xlu0 %v490
      %v492 = vpop.xlane.xlu0 %491
      %v493 = vadd.f32 %v489, %v492
      %494 = vst.msk [vmem:[%s487] sm:$0xff] %vm351, %v493
      %s495 = scalar_lea.vmem [#allocation4], 8
      %v496 = vld [vmem:[%s495] sm:$0xff]
      %498 = vset.pattern.permute.xlu0 0
      %499 = vperm.xlu0 %498, %v478
      %v500 = vpop.permute.xlu0 %499
      %v502 = vmul.f32 %v500, %v496
      %v503 = vpack.c.bf16 %v486, %v486
      %v505 = vunpack.c.l.b16 %v413
      %v506 = vpack.c.b16 %v505, %v505
      %507 = vrot.lane.b32.xlu0 %v506, 120
      %v508 = vpop.permute.xlu0 %507
      %v510 = vsel %vm282, %v503, 0
      %v513 = vsel %vm364, %v508, 0
      %515 = vmatprep.subr.bf16.mxu0 0
      %516 = vmatpush1.bf16.msra.mxu0 %v513
      %517 = vmatprep.subr.bf16.mxu0 0
      %518 = vmatpush1.bf16.msra.mxu0 0
      %519 = vmatprep.subr.bf16.mxu0 0
      %520 = vmatpush1.bf16.msra.mxu0 0
      %521 = vmatprep.subr.bf16.mxu0 0
      %522 = vmatpush1.bf16.msra.mxu0 0
      %523 = vmatprep.subr.bf16.mxu0 0
      %524 = vmatpush1.bf16.msra.mxu0 0
      %525 = vmatprep.subr.bf16.mxu0 0
      %526 = vmatpush1.bf16.msra.mxu0 0
      %527 = vmatprep.subr.bf16.mxu0 0
      %528 = vmatpush1.bf16.msra.mxu0 0
      %529 = vmatprep.subr.bf16.mxu0 0
      %530 = vmatpush1.bf16.msra.mxu0 0
      %531 = vmatprep.subr.bf16.mxu0 0
      %532 = vmatpush1.bf16.msra.mxu0 0
      %533 = vmatprep.subr.bf16.mxu0 0
      %534 = vmatpush1.bf16.msra.mxu0 0
      %535 = vmatprep.subr.bf16.mxu0 0
      %536 = vmatpush1.bf16.msra.mxu0 0
      %537 = vmatprep.subr.bf16.mxu0 0
      %538 = vmatpush1.bf16.msra.mxu0 0
      %539 = vmatprep.subr.bf16.mxu0 0
      %540 = vmatpush1.bf16.msra.mxu0 0
      %541 = vmatprep.subr.bf16.mxu0 0
      %542 = vmatpush1.bf16.msra.mxu0 0
      %543 = vmatprep.subr.bf16.mxu0 0
      %544 = vmatpush1.bf16.msra.mxu0 0
      %545 = vmatprep.subr.bf16.mxu0 0
      %546 = vmatpush1.bf16.msra.mxu0 0
      %547 = vmatprep.mubr.bf16.mxu0 0
      %548 = vmatmul.mubr.bf16.gmra.mrb[0].mxu0 %v510
      %v549 = vpop.f32.mrb[0].mxu0
      %v550 = vadd.f32 0.0, %v549
      %v551 = vpop.f32.mrb[0].mxu0
      %v552 = vpop.f32.mrb[0].mxu0
      %v553 = vpop.f32.mrb[0].mxu0
      %554 = vdwg.mxu0
      %v555 = vadd.f32 %v502, %v550
      %556 = vst.msk [vmem:[%s495] sm:$0xff] %vm282, %v555
      %557 = vst.msk [vmem:[%s470] sm:$0xff] %vm351, %v475
      %v558 = vld [vmem:[%s238] sm:$0xf]
      %v559 = vld [vmem:[%s245] sm:$0xf]
      %v560 = vld [vmem:[%s252] sm:$0xf]
      %v562 = vunpack.c.l.b16 %v558
      %v563 = vpack.c.b16 %v562, %v562
      %564 = vrot.lane.b32.xlu0 %v563, 112
      %v565 = vpop.permute.xlu0 %564
      %v567 = vunpack.c.l.b16 %v559
      %v568 = vpack.c.b16 %v567, %v567
      %569 = vrot.lane.b32.xlu0 %v568, 112
      %v570 = vpop.permute.xlu0 %569
      %v572 = vsel %vm282, %v565, 0
      %v575 = vsel %vm282, %v570, 0
      %577 = vmatprep.subr.bf16.mxu0 0
      %578 = vmatpush1.bf16.xpose.msra.mxu0 %v575
      %579 = vmatprep.subr.bf16.mxu0 0
      %580 = vmatpush1.bf16.xpose.msra.mxu0 0
      %581 = vmatprep.subr.bf16.mxu0 0
      %582 = vmatpush1.bf16.xpose.msra.mxu0 0
      %583 = vmatprep.subr.bf16.mxu0 0
      %584 = vmatpush1.bf16.xpose.msra.mxu0 0
      %585 = vmatprep.subr.bf16.mxu0 0
      %586 = vmatpush1.bf16.xpose.msra.mxu0 0
      %587 = vmatprep.subr.bf16.mxu0 0
      %588 = vmatpush1.bf16.xpose.msra.mxu0 0
      %589 = vmatprep.subr.bf16.mxu0 0
      %590 = vmatpush1.bf16.xpose.msra.mxu0 0
      %591 = vmatprep.subr.bf16.mxu0 0
      %592 = vmatpush1.bf16.xpose.msra.mxu0 0
      %593 = vmatprep.subr.bf16.mxu0 0
      %594 = vmatpush1.bf16.xpose.msra.mxu0 0
      %595 = vmatprep.subr.bf16.mxu0 0
      %596 = vmatpush1.bf16.xpose.msra.mxu0 0
      %597 = vmatprep.subr.bf16.mxu0 0
      %598 = vmatpush1.bf16.xpose.msra.mxu0 0
      %599 = vmatprep.subr.bf16.mxu0 0
      %600 = vmatpush1.bf16.xpose.msra.mxu0 0
      %601 = vmatprep.subr.bf16.mxu0 0
      %602 = vmatpush1.bf16.xpose.msra.mxu0 0
      %603 = vmatprep.subr.bf16.mxu0 0
      %604 = vmatpush1.bf16.xpose.msra.mxu0 0
      %605 = vmatprep.subr.bf16.mxu0 0
      %606 = vmatpush1.bf16.xpose.msra.mxu0 0
      %607 = vmatprep.subr.bf16.mxu0 0
      %608 = vmatpush1.bf16.xpose.msra.mxu0 0
      %609 = vmatprep.mubr.bf16.mxu0 0
      %610 = vmatmul.mubr.bf16.gmra.mrb[0].mxu0 %v572
      %v611 = vpop.f32.mrb[0].mxu0
      %v612 = vadd.f32 0.0, %v611
      %v613 = vpop.f32.mrb[0].mxu0
      %v614 = vpop.f32.mrb[0].mxu0
      %v615 = vpop.f32.mrb[0].mxu0
      %616 = vdwg.mxu0
      %s617 = scalar_lea.vmem [#allocation2], 16
      %v618 = vld [vmem:[%s617] sm:$0xff]
      %v619 = vsel %vm282, %v612, -inf
      %620 = vmax.xlane.f32.xlu0 %v619
      %v621 = vpop.xlane.xlu0 %620
      %v622 = vmax.f32 %v618, %v621
      %v623 = vsub.f32 %v618, %v622
      %v624 = vmul.f32 %v623, 1.442695
      %v625 = vpow.pop %v624
      %627 = vset.pattern.permute.xlu0 0
      %628 = vperm.xlu0 %627, %v622
      %v629 = vpop.permute.xlu0 %628
      %v631 = vsub.f32 %v612, %v629
      %v632 = vmul.f32 %v631, 1.442695
      %v633 = vpow.pop %v632
      %s634 = scalar_lea.vmem [#allocation3], 16
      %v635 = vld [vmem:[%s634] sm:$0xff]
      %v636 = vmul.f32 %v625, %v635
      %v637 = vsel %vm282, %v633, 0.0
      %638 = vadd.xlane.f32.xlu0 %v637
      %v639 = vpop.xlane.xlu0 %638
      %v640 = vadd.f32 %v636, %v639
      %641 = vst.msk [vmem:[%s634] sm:$0xff] %vm351, %v640
      %s642 = scalar_lea.vmem [#allocation4], 16
      %v643 = vld [vmem:[%s642] sm:$0xff]
      %645 = vset.pattern.permute.xlu0 0
      %646 = vperm.xlu0 %645, %v625
      %v647 = vpop.permute.xlu0 %646
      %v649 = vmul.f32 %v647, %v643
      %v650 = vpack.c.bf16 %v633, %v633
      %v652 = vunpack.c.l.b16 %v560
      %v653 = vpack.c.b16 %v652, %v652
      %654 = vrot.lane.b32.xlu0 %v653, 112
      %v655 = vpop.permute.xlu0 %654
      %v657 = vsel %vm282, %v650, 0
      %v660 = vsel %vm364, %v655, 0
      %662 = vmatprep.subr.bf16.mxu0 0
      %663 = vmatpush1.bf16.msra.mxu0 %v660
      %664 = vmatprep.subr.bf16.mxu0 0
      %665 = vmatpush1.bf16.msra.mxu0 0
      %666 = vmatprep.subr.bf16.mxu0 0
      %667 = vmatpush1.bf16.msra.mxu0 0
      %668 = vmatprep.subr.bf16.mxu0 0
      %669 = vmatpush1.bf16.msra.mxu0 0
      %670 = vmatprep.subr.bf16.mxu0 0
      %671 = vmatpush1.bf16.msra.mxu0 0
      %672 = vmatprep.subr.bf16.mxu0 0
      %673 = vmatpush1.bf16.msra.mxu0 0
      %674 = vmatprep.subr.bf16.mxu0 0
      %675 = vmatpush1.bf16.msra.mxu0 0
      %676 = vmatprep.subr.bf16.mxu0 0
      %677 = vmatpush1.bf16.msra.mxu0 0
      %678 = vmatprep.subr.bf16.mxu0 0
      %679 = vmatpush1.bf16.msra.mxu0 0
      %680 = vmatprep.subr.bf16.mxu0 0
      %681 = vmatpush1.bf16.msra.mxu0 0
      %682 = vmatprep.subr.bf16.mxu0 0
      %683 = vmatpush1.bf16.msra.mxu0 0
      %684 = vmatprep.subr.bf16.mxu0 0
      %685 = vmatpush1.bf16.msra.mxu0 0
      %686 = vmatprep.subr.bf16.mxu0 0
      %687 = vmatpush1.bf16.msra.mxu0 0
      %688 = vmatprep.subr.bf16.mxu0 0
      %689 = vmatpush1.bf16.msra.mxu0 0
      %690 = vmatprep.subr.bf16.mxu0 0
      %691 = vmatpush1.bf16.msra.mxu0 0
      %692 = vmatprep.subr.bf16.mxu0 0
      %693 = vmatpush1.bf16.msra.mxu0 0
      %694 = vmatprep.mubr.bf16.mxu0 0
      %695 = vmatmul.mubr.bf16.gmra.mrb[0].mxu0 %v657
      %v696 = vpop.f32.mrb[0].mxu0
      %v697 = vadd.f32 0.0, %v696
      %v698 = vpop.f32.mrb[0].mxu0
      %v699 = vpop.f32.mrb[0].mxu0
      %v700 = vpop.f32.mrb[0].mxu0
      %701 = vdwg.mxu0
      %v702 = vadd.f32 %v649, %v697
      %703 = vst.msk [vmem:[%s642] sm:$0xff] %vm282, %v702
      %704 = vst.msk [vmem:[%s617] sm:$0xff] %vm351, %v622
      %v705 = vld [vmem:[%s238] sm:$0xf]
      %v706 = vld [vmem:[%s245] sm:$0xf]
      %v707 = vld [vmem:[%s252] sm:$0xf]
      %v709 = vunpack.c.l.b16 %v705
      %v710 = vpack.c.b16 %v709, %v709
      %711 = vrot.lane.b32.xlu0 %v710, 104
      %v712 = vpop.permute.xlu0 %711
      %v714 = vunpack.c.l.b16 %v706
      %v715 = vpack.c.b16 %v714, %v714
      %716 = vrot.lane.b32.xlu0 %v715, 104
      %v717 = vpop.permute.xlu0 %716
      %v719 = vsel %vm282, %v712, 0
      %v722 = vsel %vm282, %v717, 0
      %724 = vmatprep.subr.bf16.mxu0 0
      %725 = vmatpush1.bf16.xpose.msra.mxu0 %v722
      %726 = vmatprep.subr.bf16.mxu0 0
      %727 = vmatpush1.bf16.xpose.msra.mxu0 0
      %728 = vmatprep.subr.bf16.mxu0 0
      %729 = vmatpush1.bf16.xpose.msra.mxu0 0
      %730 = vmatprep.subr.bf16.mxu0 0
      %731 = vmatpush1.bf16.xpose.msra.mxu0 0
      %732 = vmatprep.subr.bf16.mxu0 0
      %733 = vmatpush1.bf16.xpose.msra.mxu0 0
      %734 = vmatprep.subr.bf16.mxu0 0
      %735 = vmatpush1.bf16.xpose.msra.mxu0 0
      %736 = vmatprep.subr.bf16.mxu0 0
      %737 = vmatpush1.bf16.xpose.msra.mxu0 0
      %738 = vmatprep.subr.bf16.mxu0 0
      %739 = vmatpush1.bf16.xpose.msra.mxu0 0
      %740 = vmatprep.subr.bf16.mxu0 0
      %741 = vmatpush1.bf16.xpose.msra.mxu0 0
      %742 = vmatprep.subr.bf16.mxu0 0
      %743 = vmatpush1.bf16.xpose.msra.mxu0 0
      %744 = vmatprep.subr.bf16.mxu0 0
      %745 = vmatpush1.bf16.xpose.msra.mxu0 0
      %746 = vmatprep.subr.bf16.mxu0 0
      %747 = vmatpush1.bf16.xpose.msra.mxu0 0
      %748 = vmatprep.subr.bf16.mxu0 0
      %749 = vmatpush1.bf16.xpose.msra.mxu0 0
      %750 = vmatprep.subr.bf16.mxu0 0
      %751 = vmatpush1.bf16.xpose.msra.mxu0 0
      %752 = vmatprep.subr.bf16.mxu0 0
      %753 = vmatpush1.bf16.xpose.msra.mxu0 0
      %754 = vmatprep.subr.bf16.mxu0 0
      %755 = vmatpush1.bf16.xpose.msra.mxu0 0
      %756 = vmatprep.mubr.bf16.mxu0 0
      %757 = vmatmul.mubr.bf16.gmra.mrb[0].mxu0 %v719
      %v758 = vpop.f32.mrb[0].mxu0
      %v759 = vadd.f32 0.0, %v758
      %v760 = vpop.f32.mrb[0].mxu0
      %v761 = vpop.f32.mrb[0].mxu0
      %v762 = vpop.f32.mrb[0].mxu0
      %763 = vdwg.mxu0
      %s764 = scalar_lea.vmem [#allocation2], 24
      %v765 = vld [vmem:[%s764] sm:$0xff]
      %v766 = vsel %vm282, %v759, -inf
      %767 = vmax.xlane.f32.xlu0 %v766
      %v768 = vpop.xlane.xlu0 %767
      %v769 = vmax.f32 %v765, %v768
      %v770 = vsub.f32 %v765, %v769
      %v771 = vmul.f32 %v770, 1.442695
      %v772 = vpow.pop %v771
      %774 = vset.pattern.permute.xlu0 0
      %775 = vperm.xlu0 %774, %v769
      %v776 = vpop.permute.xlu0 %775
      %v778 = vsub.f32 %v759, %v776
      %v779 = vmul.f32 %v778, 1.442695
      %v780 = vpow.pop %v779
      %s781 = scalar_lea.vmem [#allocation3], 24
      %v782 = vld [vmem:[%s781] sm:$0xff]
      %v783 = vmul.f32 %v772, %v782
      %v784 = vsel %vm282, %v780, 0.0
      %785 = vadd.xlane.f32.xlu0 %v784
      %v786 = vpop.xlane.xlu0 %785
      %v787 = vadd.f32 %v783, %v786
      %788 = vst.msk [vmem:[%s781] sm:$0xff] %vm351, %v787
      %s789 = scalar_lea.vmem [#allocation4], 24
      %v790 = vld [vmem:[%s789] sm:$0xff]
      %792 = vset.pattern.permute.xlu0 0
      %793 = vperm.xlu0 %792, %v772
      %v794 = vpop.permute.xlu0 %793
      %v796 = vmul.f32 %v794, %v790
      %v797 = vpack.c.bf16 %v780, %v780
      %v799 = vunpack.c.l.b16 %v707
      %v800 = vpack.c.b16 %v799, %v799
      %801 = vrot.lane.b32.xlu0 %v800, 104
      %v802 = vpop.permute.xlu0 %801
      %v804 = vsel %vm282, %v797, 0
      %v807 = vsel %vm364, %v802, 0
      %809 = vmatprep.subr.bf16.mxu0 0
      %810 = vmatpush1.bf16.msra.mxu0 %v807
      %811 = vmatprep.subr.bf16.mxu0 0
      %812 = vmatpush1.bf16.msra.mxu0 0
      %813 = vmatprep.subr.bf16.mxu0 0
      %814 = vmatpush1.bf16.msra.mxu0 0
      %815 = vmatprep.subr.bf16.mxu0 0
      %816 = vmatpush1.bf16.msra.mxu0 0
      %817 = vmatprep.subr.bf16.mxu0 0
      %818 = vmatpush1.bf16.msra.mxu0 0
      %819 = vmatprep.subr.bf16.mxu0 0
      %820 = vmatpush1.bf16.msra.mxu0 0
      %821 = vmatprep.subr.bf16.mxu0 0
      %822 = vmatpush1.bf16.msra.mxu0 0
      %823 = vmatprep.subr.bf16.mxu0 0
      %824 = vmatpush1.bf16.msra.mxu0 0
      %825 = vmatprep.subr.bf16.mxu0 0
      %826 = vmatpush1.bf16.msra.mxu0 0
      %827 = vmatprep.subr.bf16.mxu0 0
      %828 = vmatpush1.bf16.msra.mxu0 0
      %829 = vmatprep.subr.bf16.mxu0 0
      %830 = vmatpush1.bf16.msra.mxu0 0
      %831 = vmatprep.subr.bf16.mxu0 0
      %832 = vmatpush1.bf16.msra.mxu0 0
      %833 = vmatprep.subr.bf16.mxu0 0
      %834 = vmatpush1.bf16.msra.mxu0 0
      %835 = vmatprep.subr.bf16.mxu0 0
      %836 = vmatpush1.bf16.msra.mxu0 0
      %837 = vmatprep.subr.bf16.mxu0 0
      %838 = vmatpush1.bf16.msra.mxu0 0
      %839 = vmatprep.subr.bf16.mxu0 0
      %840 = vmatpush1.bf16.msra.mxu0 0
      %841 = vmatprep.mubr.bf16.mxu0 0
      %842 = vmatmul.mubr.bf16.gmra.mrb[0].mxu0 %v804
      %v843 = vpop.f32.mrb[0].mxu0
      %v844 = vadd.f32 0.0, %v843
      %v845 = vpop.f32.mrb[0].mxu0
      %v846 = vpop.f32.mrb[0].mxu0
      %v847 = vpop.f32.mrb[0].mxu0
      %848 = vdwg.mxu0
      %v849 = vadd.f32 %v796, %v844
      %850 = vst.msk [vmem:[%s789] sm:$0xff] %vm282, %v849
      %851 = vst.msk [vmem:[%s764] sm:$0xff] %vm351, %v769
      // Predicated region
      $region37: #{dit_block_forward.14} parent=31 // pred_check
        %p852 = pneg %p261
      $region38: #{dit_block_forward.14} parent=31 // pred_check_branch
        %854 = sbr.rel (%p852) target = $region40
      $region39: #{dit_block_forward.14} parent=31 // pred_region
        %v855 = vld [vmem:[#allocation4] sm:$0xff]
        %v856 = vld [vmem:[#allocation3] sm:$0xff]
        %858 = vset.pattern.permute.xlu0 0
        %859 = vperm.xlu0 %858, %v856
        %v860 = vpop.permute.xlu0 %859
        %v862 = vrcp.pop %v860
        %v863 = vmul.f32 %v855, %v862
        %v864 = vpack.c.bf16 %v863, %v863
        %vm865 = vcmask 60416
        %866 = vst.msk [vmem:[%s259] sm:$0xf] %vm865, %v864
        %v867 = vld [vmem:[%s495] sm:$0xff]
        %v868 = vld [vmem:[%s487] sm:$0xff]
        %870 = vset.pattern.permute.xlu0 0
        %871 = vperm.xlu0 %870, %v868
        %v872 = vpop.permute.xlu0 %871
        %v874 = vrcp.pop %v872
        %v875 = vmul.f32 %v867, %v874
        %v876 = vpack.c.bf16 %v875, %v875
        %v878 = vunpack.c.l.b16 %v876
        %v879 = vpack.c.b16 %v878, %v878
        %880 = vrot.lane.b32.xlu0 %v879, 8
        %v881 = vpop.permute.xlu0 %880
        %vm883 = vcmask 126016
        %884 = vst.msk [vmem:[%s259] sm:$0xf] %vm883, %v881
        %v885 = vld [vmem:[%s642] sm:$0xff]
        %v886 = vld [vmem:[%s634] sm:$0xff]
        %888 = vset.pattern.permute.xlu0 0
        %889 = vperm.xlu0 %888, %v886
        %v890 = vpop.permute.xlu0 %889
        %v892 = vrcp.pop %v890
        %v893 = vmul.f32 %v885, %v892
        %v894 = vpack.c.bf16 %v893, %v893
        %v896 = vunpack.c.l.b16 %v894
        %v897 = vpack.c.b16 %v896, %v896
        %898 = vrot.lane.b32.xlu0 %v897, 16
        %v899 = vpop.permute.xlu0 %898
        %vm901 = vcmask 191616
        %902 = vst.msk [vmem:[%s259] sm:$0xf] %vm901, %v899
        %v903 = vld [vmem:[%s789] sm:$0xff]
        %v904 = vld [vmem:[%s781] sm:$0xff]
        %906 = vset.pattern.permute.xlu0 0
        %907 = vperm.xlu0 %906, %v904
        %v908 = vpop.permute.xlu0 %907
        %v910 = vrcp.pop %v908
        %v911 = vmul.f32 %v903, %v910
        %v912 = vpack.c.bf16 %v911, %v911
        %v914 = vunpack.c.l.b16 %v912
        %v915 = vpack.c.b16 %v914, %v914
        %916 = vrot.lane.b32.xlu0 %v915, 24
        %v917 = vpop.permute.xlu0 %916
        %vm919 = vcmask 257216
        %920 = vst.msk [vmem:[%s259] sm:$0xf] %vm919, %v917
      $region40: #{dit_block_forward.14} parent=31 // pred_fallthru
        _
      %p921 = scmp.lt.s32.totalorder %s19, 1
      %s922 = scalar_select %p921, %s19, 1
      %p923 = scmp.lt.s32.totalorder %s20, 0
      %s924 = scalar_select %p923, %s20, 0
      %s925 = sadd.s32 %s924, %s922
      %s926 = smul.addr %s925, 4
      %s927 = scalar_lea.vmem %s3, %s926
      // Predicated region
      $region41: #{dit_block_forward.14} parent=31 // pred_check
        %p928 = pneg %p137
      $region42: #{dit_block_forward.14} parent=31 // pred_check_branch
        %930 = sbr.rel (%p928) target = $region44
      $region43: #{dit_block_forward.14} parent=31 // pred_region
        _
      $region44: #{dit_block_forward.14} parent=31 // pred_fallthru
        _
    $region32: #{dit_block_forward.14} parent=5 // pred_fallthru
      _
    %p931 = scmp.le.s32.totalorder 2, %s9
    // Predicated region
    $region45: #{dit_block_forward.14} parent=5 // pred_check
      %p932 = pneg %p931
    $region46: #{dit_block_forward.14} parent=5 // pred_check_branch
      %934 = sbr.rel (%p932) target = $region48
    $region47: #{dit_block_forward.14} parent=5 // pred_region
      %s935 = ssub.s32 %s9, 2
      // Predicated region
      $region49: #{dit_block_forward.14} parent=47 // pred_check
        %p936 = pneg %p143
      $region50: #{dit_block_forward.14} parent=47 // pred_check_branch
        %938 = sbr.rel (%p936) target = $region52
      $region51: #{dit_block_forward.14} parent=47 // pred_region
        %p939 = scmp.lt.s32.totalorder %s22, 1
        %s940 = scalar_select %p939, %s22, 1
        %p941 = scmp.lt.s32.totalorder %s23, 0
        %s942 = scalar_select %p941, %s23, 0
        %s943 = sadd.s32 %s942, %s940
        %s944 = smul.addr %s943, 4
        %s945 = scalar_lea.vmem %s3, %s944
      $region52: #{dit_block_forward.14} parent=47 // pred_fallthru
        _
    $region48: #{dit_block_forward.14} parent=5 // pred_fallthru
      _
  $region6: #{dit_block_forward.14} parent=0 // loop_footer
    %s13 = sadd.s32 1, %s9
  $region7: #{dit_block_forward.14} parent=0 // loop_footer_branch
    %8 = sbr.rel target = $region3
  $region8: #{dit_block_forward.14} parent=0 // loop_exit
    _

// kernel: dit_block_forward.17
$region0: #{dit_block_forward.17}
  #allocation0 [shape = 'u32[]', space=smem, size = 0x4, offset = 0x4, fixed_abs, tag = 'smem constant byte address 0x4 - core index']
  #allocation1 [shape = 'u32[144,128]{1,0:T(1,128)}', space=vmem, size = 0x12000, scoped, tag = 'internal scratch']
  #allocation2 [shape = 'bf16[8,32]{1,0:T(8,128)(2,1)}', space=vmem, size = 0x800, scoped, tag = 'scratch operand']
  %s0 = inlined_call_operand.vmem [shape: f32[2,8,32], index: 0, kind: input, shape index: {}]
  %s1 = inlined_call_operand.vmem [shape: f32[2,1,32], index: 1, kind: input, shape index: {}]
  %s2 = inlined_call_operand.vmem [shape: f32[2,1,32], index: 2, kind: input, shape index: {}]
  %s3 = inlined_call_operand.vmem [shape: bf16[32,256], index: 3, kind: input, shape index: {}]
  %s4 = inlined_call_operand.vmem [shape: f32[1,256], index: 4, kind: input, shape index: {}]
  %s5 = inlined_call_operand.vmem [shape: bf16[2,8,256], index: 5, kind: output, shape index: {}]
  %s6 = sld [smem:[#allocation0]]
  $region57: #{dit_block_forward.17} parent=0
    _
  %s8 = ssub.s32 1, %s6
  %s9 = scalar_select 0, %s8, %s6
  loop: start=0, step=1, limit=4
  $region2: #{dit_block_forward.17} parent=0 // loop_pre_header
    _
  $region3: #{dit_block_forward.17} parent=0 // loop_header
    %s11 = sphi 0, %s15
    %p12 = scmp.ge.s32.totalorder %s11, 4
    %s18 = sphi 0, %s37
    %s19 = sphi 0, %s33
    %s20 = sphi 0, %s29
    %s21 = sphi 0, %s18
    %s22 = sphi 0, %s19
    %s23 = sphi 0, %s20
    %s24 = sphi 0, %s21
    %s25 = sphi 0, %s22
    %s26 = sphi 0, %s23
    %s42 = sphi 0, %s44
    %s45 = sphi 0, %s42
    %s46 = sphi 0, %s45
    %s62 = sphi 0, %s46
    %s68 = sphi 0, %s70
    %s71 = sphi 0, %s68
    %s72 = sphi 0, %s71
    %s88 = sphi 0, %s72
    %s94 = sphi 0, %s96
    %s97 = sphi 0, %s94
    %s98 = sphi 0, %s97
    %s114 = sphi 0, %s98
    %s120 = sphi 0, %s122
    %s123 = sphi 0, %s120
    %s124 = sphi 0, %s123
    %s140 = sphi 0, %s124
    %s146 = sphi 0, %s148
    %s149 = sphi 0, %s146
    %s150 = sphi 0, %s149
    %s166 = sphi 0, %s150
    %s176 = sphi 0, %s178
    %s179 = sphi 0, %s176
    %s180 = sphi 0, %s179
    %s196 = sphi 0, %s180
  $region4: #{dit_block_forward.17} parent=0 // loop_header_branch
    %14 = sbr.rel (%p12) target = $region8
  $region5: #{dit_block_forward.17} parent=0 // loop_body
    %s16 = ssub.s32 %s11, 1
    %s17 = ssub.s32 %s11, 2
    %s27 = sadd.s32 1, %s20
    %p28 = scmp.ge.s32.totalorder %s27, 1
    %s29 = scalar_select %p28, 0, %s27
    %s30 = sadd.s32 1, %s19
    %s31 = scalar_select %p28, %s30, %s19
    %p32 = scmp.ge.s32.totalorder %s31, 1
    %s33 = scalar_select %p32, 0, %s31
    %s34 = sadd.s32 1, %s18
    %s35 = scalar_select %p32, %s34, %s18
    %p36 = scmp.ge.s32.totalorder %s35, 2
    %s37 = scalar_select %p36, 0, %s35
    %s38 = ssub.s32 %s18, %s37
    %s39 = ssub.s32 %s19, %s33
    %s40 = sor.u32 %s38, %s39
    %p41 = scmp.eq.s32.totalorder %s40, 0
    %s43 = sadd.s32 %s42, 1
    %s44 = scalar_select %p41, %s42, %s43
    %p47 = pneg %p41
    %p48 = scmp.eq.s32.totalorder %s11, 1
    %p49 = por %p47, %p48
    %p50 = scmp.ne.s32.totalorder %s42, %s45
    %p51 = scmp.eq.s32.totalorder %s11, 0
    %p52 = por %p50, %p51
    %p53 = scmp.ne.s32.totalorder %s42, %s45
    %p54 = scmp.eq.s32.totalorder %s16, 1
    %p55 = por %p53, %p54
    %p56 = scmp.ne.s32.totalorder %s45, %s46
    %p57 = scmp.eq.s32.totalorder %s16, 0
    %p58 = por %p56, %p57
    %p59 = scmp.ne.s32.totalorder %s45, %s46
    %p60 = scmp.eq.s32.totalorder %s17, 1
    %p61 = por %p59, %p60
    %p63 = scmp.ne.s32.totalorder %s46, %s62
    %p64 = scmp.eq.s32.totalorder %s17, 0
    %p65 = por %p63, %p64
    %s66 = ssub.s32 %s18, %s37
    %p67 = scmp.eq.s32.totalorder %s66, 0
    %s69 = sadd.s32 %s68, 1
    %s70 = scalar_select %p67, %s68, %s69
    %p73 = pneg %p67
    %p74 = scmp.eq.s32.totalorder %s11, 1
    %p75 = por %p73, %p74
    %p76 = scmp.ne.s32.totalorder %s68, %s71
    %p77 = scmp.eq.s32.totalorder %s11, 0
    %p78 = por %p76, %p77
    %p79 = scmp.ne.s32.totalorder %s68, %s71
    %p80 = scmp.eq.s32.totalorder %s16, 1
    %p81 = por %p79, %p80
    %p82 = scmp.ne.s32.totalorder %s71, %s72
    %p83 = scmp.eq.s32.totalorder %s16, 0
    %p84 = por %p82, %p83
    %p85 = scmp.ne.s32.totalorder %s71, %s72
    %p86 = scmp.eq.s32.totalorder %s17, 1
    %p87 = por %p85, %p86
    %p89 = scmp.ne.s32.totalorder %s72, %s88
    %p90 = scmp.eq.s32.totalorder %s17, 0
    %p91 = por %p89, %p90
    %s92 = ssub.s32 %s18, %s37
    %p93 = scmp.eq.s32.totalorder %s92, 0
    %s95 = sadd.s32 %s94, 1
    %s96 = scalar_select %p93, %s94, %s95
    %p99 = pneg %p93
    %p100 = scmp.eq.s32.totalorder %s11, 1
    %p101 = por %p99, %p100
    %p102 = scmp.ne.s32.totalorder %s94, %s97
    %p103 = scmp.eq.s32.totalorder %s11, 0
    %p104 = por %p102, %p103
    %p105 = scmp.ne.s32.totalorder %s94, %s97
    %p106 = scmp.eq.s32.totalorder %s16, 1
    %p107 = por %p105, %p106
    %p108 = scmp.ne.s32.totalorder %s97, %s98
    %p109 = scmp.eq.s32.totalorder %s16, 0
    %p110 = por %p108, %p109
    %p111 = scmp.ne.s32.totalorder %s97, %s98
    %p112 = scmp.eq.s32.totalorder %s17, 1
    %p113 = por %p111, %p112
    %p115 = scmp.ne.s32.totalorder %s98, %s114
    %p116 = scmp.eq.s32.totalorder %s17, 0
    %p117 = por %p115, %p116
    %s118 = ssub.s32 %s20, %s29
    %p119 = scmp.eq.s32.totalorder %s118, 0
    %s121 = sadd.s32 %s120, 1
    %s122 = scalar_select %p119, %s120, %s121
    %p125 = pneg %p119
    %p126 = scmp.eq.s32.totalorder %s11, 1
    %p127 = por %p125, %p126
    %p128 = scmp.ne.s32.totalorder %s120, %s123
    %p129 = scmp.eq.s32.totalorder %s11, 0
    %p130 = por %p128, %p129
    %p131 = scmp.ne.s32.totalorder %s120, %s123
    %p132 = scmp.eq.s32.totalorder %s16, 1
    %p133 = por %p131, %p132
    %p134 = scmp.ne.s32.totalorder %s123, %s124
    %p135 = scmp.eq.s32.totalorder %s16, 0
    %p136 = por %p134, %p135
    %p137 = scmp.ne.s32.totalorder %s123, %s124
    %p138 = scmp.eq.s32.totalorder %s17, 1
    %p139 = por %p137, %p138
    %p141 = scmp.ne.s32.totalorder %s124, %s140
    %p142 = scmp.eq.s32.totalorder %s17, 0
    %p143 = por %p141, %p142
    %s144 = ssub.s32 %s20, %s29
    %p145 = scmp.eq.s32.totalorder %s144, 0
    %s147 = sadd.s32 %s146, 1
    %s148 = scalar_select %p145, %s146, %s147
    %p151 = pneg %p145
    %p152 = scmp.eq.s32.totalorder %s11, 1
    %p153 = por %p151, %p152
    %p154 = scmp.ne.s32.totalorder %s146, %s149
    %p155 = scmp.eq.s32.totalorder %s11, 0
    %p156 = por %p154, %p155
    %p157 = scmp.ne.s32.totalorder %s146, %s149
    %p158 = scmp.eq.s32.totalorder %s16, 1
    %p159 = por %p157, %p158
    %p160 = scmp.ne.s32.totalorder %s149, %s150
    %p161 = scmp.eq.s32.totalorder %s16, 0
    %p162 = por %p160, %p161
    %p163 = scmp.ne.s32.totalorder %s149, %s150
    %p164 = scmp.eq.s32.totalorder %s17, 1
    %p165 = por %p163, %p164
    %p167 = scmp.ne.s32.totalorder %s150, %s166
    %p168 = scmp.eq.s32.totalorder %s17, 0
    %p169 = por %p167, %p168
    %s170 = ssub.s32 %s18, %s37
    %s171 = ssub.s32 %s19, %s33
    %s172 = sor.u32 %s170, %s171
    %s173 = ssub.s32 %s20, %s29
    %s174 = sor.u32 %s172, %s173
    %p175 = scmp.eq.s32.totalorder %s174, 0
    %s177 = sadd.s32 %s176, 1
    %s178 = scalar_select %p175, %s176, %s177
    %p181 = pneg %p175
    %p182 = scmp.eq.s32.totalorder %s11, 1
    %p183 = por %p181, %p182
    %p184 = scmp.ne.s32.totalorder %s176, %s179
    %p185 = scmp.eq.s32.totalorder %s11, 0
    %p186 = por %p184, %p185
    %p187 = scmp.ne.s32.totalorder %s176, %s179
    %p188 = scmp.eq.s32.totalorder %s16, 1
    %p189 = por %p187, %p188
    %p190 = scmp.ne.s32.totalorder %s179, %s180
    %p191 = scmp.eq.s32.totalorder %s16, 0
    %p192 = por %p190, %p191
    %p193 = scmp.ne.s32.totalorder %s179, %s180
    %p194 = scmp.eq.s32.totalorder %s17, 1
    %p195 = por %p193, %p194
    %p197 = scmp.ne.s32.totalorder %s180, %s196
    %p198 = scmp.eq.s32.totalorder %s17, 0
    %p199 = por %p197, %p198
    %p200 = scmp.le.s32.totalorder 1, %s11
    %p201 = scmp.lt.s32.totalorder %s11, 3
    %p202 = pnand %p200, %p201
    %p203 = pneg %p202
    // Predicated region
    $region9: #{dit_block_forward.17} parent=5 // pred_check
      _
    $region10: #{dit_block_forward.17} parent=5 // pred_check_branch
      %205 = sbr.rel (%p202) target = $region12
    $region11: #{dit_block_forward.17} parent=5 // pred_region
      %s206 = ssub.s32 %s11, 1
      // Predicated region
      $region13: #{dit_block_forward.17} parent=11 // pred_check
        %p207 = pneg %p136
      $region14: #{dit_block_forward.17} parent=11 // pred_check_branch
        %209 = sbr.rel (%p207) target = $region16
      $region15: #{dit_block_forward.17} parent=11 // pred_region
        %s210 = smul.u32 2, %s23
        %p211 = scmp.lt.s32.totalorder %s210, 1
        %s212 = scalar_select %p211, %s210, 1
        %s213 = smul.addr %s212, 4
        %s214 = scalar_lea.vmem %s3, %s213
        %s215 = smul.u32 2, %s23
      $region16: #{dit_block_forward.17} parent=11 // pred_fallthru
        _
      // Predicated region
      $region17: #{dit_block_forward.17} parent=11 // pred_check
        %p216 = pneg %p162
      $region18: #{dit_block_forward.17} parent=11 // pred_check_branch
        %218 = sbr.rel (%p216) target = $region20
      $region19: #{dit_block_forward.17} parent=11 // pred_region
        %s219 = smul.u32 2, %s23
        %p220 = scmp.lt.s32.totalorder %s219, 1
        %s221 = scalar_select %p220, %s219, 1
        %s222 = scalar_lea.vmem %s4, %s221
        %s223 = smul.u32 2, %s23
      $region20: #{dit_block_forward.17} parent=11 // pred_fallthru
        _
    $region12: #{dit_block_forward.17} parent=5 // pred_fallthru
      _
    %p224 = scmp.lt.s32.totalorder %s11, 2
    // Predicated region
    $region21: #{dit_block_forward.17} parent=5 // pred_check
      %p225 = pneg %p224
    $region22: #{dit_block_forward.17} parent=5 // pred_check_branch
      %227 = sbr.rel (%p225) target = $region24
    $region23: #{dit_block_forward.17} parent=5 // pred_region
      // Predicated region
      $region25: #{dit_block_forward.17} parent=23 // pred_check
        %p228 = pneg %p52
      $region26: #{dit_block_forward.17} parent=23 // pred_check_branch
        %230 = sbr.rel (%p228) target = $region28
      $region27: #{dit_block_forward.17} parent=23 // pred_region
        %p231 = scmp.lt.s32.totalorder %s18, 1
        %s232 = scalar_select %p231, %s18, 1
        %p233 = scmp.lt.s32.totalorder %s19, 0
        %s234 = scalar_select %p233, %s19, 0
        %s235 = sadd.s32 %s234, %s232
        %s236 = smul.addr %s235, 8
        %s237 = scalar_lea.vmem %s0, %s236
      $region28: #{dit_block_forward.17} parent=23 // pred_fallthru
        _
      // Predicated region
      $region29: #{dit_block_forward.17} parent=23 // pred_check
        %p238 = pneg %p78
      $region30: #{dit_block_forward.17} parent=23 // pred_check_branch
        %240 = sbr.rel (%p238) target = $region32
      $region31: #{dit_block_forward.17} parent=23 // pred_region
        %p241 = scmp.lt.s32.totalorder %s18, 1
        %s242 = scalar_select %p241, %s18, 1
        %s243 = scalar_lea.vmem %s1, %s242
      $region32: #{dit_block_forward.17} parent=23 // pred_fallthru
        _
      // Predicated region
      $region33: #{dit_block_forward.17} parent=23 // pred_check
        %p244 = pneg %p104
      $region34: #{dit_block_forward.17} parent=23 // pred_check_branch
        %246 = sbr.rel (%p244) target = $region36
      $region35: #{dit_block_forward.17} parent=23 // pred_region
        %p247 = scmp.lt.s32.totalorder %s18, 1
        %s248 = scalar_select %p247, %s18, 1
        %s249 = scalar_lea.vmem %s2, %s248
      $region36: #{dit_block_forward.17} parent=23 // pred_fallthru
        _
    $region24: #{dit_block_forward.17} parent=5 // pred_fallthru
      _
    %p250 = scmp.le.s32.totalorder 1, %s11
    %p251 = scmp.lt.s32.totalorder %s11, 3
    %p252 = pnand %p250, %p251
    %p253 = pneg %p252
    // Predicated region
    $region37: #{dit_block_forward.17} parent=5 // pred_check
      _
    $region38: #{dit_block_forward.17} parent=5 // pred_check_branch
      %255 = sbr.rel (%p252) target = $region40
    $region39: #{dit_block_forward.17} parent=5 // pred_region
      %s256 = ssub.s32 %s11, 1
      %p257 = scmp.lt.s32.totalorder %s21, 1
      %s258 = scalar_select %p257, %s21, 1
      %p259 = scmp.lt.s32.totalorder %s22, 0
      %s260 = scalar_select %p259, %s22, 0
      %s261 = sadd.s32 %s260, %s258
      %s262 = smul.addr %s261, 8
      %s263 = scalar_lea.vmem %s0, %s262
      %p264 = pneg %p58
      %p265 = pneg %p55
      %p266 = scmp.lt.s32.totalorder %s21, 1
      %s267 = scalar_select %p266, %s21, 1
      %s268 = scalar_lea.vmem %s1, %s267
      %p269 = pneg %p84
      %p270 = pneg %p81
      %p271 = scmp.lt.s32.totalorder %s21, 1
      %s272 = scalar_select %p271, %s21, 1
      %s273 = scalar_lea.vmem %s2, %s272
      %p274 = pneg %p110
      %p275 = pneg %p107
      %s276 = smul.u32 2, %s23
      %p277 = scmp.lt.s32.totalorder %s276, 1
      %s278 = scalar_select %p277, %s276, 1
      %s279 = smul.addr %s278, 4
      %s280 = scalar_lea.vmem %s3, %s279
      %p281 = pneg %p136
      %p282 = pneg %p133
      %s283 = smul.u32 2, %s23
      %p284 = scmp.lt.s32.totalorder %s283, 1
      %s285 = scalar_select %p284, %s283, 1
      %s286 = scalar_lea.vmem %s4, %s285
      %p287 = pneg %p162
      %p288 = pneg %p159
      %p289 = pneg %p192
      %p290 = pneg %p189
      %s291 = smul.u32 2, %s23
      %p292 = scmp.lt.s32.totalorder %s21, 1
      %s293 = scalar_select %p292, %s21, 1
      %p294 = scmp.lt.s32.totalorder %s22, 0
      %s295 = scalar_select %p294, %s22, 0
      %p296 = scmp.lt.s32.totalorder %s291, 1
      %s297 = scalar_select %p296, %s291, 1
      %s298 = smul.addr %s295, 2
      %s299 = sadd.s32 %s297, %s298
      %s300 = smul.addr %s293, 2
      %s301 = sadd.s32 %s299, %s300
      %s302 = smul.addr %s301, 4
      %s303 = scalar_lea.vmem %s5, %s302
      %p304 = scmp.lt.s32.totalorder %s21, 1
      %s305 = scalar_select %p304, %s21, 1
      %p306 = scmp.lt.s32.totalorder %s22, 0
      %s307 = scalar_select %p306, %s22, 0
      %s308 = sadd.s32 %s307, %s305
      %s309 = smul.addr %s308, 8
      %s310 = scalar_lea.vmem %s0, %s309
      %p311 = scmp.lt.s32.totalorder %s21, 1
      %s312 = scalar_select %p311, %s21, 1
      %s313 = scalar_lea.vmem %s1, %s312
      %p314 = scmp.lt.s32.totalorder %s21, 1
      %s315 = scalar_select %p314, %s21, 1
      %s316 = scalar_lea.vmem %s2, %s315
      %s317 = smul.u32 2, %s23
      %p318 = scmp.lt.s32.totalorder %s317, 1
      %s319 = scalar_select %p318, %s317, 1
      %s320 = smul.addr %s319, 4
      %s321 = scalar_lea.vmem %s3, %s320
      %s322 = smul.u32 2, %s23
      %s323 = smul.u32 2, %s23
      %p324 = scmp.lt.s32.totalorder %s323, 1
      %s325 = scalar_select %p324, %s323, 1
      %s326 = scalar_lea.vmem %s4, %s325
      %s327 = smul.u32 2, %s23
      %s328 = smul.u32 2, %s23
      %p329 = scmp.lt.s32.totalorder %s21, 1
      %s330 = scalar_select %p329, %s21, 1
      %p331 = scmp.lt.s32.totalorder %s22, 0
      %s332 = scalar_select %p331, %s22, 0
      %p333 = scmp.lt.s32.totalorder %s328, 1
      %s334 = scalar_select %p333, %s328, 1
      %s335 = smul.addr %s332, 2
      %s336 = sadd.s32 %s334, %s335
      %s337 = smul.addr %s330, 2
      %s338 = sadd.s32 %s336, %s337
      %s339 = smul.addr %s338, 4
      %s340 = scalar_lea.vmem %s5, %s339
      %s341 = smul.u32 2, %s23
      %p343 = scmp.eq.s32.totalorder %s23, 0
      // Predicated region
      $region41: #{dit_block_forward.17} parent=39 // pred_check
        %p344 = pneg %p343
      $region42: #{dit_block_forward.17} parent=39 // pred_check_branch
        %346 = sbr.rel (%p344) target = $region44
      $region43: #{dit_block_forward.17} parent=39 // pred_region
        %v347 = vld [vmem:[%s310] sm:$0xff]
        %vm348 = vcmask 261120
        %v349 = vsel %vm348, %v347, 0.0
        %350 = vadd.xlane.f32.xlu0 %v349
        %v351 = vpop.xlane.xlu0 %350
        %v352 = vrcp.pop 32.0
        %v353 = vmul.f32 %v351, %v352
        %v354 = vsub.f32 %v347, %v353
        %v355 = vmul.f32 %v354, %v354
        %v356 = vsel %vm348, %v355, 0.0
        %357 = vadd.xlane.f32.xlu0 %v356
        %v358 = vpop.xlane.xlu0 %357
        %v359 = vmul.f32 %v358, %v352
        %v360 = vadd.f32 %v359, 1e-06
        %v361 = vrsqrt.pop %v360
        %v362 = vmul.f32 %v354, %v361
        %v363 = vld [vmem:[%s316] sm:$0x1]
        %v364 = vadd.f32 %v363, 1.0
        %v366 = vlaneseq
        %v367 = vshrl.u32 %v366, 7
        %v368 = vsub.s32 0, %v367
        %v369 = vrot.slane %v364, %v368
        %v371 = vmul.f32 %v362, %v369
        %v372 = vld [vmem:[%s313] sm:$0x1]
        %v374 = vlaneseq
        %v375 = vshrl.u32 %v374, 7
        %v376 = vsub.s32 0, %v375
        %v377 = vrot.slane %v372, %v376
        %v379 = vadd.f32 %v371, %v377
        %v380 = vpack.c.bf16 %v379, %v379
        %vm381 = vcmask 257024
        %382 = vst.msk [vmem:[#allocation2] sm:$0xf] %vm381, %v380
      $region44: #{dit_block_forward.17} parent=39 // pred_fallthru
        _
      %v383 = vld [vmem:[#allocation2] sm:$0xf]
      %v384 = vld [vmem:[%s321] sm:$0xff]
      %v385 = vld [vmem:[%s321 + $0x8] sm:$0xff]
      %v386 = vld [vmem:[%s321 + $0x10] sm:$0xff]
      %v387 = vld [vmem:[%s321 + $0x18] sm:$0xff]
      %v388 = vld [vmem:[%s326] sm:$0x3]
      %v390 = vlaneseq
      %v391 = vshrl.u32 %v390, 7
      %v392 = vsub.s32 0, %v391
      %v393 = vrot.slane %v388, %v392
      %v394 = vlaneseq
      %v395 = vshrl.u32 %v394, 7
      %v396 = vsub.s32 1, %v395
      %v397 = vrot.slane %v388, %v396
      %v404 = vunpack.c.l.b16 %v384
      %v405 = vunpack.c.h.b16 %v384
      %v406 = vunpack.c.l.b16 %v385
      %v407 = vunpack.c.h.b16 %v385
      %v408 = vunpack.c.l.b16 %v386
      %v409 = vunpack.c.h.b16 %v386
      %v410 = vunpack.c.l.b16 %v387
      %v411 = vunpack.c.h.b16 %v387
      %v412 = vpack.c.b16 %v406, %v404
      %v413 = vpack.c.b16 %v407, %v405
      %v414 = vpack.c.b16 %v410, %v408
      %v415 = vpack.c.b16 %v411, %v409
      %vm420 = vcmask 261120
      %v422 = vsel %vm420, %v383, 0
      %424 = vmatprep.subr.bf16.mxu0 %v413
      %425 = vmatpush1.bf16.msra.mxu0 %v412
      %426 = vmatprep.subr.bf16.mxu0 %v415
      %427 = vmatpush1.bf16.msra.mxu0 %v414
      %428 = vmatprep.subr.bf16.mxu0 0
      %429 = vmatpush1.bf16.msra.mxu0 0
      %430 = vmatprep.subr.bf16.mxu0 0
      %431 = vmatpush1.bf16.msra.mxu0 0
      %432 = vmatprep.subr.bf16.mxu0 0
      %433 = vmatpush1.bf16.msra.mxu0 0
      %434 = vmatprep.subr.bf16.mxu0 0
      %435 = vmatpush1.bf16.msra.mxu0 0
      %436 = vmatprep.subr.bf16.mxu0 0
      %437 = vmatpush1.bf16.msra.mxu0 0
      %438 = vmatprep.subr.bf16.mxu0 0
      %439 = vmatpush1.bf16.msra.mxu0 0
      %440 = vmatprep.subr.bf16.mxu0 0
      %441 = vmatpush1.bf16.msra.mxu0 0
      %442 = vmatprep.subr.bf16.mxu0 0
      %443 = vmatpush1.bf16.msra.mxu0 0
      %444 = vmatprep.subr.bf16.mxu0 0
      %445 = vmatpush1.bf16.msra.mxu0 0
      %446 = vmatprep.subr.bf16.mxu0 0
      %447 = vmatpush1.bf16.msra.mxu0 0
      %448 = vmatprep.subr.bf16.mxu0 0
      %449 = vmatpush1.bf16.msra.mxu0 0
      %450 = vmatprep.subr.bf16.mxu0 0
      %451 = vmatpush1.bf16.msra.mxu0 0
      %452 = vmatprep.subr.bf16.mxu0 0
      %453 = vmatpush1.bf16.msra.mxu0 0
      %454 = vmatprep.subr.bf16.mxu0 0
      %455 = vmatpush1.bf16.msra.mxu0 0
      %456 = vmatprep.mubr.bf16.mxu0 0
      %457 = vmatmul.mubr.bf16.gmra.mrb[0].mxu0 %v422
      %v458 = vpop.f32.mrb[0].mxu0
      %v459 = vadd.f32 %v393, %v458
      %v460 = vpop.f32.mrb[0].mxu0
      %v461 = vadd.f32 %v397, %v460
      %v462 = vpop.f32.mrb[0].mxu0
      %v463 = vpop.f32.mrb[0].mxu0
      %464 = vdwg.mxu0
      %v465 = vpack.c.bf16 %v459, %v459
      %v466 = vpack.c.bf16 %v461, %v461
      %v469 = vunpack.c.l.b16 %v465
      %v470 = vunpack.c.l.b16 %v466
      %v471 = vpack.c.b16 %v470, %v469
      %473 = vst [vmem:[%s340] sm:$0xff] %v471
      %s474 = smul.u32 2, %s23
      %p475 = scmp.lt.s32.totalorder %s21, 1
      %s476 = scalar_select %p475, %s21, 1
      %p477 = scmp.lt.s32.totalorder %s22, 0
      %s478 = scalar_select %p477, %s22, 0
      %p479 = scmp.lt.s32.totalorder %s474, 1
      %s480 = scalar_select %p479, %s474, 1
      %s481 = smul.addr %s478, 2
      %s482 = sadd.s32 %s480, %s481
      %s483 = smul.addr %s476, 2
      %s484 = sadd.s32 %s482, %s483
      %s485 = smul.addr %s484, 4
      %s486 = scalar_lea.vmem %s5, %s485
      // Predicated region
      $region45: #{dit_block_forward.17} parent=39 // pred_check
        %p487 = pneg %p189
      $region46: #{dit_block_forward.17} parent=39 // pred_check_branch
        %489 = sbr.rel (%p487) target = $region48
      $region47: #{dit_block_forward.17} parent=39 // pred_region
        %s490 = smul.u32 2, %s23
      $region48: #{dit_block_forward.17} parent=39 // pred_fallthru
        _
    $region40: #{dit_block_forward.17} parent=5 // pred_fallthru
      _
    %p491 = scmp.le.s32.totalorder 2, %s11
    // Predicated region
    $region49: #{dit_block_forward.17} parent=5 // pred_check
      %p492 = pneg %p491
    $region50: #{dit_block_forward.17} parent=5 // pred_check_branch
      %494 = sbr.rel (%p492) target = $region52
    $region51: #{dit_block_forward.17} parent=5 // pred_region
      %s495 = ssub.s32 %s11, 2
      // Predicated region
      $region53: #{dit_block_forward.17} parent=51 // pred_check
        %p496 = pneg %p195
      $region54: #{dit_block_forward.17} parent=51 // pred_check_branch
        %498 = sbr.rel (%p496) target = $region56
      $region55: #{dit_block_forward.17} parent=51 // pred_region
        %s499 = smul.u32 2, %s26
        %p500 = scmp.lt.s32.totalorder %s24, 1
        %s501 = scalar_select %p500, %s24, 1
        %p502 = scmp.lt.s32.totalorder %s25, 0
        %s503 = scalar_select %p502, %s25, 0
        %p504 = scmp.lt.s32.totalorder %s499, 1
        %s505 = scalar_select %p504, %s499, 1
        %s506 = smul.addr %s503, 2
        %s507 = sadd.s32 %s505, %s506
        %s508 = smul.addr %s501, 2
        %s509 = sadd.s32 %s507, %s508
        %s510 = smul.addr %s509, 4
        %s511 = scalar_lea.vmem %s5, %s510
      $region56: #{dit_block_forward.17} parent=51 // pred_fallthru
        _
    $region52: #{dit_block_forward.17} parent=5 // pred_fallthru
      _
  $region6: #{dit_block_forward.17} parent=0 // loop_footer
    %s15 = sadd.s32 1, %s11
  $region7: #{dit_block_forward.17} parent=0 // loop_footer_branch
    %10 = sbr.rel target = $region3
  $region8: #{dit_block_forward.17} parent=0 // loop_exit
    _

// kernel: dit_block_forward.16
$region0: #{dit_block_forward.16}
  #allocation0 [shape = 'u32[]', space=smem, size = 0x4, offset = 0x4, fixed_abs, tag = 'smem constant byte address 0x4 - core index']
  #allocation1 [shape = 'u32[144,128]{1,0:T(1,128)}', space=vmem, size = 0x12000, scoped, tag = 'internal scratch']
  #allocation2 [shape = 'f32[6,32]{1,0:T(8,128)}', space=vmem, size = 0x1000, scoped, tag = 'scratch operand']
  %s0 = inlined_call_operand.vmem [shape: f32[2,6,48], index: 0, kind: input, shape index: {}]
  %s1 = inlined_call_operand.vmem [shape: bf16[48,32], index: 1, kind: input, shape index: {}]
  %s2 = inlined_call_operand.vmem [shape: f32[1,32], index: 2, kind: input, shape index: {}]
  %s3 = inlined_call_operand.vmem [shape: bf16[2,6,32], index: 3, kind: output, shape index: {}]
  %s4 = sld [smem:[#allocation0]]
  $region53: #{dit_block_forward.16} parent=0
    _
  %s6 = ssub.s32 1, %s4
  %s7 = scalar_select 0, %s6, %s4
  loop: start=0, step=1, limit=4
  $region2: #{dit_block_forward.16} parent=0 // loop_pre_header
    _
  $region3: #{dit_block_forward.16} parent=0 // loop_header
    %s9 = sphi 0, %s13
    %p10 = scmp.ge.s32.totalorder %s9, 4
    %s16 = sphi 0, %s42
    %s17 = sphi 0, %s38
    %s18 = sphi 0, %s34
    %s19 = sphi 0, %s30
    %s20 = sphi 0, %s16
    %s21 = sphi 0, %s17
    %s22 = sphi 0, %s18
    %s23 = sphi 0, %s19
    %s24 = sphi 0, %s20
    %s25 = sphi 0, %s21
    %s26 = sphi 0, %s22
    %s27 = sphi 0, %s23
    %s49 = sphi 0, %s51
    %s52 = sphi 0, %s49
    %s53 = sphi 0, %s52
    %s69 = sphi 0, %s53
    %s77 = sphi 0, %s79
    %s80 = sphi 0, %s77
    %s81 = sphi 0, %s80
    %s97 = sphi 0, %s81
    %s103 = sphi 0, %s105
    %s106 = sphi 0, %s103
    %s107 = sphi 0, %s106
    %s123 = sphi 0, %s107
    %s133 = sphi 0, %s135
    %s136 = sphi 0, %s133
    %s137 = sphi 0, %s136
    %s153 = sphi 0, %s137
  $region4: #{dit_block_forward.16} parent=0 // loop_header_branch
    %12 = sbr.rel (%p10) target = $region8
  $region5: #{dit_block_forward.16} parent=0 // loop_body
    %s14 = ssub.s32 %s9, 1
    %s15 = ssub.s32 %s9, 2
    %s28 = sadd.s32 1, %s19
    %p29 = scmp.ge.s32.totalorder %s28, 1
    %s30 = scalar_select %p29, 0, %s28
    %s31 = sadd.s32 1, %s18
    %s32 = scalar_select %p29, %s31, %s18
    %p33 = scmp.ge.s32.totalorder %s32, 1
    %s34 = scalar_select %p33, 0, %s32
    %s35 = sadd.s32 1, %s17
    %s36 = scalar_select %p33, %s35, %s17
    %p37 = scmp.ge.s32.totalorder %s36, 1
    %s38 = scalar_select %p37, 0, %s36
    %s39 = sadd.s32 1, %s16
    %s40 = scalar_select %p37, %s39, %s16
    %p41 = scmp.ge.s32.totalorder %s40, 2
    %s42 = scalar_select %p41, 0, %s40
    %s43 = ssub.s32 %s16, %s42
    %s44 = ssub.s32 %s17, %s38
    %s45 = sor.u32 %s43, %s44
    %s46 = ssub.s32 %s19, %s30
    %s47 = sor.u32 %s45, %s46
    %p48 = scmp.eq.s32.totalorder %s47, 0
    %s50 = sadd.s32 %s49, 1
    %s51 = scalar_select %p48, %s49, %s50
    %p54 = pneg %p48
    %p55 = scmp.eq.s32.totalorder %s9, 1
    %p56 = por %p54, %p55
    %p57 = scmp.ne.s32.totalorder %s49, %s52
    %p58 = scmp.eq.s32.totalorder %s9, 0
    %p59 = por %p57, %p58
    %p60 = scmp.ne.s32.totalorder %s49, %s52
    %p61 = scmp.eq.s32.totalorder %s14, 1
    %p62 = por %p60, %p61
    %p63 = scmp.ne.s32.totalorder %s52, %s53
    %p64 = scmp.eq.s32.totalorder %s14, 0
    %p65 = por %p63, %p64
    %p66 = scmp.ne.s32.totalorder %s52, %s53
    %p67 = scmp.eq.s32.totalorder %s15, 1
    %p68 = por %p66, %p67
    %p70 = scmp.ne.s32.totalorder %s53, %s69
    %p71 = scmp.eq.s32.totalorder %s15, 0
    %p72 = por %p70, %p71
    %s73 = ssub.s32 %s19, %s30
    %s74 = ssub.s32 %s18, %s34
    %s75 = sor.u32 %s73, %s74
    %p76 = scmp.eq.s32.totalorder %s75, 0
    %s78 = sadd.s32 %s77, 1
    %s79 = scalar_select %p76, %s77, %s78
    %p82 = pneg %p76
    %p83 = scmp.eq.s32.totalorder %s9, 1
    %p84 = por %p82, %p83
    %p85 = scmp.ne.s32.totalorder %s77, %s80
    %p86 = scmp.eq.s32.totalorder %s9, 0
    %p87 = por %p85, %p86
    %p88 = scmp.ne.s32.totalorder %s77, %s80
    %p89 = scmp.eq.s32.totalorder %s14, 1
    %p90 = por %p88, %p89
    %p91 = scmp.ne.s32.totalorder %s80, %s81
    %p92 = scmp.eq.s32.totalorder %s14, 0
    %p93 = por %p91, %p92
    %p94 = scmp.ne.s32.totalorder %s80, %s81
    %p95 = scmp.eq.s32.totalorder %s15, 1
    %p96 = por %p94, %p95
    %p98 = scmp.ne.s32.totalorder %s81, %s97
    %p99 = scmp.eq.s32.totalorder %s15, 0
    %p100 = por %p98, %p99
    %s101 = ssub.s32 %s18, %s34
    %p102 = scmp.eq.s32.totalorder %s101, 0
    %s104 = sadd.s32 %s103, 1
    %s105 = scalar_select %p102, %s103, %s104
    %p108 = pneg %p102
    %p109 = scmp.eq.s32.totalorder %s9, 1
    %p110 = por %p108, %p109
    %p111 = scmp.ne.s32.totalorder %s103, %s106
    %p112 = scmp.eq.s32.totalorder %s9, 0
    %p113 = por %p111, %p112
    %p114 = scmp.ne.s32.totalorder %s103, %s106
    %p115 = scmp.eq.s32.totalorder %s14, 1
    %p116 = por %p114, %p115
    %p117 = scmp.ne.s32.totalorder %s106, %s107
    %p118 = scmp.eq.s32.totalorder %s14, 0
    %p119 = por %p117, %p118
    %p120 = scmp.ne.s32.totalorder %s106, %s107
    %p121 = scmp.eq.s32.totalorder %s15, 1
    %p122 = por %p120, %p121
    %p124 = scmp.ne.s32.totalorder %s107, %s123
    %p125 = scmp.eq.s32.totalorder %s15, 0
    %p126 = por %p124, %p125
    %s127 = ssub.s32 %s16, %s42
    %s128 = ssub.s32 %s17, %s38
    %s129 = sor.u32 %s127, %s128
    %s130 = ssub.s32 %s18, %s34
    %s131 = sor.u32 %s129, %s130
    %p132 = scmp.eq.s32.totalorder %s131, 0
    %s134 = sadd.s32 %s133, 1
    %s135 = scalar_select %p132, %s133, %s134
    %p138 = pneg %p132
    %p139 = scmp.eq.s32.totalorder %s9, 1
    %p140 = por %p138, %p139
    %p141 = scmp.ne.s32.totalorder %s133, %s136
    %p142 = scmp.eq.s32.totalorder %s9, 0
    %p143 = por %p141, %p142
    %p144 = scmp.ne.s32.totalorder %s133, %s136
    %p145 = scmp.eq.s32.totalorder %s14, 1
    %p146 = por %p144, %p145
    %p147 = scmp.ne.s32.totalorder %s136, %s137
    %p148 = scmp.eq.s32.totalorder %s14, 0
    %p149 = por %p147, %p148
    %p150 = scmp.ne.s32.totalorder %s136, %s137
    %p151 = scmp.eq.s32.totalorder %s15, 1
    %p152 = por %p150, %p151
    %p154 = scmp.ne.s32.totalorder %s137, %s153
    %p155 = scmp.eq.s32.totalorder %s15, 0
    %p156 = por %p154, %p155
    %p157 = scmp.le.s32.totalorder 1, %s9
    %p158 = scmp.lt.s32.totalorder %s9, 3
    %p159 = pnand %p157, %p158
    %p160 = pneg %p159
    // Predicated region
    $region9: #{dit_block_forward.16} parent=5 // pred_check
      _
    $region10: #{dit_block_forward.16} parent=5 // pred_check_branch
      %162 = sbr.rel (%p159) target = $region12
    $region11: #{dit_block_forward.16} parent=5 // pred_region
      %s163 = ssub.s32 %s9, 1
      // Predicated region
      $region13: #{dit_block_forward.16} parent=11 // pred_check
        %p164 = pneg %p93
      $region14: #{dit_block_forward.16} parent=11 // pred_check_branch
        %166 = sbr.rel (%p164) target = $region16
      $region15: #{dit_block_forward.16} parent=11 // pred_region
        %s167 = smul.u32 6, %s23
        %p168 = scmp.lt.s32.totalorder %s167, 5
        %s169 = scalar_select %p168, %s167, 5
        %p170 = scmp.lt.s32.totalorder %s22, 0
        %s171 = scalar_select %p170, %s22, 0
        %s172 = sadd.s32 %s171, %s169
        %s173 = smul.addr %s172, 4
        %s174 = scalar_lea.vmem %s1, %s173
        %s175 = smul.u32 6, %s23
      $region16: #{dit_block_forward.16} parent=11 // pred_fallthru
        _
      // Predicated region
      $region17: #{dit_block_forward.16} parent=11 // pred_check
        %p176 = pneg %p119
      $region18: #{dit_block_forward.16} parent=11 // pred_check_branch
        %178 = sbr.rel (%p176) target = $region20
      $region19: #{dit_block_forward.16} parent=11 // pred_region
        %p179 = scmp.lt.s32.totalorder %s22, 0
        %s180 = scalar_select %p179, %s22, 0
        %s181 = scalar_lea.vmem %s2, %s180
      $region20: #{dit_block_forward.16} parent=11 // pred_fallthru
        _
    $region12: #{dit_block_forward.16} parent=5 // pred_fallthru
      _
    %p182 = scmp.lt.s32.totalorder %s9, 2
    // Predicated region
    $region21: #{dit_block_forward.16} parent=5 // pred_check
      %p183 = pneg %p182
    $region22: #{dit_block_forward.16} parent=5 // pred_check_branch
      %185 = sbr.rel (%p183) target = $region24
    $region23: #{dit_block_forward.16} parent=5 // pred_region
      // Predicated region
      $region25: #{dit_block_forward.16} parent=23 // pred_check
        %p186 = pneg %p59
      $region26: #{dit_block_forward.16} parent=23 // pred_check_branch
        %188 = sbr.rel (%p186) target = $region28
      $region27: #{dit_block_forward.16} parent=23 // pred_region
        %p189 = scmp.lt.s32.totalorder %s16, 1
        %s190 = scalar_select %p189, %s16, 1
        %p191 = scmp.lt.s32.totalorder %s17, 0
        %s192 = scalar_select %p191, %s17, 0
        %p193 = scmp.lt.s32.totalorder %s19, 0
        %s194 = scalar_select %p193, %s19, 0
        %s195 = sadd.s32 %s194, %s192
        %s196 = sadd.s32 %s195, %s190
        %s197 = smul.addr %s196, 8
        %s198 = scalar_lea.vmem %s0, %s197
      $region28: #{dit_block_forward.16} parent=23 // pred_fallthru
        _
    $region24: #{dit_block_forward.16} parent=5 // pred_fallthru
      _
    %p199 = scmp.le.s32.totalorder 1, %s9
    %p200 = scmp.lt.s32.totalorder %s9, 3
    %p201 = pnand %p199, %p200
    %p202 = pneg %p201
    // Predicated region
    $region29: #{dit_block_forward.16} parent=5 // pred_check
      _
    $region30: #{dit_block_forward.16} parent=5 // pred_check_branch
      %204 = sbr.rel (%p201) target = $region32
    $region31: #{dit_block_forward.16} parent=5 // pred_region
      %s205 = ssub.s32 %s9, 1
      %p206 = scmp.lt.s32.totalorder %s20, 1
      %s207 = scalar_select %p206, %s20, 1
      %p208 = scmp.lt.s32.totalorder %s21, 0
      %s209 = scalar_select %p208, %s21, 0
      %p210 = scmp.lt.s32.totalorder %s23, 0
      %s211 = scalar_select %p210, %s23, 0
      %s212 = sadd.s32 %s211, %s209
      %s213 = sadd.s32 %s212, %s207
      %s214 = smul.addr %s213, 8
      %s215 = scalar_lea.vmem %s0, %s214
      %p216 = pneg %p65
      %p217 = pneg %p62
      %s218 = smul.u32 6, %s23
      %p219 = scmp.lt.s32.totalorder %s218, 5
      %s220 = scalar_select %p219, %s218, 5
      %p221 = scmp.lt.s32.totalorder %s22, 0
      %s222 = scalar_select %p221, %s22, 0
      %s223 = sadd.s32 %s222, %s220
      %s224 = smul.addr %s223, 4
      %s225 = scalar_lea.vmem %s1, %s224
      %p226 = pneg %p93
      %p227 = pneg %p90
      %p228 = scmp.lt.s32.totalorder %s22, 0
      %s229 = scalar_select %p228, %s22, 0
      %s230 = scalar_lea.vmem %s2, %s229
      %p231 = pneg %p119
      %p232 = pneg %p116
      %p233 = pneg %p149
      %p234 = pneg %p146
      %p235 = scmp.lt.s32.totalorder %s20, 1
      %s236 = scalar_select %p235, %s20, 1
      %p237 = scmp.lt.s32.totalorder %s21, 0
      %s238 = scalar_select %p237, %s21, 0
      %p239 = scmp.lt.s32.totalorder %s22, 0
      %s240 = scalar_select %p239, %s22, 0
      %s241 = sadd.s32 %s240, %s238
      %s242 = sadd.s32 %s241, %s236
      %s243 = smul.addr %s242, 4
      %s244 = scalar_lea.vmem %s3, %s243
      %p245 = scmp.lt.s32.totalorder %s20, 1
      %s246 = scalar_select %p245, %s20, 1
      %p247 = scmp.lt.s32.totalorder %s21, 0
      %s248 = scalar_select %p247, %s21, 0
      %p249 = scmp.lt.s32.totalorder %s23, 0
      %s250 = scalar_select %p249, %s23, 0
      %s251 = sadd.s32 %s250, %s248
      %s252 = sadd.s32 %s251, %s246
      %s253 = smul.addr %s252, 8
      %s254 = scalar_lea.vmem %s0, %s253
      %s255 = smul.u32 6, %s23
      %p256 = scmp.lt.s32.totalorder %s255, 5
      %s257 = scalar_select %p256, %s255, 5
      %p258 = scmp.lt.s32.totalorder %s22, 0
      %s259 = scalar_select %p258, %s22, 0
      %s260 = sadd.s32 %s259, %s257
      %s261 = smul.addr %s260, 4
      %s262 = scalar_lea.vmem %s1, %s261
      %s263 = smul.u32 6, %s23
      %p264 = scmp.lt.s32.totalorder %s22, 0
      %s265 = scalar_select %p264, %s22, 0
      %s266 = scalar_lea.vmem %s2, %s265
      %p267 = scmp.lt.s32.totalorder %s20, 1
      %s268 = scalar_select %p267, %s20, 1
      %p269 = scmp.lt.s32.totalorder %s21, 0
      %s270 = scalar_select %p269, %s21, 0
      %p271 = scmp.lt.s32.totalorder %s22, 0
      %s272 = scalar_select %p271, %s22, 0
      %s273 = sadd.s32 %s272, %s270
      %s274 = sadd.s32 %s273, %s268
      %s275 = smul.addr %s274, 4
      %s276 = scalar_lea.vmem %s3, %s275
      %p278 = scmp.eq.s32.totalorder %s23, 0
      // Predicated region
      $region33: #{dit_block_forward.16} parent=31 // pred_check
        %p279 = pneg %p278
      $region34: #{dit_block_forward.16} parent=31 // pred_check_branch
        %281 = sbr.rel (%p279) target = $region36
      $region35: #{dit_block_forward.16} parent=31 // pred_region
        %vm282 = vcmask 259072
        %283 = vst.msk [vmem:[#allocation2] sm:$0x3f] %vm282, 0.0
      $region36: #{dit_block_forward.16} parent=31 // pred_fallthru
        _
      %v284 = vld [vmem:[#allocation2] sm:$0x3f]
      %v285 = vld [vmem:[%s254] sm:$0x3f]
      %v286 = vpack.c.bf16 %v285, %v285
      %v287 = vld [vmem:[%s262] sm:$0xf]
      %v288 = vld [vmem:[%s262 + $0x4] sm:$0xf]
      %v289 = vld [vmem:[%s262 + $0x8] sm:$0xf]
      %v290 = vld [vmem:[%s262 + $0xc] sm:$0xf]
      %v291 = vld [vmem:[%s262 + $0x10] sm:$0xf]
      %v292 = vld [vmem:[%s262 + $0x14] sm:$0xf]
      %v299 = vunpack.c.l.b16 %v287
      %v300 = vunpack.c.l.b16 %v288
      %v301 = vunpack.c.l.b16 %v289
      %v302 = vunpack.c.l.b16 %v290
      %v303 = vunpack.c.l.b16 %v291
      %v304 = vunpack.c.l.b16 %v292
      %v305 = vpack.c.b16 %v300, %v299
      %v306 = vpack.c.b16 %v302, %v301
      %v307 = vpack.c.b16 %v304, %v303
      %vm311 = vcmask 392192
      %v313 = vsel %vm311, %v286, 0
      %315 = vmatprep.subr.bf16.mxu0 0
      %316 = vmatpush1.bf16.msra.mxu0 %v305
      %317 = vmatprep.subr.bf16.mxu0 0
      %318 = vmatpush1.bf16.msra.mxu0 %v306
      %319 = vmatprep.subr.bf16.mxu0 0
      %320 = vmatpush1.bf16.msra.mxu0 %v307
      %321 = vmatprep.subr.bf16.mxu0 0
      %322 = vmatpush1.bf16.msra.mxu0 0
      %323 = vmatprep.subr.bf16.mxu0 0
      %324 = vmatpush1.bf16.msra.mxu0 0
      %325 = vmatprep.subr.bf16.mxu0 0
      %326 = vmatpush1.bf16.msra.mxu0 0
      %327 = vmatprep.subr.bf16.mxu0 0
      %328 = vmatpush1.bf16.msra.mxu0 0
      %329 = vmatprep.subr.bf16.mxu0 0
      %330 = vmatpush1.bf16.msra.mxu0 0
      %331 = vmatprep.subr.bf16.mxu0 0
      %332 = vmatpush1.bf16.msra.mxu0 0
      %333 = vmatprep.subr.bf16.mxu0 0
      %334 = vmatpush1.bf16.msra.mxu0 0
      %335 = vmatprep.subr.bf16.mxu0 0
      %336 = vmatpush1.bf16.msra.mxu0 0
      %337 = vmatprep.subr.bf16.mxu0 0
      %338 = vmatpush1.bf16.msra.mxu0 0
      %339 = vmatprep.subr.bf16.mxu0 0
      %340 = vmatpush1.bf16.msra.mxu0 0
      %341 = vmatprep.subr.bf16.mxu0 0
      %342 = vmatpush1.bf16.msra.mxu0 0
      %343 = vmatprep.subr.bf16.mxu0 0
      %344 = vmatpush1.bf16.msra.mxu0 0
      %345 = vmatprep.subr.bf16.mxu0 0
      %346 = vmatpush1.bf16.msra.mxu0 0
      %347 = vmatprep.mubr.bf16.mxu0 0
      %348 = vmatmul.mubr.bf16.gmra.mrb[0].mxu0 %v313
      %v349 = vpop.f32.mrb[0].mxu0
      %v350 = vadd.f32 0.0, %v349
      %v351 = vpop.f32.mrb[0].mxu0
      %v352 = vpop.f32.mrb[0].mxu0
      %v353 = vpop.f32.mrb[0].mxu0
      %354 = vdwg.mxu0
      %v355 = vadd.f32 %v284, %v350
      %vm356 = vcmask 259072
      %357 = vst.msk [vmem:[#allocation2] sm:$0x3f] %vm356, %v355
      // Predicated region
      $region37: #{dit_block_forward.16} parent=31 // pred_check
        %p358 = pneg %p278
      $region38: #{dit_block_forward.16} parent=31 // pred_check_branch
        %360 = sbr.rel (%p358) target = $region40
      $region39: #{dit_block_forward.16} parent=31 // pred_region
        %v361 = vld [vmem:[#allocation2] sm:$0x3f]
        %v362 = vld [vmem:[%s266] sm:$0x1]
        %v364 = vlaneseq
        %v365 = vshrl.u32 %v364, 7
        %v366 = vsub.s32 0, %v365
        %v367 = vrot.slane %v362, %v366
        %v369 = vadd.f32 %v361, %v367
        %v370 = vpack.c.bf16 %v369, %v369
        %vm371 = vcmask 256000
        %372 = vst.msk [vmem:[%s276] sm:$0x7] %vm371, %v370
      $region40: #{dit_block_forward.16} parent=31 // pred_fallthru
        _
      %p373 = scmp.lt.s32.totalorder %s20, 1
      %s374 = scalar_select %p373, %s20, 1
      %p375 = scmp.lt.s32.totalorder %s21, 0
      %s376 = scalar_select %p375, %s21, 0
      %p377 = scmp.lt.s32.totalorder %s22, 0
      %s378 = scalar_select %p377, %s22, 0
      %s379 = sadd.s32 %s378, %s376
      %s380 = sadd.s32 %s379, %s374
      %s381 = smul.addr %s380, 4
      %s382 = scalar_lea.vmem %s3, %s381
      // Predicated region
      $region41: #{dit_block_forward.16} parent=31 // pred_check
        %p383 = pneg %p146
      $region42: #{dit_block_forward.16} parent=31 // pred_check_branch
        %385 = sbr.rel (%p383) target = $region44
      $region43: #{dit_block_forward.16} parent=31 // pred_region
        _
      $region44: #{dit_block_forward.16} parent=31 // pred_fallthru
        _
    $region32: #{dit_block_forward.16} parent=5 // pred_fallthru
      _
    %p386 = scmp.le.s32.totalorder 2, %s9
    // Predicated region
    $region45: #{dit_block_forward.16} parent=5 // pred_check
      %p387 = pneg %p386
    $region46: #{dit_block_forward.16} parent=5 // pred_check_branch
      %389 = sbr.rel (%p387) target = $region48
    $region47: #{dit_block_forward.16} parent=5 // pred_region
      %s390 = ssub.s32 %s9, 2
      // Predicated region
      $region49: #{dit_block_forward.16} parent=47 // pred_check
        %p391 = pneg %p152
      $region50: #{dit_block_forward.16} parent=47 // pred_check_branch
        %393 = sbr.rel (%p391) target = $region52
      $region51: #{dit_block_forward.16} parent=47 // pred_region
        %p394 = scmp.lt.s32.totalorder %s24, 1
        %s395 = scalar_select %p394, %s24, 1
        %p396 = scmp.lt.s32.totalorder %s25, 0
        %s397 = scalar_select %p396, %s25, 0
        %p398 = scmp.lt.s32.totalorder %s26, 0
        %s399 = scalar_select %p398, %s26, 0
        %s400 = sadd.s32 %s399, %s397
        %s401 = sadd.s32 %s400, %s395
        %s402 = smul.addr %s401, 4
        %s403 = scalar_lea.vmem %s3, %s402
      $region52: #{dit_block_forward.16} parent=47 // pred_fallthru
        _
    $region48: #{dit_block_forward.16} parent=5 // pred_fallthru
      _
  $region6: #{dit_block_forward.16} parent=0 // loop_footer
    %s13 = sadd.s32 1, %s9
  $region7: #{dit_block_forward.16} parent=0 // loop_footer_branch
    %8 = sbr.rel target = $region3
  $region8: #{dit_block_forward.16} parent=0 // loop_exit
    _

// kernel: dit_block_forward.18
$region0: #{dit_block_forward.18}
  #allocation0 [shape = 'u32[]', space=smem, size = 0x4, offset = 0x4, fixed_abs, tag = 'smem constant byte address 0x4 - core index']
  #allocation1 [shape = 'u32[144,128]{1,0:T(1,128)}', space=vmem, size = 0x12000, scoped, tag = 'internal scratch']
  #allocation2 [shape = 'f32[6,256]{1,0:T(8,128)}', space=vmem, size = 0x2000, scoped, tag = 'scratch operand']
  %s0 = inlined_call_operand.vmem [shape: bf16[2,6,32], index: 0, kind: input, shape index: {}]
  %s1 = inlined_call_operand.vmem [shape: bf16[32,256], index: 1, kind: input, shape index: {}]
  %s2 = inlined_call_operand.vmem [shape: f32[1,256], index: 2, kind: input, shape index: {}]
  %s3 = inlined_call_operand.vmem [shape: bf16[2,6,256], index: 3, kind: output, shape index: {}]
  %s4 = sld [smem:[#allocation0]]
  $region53: #{dit_block_forward.18} parent=0
    _
  %s6 = ssub.s32 1, %s4
  %s7 = scalar_select 0, %s6, %s4
  loop: start=0, step=1, limit=4
  $region2: #{dit_block_forward.18} parent=0 // loop_pre_header
    _
  $region3: #{dit_block_forward.18} parent=0 // loop_header
    %s9 = sphi 0, %s13
    %p10 = scmp.ge.s32.totalorder %s9, 4
    %s16 = sphi 0, %s42
    %s17 = sphi 0, %s38
    %s18 = sphi 0, %s34
    %s19 = sphi 0, %s30
    %s20 = sphi 0, %s16
    %s21 = sphi 0, %s17
    %s22 = sphi 0, %s18
    %s23 = sphi 0, %s19
    %s24 = sphi 0, %s20
    %s25 = sphi 0, %s21
    %s26 = sphi 0, %s22
    %s27 = sphi 0, %s23
    %s49 = sphi 0, %s51
    %s52 = sphi 0, %s49
    %s53 = sphi 0, %s52
    %s69 = sphi 0, %s53
    %s77 = sphi 0, %s79
    %s80 = sphi 0, %s77
    %s81 = sphi 0, %s80
    %s97 = sphi 0, %s81
    %s103 = sphi 0, %s105
    %s106 = sphi 0, %s103
    %s107 = sphi 0, %s106
    %s123 = sphi 0, %s107
    %s133 = sphi 0, %s135
    %s136 = sphi 0, %s133
    %s137 = sphi 0, %s136
    %s153 = sphi 0, %s137
  $region4: #{dit_block_forward.18} parent=0 // loop_header_branch
    %12 = sbr.rel (%p10) target = $region8
  $region5: #{dit_block_forward.18} parent=0 // loop_body
    %s14 = ssub.s32 %s9, 1
    %s15 = ssub.s32 %s9, 2
    %s28 = sadd.s32 1, %s19
    %p29 = scmp.ge.s32.totalorder %s28, 1
    %s30 = scalar_select %p29, 0, %s28
    %s31 = sadd.s32 1, %s18
    %s32 = scalar_select %p29, %s31, %s18
    %p33 = scmp.ge.s32.totalorder %s32, 1
    %s34 = scalar_select %p33, 0, %s32
    %s35 = sadd.s32 1, %s17
    %s36 = scalar_select %p33, %s35, %s17
    %p37 = scmp.ge.s32.totalorder %s36, 1
    %s38 = scalar_select %p37, 0, %s36
    %s39 = sadd.s32 1, %s16
    %s40 = scalar_select %p37, %s39, %s16
    %p41 = scmp.ge.s32.totalorder %s40, 2
    %s42 = scalar_select %p41, 0, %s40
    %s43 = ssub.s32 %s16, %s42
    %s44 = ssub.s32 %s17, %s38
    %s45 = sor.u32 %s43, %s44
    %s46 = ssub.s32 %s19, %s30
    %s47 = sor.u32 %s45, %s46
    %p48 = scmp.eq.s32.totalorder %s47, 0
    %s50 = sadd.s32 %s49, 1
    %s51 = scalar_select %p48, %s49, %s50
    %p54 = pneg %p48
    %p55 = scmp.eq.s32.totalorder %s9, 1
    %p56 = por %p54, %p55
    %p57 = scmp.ne.s32.totalorder %s49, %s52
    %p58 = scmp.eq.s32.totalorder %s9, 0
    %p59 = por %p57, %p58
    %p60 = scmp.ne.s32.totalorder %s49, %s52
    %p61 = scmp.eq.s32.totalorder %s14, 1
    %p62 = por %p60, %p61
    %p63 = scmp.ne.s32.totalorder %s52, %s53
    %p64 = scmp.eq.s32.totalorder %s14, 0
    %p65 = por %p63, %p64
    %p66 = scmp.ne.s32.totalorder %s52, %s53
    %p67 = scmp.eq.s32.totalorder %s15, 1
    %p68 = por %p66, %p67
    %p70 = scmp.ne.s32.totalorder %s53, %s69
    %p71 = scmp.eq.s32.totalorder %s15, 0
    %p72 = por %p70, %p71
    %s73 = ssub.s32 %s19, %s30
    %s74 = ssub.s32 %s18, %s34
    %s75 = sor.u32 %s73, %s74
    %p76 = scmp.eq.s32.totalorder %s75, 0
    %s78 = sadd.s32 %s77, 1
    %s79 = scalar_select %p76, %s77, %s78
    %p82 = pneg %p76
    %p83 = scmp.eq.s32.totalorder %s9, 1
    %p84 = por %p82, %p83
    %p85 = scmp.ne.s32.totalorder %s77, %s80
    %p86 = scmp.eq.s32.totalorder %s9, 0
    %p87 = por %p85, %p86
    %p88 = scmp.ne.s32.totalorder %s77, %s80
    %p89 = scmp.eq.s32.totalorder %s14, 1
    %p90 = por %p88, %p89
    %p91 = scmp.ne.s32.totalorder %s80, %s81
    %p92 = scmp.eq.s32.totalorder %s14, 0
    %p93 = por %p91, %p92
    %p94 = scmp.ne.s32.totalorder %s80, %s81
    %p95 = scmp.eq.s32.totalorder %s15, 1
    %p96 = por %p94, %p95
    %p98 = scmp.ne.s32.totalorder %s81, %s97
    %p99 = scmp.eq.s32.totalorder %s15, 0
    %p100 = por %p98, %p99
    %s101 = ssub.s32 %s18, %s34
    %p102 = scmp.eq.s32.totalorder %s101, 0
    %s104 = sadd.s32 %s103, 1
    %s105 = scalar_select %p102, %s103, %s104
    %p108 = pneg %p102
    %p109 = scmp.eq.s32.totalorder %s9, 1
    %p110 = por %p108, %p109
    %p111 = scmp.ne.s32.totalorder %s103, %s106
    %p112 = scmp.eq.s32.totalorder %s9, 0
    %p113 = por %p111, %p112
    %p114 = scmp.ne.s32.totalorder %s103, %s106
    %p115 = scmp.eq.s32.totalorder %s14, 1
    %p116 = por %p114, %p115
    %p117 = scmp.ne.s32.totalorder %s106, %s107
    %p118 = scmp.eq.s32.totalorder %s14, 0
    %p119 = por %p117, %p118
    %p120 = scmp.ne.s32.totalorder %s106, %s107
    %p121 = scmp.eq.s32.totalorder %s15, 1
    %p122 = por %p120, %p121
    %p124 = scmp.ne.s32.totalorder %s107, %s123
    %p125 = scmp.eq.s32.totalorder %s15, 0
    %p126 = por %p124, %p125
    %s127 = ssub.s32 %s16, %s42
    %s128 = ssub.s32 %s17, %s38
    %s129 = sor.u32 %s127, %s128
    %s130 = ssub.s32 %s18, %s34
    %s131 = sor.u32 %s129, %s130
    %p132 = scmp.eq.s32.totalorder %s131, 0
    %s134 = sadd.s32 %s133, 1
    %s135 = scalar_select %p132, %s133, %s134
    %p138 = pneg %p132
    %p139 = scmp.eq.s32.totalorder %s9, 1
    %p140 = por %p138, %p139
    %p141 = scmp.ne.s32.totalorder %s133, %s136
    %p142 = scmp.eq.s32.totalorder %s9, 0
    %p143 = por %p141, %p142
    %p144 = scmp.ne.s32.totalorder %s133, %s136
    %p145 = scmp.eq.s32.totalorder %s14, 1
    %p146 = por %p144, %p145
    %p147 = scmp.ne.s32.totalorder %s136, %s137
    %p148 = scmp.eq.s32.totalorder %s14, 0
    %p149 = por %p147, %p148
    %p150 = scmp.ne.s32.totalorder %s136, %s137
    %p151 = scmp.eq.s32.totalorder %s15, 1
    %p152 = por %p150, %p151
    %p154 = scmp.ne.s32.totalorder %s137, %s153
    %p155 = scmp.eq.s32.totalorder %s15, 0
    %p156 = por %p154, %p155
    %p157 = scmp.le.s32.totalorder 1, %s9
    %p158 = scmp.lt.s32.totalorder %s9, 3
    %p159 = pnand %p157, %p158
    %p160 = pneg %p159
    // Predicated region
    $region9: #{dit_block_forward.18} parent=5 // pred_check
      _
    $region10: #{dit_block_forward.18} parent=5 // pred_check_branch
      %162 = sbr.rel (%p159) target = $region12
    $region11: #{dit_block_forward.18} parent=5 // pred_region
      %s163 = ssub.s32 %s9, 1
      // Predicated region
      $region13: #{dit_block_forward.18} parent=11 // pred_check
        %p164 = pneg %p93
      $region14: #{dit_block_forward.18} parent=11 // pred_check_branch
        %166 = sbr.rel (%p164) target = $region16
      $region15: #{dit_block_forward.18} parent=11 // pred_region
        %s167 = smul.u32 4, %s23
        %s168 = smul.u32 2, %s22
        %p169 = scmp.lt.s32.totalorder %s167, 3
        %s170 = scalar_select %p169, %s167, 3
        %p171 = scmp.lt.s32.totalorder %s168, 1
        %s172 = scalar_select %p171, %s168, 1
        %s173 = smul.addr %s170, 2
        %s174 = sadd.s32 %s172, %s173
        %s175 = smul.addr %s174, 4
        %s176 = scalar_lea.vmem %s1, %s175
        %s177 = smul.u32 4, %s23
        %s178 = smul.u32 2, %s22
      $region16: #{dit_block_forward.18} parent=11 // pred_fallthru
        _
      // Predicated region
      $region17: #{dit_block_forward.18} parent=11 // pred_check
        %p179 = pneg %p119
      $region18: #{dit_block_forward.18} parent=11 // pred_check_branch
        %181 = sbr.rel (%p179) target = $region20
      $region19: #{dit_block_forward.18} parent=11 // pred_region
        %s182 = smul.u32 2, %s22
        %p183 = scmp.lt.s32.totalorder %s182, 1
        %s184 = scalar_select %p183, %s182, 1
        %s185 = scalar_lea.vmem %s2, %s184
        %s186 = smul.u32 2, %s22
      $region20: #{dit_block_forward.18} parent=11 // pred_fallthru
        _
    $region12: #{dit_block_forward.18} parent=5 // pred_fallthru
      _
    %p187 = scmp.lt.s32.totalorder %s9, 2
    // Predicated region
    $region21: #{dit_block_forward.18} parent=5 // pred_check
      %p188 = pneg %p187
    $region22: #{dit_block_forward.18} parent=5 // pred_check_branch
      %190 = sbr.rel (%p188) target = $region24
    $region23: #{dit_block_forward.18} parent=5 // pred_region
      // Predicated region
      $region25: #{dit_block_forward.18} parent=23 // pred_check
        %p191 = pneg %p59
      $region26: #{dit_block_forward.18} parent=23 // pred_check_branch
        %193 = sbr.rel (%p191) target = $region28
      $region27: #{dit_block_forward.18} parent=23 // pred_region
        %p194 = scmp.lt.s32.totalorder %s16, 1
        %s195 = scalar_select %p194, %s16, 1
        %p196 = scmp.lt.s32.totalorder %s17, 0
        %s197 = scalar_select %p196, %s17, 0
        %p198 = scmp.lt.s32.totalorder %s19, 0
        %s199 = scalar_select %p198, %s19, 0
        %s200 = sadd.s32 %s199, %s197
        %s201 = sadd.s32 %s200, %s195
        %s202 = smul.addr %s201, 4
        %s203 = scalar_lea.vmem %s0, %s202
      $region28: #{dit_block_forward.18} parent=23 // pred_fallthru
        _
    $region24: #{dit_block_forward.18} parent=5 // pred_fallthru
      _
    %p204 = scmp.le.s32.totalorder 1, %s9
    %p205 = scmp.lt.s32.totalorder %s9, 3
    %p206 = pnand %p204, %p205
    %p207 = pneg %p206
    // Predicated region
    $region29: #{dit_block_forward.18} parent=5 // pred_check
      _
    $region30: #{dit_block_forward.18} parent=5 // pred_check_branch
      %209 = sbr.rel (%p206) target = $region32
    $region31: #{dit_block_forward.18} parent=5 // pred_region
      %s210 = ssub.s32 %s9, 1
      %p211 = scmp.lt.s32.totalorder %s20, 1
      %s212 = scalar_select %p211, %s20, 1
      %p213 = scmp.lt.s32.totalorder %s21, 0
      %s214 = scalar_select %p213, %s21, 0
      %p215 = scmp.lt.s32.totalorder %s23, 0
      %s216 = scalar_select %p215, %s23, 0
      %s217 = sadd.s32 %s216, %s214
      %s218 = sadd.s32 %s217, %s212
      %s219 = smul.addr %s218, 4
      %s220 = scalar_lea.vmem %s0, %s219
      %p221 = pneg %p65
      %p222 = pneg %p62
      %s223 = smul.u32 4, %s23
      %s224 = smul.u32 2, %s22
      %p225 = scmp.lt.s32.totalorder %s223, 3
      %s226 = scalar_select %p225, %s223, 3
      %p227 = scmp.lt.s32.totalorder %s224, 1
      %s228 = scalar_select %p227, %s224, 1
      %s229 = smul.addr %s226, 2
      %s230 = sadd.s32 %s228, %s229
      %s231 = smul.addr %s230, 4
      %s232 = scalar_lea.vmem %s1, %s231
      %p233 = pneg %p93
      %p234 = pneg %p90
      %s235 = smul.u32 2, %s22
      %p236 = scmp.lt.s32.totalorder %s235, 1
      %s237 = scalar_select %p236, %s235, 1
      %s238 = scalar_lea.vmem %s2, %s237
      %p239 = pneg %p119
      %p240 = pneg %p116
      %p241 = pneg %p149
      %p242 = pneg %p146
      %s243 = smul.u32 2, %s22
      %p244 = scmp.lt.s32.totalorder %s20, 1
      %s245 = scalar_select %p244, %s20, 1
      %p246 = scmp.lt.s32.totalorder %s21, 0
      %s247 = scalar_select %p246, %s21, 0
      %p248 = scmp.lt.s32.totalorder %s243, 1
      %s249 = scalar_select %p248, %s243, 1
      %s250 = smul.addr %s247, 2
      %s251 = sadd.s32 %s249, %s250
      %s252 = smul.addr %s245, 2
      %s253 = sadd.s32 %s251, %s252
      %s254 = smul.addr %s253, 4
      %s255 = scalar_lea.vmem %s3, %s254
      %p256 = scmp.lt.s32.totalorder %s20, 1
      %s257 = scalar_select %p256, %s20, 1
      %p258 = scmp.lt.s32.totalorder %s21, 0
      %s259 = scalar_select %p258, %s21, 0
      %p260 = scmp.lt.s32.totalorder %s23, 0
      %s261 = scalar_select %p260, %s23, 0
      %s262 = sadd.s32 %s261, %s259
      %s263 = sadd.s32 %s262, %s257
      %s264 = smul.addr %s263, 4
      %s265 = scalar_lea.vmem %s0, %s264
      %s266 = smul.u32 4, %s23
      %s267 = smul.u32 2, %s22
      %p268 = scmp.lt.s32.totalorder %s266, 3
      %s269 = scalar_select %p268, %s266, 3
      %p270 = scmp.lt.s32.totalorder %s267, 1
      %s271 = scalar_select %p270, %s267, 1
      %s272 = smul.addr %s269, 2
      %s273 = sadd.s32 %s271, %s272
      %s274 = smul.addr %s273, 4
      %s275 = scalar_lea.vmem %s1, %s274
      %s276 = smul.u32 4, %s23
      %s277 = smul.u32 2, %s22
      %s278 = smul.u32 2, %s22
      %p279 = scmp.lt.s32.totalorder %s278, 1
      %s280 = scalar_select %p279, %s278, 1
      %s281 = scalar_lea.vmem %s2, %s280
      %s282 = smul.u32 2, %s22
      %s283 = smul.u32 2, %s22
      %p284 = scmp.lt.s32.totalorder %s20, 1
      %s285 = scalar_select %p284, %s20, 1
      %p286 = scmp.lt.s32.totalorder %s21, 0
      %s287 = scalar_select %p286, %s21, 0
      %p288 = scmp.lt.s32.totalorder %s283, 1
      %s289 = scalar_select %p288, %s283, 1
      %s290 = smul.addr %s287, 2
      %s291 = sadd.s32 %s289, %s290
      %s292 = smul.addr %s285, 2
      %s293 = sadd.s32 %s291, %s292
      %s294 = smul.addr %s293, 4
      %s295 = scalar_lea.vmem %s3, %s294
      %s296 = smul.u32 2, %s22
      %p298 = scmp.eq.s32.totalorder %s23, 0
      // Predicated region
      $region33: #{dit_block_forward.18} parent=31 // pred_check
        %p299 = pneg %p298
      $region34: #{dit_block_forward.18} parent=31 // pred_check_branch
        %301 = sbr.rel (%p299) target = $region36
      $region35: #{dit_block_forward.18} parent=31 // pred_region
        %302 = vst [vmem:[#allocation2] sm:$0x3f] 0.0
        %303 = vst [vmem:[#allocation2 + $0x8] sm:$0x3f] 0.0
      $region36: #{dit_block_forward.18} parent=31 // pred_fallthru
        _
      %v304 = vld [vmem:[#allocation2] sm:$0x3f]
      %v305 = vld [vmem:[#allocation2 + $0x8] sm:$0x3f]
      %v306 = vld [vmem:[%s265] sm:$0x7]
      %v307 = vld [vmem:[%s275] sm:$0xff]
      %v308 = vld [vmem:[%s275 + $0x8] sm:$0xff]
      %v309 = vld [vmem:[%s275 + $0x10] sm:$0xff]
      %v310 = vld [vmem:[%s275 + $0x18] sm:$0xff]
      %v315 = vunpack.c.l.b16 %v307
      %v316 = vunpack.c.h.b16 %v307
      %v317 = vunpack.c.l.b16 %v308
      %v318 = vunpack.c.h.b16 %v308
      %v319 = vunpack.c.l.b16 %v309
      %v320 = vunpack.c.h.b16 %v309
      %v321 = vunpack.c.l.b16 %v310
      %v322 = vunpack.c.h.b16 %v310
      %v323 = vpack.c.b16 %v317, %v315
      %v324 = vpack.c.b16 %v318, %v316
      %v325 = vpack.c.b16 %v321, %v319
      %v326 = vpack.c.b16 %v322, %v320
      %vm331 = vcmask 261120
      %v333 = vsel %vm331, %v306, 0
      %335 = vmatprep.subr.bf16.mxu0 %v324
      %336 = vmatpush1.bf16.msra.mxu0 %v323
      %337 = vmatprep.subr.bf16.mxu0 %v326
      %338 = vmatpush1.bf16.msra.mxu0 %v325
      %339 = vmatprep.subr.bf16.mxu0 0
      %340 = vmatpush1.bf16.msra.mxu0 0
      %341 = vmatprep.subr.bf16.mxu0 0
      %342 = vmatpush1.bf16.msra.mxu0 0
      %343 = vmatprep.subr.bf16.mxu0 0
      %344 = vmatpush1.bf16.msra.mxu0 0
      %345 = vmatprep.subr.bf16.mxu0 0
      %346 = vmatpush1.bf16.msra.mxu0 0
      %347 = vmatprep.subr.bf16.mxu0 0
      %348 = vmatpush1.bf16.msra.mxu0 0
      %349 = vmatprep.subr.bf16.mxu0 0
      %350 = vmatpush1.bf16.msra.mxu0 0
      %351 = vmatprep.subr.bf16.mxu0 0
      %352 = vmatpush1.bf16.msra.mxu0 0
      %353 = vmatprep.subr.bf16.mxu0 0
      %354 = vmatpush1.bf16.msra.mxu0 0
      %355 = vmatprep.subr.bf16.mxu0 0
      %356 = vmatpush1.bf16.msra.mxu0 0
      %357 = vmatprep.subr.bf16.mxu0 0
      %358 = vmatpush1.bf16.msra.mxu0 0
      %359 = vmatprep.subr.bf16.mxu0 0
      %360 = vmatpush1.bf16.msra.mxu0 0
      %361 = vmatprep.subr.bf16.mxu0 0
      %362 = vmatpush1.bf16.msra.mxu0 0
      %363 = vmatprep.subr.bf16.mxu0 0
      %364 = vmatpush1.bf16.msra.mxu0 0
      %365 = vmatprep.subr.bf16.mxu0 0
      %366 = vmatpush1.bf16.msra.mxu0 0
      %367 = vmatprep.mubr.bf16.mxu0 0
      %368 = vmatmul.mubr.bf16.gmra.mrb[0].mxu0 %v333
      %v369 = vpop.f32.mrb[0].mxu0
      %v370 = vadd.f32 0.0, %v369
      %v371 = vpop.f32.mrb[0].mxu0
      %v372 = vadd.f32 0.0, %v371
      %v373 = vpop.f32.mrb[0].mxu0
      %v374 = vpop.f32.mrb[0].mxu0
      %375 = vdwg.mxu0
      %v376 = vadd.f32 %v304, %v370
      %v377 = vadd.f32 %v305, %v372
      %378 = vst [vmem:[#allocation2] sm:$0x3f] %v376
      %379 = vst [vmem:[#allocation2 + $0x8] sm:$0x3f] %v377
      // Predicated region
      $region37: #{dit_block_forward.18} parent=31 // pred_check
        %p380 = pneg %p298
      $region38: #{dit_block_forward.18} parent=31 // pred_check_branch
        %382 = sbr.rel (%p380) target = $region40
      $region39: #{dit_block_forward.18} parent=31 // pred_region
        %v383 = vld [vmem:[#allocation2] sm:$0x3f]
        %v384 = vld [vmem:[#allocation2 + $0x8] sm:$0x3f]
        %v385 = vld [vmem:[%s281] sm:$0x3]
        %v387 = vlaneseq
        %v388 = vshrl.u32 %v387, 7
        %v389 = vsub.s32 0, %v388
        %v390 = vrot.slane %v385, %v389
        %v391 = vlaneseq
        %v392 = vshrl.u32 %v391, 7
        %v393 = vsub.s32 1, %v392
        %v394 = vrot.slane %v385, %v393
        %v397 = vadd.f32 %v383, %v390
        %v398 = vadd.f32 %v384, %v394
        %v399 = vpack.c.bf16 %v397, %v397
        %v400 = vpack.c.bf16 %v398, %v398
        %v403 = vunpack.c.l.b16 %v399
        %v404 = vunpack.c.l.b16 %v400
        %v405 = vpack.c.b16 %v404, %v403
        %407 = vst [vmem:[%s295] sm:$0x77] %v405
      $region40: #{dit_block_forward.18} parent=31 // pred_fallthru
        _
      %s408 = smul.u32 2, %s22
      %p409 = scmp.lt.s32.totalorder %s20, 1
      %s410 = scalar_select %p409, %s20, 1
      %p411 = scmp.lt.s32.totalorder %s21, 0
      %s412 = scalar_select %p411, %s21, 0
      %p413 = scmp.lt.s32.totalorder %s408, 1
      %s414 = scalar_select %p413, %s408, 1
      %s415 = smul.addr %s412, 2
      %s416 = sadd.s32 %s414, %s415
      %s417 = smul.addr %s410, 2
      %s418 = sadd.s32 %s416, %s417
      %s419 = smul.addr %s418, 4
      %s420 = scalar_lea.vmem %s3, %s419
      // Predicated region
      $region41: #{dit_block_forward.18} parent=31 // pred_check
        %p421 = pneg %p146
      $region42: #{dit_block_forward.18} parent=31 // pred_check_branch
        %423 = sbr.rel (%p421) target = $region44
      $region43: #{dit_block_forward.18} parent=31 // pred_region
        %s424 = smul.u32 2, %s22
      $region44: #{dit_block_forward.18} parent=31 // pred_fallthru
        _
    $region32: #{dit_block_forward.18} parent=5 // pred_fallthru
      _
    %p425 = scmp.le.s32.totalorder 2, %s9
    // Predicated region
    $region45: #{dit_block_forward.18} parent=5 // pred_check
      %p426 = pneg %p425
    $region46: #{dit_block_forward.18} parent=5 // pred_check_branch
      %428 = sbr.rel (%p426) target = $region48
    $region47: #{dit_block_forward.18} parent=5 // pred_region
      %s429 = ssub.s32 %s9, 2
      // Predicated region
      $region49: #{dit_block_forward.18} parent=47 // pred_check
        %p430 = pneg %p152
      $region50: #{dit_block_forward.18} parent=47 // pred_check_branch
        %432 = sbr.rel (%p430) target = $region52
      $region51: #{dit_block_forward.18} parent=47 // pred_region
        %s433 = smul.u32 2, %s26
        %p434 = scmp.lt.s32.totalorder %s24, 1
        %s435 = scalar_select %p434, %s24, 1
        %p436 = scmp.lt.s32.totalorder %s25, 0
        %s437 = scalar_select %p436, %s25, 0
        %p438 = scmp.lt.s32.totalorder %s433, 1
        %s439 = scalar_select %p438, %s433, 1
        %s440 = smul.addr %s437, 2
        %s441 = sadd.s32 %s439, %s440
        %s442 = smul.addr %s435, 2
        %s443 = sadd.s32 %s441, %s442
        %s444 = smul.addr %s443, 4
        %s445 = scalar_lea.vmem %s3, %s444
      $region52: #{dit_block_forward.18} parent=47 // pred_fallthru
        _
    $region48: #{dit_block_forward.18} parent=5 // pred_fallthru
      _
  $region6: #{dit_block_forward.18} parent=0 // loop_footer
    %s13 = sadd.s32 1, %s9
  $region7: #{dit_block_forward.18} parent=0 // loop_footer_branch
    %8 = sbr.rel target = $region3
  $region8: #{dit_block_forward.18} parent=0 // loop_exit
    _

// kernel: dit_block_forward.21
$region0: #{dit_block_forward.21}
  #allocation0 [shape = 'u32[]', space=smem, size = 0x4, offset = 0x4, fixed_abs, tag = 'smem constant byte address 0x4 - core index']
  #allocation1 [shape = 'u32[144,128]{1,0:T(1,128)}', space=vmem, size = 0x12000, scoped, tag = 'internal scratch']
  #allocation2 [shape = 'f32[8,32]{1,0:T(8,128)}', space=vmem, size = 0x1000, scoped, tag = 'scratch operand']
  %s0 = inlined_call_operand.vmem [shape: bf16[2,8,256], index: 0, kind: input, shape index: {}]
  %s1 = inlined_call_operand.vmem [shape: bf16[256,32], index: 1, kind: input, shape index: {}]
  %s2 = inlined_call_operand.vmem [shape: f32[1,32], index: 2, kind: input, shape index: {}]
  %s3 = inlined_call_operand.vmem [shape: f32[2,8,32], index: 3, kind: input, shape index: {}]
  %s4 = inlined_call_operand.vmem [shape: f32[2,8,32], index: 4, kind: output, shape index: {}]
  %s5 = sld [smem:[#allocation0]]
  $region57: #{dit_block_forward.21} parent=0
    _
  %s7 = ssub.s32 1, %s5
  %s8 = scalar_select 0, %s7, %s5
  loop: start=0, step=1, limit=4
  $region2: #{dit_block_forward.21} parent=0 // loop_pre_header
    _
  $region3: #{dit_block_forward.21} parent=0 // loop_header
    %s10 = sphi 0, %s14
    %p11 = scmp.ge.s32.totalorder %s10, 4
    %s17 = sphi 0, %s43
    %s18 = sphi 0, %s39
    %s19 = sphi 0, %s35
    %s20 = sphi 0, %s31
    %s21 = sphi 0, %s17
    %s22 = sphi 0, %s18
    %s23 = sphi 0, %s19
    %s24 = sphi 0, %s20
    %s25 = sphi 0, %s21
    %s26 = sphi 0, %s22
    %s27 = sphi 0, %s23
    %s28 = sphi 0, %s24
    %s50 = sphi 0, %s52
    %s53 = sphi 0, %s50
    %s54 = sphi 0, %s53
    %s70 = sphi 0, %s54
    %s78 = sphi 0, %s80
    %s81 = sphi 0, %s78
    %s82 = sphi 0, %s81
    %s98 = sphi 0, %s82
    %s104 = sphi 0, %s106
    %s107 = sphi 0, %s104
    %s108 = sphi 0, %s107
    %s124 = sphi 0, %s108
    %s134 = sphi 0, %s136
    %s137 = sphi 0, %s134
    %s138 = sphi 0, %s137
    %s154 = sphi 0, %s138
    %s164 = sphi 0, %s166
    %s167 = sphi 0, %s164
    %s168 = sphi 0, %s167
    %s184 = sphi 0, %s168
  $region4: #{dit_block_forward.21} parent=0 // loop_header_branch
    %13 = sbr.rel (%p11) target = $region8
  $region5: #{dit_block_forward.21} parent=0 // loop_body
    %s15 = ssub.s32 %s10, 1
    %s16 = ssub.s32 %s10, 2
    %s29 = sadd.s32 1, %s20
    %p30 = scmp.ge.s32.totalorder %s29, 1
    %s31 = scalar_select %p30, 0, %s29
    %s32 = sadd.s32 1, %s19
    %s33 = scalar_select %p30, %s32, %s19
    %p34 = scmp.ge.s32.totalorder %s33, 1
    %s35 = scalar_select %p34, 0, %s33
    %s36 = sadd.s32 1, %s18
    %s37 = scalar_select %p34, %s36, %s18
    %p38 = scmp.ge.s32.totalorder %s37, 1
    %s39 = scalar_select %p38, 0, %s37
    %s40 = sadd.s32 1, %s17
    %s41 = scalar_select %p38, %s40, %s17
    %p42 = scmp.ge.s32.totalorder %s41, 2
    %s43 = scalar_select %p42, 0, %s41
    %s44 = ssub.s32 %s17, %s43
    %s45 = ssub.s32 %s18, %s39
    %s46 = sor.u32 %s44, %s45
    %s47 = ssub.s32 %s20, %s31
    %s48 = sor.u32 %s46, %s47
    %p49 = scmp.eq.s32.totalorder %s48, 0
    %s51 = sadd.s32 %s50, 1
    %s52 = scalar_select %p49, %s50, %s51
    %p55 = pneg %p49
    %p56 = scmp.eq.s32.totalorder %s10, 1
    %p57 = por %p55, %p56
    %p58 = scmp.ne.s32.totalorder %s50, %s53
    %p59 = scmp.eq.s32.totalorder %s10, 0
    %p60 = por %p58, %p59
    %p61 = scmp.ne.s32.totalorder %s50, %s53
    %p62 = scmp.eq.s32.totalorder %s15, 1
    %p63 = por %p61, %p62
    %p64 = scmp.ne.s32.totalorder %s53, %s54
    %p65 = scmp.eq.s32.totalorder %s15, 0
    %p66 = por %p64, %p65
    %p67 = scmp.ne.s32.totalorder %s53, %s54
    %p68 = scmp.eq.s32.totalorder %s16, 1
    %p69 = por %p67, %p68
    %p71 = scmp.ne.s32.totalorder %s54, %s70
    %p72 = scmp.eq.s32.totalorder %s16, 0
    %p73 = por %p71, %p72
    %s74 = ssub.s32 %s20, %s31
    %s75 = ssub.s32 %s19, %s35
    %s76 = sor.u32 %s74, %s75
    %p77 = scmp.eq.s32.totalorder %s76, 0
    %s79 = sadd.s32 %s78, 1
    %s80 = scalar_select %p77, %s78, %s79
    %p83 = pneg %p77
    %p84 = scmp.eq.s32.totalorder %s10, 1
    %p85 = por %p83, %p84
    %p86 = scmp.ne.s32.totalorder %s78, %s81
    %p87 = scmp.eq.s32.totalorder %s10, 0
    %p88 = por %p86, %p87
    %p89 = scmp.ne.s32.totalorder %s78, %s81
    %p90 = scmp.eq.s32.totalorder %s15, 1
    %p91 = por %p89, %p90
    %p92 = scmp.ne.s32.totalorder %s81, %s82
    %p93 = scmp.eq.s32.totalorder %s15, 0
    %p94 = por %p92, %p93
    %p95 = scmp.ne.s32.totalorder %s81, %s82
    %p96 = scmp.eq.s32.totalorder %s16, 1
    %p97 = por %p95, %p96
    %p99 = scmp.ne.s32.totalorder %s82, %s98
    %p100 = scmp.eq.s32.totalorder %s16, 0
    %p101 = por %p99, %p100
    %s102 = ssub.s32 %s19, %s35
    %p103 = scmp.eq.s32.totalorder %s102, 0
    %s105 = sadd.s32 %s104, 1
    %s106 = scalar_select %p103, %s104, %s105
    %p109 = pneg %p103
    %p110 = scmp.eq.s32.totalorder %s10, 1
    %p111 = por %p109, %p110
    %p112 = scmp.ne.s32.totalorder %s104, %s107
    %p113 = scmp.eq.s32.totalorder %s10, 0
    %p114 = por %p112, %p113
    %p115 = scmp.ne.s32.totalorder %s104, %s107
    %p116 = scmp.eq.s32.totalorder %s15, 1
    %p117 = por %p115, %p116
    %p118 = scmp.ne.s32.totalorder %s107, %s108
    %p119 = scmp.eq.s32.totalorder %s15, 0
    %p120 = por %p118, %p119
    %p121 = scmp.ne.s32.totalorder %s107, %s108
    %p122 = scmp.eq.s32.totalorder %s16, 1
    %p123 = por %p121, %p122
    %p125 = scmp.ne.s32.totalorder %s108, %s124
    %p126 = scmp.eq.s32.totalorder %s16, 0
    %p127 = por %p125, %p126
    %s128 = ssub.s32 %s17, %s43
    %s129 = ssub.s32 %s18, %s39
    %s130 = sor.u32 %s128, %s129
    %s131 = ssub.s32 %s19, %s35
    %s132 = sor.u32 %s130, %s131
    %p133 = scmp.eq.s32.totalorder %s132, 0
    %s135 = sadd.s32 %s134, 1
    %s136 = scalar_select %p133, %s134, %s135
    %p139 = pneg %p133
    %p140 = scmp.eq.s32.totalorder %s10, 1
    %p141 = por %p139, %p140
    %p142 = scmp.ne.s32.totalorder %s134, %s137
    %p143 = scmp.eq.s32.totalorder %s10, 0
    %p144 = por %p142, %p143
    %p145 = scmp.ne.s32.totalorder %s134, %s137
    %p146 = scmp.eq.s32.totalorder %s15, 1
    %p147 = por %p145, %p146
    %p148 = scmp.ne.s32.totalorder %s137, %s138
    %p149 = scmp.eq.s32.totalorder %s15, 0
    %p150 = por %p148, %p149
    %p151 = scmp.ne.s32.totalorder %s137, %s138
    %p152 = scmp.eq.s32.totalorder %s16, 1
    %p153 = por %p151, %p152
    %p155 = scmp.ne.s32.totalorder %s138, %s154
    %p156 = scmp.eq.s32.totalorder %s16, 0
    %p157 = por %p155, %p156
    %s158 = ssub.s32 %s17, %s43
    %s159 = ssub.s32 %s18, %s39
    %s160 = sor.u32 %s158, %s159
    %s161 = ssub.s32 %s19, %s35
    %s162 = sor.u32 %s160, %s161
    %p163 = scmp.eq.s32.totalorder %s162, 0
    %s165 = sadd.s32 %s164, 1
    %s166 = scalar_select %p163, %s164, %s165
    %p169 = pneg %p163
    %p170 = scmp.eq.s32.totalorder %s10, 1
    %p171 = por %p169, %p170
    %p172 = scmp.ne.s32.totalorder %s164, %s167
    %p173 = scmp.eq.s32.totalorder %s10, 0
    %p174 = por %p172, %p173
    %p175 = scmp.ne.s32.totalorder %s164, %s167
    %p176 = scmp.eq.s32.totalorder %s15, 1
    %p177 = por %p175, %p176
    %p178 = scmp.ne.s32.totalorder %s167, %s168
    %p179 = scmp.eq.s32.totalorder %s15, 0
    %p180 = por %p178, %p179
    %p181 = scmp.ne.s32.totalorder %s167, %s168
    %p182 = scmp.eq.s32.totalorder %s16, 1
    %p183 = por %p181, %p182
    %p185 = scmp.ne.s32.totalorder %s168, %s184
    %p186 = scmp.eq.s32.totalorder %s16, 0
    %p187 = por %p185, %p186
    %p188 = scmp.le.s32.totalorder 1, %s10
    %p189 = scmp.lt.s32.totalorder %s10, 3
    %p190 = pnand %p188, %p189
    %p191 = pneg %p190
    // Predicated region
    $region9: #{dit_block_forward.21} parent=5 // pred_check
      _
    $region10: #{dit_block_forward.21} parent=5 // pred_check_branch
      %193 = sbr.rel (%p190) target = $region12
    $region11: #{dit_block_forward.21} parent=5 // pred_region
      %s194 = ssub.s32 %s10, 1
      // Predicated region
      $region13: #{dit_block_forward.21} parent=11 // pred_check
        %p195 = pneg %p94
      $region14: #{dit_block_forward.21} parent=11 // pred_check_branch
        %197 = sbr.rel (%p195) target = $region16
      $region15: #{dit_block_forward.21} parent=11 // pred_region
        %s198 = smul.u32 32, %s24
        %p199 = scmp.lt.s32.totalorder %s198, 31
        %s200 = scalar_select %p199, %s198, 31
        %p201 = scmp.lt.s32.totalorder %s23, 0
        %s202 = scalar_select %p201, %s23, 0
        %s203 = sadd.s32 %s202, %s200
        %s204 = smul.addr %s203, 4
        %s205 = scalar_lea.vmem %s1, %s204
        %s206 = smul.u32 32, %s24
      $region16: #{dit_block_forward.21} parent=11 // pred_fallthru
        _
      // Predicated region
      $region17: #{dit_block_forward.21} parent=11 // pred_check
        %p207 = pneg %p120
      $region18: #{dit_block_forward.21} parent=11 // pred_check_branch
        %209 = sbr.rel (%p207) target = $region20
      $region19: #{dit_block_forward.21} parent=11 // pred_region
        %p210 = scmp.lt.s32.totalorder %s23, 0
        %s211 = scalar_select %p210, %s23, 0
        %s212 = scalar_lea.vmem %s2, %s211
      $region20: #{dit_block_forward.21} parent=11 // pred_fallthru
        _
    $region12: #{dit_block_forward.21} parent=5 // pred_fallthru
      _
    %p213 = scmp.lt.s32.totalorder %s10, 2
    // Predicated region
    $region21: #{dit_block_forward.21} parent=5 // pred_check
      %p214 = pneg %p213
    $region22: #{dit_block_forward.21} parent=5 // pred_check_branch
      %216 = sbr.rel (%p214) target = $region24
    $region23: #{dit_block_forward.21} parent=5 // pred_region
      // Predicated region
      $region25: #{dit_block_forward.21} parent=23 // pred_check
        %p217 = pneg %p60
      $region26: #{dit_block_forward.21} parent=23 // pred_check_branch
        %219 = sbr.rel (%p217) target = $region28
      $region27: #{dit_block_forward.21} parent=23 // pred_region
        %s220 = smul.u32 2, %s20
        %p221 = scmp.lt.s32.totalorder %s17, 1
        %s222 = scalar_select %p221, %s17, 1
        %p223 = scmp.lt.s32.totalorder %s18, 0
        %s224 = scalar_select %p223, %s18, 0
        %p225 = scmp.lt.s32.totalorder %s220, 1
        %s226 = scalar_select %p225, %s220, 1
        %s227 = smul.addr %s224, 2
        %s228 = sadd.s32 %s226, %s227
        %s229 = smul.addr %s222, 2
        %s230 = sadd.s32 %s228, %s229
        %s231 = smul.addr %s230, 4
        %s232 = scalar_lea.vmem %s0, %s231
        %s233 = smul.u32 2, %s20
      $region28: #{dit_block_forward.21} parent=23 // pred_fallthru
        _
      // Predicated region
      $region29: #{dit_block_forward.21} parent=23 // pred_check
        %p234 = pneg %p144
      $region30: #{dit_block_forward.21} parent=23 // pred_check_branch
        %236 = sbr.rel (%p234) target = $region32
      $region31: #{dit_block_forward.21} parent=23 // pred_region
        %p237 = scmp.lt.s32.totalorder %s17, 1
        %s238 = scalar_select %p237, %s17, 1
        %p239 = scmp.lt.s32.totalorder %s18, 0
        %s240 = scalar_select %p239, %s18, 0
        %p241 = scmp.lt.s32.totalorder %s19, 0
        %s242 = scalar_select %p241, %s19, 0
        %s243 = sadd.s32 %s242, %s240
        %s244 = sadd.s32 %s243, %s238
        %s245 = smul.addr %s244, 8
        %s246 = scalar_lea.vmem %s3, %s245
      $region32: #{dit_block_forward.21} parent=23 // pred_fallthru
        _
    $region24: #{dit_block_forward.21} parent=5 // pred_fallthru
      _
    %p247 = scmp.le.s32.totalorder 1, %s10
    %p248 = scmp.lt.s32.totalorder %s10, 3
    %p249 = pnand %p247, %p248
    %p250 = pneg %p249
    // Predicated region
    $region33: #{dit_block_forward.21} parent=5 // pred_check
      _
    $region34: #{dit_block_forward.21} parent=5 // pred_check_branch
      %252 = sbr.rel (%p249) target = $region36
    $region35: #{dit_block_forward.21} parent=5 // pred_region
      %s253 = ssub.s32 %s10, 1
      %s254 = smul.u32 2, %s24
      %p255 = scmp.lt.s32.totalorder %s21, 1
      %s256 = scalar_select %p255, %s21, 1
      %p257 = scmp.lt.s32.totalorder %s22, 0
      %s258 = scalar_select %p257, %s22, 0
      %p259 = scmp.lt.s32.totalorder %s254, 1
      %s260 = scalar_select %p259, %s254, 1
      %s261 = smul.addr %s258, 2
      %s262 = sadd.s32 %s260, %s261
      %s263 = smul.addr %s256, 2
      %s264 = sadd.s32 %s262, %s263
      %s265 = smul.addr %s264, 4
      %s266 = scalar_lea.vmem %s0, %s265
      %p267 = pneg %p66
      %p268 = pneg %p63
      %s269 = smul.u32 32, %s24
      %p270 = scmp.lt.s32.totalorder %s269, 31
      %s271 = scalar_select %p270, %s269, 31
      %p272 = scmp.lt.s32.totalorder %s23, 0
      %s273 = scalar_select %p272, %s23, 0
      %s274 = sadd.s32 %s273, %s271
      %s275 = smul.addr %s274, 4
      %s276 = scalar_lea.vmem %s1, %s275
      %p277 = pneg %p94
      %p278 = pneg %p91
      %p279 = scmp.lt.s32.totalorder %s23, 0
      %s280 = scalar_select %p279, %s23, 0
      %s281 = scalar_lea.vmem %s2, %s280
      %p282 = pneg %p120
      %p283 = pneg %p117
      %p284 = scmp.lt.s32.totalorder %s21, 1
      %s285 = scalar_select %p284, %s21, 1
      %p286 = scmp.lt.s32.totalorder %s22, 0
      %s287 = scalar_select %p286, %s22, 0
      %p288 = scmp.lt.s32.totalorder %s23, 0
      %s289 = scalar_select %p288, %s23, 0
      %s290 = sadd.s32 %s289, %s287
      %s291 = sadd.s32 %s290, %s285
      %s292 = smul.addr %s291, 8
      %s293 = scalar_lea.vmem %s3, %s292
      %p294 = pneg %p150
      %p295 = pneg %p147
      %p296 = pneg %p180
      %p297 = pneg %p177
      %p298 = scmp.lt.s32.totalorder %s21, 1
      %s299 = scalar_select %p298, %s21, 1
      %p300 = scmp.lt.s32.totalorder %s22, 0
      %s301 = scalar_select %p300, %s22, 0
      %p302 = scmp.lt.s32.totalorder %s23, 0
      %s303 = scalar_select %p302, %s23, 0
      %s304 = sadd.s32 %s303, %s301
      %s305 = sadd.s32 %s304, %s299
      %s306 = smul.addr %s305, 8
      %s307 = scalar_lea.vmem %s4, %s306
      %s308 = smul.u32 2, %s24
      %p309 = scmp.lt.s32.totalorder %s21, 1
      %s310 = scalar_select %p309, %s21, 1
      %p311 = scmp.lt.s32.totalorder %s22, 0
      %s312 = scalar_select %p311, %s22, 0
      %p313 = scmp.lt.s32.totalorder %s308, 1
      %s314 = scalar_select %p313, %s308, 1
      %s315 = smul.addr %s312, 2
      %s316 = sadd.s32 %s314, %s315
      %s317 = smul.addr %s310, 2
      %s318 = sadd.s32 %s316, %s317
      %s319 = smul.addr %s318, 4
      %s320 = scalar_lea.vmem %s0, %s319
      %s321 = smul.u32 2, %s24
      %s322 = smul.u32 32, %s24
      %p323 = scmp.lt.s32.totalorder %s322, 31
      %s324 = scalar_select %p323, %s322, 31
      %p325 = scmp.lt.s32.totalorder %s23, 0
      %s326 = scalar_select %p325, %s23, 0
      %s327 = sadd.s32 %s326, %s324
      %s328 = smul.addr %s327, 4
      %s329 = scalar_lea.vmem %s1, %s328
      %s330 = smul.u32 32, %s24
      %p331 = scmp.lt.s32.totalorder %s23, 0
      %s332 = scalar_select %p331, %s23, 0
      %s333 = scalar_lea.vmem %s2, %s332
      %p334 = scmp.lt.s32.totalorder %s21, 1
      %s335 = scalar_select %p334, %s21, 1
      %p336 = scmp.lt.s32.totalorder %s22, 0
      %s337 = scalar_select %p336, %s22, 0
      %p338 = scmp.lt.s32.totalorder %s23, 0
      %s339 = scalar_select %p338, %s23, 0
      %s340 = sadd.s32 %s339, %s337
      %s341 = sadd.s32 %s340, %s335
      %s342 = smul.addr %s341, 8
      %s343 = scalar_lea.vmem %s3, %s342
      %p344 = scmp.lt.s32.totalorder %s21, 1
      %s345 = scalar_select %p344, %s21, 1
      %p346 = scmp.lt.s32.totalorder %s22, 0
      %s347 = scalar_select %p346, %s22, 0
      %p348 = scmp.lt.s32.totalorder %s23, 0
      %s349 = scalar_select %p348, %s23, 0
      %s350 = sadd.s32 %s349, %s347
      %s351 = sadd.s32 %s350, %s345
      %s352 = smul.addr %s351, 8
      %s353 = scalar_lea.vmem %s4, %s352
      %p355 = scmp.eq.s32.totalorder %s24, 0
      // Predicated region
      $region37: #{dit_block_forward.21} parent=35 // pred_check
        %p356 = pneg %p355
      $region38: #{dit_block_forward.21} parent=35 // pred_check_branch
        %358 = sbr.rel (%p356) target = $region40
      $region39: #{dit_block_forward.21} parent=35 // pred_region
        %vm359 = vcmask 261120
        %360 = vst.msk [vmem:[#allocation2] sm:$0xff] %vm359, 0.0
      $region40: #{dit_block_forward.21} parent=35 // pred_fallthru
        _
      %v361 = vld [vmem:[#allocation2] sm:$0xff]
      %v362 = vld [vmem:[%s320] sm:$0xff]
      %v363 = vld [vmem:[%s329] sm:$0xf]
      %v364 = vld [vmem:[%s329 + $0x4] sm:$0xf]
      %v365 = vld [vmem:[%s329 + $0x8] sm:$0xf]
      %v366 = vld [vmem:[%s329 + $0xc] sm:$0xf]
      %v367 = vld [vmem:[%s329 + $0x10] sm:$0xf]
      %v368 = vld [vmem:[%s329 + $0x14] sm:$0xf]
      %v369 = vld [vmem:[%s329 + $0x18] sm:$0xf]
      %v370 = vld [vmem:[%s329 + $0x1c] sm:$0xf]
      %v371 = vld [vmem:[%s329 + $0x20] sm:$0xf]
      %v372 = vld [vmem:[%s329 + $0x24] sm:$0xf]
      %v373 = vld [vmem:[%s329 + $0x28] sm:$0xf]
      %v374 = vld [vmem:[%s329 + $0x2c] sm:$0xf]
      %v375 = vld [vmem:[%s329 + $0x30] sm:$0xf]
      %v376 = vld [vmem:[%s329 + $0x34] sm:$0xf]
      %v377 = vld [vmem:[%s329 + $0x38] sm:$0xf]
      %v378 = vld [vmem:[%s329 + $0x3c] sm:$0xf]
      %v379 = vld [vmem:[%s329 + $0x40] sm:$0xf]
      %v380 = vld [vmem:[%s329 + $0x44] sm:$0xf]
      %v381 = vld [vmem:[%s329 + $0x48] sm:$0xf]
      %v382 = vld [vmem:[%s329 + $0x4c] sm:$0xf]
      %v383 = vld [vmem:[%s329 + $0x50] sm:$0xf]
      %v384 = vld [vmem:[%s329 + $0x54] sm:$0xf]
      %v385 = vld [vmem:[%s329 + $0x58] sm:$0xf]
      %v386 = vld [vmem:[%s329 + $0x5c] sm:$0xf]
      %v387 = vld [vmem:[%s329 + $0x60] sm:$0xf]
      %v388 = vld [vmem:[%s329 + $0x64] sm:$0xf]
      %v389 = vld [vmem:[%s329 + $0x68] sm:$0xf]
      %v390 = vld [vmem:[%s329 + $0x6c] sm:$0xf]
      %v391 = vld [vmem:[%s329 + $0x70] sm:$0xf]
      %v392 = vld [vmem:[%s329 + $0x74] sm:$0xf]
      %v393 = vld [vmem:[%s329 + $0x78] sm:$0xf]
      %v394 = vld [vmem:[%s329 + $0x7c] sm:$0xf]
      %v396 = vunpack.c.l.b16 %v362
      %v397 = vunpack.c.h.b16 %v362
      %v398 = vpack.c.b16 %v396, %v396
      %v399 = vpack.c.b16 %v397, %v397
      %v434 = vunpack.c.l.b16 %v363
      %v435 = vunpack.c.l.b16 %v364
      %v436 = vunpack.c.l.b16 %v365
      %v437 = vunpack.c.l.b16 %v366
      %v438 = vunpack.c.l.b16 %v367
      %v439 = vunpack.c.l.b16 %v368
      %v440 = vunpack.c.l.b16 %v369
      %v441 = vunpack.c.l.b16 %v370
      %v442 = vunpack.c.l.b16 %v371
      %v443 = vunpack.c.l.b16 %v372
      %v444 = vunpack.c.l.b16 %v373
      %v445 = vunpack.c.l.b16 %v374
      %v446 = vunpack.c.l.b16 %v375
      %v447 = vunpack.c.l.b16 %v376
      %v448 = vunpack.c.l.b16 %v377
      %v449 = vunpack.c.l.b16 %v378
      %v450 = vunpack.c.l.b16 %v379
      %v451 = vunpack.c.l.b16 %v380
      %v452 = vunpack.c.l.b16 %v381
      %v453 = vunpack.c.l.b16 %v382
      %v454 = vunpack.c.l.b16 %v383
      %v455 = vunpack.c.l.b16 %v384
      %v456 = vunpack.c.l.b16 %v385
      %v457 = vunpack.c.l.b16 %v386
      %v458 = vunpack.c.l.b16 %v387
      %v459 = vunpack.c.l.b16 %v388
      %v460 = vunpack.c.l.b16 %v389
      %v461 = vunpack.c.l.b16 %v390
      %v462 = vunpack.c.l.b16 %v391
      %v463 = vunpack.c.l.b16 %v392
      %v464 = vunpack.c.l.b16 %v393
      %v465 = vunpack.c.l.b16 %v394
      %v466 = vpack.c.b16 %v435, %v434
      %v467 = vpack.c.b16 %v437, %v436
      %v468 = vpack.c.b16 %v439, %v438
      %v469 = vpack.c.b16 %v441, %v440
      %v470 = vpack.c.b16 %v443, %v442
      %v471 = vpack.c.b16 %v445, %v444
      %v472 = vpack.c.b16 %v447, %v446
      %v473 = vpack.c.b16 %v449, %v448
      %v474 = vpack.c.b16 %v451, %v450
      %v475 = vpack.c.b16 %v453, %v452
      %v476 = vpack.c.b16 %v455, %v454
      %v477 = vpack.c.b16 %v457, %v456
      %v478 = vpack.c.b16 %v459, %v458
      %v479 = vpack.c.b16 %v461, %v460
      %v480 = vpack.c.b16 %v463, %v462
      %v481 = vpack.c.b16 %v465, %v464
      %498 = vmatprep.subr.bf16.mxu0 0
      %499 = vmatpush1.bf16.msra.mxu0 %v466
      %500 = vmatprep.subr.bf16.mxu0 0
      %501 = vmatpush1.bf16.msra.mxu0 %v467
      %502 = vmatprep.subr.bf16.mxu0 0
      %503 = vmatpush1.bf16.msra.mxu0 %v468
      %504 = vmatprep.subr.bf16.mxu0 0
      %505 = vmatpush1.bf16.msra.mxu0 %v469
      %506 = vmatprep.subr.bf16.mxu0 0
      %507 = vmatpush1.bf16.msra.mxu0 %v470
      %508 = vmatprep.subr.bf16.mxu0 0
      %509 = vmatpush1.bf16.msra.mxu0 %v471
      %510 = vmatprep.subr.bf16.mxu0 0
      %511 = vmatpush1.bf16.msra.mxu0 %v472
      %512 = vmatprep.subr.bf16.mxu0 0
      %513 = vmatpush1.bf16.msra.mxu0 %v473
      %514 = vmatprep.subr.bf16.mxu0 0
      %515 = vmatpush1.bf16.msra.mxu0 %v474
      %516 = vmatprep.subr.bf16.mxu0 0
      %517 = vmatpush1.bf16.msra.mxu0 %v475
      %518 = vmatprep.subr.bf16.mxu0 0
      %519 = vmatpush1.bf16.msra.mxu0 %v476
      %520 = vmatprep.subr.bf16.mxu0 0
      %521 = vmatpush1.bf16.msra.mxu0 %v477
      %522 = vmatprep.subr.bf16.mxu0 0
      %523 = vmatpush1.bf16.msra.mxu0 %v478
      %524 = vmatprep.subr.bf16.mxu0 0
      %525 = vmatpush1.bf16.msra.mxu0 %v479
      %526 = vmatprep.subr.bf16.mxu0 0
      %527 = vmatpush1.bf16.msra.mxu0 %v480
      %528 = vmatprep.subr.bf16.mxu0 0
      %529 = vmatpush1.bf16.msra.mxu0 %v481
      %530 = vmatprep.mubr.bf16.mxu0 %v399
      %531 = vmatmul.mubr.bf16.gmra.mrb[0].mxu0 %v398
      %v532 = vpop.f32.mrb[0].mxu0
      %v533 = vadd.f32 0.0, %v532
      %v534 = vpop.f32.mrb[0].mxu0
      %v535 = vpop.f32.mrb[0].mxu0
      %v536 = vpop.f32.mrb[0].mxu0
      %537 = vdwg.mxu0
      %v538 = vadd.f32 %v361, %v533
      %vm539 = vcmask 261120
      %540 = vst.msk [vmem:[#allocation2] sm:$0xff] %vm539, %v538
      // Predicated region
      $region41: #{dit_block_forward.21} parent=35 // pred_check
        %p541 = pneg %p355
      $region42: #{dit_block_forward.21} parent=35 // pred_check_branch
        %543 = sbr.rel (%p541) target = $region44
      $region43: #{dit_block_forward.21} parent=35 // pred_region
        %v544 = vld [vmem:[#allocation2] sm:$0xff]
        %v545 = vld [vmem:[%s333] sm:$0x1]
        %v547 = vlaneseq
        %v548 = vshrl.u32 %v547, 7
        %v549 = vsub.s32 0, %v548
        %v550 = vrot.slane %v545, %v549
        %v552 = vadd.f32 %v544, %v550
        %v553 = vld [vmem:[%s343] sm:$0xff]
        %v554 = vadd.f32 %v552, %v553
        %555 = vst.msk [vmem:[%s353] sm:$0xff] %vm539, %v554
      $region44: #{dit_block_forward.21} parent=35 // pred_fallthru
        _
      %p556 = scmp.lt.s32.totalorder %s21, 1
      %s557 = scalar_select %p556, %s21, 1
      %p558 = scmp.lt.s32.totalorder %s22, 0
      %s559 = scalar_select %p558, %s22, 0
      %p560 = scmp.lt.s32.totalorder %s23, 0
      %s561 = scalar_select %p560, %s23, 0
      %s562 = sadd.s32 %s561, %s559
      %s563 = sadd.s32 %s562, %s557
      %s564 = smul.addr %s563, 8
      %s565 = scalar_lea.vmem %s4, %s564
      // Predicated region
      $region45: #{dit_block_forward.21} parent=35 // pred_check
        %p566 = pneg %p177
      $region46: #{dit_block_forward.21} parent=35 // pred_check_branch
        %568 = sbr.rel (%p566) target = $region48
      $region47: #{dit_block_forward.21} parent=35 // pred_region
        _
      $region48: #{dit_block_forward.21} parent=35 // pred_fallthru
        _
    $region36: #{dit_block_forward.21} parent=5 // pred_fallthru
      _
    %p569 = scmp.le.s32.totalorder 2, %s10
    // Predicated region
    $region49: #{dit_block_forward.21} parent=5 // pred_check
      %p570 = pneg %p569
    $region50: #{dit_block_forward.21} parent=5 // pred_check_branch
      %572 = sbr.rel (%p570) target = $region52
    $region51: #{dit_block_forward.21} parent=5 // pred_region
      %s573 = ssub.s32 %s10, 2
      // Predicated region
      $region53: #{dit_block_forward.21} parent=51 // pred_check
        %p574 = pneg %p183
      $region54: #{dit_block_forward.21} parent=51 // pred_check_branch
        %576 = sbr.rel (%p574) target = $region56
      $region55: #{dit_block_forward.21} parent=51 // pred_region
        %p577 = scmp.lt.s32.totalorder %s25, 1
        %s578 = scalar_select %p577, %s25, 1
        %p579 = scmp.lt.s32.totalorder %s26, 0
        %s580 = scalar_select %p579, %s26, 0
        %p581 = scmp.lt.s32.totalorder %s27, 0
        %s582 = scalar_select %p581, %s27, 0
        %s583 = sadd.s32 %s582, %s580
        %s584 = sadd.s32 %s583, %s578
        %s585 = smul.addr %s584, 8
        %s586 = scalar_lea.vmem %s4, %s585
      $region56: #{dit_block_forward.21} parent=51 // pred_fallthru
        _
    $region52: #{dit_block_forward.21} parent=5 // pred_fallthru
      _
  $region6: #{dit_block_forward.21} parent=0 // loop_footer
    %s14 = sadd.s32 1, %s10
  $region7: #{dit_block_forward.21} parent=0 // loop_footer_branch
    %9 = sbr.rel target = $region3
  $region8: #{dit_block_forward.21} parent=0 // loop_exit
    _

// kernel: dit_block_forward.20
$region0: #{dit_block_forward.20}
  #allocation0 [shape = 'u32[]', space=smem, size = 0x4, offset = 0x4, fixed_abs, tag = 'smem constant byte address 0x4 - core index']
  #allocation1 [shape = 'u32[144,128]{1,0:T(1,128)}', space=vmem, size = 0x12000, scoped, tag = 'internal scratch']
  #allocation2 [shape = 'f32[4,8,1]{2,1,0:T(8,128)}', space=vmem, size = 0x4000, scoped, tag = 'scratch operand']
  #allocation3 [shape = 'f32[4,8,1]{2,1,0:T(8,128)}', space=vmem, size = 0x4000, scoped, tag = 'scratch operand']
  #allocation4 [shape = 'f32[4,8,64]{2,1,0:T(8,128)}', space=vmem, size = 0x4000, scoped, tag = 'scratch operand']
  %s0 = inlined_call_operand.vmem [shape: bf16[2,8,256], index: 0, kind: input, shape index: {}]
  %s1 = inlined_call_operand.vmem [shape: bf16[2,6,256], index: 1, kind: input, shape index: {}]
  %s2 = inlined_call_operand.vmem [shape: bf16[2,6,256], index: 2, kind: input, shape index: {}]
  %s3 = inlined_call_operand.vmem [shape: bf16[2,8,256], index: 3, kind: output, shape index: {}]
  %s4 = sld [smem:[#allocation0]]
  $region53: #{dit_block_forward.20} parent=0
    _
  %s6 = ssub.s32 1, %s4
  %s7 = scalar_select 0, %s6, %s4
  loop: start=0, step=1, limit=4
  $region2: #{dit_block_forward.20} parent=0 // loop_pre_header
    _
  $region3: #{dit_block_forward.20} parent=0 // loop_header
    %s9 = sphi 0, %s13
    %p10 = scmp.ge.s32.totalorder %s9, 4
    %s16 = sphi 0, %s35
    %s17 = sphi 0, %s31
    %s18 = sphi 0, %s27
    %s19 = sphi 0, %s16
    %s20 = sphi 0, %s17
    %s21 = sphi 0, %s18
    %s22 = sphi 0, %s19
    %s23 = sphi 0, %s20
    %s24 = sphi 0, %s21
    %s40 = sphi 0, %s42
    %s43 = sphi 0, %s40
    %s44 = sphi 0, %s43
    %s60 = sphi 0, %s44
    %s68 = sphi 0, %s70
    %s71 = sphi 0, %s68
    %s72 = sphi 0, %s71
    %s88 = sphi 0, %s72
    %s96 = sphi 0, %s98
    %s99 = sphi 0, %s96
    %s100 = sphi 0, %s99
    %s116 = sphi 0, %s100
    %s124 = sphi 0, %s126
    %s127 = sphi 0, %s124
    %s128 = sphi 0, %s127
    %s144 = sphi 0, %s128
  $region4: #{dit_block_forward.20} parent=0 // loop_header_branch
    %12 = sbr.rel (%p10) target = $region8
  $region5: #{dit_block_forward.20} parent=0 // loop_body
    %s14 = ssub.s32 %s9, 1
    %s15 = ssub.s32 %s9, 2
    %s25 = sadd.s32 1, %s18
    %p26 = scmp.ge.s32.totalorder %s25, 1
    %s27 = scalar_select %p26, 0, %s25
    %s28 = sadd.s32 1, %s17
    %s29 = scalar_select %p26, %s28, %s17
    %p30 = scmp.ge.s32.totalorder %s29, 1
    %s31 = scalar_select %p30, 0, %s29
    %s32 = sadd.s32 1, %s16
    %s33 = scalar_select %p30, %s32, %s16
    %p34 = scmp.ge.s32.totalorder %s33, 2
    %s35 = scalar_select %p34, 0, %s33
    %s36 = ssub.s32 %s16, %s35
    %s37 = ssub.s32 %s17, %s31
    %s38 = sor.u32 %s36, %s37
    %p39 = scmp.eq.s32.totalorder %s38, 0
    %s41 = sadd.s32 %s40, 1
    %s42 = scalar_select %p39, %s40, %s41
    %p45 = pneg %p39
    %p46 = scmp.eq.s32.totalorder %s9, 1
    %p47 = por %p45, %p46
    %p48 = scmp.ne.s32.totalorder %s40, %s43
    %p49 = scmp.eq.s32.totalorder %s9, 0
    %p50 = por %p48, %p49
    %p51 = scmp.ne.s32.totalorder %s40, %s43
    %p52 = scmp.eq.s32.totalorder %s14, 1
    %p53 = por %p51, %p52
    %p54 = scmp.ne.s32.totalorder %s43, %s44
    %p55 = scmp.eq.s32.totalorder %s14, 0
    %p56 = por %p54, %p55
    %p57 = scmp.ne.s32.totalorder %s43, %s44
    %p58 = scmp.eq.s32.totalorder %s15, 1
    %p59 = por %p57, %p58
    %p61 = scmp.ne.s32.totalorder %s44, %s60
    %p62 = scmp.eq.s32.totalorder %s15, 0
    %p63 = por %p61, %p62
    %s64 = ssub.s32 %s16, %s35
    %s65 = ssub.s32 %s18, %s27
    %s66 = sor.u32 %s64, %s65
    %p67 = scmp.eq.s32.totalorder %s66, 0
    %s69 = sadd.s32 %s68, 1
    %s70 = scalar_select %p67, %s68, %s69
    %p73 = pneg %p67
    %p74 = scmp.eq.s32.totalorder %s9, 1
    %p75 = por %p73, %p74
    %p76 = scmp.ne.s32.totalorder %s68, %s71
    %p77 = scmp.eq.s32.totalorder %s9, 0
    %p78 = por %p76, %p77
    %p79 = scmp.ne.s32.totalorder %s68, %s71
    %p80 = scmp.eq.s32.totalorder %s14, 1
    %p81 = por %p79, %p80
    %p82 = scmp.ne.s32.totalorder %s71, %s72
    %p83 = scmp.eq.s32.totalorder %s14, 0
    %p84 = por %p82, %p83
    %p85 = scmp.ne.s32.totalorder %s71, %s72
    %p86 = scmp.eq.s32.totalorder %s15, 1
    %p87 = por %p85, %p86
    %p89 = scmp.ne.s32.totalorder %s72, %s88
    %p90 = scmp.eq.s32.totalorder %s15, 0
    %p91 = por %p89, %p90
    %s92 = ssub.s32 %s16, %s35
    %s93 = ssub.s32 %s18, %s27
    %s94 = sor.u32 %s92, %s93
    %p95 = scmp.eq.s32.totalorder %s94, 0
    %s97 = sadd.s32 %s96, 1
    %s98 = scalar_select %p95, %s96, %s97
    %p101 = pneg %p95
    %p102 = scmp.eq.s32.totalorder %s9, 1
    %p103 = por %p101, %p102
    %p104 = scmp.ne.s32.totalorder %s96, %s99
    %p105 = scmp.eq.s32.totalorder %s9, 0
    %p106 = por %p104, %p105
    %p107 = scmp.ne.s32.totalorder %s96, %s99
    %p108 = scmp.eq.s32.totalorder %s14, 1
    %p109 = por %p107, %p108
    %p110 = scmp.ne.s32.totalorder %s99, %s100
    %p111 = scmp.eq.s32.totalorder %s14, 0
    %p112 = por %p110, %p111
    %p113 = scmp.ne.s32.totalorder %s99, %s100
    %p114 = scmp.eq.s32.totalorder %s15, 1
    %p115 = por %p113, %p114
    %p117 = scmp.ne.s32.totalorder %s100, %s116
    %p118 = scmp.eq.s32.totalorder %s15, 0
    %p119 = por %p117, %p118
    %s120 = ssub.s32 %s16, %s35
    %s121 = ssub.s32 %s17, %s31
    %s122 = sor.u32 %s120, %s121
    %p123 = scmp.eq.s32.totalorder %s122, 0
    %s125 = sadd.s32 %s124, 1
    %s126 = scalar_select %p123, %s124, %s125
    %p129 = pneg %p123
    %p130 = scmp.eq.s32.totalorder %s9, 1
    %p131 = por %p129, %p130
    %p132 = scmp.ne.s32.totalorder %s124, %s127
    %p133 = scmp.eq.s32.totalorder %s9, 0
    %p134 = por %p132, %p133
    %p135 = scmp.ne.s32.totalorder %s124, %s127
    %p136 = scmp.eq.s32.totalorder %s14, 1
    %p137 = por %p135, %p136
    %p138 = scmp.ne.s32.totalorder %s127, %s128
    %p139 = scmp.eq.s32.totalorder %s14, 0
    %p140 = por %p138, %p139
    %p141 = scmp.ne.s32.totalorder %s127, %s128
    %p142 = scmp.eq.s32.totalorder %s15, 1
    %p143 = por %p141, %p142
    %p145 = scmp.ne.s32.totalorder %s128, %s144
    %p146 = scmp.eq.s32.totalorder %s15, 0
    %p147 = por %p145, %p146
    %p148 = scmp.le.s32.totalorder 1, %s9
    %p149 = scmp.lt.s32.totalorder %s9, 3
    %p150 = pnand %p148, %p149
    %p151 = pneg %p150
    // Predicated region
    $region9: #{dit_block_forward.20} parent=5 // pred_check
      _
    $region10: #{dit_block_forward.20} parent=5 // pred_check_branch
      %153 = sbr.rel (%p150) target = $region12
    $region11: #{dit_block_forward.20} parent=5 // pred_region
      %s154 = ssub.s32 %s9, 1
    $region12: #{dit_block_forward.20} parent=5 // pred_fallthru
      _
    %p155 = scmp.lt.s32.totalorder %s9, 2
    // Predicated region
    $region13: #{dit_block_forward.20} parent=5 // pred_check
      %p156 = pneg %p155
    $region14: #{dit_block_forward.20} parent=5 // pred_check_branch
      %158 = sbr.rel (%p156) target = $region16
    $region15: #{dit_block_forward.20} parent=5 // pred_region
      // Predicated region
      $region17: #{dit_block_forward.20} parent=15 // pred_check
        %p159 = pneg %p50
      $region18: #{dit_block_forward.20} parent=15 // pred_check_branch
        %161 = sbr.rel (%p159) target = $region20
      $region19: #{dit_block_forward.20} parent=15 // pred_region
        %p162 = scmp.lt.s32.totalorder %s16, 1
        %s163 = scalar_select %p162, %s16, 1
        %p164 = scmp.lt.s32.totalorder %s17, 0
        %s165 = scalar_select %p164, %s17, 0
        %s166 = smul.addr %s165, 2
        %s167 = smul.addr %s163, 2
        %s168 = sadd.s32 %s166, %s167
        %s169 = smul.addr %s168, 4
        %s170 = scalar_lea.vmem %s0, %s169
      $region20: #{dit_block_forward.20} parent=15 // pred_fallthru
        _
      // Predicated region
      $region21: #{dit_block_forward.20} parent=15 // pred_check
        %p171 = pneg %p78
      $region22: #{dit_block_forward.20} parent=15 // pred_check_branch
        %173 = sbr.rel (%p171) target = $region24
      $region23: #{dit_block_forward.20} parent=15 // pred_region
        %p174 = scmp.lt.s32.totalorder %s16, 1
        %s175 = scalar_select %p174, %s16, 1
        %p176 = scmp.lt.s32.totalorder %s18, 0
        %s177 = scalar_select %p176, %s18, 0
        %s178 = smul.addr %s177, 2
        %s179 = smul.addr %s175, 2
        %s180 = sadd.s32 %s178, %s179
        %s181 = smul.addr %s180, 4
        %s182 = scalar_lea.vmem %s1, %s181
      $region24: #{dit_block_forward.20} parent=15 // pred_fallthru
        _
      // Predicated region
      $region25: #{dit_block_forward.20} parent=15 // pred_check
        %p183 = pneg %p106
      $region26: #{dit_block_forward.20} parent=15 // pred_check_branch
        %185 = sbr.rel (%p183) target = $region28
      $region27: #{dit_block_forward.20} parent=15 // pred_region
        %p186 = scmp.lt.s32.totalorder %s16, 1
        %s187 = scalar_select %p186, %s16, 1
        %p188 = scmp.lt.s32.totalorder %s18, 0
        %s189 = scalar_select %p188, %s18, 0
        %s190 = smul.addr %s189, 2
        %s191 = smul.addr %s187, 2
        %s192 = sadd.s32 %s190, %s191
        %s193 = smul.addr %s192, 4
        %s194 = scalar_lea.vmem %s2, %s193
      $region28: #{dit_block_forward.20} parent=15 // pred_fallthru
        _
    $region16: #{dit_block_forward.20} parent=5 // pred_fallthru
      _
    %p195 = scmp.le.s32.totalorder 1, %s9
    %p196 = scmp.lt.s32.totalorder %s9, 3
    %p197 = pnand %p195, %p196
    %p198 = pneg %p197
    // Predicated region
    $region29: #{dit_block_forward.20} parent=5 // pred_check
      _
    $region30: #{dit_block_forward.20} parent=5 // pred_check_branch
      %200 = sbr.rel (%p197) target = $region32
    $region31: #{dit_block_forward.20} parent=5 // pred_region
      %s201 = ssub.s32 %s9, 1
      %p202 = scmp.lt.s32.totalorder %s19, 1
      %s203 = scalar_select %p202, %s19, 1
      %p204 = scmp.lt.s32.totalorder %s20, 0
      %s205 = scalar_select %p204, %s20, 0
      %s206 = smul.addr %s205, 2
      %s207 = smul.addr %s203, 2
      %s208 = sadd.s32 %s206, %s207
      %s209 = smul.addr %s208, 4
      %s210 = scalar_lea.vmem %s0, %s209
      %p211 = pneg %p56
      %p212 = pneg %p53
      %p213 = scmp.lt.s32.totalorder %s19, 1
      %s214 = scalar_select %p213, %s19, 1
      %p215 = scmp.lt.s32.totalorder %s21, 0
      %s216 = scalar_select %p215, %s21, 0
      %s217 = smul.addr %s216, 2
      %s218 = smul.addr %s214, 2
      %s219 = sadd.s32 %s217, %s218
      %s220 = smul.addr %s219, 4
      %s221 = scalar_lea.vmem %s1, %s220
      %p222 = pneg %p84
      %p223 = pneg %p81
      %p224 = scmp.lt.s32.totalorder %s19, 1
      %s225 = scalar_select %p224, %s19, 1
      %p226 = scmp.lt.s32.totalorder %s21, 0
      %s227 = scalar_select %p226, %s21, 0
      %s228 = smul.addr %s227, 2
      %s229 = smul.addr %s225, 2
      %s230 = sadd.s32 %s228, %s229
      %s231 = smul.addr %s230, 4
      %s232 = scalar_lea.vmem %s2, %s231
      %p233 = pneg %p112
      %p234 = pneg %p109
      %p235 = pneg %p140
      %p236 = pneg %p137
      %p237 = scmp.lt.s32.totalorder %s19, 1
      %s238 = scalar_select %p237, %s19, 1
      %p239 = scmp.lt.s32.totalorder %s20, 0
      %s240 = scalar_select %p239, %s20, 0
      %s241 = smul.addr %s240, 2
      %s242 = smul.addr %s238, 2
      %s243 = sadd.s32 %s241, %s242
      %s244 = smul.addr %s243, 4
      %s245 = scalar_lea.vmem %s3, %s244
      %p246 = scmp.lt.s32.totalorder %s19, 1
      %s247 = scalar_select %p246, %s19, 1
      %p248 = scmp.lt.s32.totalorder %s20, 0
      %s249 = scalar_select %p248, %s20, 0
      %s250 = smul.addr %s249, 2
      %s251 = smul.addr %s247, 2
      %s252 = sadd.s32 %s250, %s251
      %s253 = smul.addr %s252, 4
      %s254 = scalar_lea.vmem %s0, %s253
      %p255 = scmp.lt.s32.totalorder %s19, 1
      %s256 = scalar_select %p255, %s19, 1
      %p257 = scmp.lt.s32.totalorder %s21, 0
      %s258 = scalar_select %p257, %s21, 0
      %s259 = smul.addr %s258, 2
      %s260 = smul.addr %s256, 2
      %s261 = sadd.s32 %s259, %s260
      %s262 = smul.addr %s261, 4
      %s263 = scalar_lea.vmem %s1, %s262
      %p264 = scmp.lt.s32.totalorder %s19, 1
      %s265 = scalar_select %p264, %s19, 1
      %p266 = scmp.lt.s32.totalorder %s21, 0
      %s267 = scalar_select %p266, %s21, 0
      %s268 = smul.addr %s267, 2
      %s269 = smul.addr %s265, 2
      %s270 = sadd.s32 %s268, %s269
      %s271 = smul.addr %s270, 4
      %s272 = scalar_lea.vmem %s2, %s271
      %p273 = scmp.lt.s32.totalorder %s19, 1
      %s274 = scalar_select %p273, %s19, 1
      %p275 = scmp.lt.s32.totalorder %s20, 0
      %s276 = scalar_select %p275, %s20, 0
      %s277 = smul.addr %s276, 2
      %s278 = smul.addr %s274, 2
      %s279 = sadd.s32 %s277, %s278
      %s280 = smul.addr %s279, 4
      %s281 = scalar_lea.vmem %s3, %s280
      %p283 = scmp.eq.s32.totalorder %s21, 0
      // Predicated region
      $region33: #{dit_block_forward.20} parent=31 // pred_check
        %p284 = pneg %p283
      $region34: #{dit_block_forward.20} parent=31 // pred_check_branch
        %286 = sbr.rel (%p284) target = $region36
      $region35: #{dit_block_forward.20} parent=31 // pred_region
        %vm287 = vcmask 7168
        %288 = vst.msk [vmem:[#allocation2] sm:$0xff] %vm287, -inf
        %289 = vst.msk [vmem:[#allocation2 + $0x8] sm:$0xff] %vm287, -inf
        %290 = vst.msk [vmem:[#allocation2 + $0x10] sm:$0xff] %vm287, -inf
        %291 = vst.msk [vmem:[#allocation2 + $0x18] sm:$0xff] %vm287, -inf
        %292 = vst.msk [vmem:[#allocation3] sm:$0xff] %vm287, 0.0
        %293 = vst.msk [vmem:[#allocation3 + $0x8] sm:$0xff] %vm287, 0.0
        %294 = vst.msk [vmem:[#allocation3 + $0x10] sm:$0xff] %vm287, 0.0
        %295 = vst.msk [vmem:[#allocation3 + $0x18] sm:$0xff] %vm287, 0.0
        %vm296 = vcmask 523264
        %297 = vst.msk [vmem:[#allocation4] sm:$0xff] %vm296, 0.0
        %298 = vst.msk [vmem:[#allocation4 + $0x8] sm:$0xff] %vm296, 0.0
        %299 = vst.msk [vmem:[#allocation4 + $0x10] sm:$0xff] %vm296, 0.0
        %300 = vst.msk [vmem:[#allocation4 + $0x18] sm:$0xff] %vm296, 0.0
      $region36: #{dit_block_forward.20} parent=31 // pred_fallthru
        _
      %v301 = vld [vmem:[%s254] sm:$0xf]
      %v302 = vld [vmem:[%s263] sm:$0x7]
      %v303 = vld [vmem:[%s272] sm:$0x7]
      %vm304 = vcmask 523264
      %v306 = vsel %vm304, %v301, 0
      %v309 = vsel %vm304, %v302, 0
      %311 = vmatprep.subr.bf16.mxu0 0
      %312 = vmatpush1.bf16.xpose.msra.mxu0 %v309
      %313 = vmatprep.subr.bf16.mxu0 0
      %314 = vmatpush1.bf16.xpose.msra.mxu0 0
      %315 = vmatprep.subr.bf16.mxu0 0
      %316 = vmatpush1.bf16.xpose.msra.mxu0 0
      %317 = vmatprep.subr.bf16.mxu0 0
      %318 = vmatpush1.bf16.xpose.msra.mxu0 0
      %319 = vmatprep.subr.bf16.mxu0 0
      %320 = vmatpush1.bf16.xpose.msra.mxu0 0
      %321 = vmatprep.subr.bf16.mxu0 0
      %322 = vmatpush1.bf16.xpose.msra.mxu0 0
      %323 = vmatprep.subr.bf16.mxu0 0
      %324 = vmatpush1.bf16.xpose.msra.mxu0 0
      %325 = vmatprep.subr.bf16.mxu0 0
      %326 = vmatpush1.bf16.xpose.msra.mxu0 0
      %327 = vmatprep.subr.bf16.mxu0 0
      %328 = vmatpush1.bf16.xpose.msra.mxu0 0
      %329 = vmatprep.subr.bf16.mxu0 0
      %330 = vmatpush1.bf16.xpose.msra.mxu0 0
      %331 = vmatprep.subr.bf16.mxu0 0
      %332 = vmatpush1.bf16.xpose.msra.mxu0 0
      %333 = vmatprep.subr.bf16.mxu0 0
      %334 = vmatpush1.bf16.xpose.msra.mxu0 0
      %335 = vmatprep.subr.bf16.mxu0 0
      %336 = vmatpush1.bf16.xpose.msra.mxu0 0
      %337 = vmatprep.subr.bf16.mxu0 0
      %338 = vmatpush1.bf16.xpose.msra.mxu0 0
      %339 = vmatprep.subr.bf16.mxu0 0
      %340 = vmatpush1.bf16.xpose.msra.mxu0 0
      %341 = vmatprep.subr.bf16.mxu0 0
      %342 = vmatpush1.bf16.xpose.msra.mxu0 0
      %343 = vmatprep.mubr.bf16.mxu0 0
      %344 = vmatmul.mubr.bf16.gmra.mrb[0].mxu0 %v306
      %v345 = vpop.f32.mrb[0].mxu0
      %v346 = vadd.f32 0.0, %v345
      %v347 = vpop.f32.mrb[0].mxu0
      %v348 = vpop.f32.mrb[0].mxu0
      %v349 = vpop.f32.mrb[0].mxu0
      %350 = vdwg.mxu0
      %v351 = vld [vmem:[#allocation2] sm:$0xff]
      %vm352 = vcmask 48128
      %v353 = vsel %vm352, %v346, -inf
      %354 = vmax.xlane.f32.xlu0 %v353
      %v355 = vpop.xlane.xlu0 %354
      %v356 = vmax.f32 %v351, %v355
      %v357 = vsub.f32 %v351, %v356
      %v358 = vmul.f32 %v357, 1.442695
      %v359 = vpow.pop %v358
      %361 = vset.pattern.permute.xlu0 0
      %362 = vperm.xlu0 %361, %v356
      %v363 = vpop.permute.xlu0 %362
      %v365 = vsub.f32 %v346, %v363
      %v366 = vmul.f32 %v365, 1.442695
      %v367 = vpow.pop %v366
      %v368 = vld [vmem:[#allocation3] sm:$0xff]
      %v369 = vmul.f32 %v359, %v368
      %v370 = vsel %vm352, %v367, 0.0
      %371 = vadd.xlane.f32.xlu0 %v370
      %v372 = vpop.xlane.xlu0 %371
      %v373 = vadd.f32 %v369, %v372
      %vm374 = vcmask 7168
      %375 = vst.msk [vmem:[#allocation3] sm:$0xff] %vm374, %v373
      %v376 = vld [vmem:[#allocation4] sm:$0xff]
      %378 = vset.pattern.permute.xlu0 0
      %379 = vperm.xlu0 %378, %v359
      %v380 = vpop.permute.xlu0 %379
      %v382 = vmul.f32 %v380, %v376
      %v383 = vpack.c.bf16 %v367, %v367
      %v385 = vsel %vm352, %v383, 0
      %vm387 = vcmask 1042432
      %v389 = vsel %vm387, %v303, 0
      %391 = vmatprep.subr.bf16.mxu0 0
      %392 = vmatpush1.bf16.msra.mxu0 %v389
      %393 = vmatprep.subr.bf16.mxu0 0
      %394 = vmatpush1.bf16.msra.mxu0 0
      %395 = vmatprep.subr.bf16.mxu0 0
      %396 = vmatpush1.bf16.msra.mxu0 0
      %397 = vmatprep.subr.bf16.mxu0 0
      %398 = vmatpush1.bf16.msra.mxu0 0
      %399 = vmatprep.subr.bf16.mxu0 0
      %400 = vmatpush1.bf16.msra.mxu0 0
      %401 = vmatprep.subr.bf16.mxu0 0
      %402 = vmatpush1.bf16.msra.mxu0 0
      %403 = vmatprep.subr.bf16.mxu0 0
      %404 = vmatpush1.bf16.msra.mxu0 0
      %405 = vmatprep.subr.bf16.mxu0 0
      %406 = vmatpush1.bf16.msra.mxu0 0
      %407 = vmatprep.subr.bf16.mxu0 0
      %408 = vmatpush1.bf16.msra.mxu0 0
      %409 = vmatprep.subr.bf16.mxu0 0
      %410 = vmatpush1.bf16.msra.mxu0 0
      %411 = vmatprep.subr.bf16.mxu0 0
      %412 = vmatpush1.bf16.msra.mxu0 0
      %413 = vmatprep.subr.bf16.mxu0 0
      %414 = vmatpush1.bf16.msra.mxu0 0
      %415 = vmatprep.subr.bf16.mxu0 0
      %416 = vmatpush1.bf16.msra.mxu0 0
      %417 = vmatprep.subr.bf16.mxu0 0
      %418 = vmatpush1.bf16.msra.mxu0 0
      %419 = vmatprep.subr.bf16.mxu0 0
      %420 = vmatpush1.bf16.msra.mxu0 0
      %421 = vmatprep.subr.bf16.mxu0 0
      %422 = vmatpush1.bf16.msra.mxu0 0
      %423 = vmatprep.mubr.bf16.mxu0 0
      %424 = vmatmul.mubr.bf16.gmra.mrb[0].mxu0 %v385
      %v425 = vpop.f32.mrb[0].mxu0
      %v426 = vadd.f32 0.0, %v425
      %v427 = vpop.f32.mrb[0].mxu0
      %v428 = vpop.f32.mrb[0].mxu0
      %v429 = vpop.f32.mrb[0].mxu0
      %430 = vdwg.mxu0
      %v431 = vadd.f32 %v382, %v426
      %432 = vst.msk [vmem:[#allocation4] sm:$0xff] %vm304, %v431
      %433 = vst.msk [vmem:[#allocation2] sm:$0xff] %vm374, %v356
      %v434 = vld [vmem:[%s254] sm:$0xf]
      %v435 = vld [vmem:[%s263] sm:$0x7]
      %v436 = vld [vmem:[%s272] sm:$0x7]
      %v438 = vunpack.c.l.b16 %v434
      %v439 = vpack.c.b16 %v438, %v438
      %440 = vrot.lane.b32.xlu0 %v439, 64
      %v441 = vpop.permute.xlu0 %440
      %v443 = vunpack.c.l.b16 %v435
      %v444 = vpack.c.b16 %v443, %v443
      %445 = vrot.lane.b32.xlu0 %v444, 64
      %v446 = vpop.permute.xlu0 %445
      %v448 = vsel %vm304, %v441, 0
      %v451 = vsel %vm304, %v446, 0
      %453 = vmatprep.subr.bf16.mxu0 0
      %454 = vmatpush1.bf16.xpose.msra.mxu0 %v451
      %455 = vmatprep.subr.bf16.mxu0 0
      %456 = vmatpush1.bf16.xpose.msra.mxu0 0
      %457 = vmatprep.subr.bf16.mxu0 0
      %458 = vmatpush1.bf16.xpose.msra.mxu0 0
      %459 = vmatprep.subr.bf16.mxu0 0
      %460 = vmatpush1.bf16.xpose.msra.mxu0 0
      %461 = vmatprep.subr.bf16.mxu0 0
      %462 = vmatpush1.bf16.xpose.msra.mxu0 0
      %463 = vmatprep.subr.bf16.mxu0 0
      %464 = vmatpush1.bf16.xpose.msra.mxu0 0
      %465 = vmatprep.subr.bf16.mxu0 0
      %466 = vmatpush1.bf16.xpose.msra.mxu0 0
      %467 = vmatprep.subr.bf16.mxu0 0
      %468 = vmatpush1.bf16.xpose.msra.mxu0 0
      %469 = vmatprep.subr.bf16.mxu0 0
      %470 = vmatpush1.bf16.xpose.msra.mxu0 0
      %471 = vmatprep.subr.bf16.mxu0 0
      %472 = vmatpush1.bf16.xpose.msra.mxu0 0
      %473 = vmatprep.subr.bf16.mxu0 0
      %474 = vmatpush1.bf16.xpose.msra.mxu0 0
      %475 = vmatprep.subr.bf16.mxu0 0
      %476 = vmatpush1.bf16.xpose.msra.mxu0 0
      %477 = vmatprep.subr.bf16.mxu0 0
      %478 = vmatpush1.bf16.xpose.msra.mxu0 0
      %479 = vmatprep.subr.bf16.mxu0 0
      %480 = vmatpush1.bf16.xpose.msra.mxu0 0
      %481 = vmatprep.subr.bf16.mxu0 0
      %482 = vmatpush1.bf16.xpose.msra.mxu0 0
      %483 = vmatprep.subr.bf16.mxu0 0
      %484 = vmatpush1.bf16.xpose.msra.mxu0 0
      %485 = vmatprep.mubr.bf16.mxu0 0
      %486 = vmatmul.mubr.bf16.gmra.mrb[0].mxu0 %v448
      %v487 = vpop.f32.mrb[0].mxu0
      %v488 = vadd.f32 0.0, %v487
      %v489 = vpop.f32.mrb[0].mxu0
      %v490 = vpop.f32.mrb[0].mxu0
      %v491 = vpop.f32.mrb[0].mxu0
      %492 = vdwg.mxu0
      %s493 = scalar_lea.vmem [#allocation2], 8
      %v494 = vld [vmem:[%s493] sm:$0xff]
      %v495 = vsel %vm352, %v488, -inf
      %496 = vmax.xlane.f32.xlu0 %v495
      %v497 = vpop.xlane.xlu0 %496
      %v498 = vmax.f32 %v494, %v497
      %v499 = vsub.f32 %v494, %v498
      %v500 = vmul.f32 %v499, 1.442695
      %v501 = vpow.pop %v500
      %503 = vset.pattern.permute.xlu0 0
      %504 = vperm.xlu0 %503, %v498
      %v505 = vpop.permute.xlu0 %504
      %v507 = vsub.f32 %v488, %v505
      %v508 = vmul.f32 %v507, 1.442695
      %v509 = vpow.pop %v508
      %s510 = scalar_lea.vmem [#allocation3], 8
      %v511 = vld [vmem:[%s510] sm:$0xff]
      %v512 = vmul.f32 %v501, %v511
      %v513 = vsel %vm352, %v509, 0.0
      %514 = vadd.xlane.f32.xlu0 %v513
      %v515 = vpop.xlane.xlu0 %514
      %v516 = vadd.f32 %v512, %v515
      %517 = vst.msk [vmem:[%s510] sm:$0xff] %vm374, %v516
      %s518 = scalar_lea.vmem [#allocation4], 8
      %v519 = vld [vmem:[%s518] sm:$0xff]
      %521 = vset.pattern.permute.xlu0 0
      %522 = vperm.xlu0 %521, %v501
      %v523 = vpop.permute.xlu0 %522
      %v525 = vmul.f32 %v523, %v519
      %v526 = vpack.c.bf16 %v509, %v509
      %v528 = vunpack.c.l.b16 %v436
      %v529 = vpack.c.b16 %v528, %v528
      %530 = vrot.lane.b32.xlu0 %v529, 64
      %v531 = vpop.permute.xlu0 %530
      %v533 = vsel %vm352, %v526, 0
      %v536 = vsel %vm387, %v531, 0
      %538 = vmatprep.subr.bf16.mxu0 0
      %539 = vmatpush1.bf16.msra.mxu0 %v536
      %540 = vmatprep.subr.bf16.mxu0 0
      %541 = vmatpush1.bf16.msra.mxu0 0
      %542 = vmatprep.subr.bf16.mxu0 0
      %543 = vmatpush1.bf16.msra.mxu0 0
      %544 = vmatprep.subr.bf16.mxu0 0
      %545 = vmatpush1.bf16.msra.mxu0 0
      %546 = vmatprep.subr.bf16.mxu0 0
      %547 = vmatpush1.bf16.msra.mxu0 0
      %548 = vmatprep.subr.bf16.mxu0 0
      %549 = vmatpush1.bf16.msra.mxu0 0
      %550 = vmatprep.subr.bf16.mxu0 0
      %551 = vmatpush1.bf16.msra.mxu0 0
      %552 = vmatprep.subr.bf16.mxu0 0
      %553 = vmatpush1.bf16.msra.mxu0 0
      %554 = vmatprep.subr.bf16.mxu0 0
      %555 = vmatpush1.bf16.msra.mxu0 0
      %556 = vmatprep.subr.bf16.mxu0 0
      %557 = vmatpush1.bf16.msra.mxu0 0
      %558 = vmatprep.subr.bf16.mxu0 0
      %559 = vmatpush1.bf16.msra.mxu0 0
      %560 = vmatprep.subr.bf16.mxu0 0
      %561 = vmatpush1.bf16.msra.mxu0 0
      %562 = vmatprep.subr.bf16.mxu0 0
      %563 = vmatpush1.bf16.msra.mxu0 0
      %564 = vmatprep.subr.bf16.mxu0 0
      %565 = vmatpush1.bf16.msra.mxu0 0
      %566 = vmatprep.subr.bf16.mxu0 0
      %567 = vmatpush1.bf16.msra.mxu0 0
      %568 = vmatprep.subr.bf16.mxu0 0
      %569 = vmatpush1.bf16.msra.mxu0 0
      %570 = vmatprep.mubr.bf16.mxu0 0
      %571 = vmatmul.mubr.bf16.gmra.mrb[0].mxu0 %v533
      %v572 = vpop.f32.mrb[0].mxu0
      %v573 = vadd.f32 0.0, %v572
      %v574 = vpop.f32.mrb[0].mxu0
      %v575 = vpop.f32.mrb[0].mxu0
      %v576 = vpop.f32.mrb[0].mxu0
      %577 = vdwg.mxu0
      %v578 = vadd.f32 %v525, %v573
      %579 = vst.msk [vmem:[%s518] sm:$0xff] %vm304, %v578
      %580 = vst.msk [vmem:[%s493] sm:$0xff] %vm374, %v498
      %v581 = vld [vmem:[%s254 + $0x4] sm:$0xf]
      %v582 = vld [vmem:[%s263 + $0x4] sm:$0x7]
      %v583 = vld [vmem:[%s272 + $0x4] sm:$0x7]
      %v585 = vsel %vm304, %v581, 0
      %v588 = vsel %vm304, %v582, 0
      %590 = vmatprep.subr.bf16.mxu0 0
      %591 = vmatpush1.bf16.xpose.msra.mxu0 %v588
      %592 = vmatprep.subr.bf16.mxu0 0
      %593 = vmatpush1.bf16.xpose.msra.mxu0 0
      %594 = vmatprep.subr.bf16.mxu0 0
      %595 = vmatpush1.bf16.xpose.msra.mxu0 0
      %596 = vmatprep.subr.bf16.mxu0 0
      %597 = vmatpush1.bf16.xpose.msra.mxu0 0
      %598 = vmatprep.subr.bf16.mxu0 0
      %599 = vmatpush1.bf16.xpose.msra.mxu0 0
      %600 = vmatprep.subr.bf16.mxu0 0
      %601 = vmatpush1.bf16.xpose.msra.mxu0 0
      %602 = vmatprep.subr.bf16.mxu0 0
      %603 = vmatpush1.bf16.xpose.msra.mxu0 0
      %604 = vmatprep.subr.bf16.mxu0 0
      %605 = vmatpush1.bf16.xpose.msra.mxu0 0
      %606 = vmatprep.subr.bf16.mxu0 0
      %607 = vmatpush1.bf16.xpose.msra.mxu0 0
      %608 = vmatprep.subr.bf16.mxu0 0
      %609 = vmatpush1.bf16.xpose.msra.mxu0 0
      %610 = vmatprep.subr.bf16.mxu0 0
      %611 = vmatpush1.bf16.xpose.msra.mxu0 0
      %612 = vmatprep.subr.bf16.mxu0 0
      %613 = vmatpush1.bf16.xpose.msra.mxu0 0
      %614 = vmatprep.subr.bf16.mxu0 0
      %615 = vmatpush1.bf16.xpose.msra.mxu0 0
      %616 = vmatprep.subr.bf16.mxu0 0
      %617 = vmatpush1.bf16.xpose.msra.mxu0 0
      %618 = vmatprep.subr.bf16.mxu0 0
      %619 = vmatpush1.bf16.xpose.msra.mxu0 0
      %620 = vmatprep.subr.bf16.mxu0 0
      %621 = vmatpush1.bf16.xpose.msra.mxu0 0
      %622 = vmatprep.mubr.bf16.mxu0 0
      %623 = vmatmul.mubr.bf16.gmra.mrb[0].mxu0 %v585
      %v624 = vpop.f32.mrb[0].mxu0
      %v625 = vadd.f32 0.0, %v624
      %v626 = vpop.f32.mrb[0].mxu0
      %v627 = vpop.f32.mrb[0].mxu0
      %v628 = vpop.f32.mrb[0].mxu0
      %629 = vdwg.mxu0
      %s630 = scalar_lea.vmem [#allocation2], 16
      %v631 = vld [vmem:[%s630] sm:$0xff]
      %v632 = vsel %vm352, %v625, -inf
      %633 = vmax.xlane.f32.xlu0 %v632
      %v634 = vpop.xlane.xlu0 %633
      %v635 = vmax.f32 %v631, %v634
      %v636 = vsub.f32 %v631, %v635
      %v637 = vmul.f32 %v636, 1.442695
      %v638 = vpow.pop %v637
      %640 = vset.pattern.permute.xlu0 0
      %641 = vperm.xlu0 %640, %v635
      %v642 = vpop.permute.xlu0 %641
      %v644 = vsub.f32 %v625, %v642
      %v645 = vmul.f32 %v644, 1.442695
      %v646 = vpow.pop %v645
      %s647 = scalar_lea.vmem [#allocation3], 16
      %v648 = vld [vmem:[%s647] sm:$0xff]
      %v649 = vmul.f32 %v638, %v648
      %v650 = vsel %vm352, %v646, 0.0
      %651 = vadd.xlane.f32.xlu0 %v650
      %v652 = vpop.xlane.xlu0 %651
      %v653 = vadd.f32 %v649, %v652
      %654 = vst.msk [vmem:[%s647] sm:$0xff] %vm374, %v653
      %s655 = scalar_lea.vmem [#allocation4], 16
      %v656 = vld [vmem:[%s655] sm:$0xff]
      %658 = vset.pattern.permute.xlu0 0
      %659 = vperm.xlu0 %658, %v638
      %v660 = vpop.permute.xlu0 %659
      %v662 = vmul.f32 %v660, %v656
      %v663 = vpack.c.bf16 %v646, %v646
      %v665 = vsel %vm352, %v663, 0
      %v668 = vsel %vm387, %v583, 0
      %670 = vmatprep.subr.bf16.mxu0 0
      %671 = vmatpush1.bf16.msra.mxu0 %v668
      %672 = vmatprep.subr.bf16.mxu0 0
      %673 = vmatpush1.bf16.msra.mxu0 0
      %674 = vmatprep.subr.bf16.mxu0 0
      %675 = vmatpush1.bf16.msra.mxu0 0
      %676 = vmatprep.subr.bf16.mxu0 0
      %677 = vmatpush1.bf16.msra.mxu0 0
      %678 = vmatprep.subr.bf16.mxu0 0
      %679 = vmatpush1.bf16.msra.mxu0 0
      %680 = vmatprep.subr.bf16.mxu0 0
      %681 = vmatpush1.bf16.msra.mxu0 0
      %682 = vmatprep.subr.bf16.mxu0 0
      %683 = vmatpush1.bf16.msra.mxu0 0
      %684 = vmatprep.subr.bf16.mxu0 0
      %685 = vmatpush1.bf16.msra.mxu0 0
      %686 = vmatprep.subr.bf16.mxu0 0
      %687 = vmatpush1.bf16.msra.mxu0 0
      %688 = vmatprep.subr.bf16.mxu0 0
      %689 = vmatpush1.bf16.msra.mxu0 0
      %690 = vmatprep.subr.bf16.mxu0 0
      %691 = vmatpush1.bf16.msra.mxu0 0
      %692 = vmatprep.subr.bf16.mxu0 0
      %693 = vmatpush1.bf16.msra.mxu0 0
      %694 = vmatprep.subr.bf16.mxu0 0
      %695 = vmatpush1.bf16.msra.mxu0 0
      %696 = vmatprep.subr.bf16.mxu0 0
      %697 = vmatpush1.bf16.msra.mxu0 0
      %698 = vmatprep.subr.bf16.mxu0 0
      %699 = vmatpush1.bf16.msra.mxu0 0
      %700 = vmatprep.subr.bf16.mxu0 0
      %701 = vmatpush1.bf16.msra.mxu0 0
      %702 = vmatprep.mubr.bf16.mxu0 0
      %703 = vmatmul.mubr.bf16.gmra.mrb[0].mxu0 %v665
      %v704 = vpop.f32.mrb[0].mxu0
      %v705 = vadd.f32 0.0, %v704
      %v706 = vpop.f32.mrb[0].mxu0
      %v707 = vpop.f32.mrb[0].mxu0
      %v708 = vpop.f32.mrb[0].mxu0
      %709 = vdwg.mxu0
      %v710 = vadd.f32 %v662, %v705
      %711 = vst.msk [vmem:[%s655] sm:$0xff] %vm304, %v710
      %712 = vst.msk [vmem:[%s630] sm:$0xff] %vm374, %v635
      %v713 = vld [vmem:[%s254 + $0x4] sm:$0xf]
      %v714 = vld [vmem:[%s263 + $0x4] sm:$0x7]
      %v715 = vld [vmem:[%s272 + $0x4] sm:$0x7]
      %v717 = vunpack.c.l.b16 %v713
      %v718 = vpack.c.b16 %v717, %v717
      %719 = vrot.lane.b32.xlu0 %v718, 64
      %v720 = vpop.permute.xlu0 %719
      %v722 = vunpack.c.l.b16 %v714
      %v723 = vpack.c.b16 %v722, %v722
      %724 = vrot.lane.b32.xlu0 %v723, 64
      %v725 = vpop.permute.xlu0 %724
      %v727 = vsel %vm304, %v720, 0
      %v730 = vsel %vm304, %v725, 0
      %732 = vmatprep.subr.bf16.mxu0 0
      %733 = vmatpush1.bf16.xpose.msra.mxu0 %v730
      %734 = vmatprep.subr.bf16.mxu0 0
      %735 = vmatpush1.bf16.xpose.msra.mxu0 0
      %736 = vmatprep.subr.bf16.mxu0 0
      %737 = vmatpush1.bf16.xpose.msra.mxu0 0
      %738 = vmatprep.subr.bf16.mxu0 0
      %739 = vmatpush1.bf16.xpose.msra.mxu0 0
      %740 = vmatprep.subr.bf16.mxu0 0
      %741 = vmatpush1.bf16.xpose.msra.mxu0 0
      %742 = vmatprep.subr.bf16.mxu0 0
      %743 = vmatpush1.bf16.xpose.msra.mxu0 0
      %744 = vmatprep.subr.bf16.mxu0 0
      %745 = vmatpush1.bf16.xpose.msra.mxu0 0
      %746 = vmatprep.subr.bf16.mxu0 0
      %747 = vmatpush1.bf16.xpose.msra.mxu0 0
      %748 = vmatprep.subr.bf16.mxu0 0
      %749 = vmatpush1.bf16.xpose.msra.mxu0 0
      %750 = vmatprep.subr.bf16.mxu0 0
      %751 = vmatpush1.bf16.xpose.msra.mxu0 0
      %752 = vmatprep.subr.bf16.mxu0 0
      %753 = vmatpush1.bf16.xpose.msra.mxu0 0
      %754 = vmatprep.subr.bf16.mxu0 0
      %755 = vmatpush1.bf16.xpose.msra.mxu0 0
      %756 = vmatprep.subr.bf16.mxu0 0
      %757 = vmatpush1.bf16.xpose.msra.mxu0 0
      %758 = vmatprep.subr.bf16.mxu0 0
      %759 = vmatpush1.bf16.xpose.msra.mxu0 0
      %760 = vmatprep.subr.bf16.mxu0 0
      %761 = vmatpush1.bf16.xpose.msra.mxu0 0
      %762 = vmatprep.subr.bf16.mxu0 0
      %763 = vmatpush1.bf16.xpose.msra.mxu0 0
      %764 = vmatprep.mubr.bf16.mxu0 0
      %765 = vmatmul.mubr.bf16.gmra.mrb[0].mxu0 %v727
      %v766 = vpop.f32.mrb[0].mxu0
      %v767 = vadd.f32 0.0, %v766
      %v768 = vpop.f32.mrb[0].mxu0
      %v769 = vpop.f32.mrb[0].mxu0
      %v770 = vpop.f32.mrb[0].mxu0
      %771 = vdwg.mxu0
      %s772 = scalar_lea.vmem [#allocation2], 24
      %v773 = vld [vmem:[%s772] sm:$0xff]
      %v774 = vsel %vm352, %v767, -inf
      %775 = vmax.xlane.f32.xlu0 %v774
      %v776 = vpop.xlane.xlu0 %775
      %v777 = vmax.f32 %v773, %v776
      %v778 = vsub.f32 %v773, %v777
      %v779 = vmul.f32 %v778, 1.442695
      %v780 = vpow.pop %v779
      %782 = vset.pattern.permute.xlu0 0
      %783 = vperm.xlu0 %782, %v777
      %v784 = vpop.permute.xlu0 %783
      %v786 = vsub.f32 %v767, %v784
      %v787 = vmul.f32 %v786, 1.442695
      %v788 = vpow.pop %v787
      %s789 = scalar_lea.vmem [#allocation3], 24
      %v790 = vld [vmem:[%s789] sm:$0xff]
      %v791 = vmul.f32 %v780, %v790
      %v792 = vsel %vm352, %v788, 0.0
      %793 = vadd.xlane.f32.xlu0 %v792
      %v794 = vpop.xlane.xlu0 %793
      %v795 = vadd.f32 %v791, %v794
      %796 = vst.msk [vmem:[%s789] sm:$0xff] %vm374, %v795
      %s797 = scalar_lea.vmem [#allocation4], 24
      %v798 = vld [vmem:[%s797] sm:$0xff]
      %800 = vset.pattern.permute.xlu0 0
      %801 = vperm.xlu0 %800, %v780
      %v802 = vpop.permute.xlu0 %801
      %v804 = vmul.f32 %v802, %v798
      %v805 = vpack.c.bf16 %v788, %v788
      %v807 = vunpack.c.l.b16 %v715
      %v808 = vpack.c.b16 %v807, %v807
      %809 = vrot.lane.b32.xlu0 %v808, 64
      %v810 = vpop.permute.xlu0 %809
      %v812 = vsel %vm352, %v805, 0
      %v815 = vsel %vm387, %v810, 0
      %817 = vmatprep.subr.bf16.mxu0 0
      %818 = vmatpush1.bf16.msra.mxu0 %v815
      %819 = vmatprep.subr.bf16.mxu0 0
      %820 = vmatpush1.bf16.msra.mxu0 0
      %821 = vmatprep.subr.bf16.mxu0 0
      %822 = vmatpush1.bf16.msra.mxu0 0
      %823 = vmatprep.subr.bf16.mxu0 0
      %824 = vmatpush1.bf16.msra.mxu0 0
      %825 = vmatprep.subr.bf16.mxu0 0
      %826 = vmatpush1.bf16.msra.mxu0 0
      %827 = vmatprep.subr.bf16.mxu0 0
      %828 = vmatpush1.bf16.msra.mxu0 0
      %829 = vmatprep.subr.bf16.mxu0 0
      %830 = vmatpush1.bf16.msra.mxu0 0
      %831 = vmatprep.subr.bf16.mxu0 0
      %832 = vmatpush1.bf16.msra.mxu0 0
      %833 = vmatprep.subr.bf16.mxu0 0
      %834 = vmatpush1.bf16.msra.mxu0 0
      %835 = vmatprep.subr.bf16.mxu0 0
      %836 = vmatpush1.bf16.msra.mxu0 0
      %837 = vmatprep.subr.bf16.mxu0 0
      %838 = vmatpush1.bf16.msra.mxu0 0
      %839 = vmatprep.subr.bf16.mxu0 0
      %840 = vmatpush1.bf16.msra.mxu0 0
      %841 = vmatprep.subr.bf16.mxu0 0
      %842 = vmatpush1.bf16.msra.mxu0 0
      %843 = vmatprep.subr.bf16.mxu0 0
      %844 = vmatpush1.bf16.msra.mxu0 0
      %845 = vmatprep.subr.bf16.mxu0 0
      %846 = vmatpush1.bf16.msra.mxu0 0
      %847 = vmatprep.subr.bf16.mxu0 0
      %848 = vmatpush1.bf16.msra.mxu0 0
      %849 = vmatprep.mubr.bf16.mxu0 0
      %850 = vmatmul.mubr.bf16.gmra.mrb[0].mxu0 %v812
      %v851 = vpop.f32.mrb[0].mxu0
      %v852 = vadd.f32 0.0, %v851
      %v853 = vpop.f32.mrb[0].mxu0
      %v854 = vpop.f32.mrb[0].mxu0
      %v855 = vpop.f32.mrb[0].mxu0
      %856 = vdwg.mxu0
      %v857 = vadd.f32 %v804, %v852
      %858 = vst.msk [vmem:[%s797] sm:$0xff] %vm304, %v857
      %859 = vst.msk [vmem:[%s772] sm:$0xff] %vm374, %v777
      // Predicated region
      $region37: #{dit_block_forward.20} parent=31 // pred_check
        %p860 = pneg %p283
      $region38: #{dit_block_forward.20} parent=31 // pred_check_branch
        %862 = sbr.rel (%p860) target = $region40
      $region39: #{dit_block_forward.20} parent=31 // pred_region
        %v863 = vld [vmem:[#allocation4] sm:$0xff]
        %v864 = vld [vmem:[#allocation3] sm:$0xff]
        %866 = vset.pattern.permute.xlu0 0
        %867 = vperm.xlu0 %866, %v864
        %v868 = vpop.permute.xlu0 %867
        %v870 = vrcp.pop %v868
        %v871 = vmul.f32 %v863, %v870
        %v872 = vpack.c.bf16 %v871, %v871
        %vm873 = vcmask 519168
        %874 = vst.msk [vmem:[%s281] sm:$0xf] %vm873, %v872
        %v875 = vld [vmem:[%s518] sm:$0xff]
        %v876 = vld [vmem:[%s510] sm:$0xff]
        %878 = vset.pattern.permute.xlu0 0
        %879 = vperm.xlu0 %878, %v876
        %v880 = vpop.permute.xlu0 %879
        %v882 = vrcp.pop %v880
        %v883 = vmul.f32 %v875, %v882
        %v884 = vpack.c.bf16 %v883, %v883
        %v886 = vunpack.c.l.b16 %v884
        %v887 = vpack.c.b16 %v886, %v886
        %888 = vrot.lane.b32.xlu0 %v887, 64
        %v889 = vpop.permute.xlu0 %888
        %vm891 = vcmask 1043968
        %892 = vst.msk [vmem:[%s281] sm:$0xf] %vm891, %v889
        %v893 = vld [vmem:[%s655] sm:$0xff]
        %v894 = vld [vmem:[%s647] sm:$0xff]
        %896 = vset.pattern.permute.xlu0 0
        %897 = vperm.xlu0 %896, %v894
        %v898 = vpop.permute.xlu0 %897
        %v900 = vrcp.pop %v898
        %v901 = vmul.f32 %v893, %v900
        %v902 = vpack.c.bf16 %v901, %v901
        %903 = vst.msk [vmem:[%s281 + $0x4] sm:$0xf] %vm873, %v902
        %v904 = vld [vmem:[%s797] sm:$0xff]
        %v905 = vld [vmem:[%s789] sm:$0xff]
        %907 = vset.pattern.permute.xlu0 0
        %908 = vperm.xlu0 %907, %v905
        %v909 = vpop.permute.xlu0 %908
        %v911 = vrcp.pop %v909
        %v912 = vmul.f32 %v904, %v911
        %v913 = vpack.c.bf16 %v912, %v912
        %v915 = vunpack.c.l.b16 %v913
        %v916 = vpack.c.b16 %v915, %v915
        %917 = vrot.lane.b32.xlu0 %v916, 64
        %v918 = vpop.permute.xlu0 %917
        %920 = vst.msk [vmem:[%s281 + $0x4] sm:$0xf] %vm891, %v918
      $region40: #{dit_block_forward.20} parent=31 // pred_fallthru
        _
      %p921 = scmp.lt.s32.totalorder %s19, 1
      %s922 = scalar_select %p921, %s19, 1
      %p923 = scmp.lt.s32.totalorder %s20, 0
      %s924 = scalar_select %p923, %s20, 0
      %s925 = smul.addr %s924, 2
      %s926 = smul.addr %s922, 2
      %s927 = sadd.s32 %s925, %s926
      %s928 = smul.addr %s927, 4
      %s929 = scalar_lea.vmem %s3, %s928
      // Predicated region
      $region41: #{dit_block_forward.20} parent=31 // pred_check
        %p930 = pneg %p137
      $region42: #{dit_block_forward.20} parent=31 // pred_check_branch
        %932 = sbr.rel (%p930) target = $region44
      $region43: #{dit_block_forward.20} parent=31 // pred_region
        _
      $region44: #{dit_block_forward.20} parent=31 // pred_fallthru
        _
    $region32: #{dit_block_forward.20} parent=5 // pred_fallthru
      _
    %p933 = scmp.le.s32.totalorder 2, %s9
    // Predicated region
    $region45: #{dit_block_forward.20} parent=5 // pred_check
      %p934 = pneg %p933
    $region46: #{dit_block_forward.20} parent=5 // pred_check_branch
      %936 = sbr.rel (%p934) target = $region48
    $region47: #{dit_block_forward.20} parent=5 // pred_region
      %s937 = ssub.s32 %s9, 2
      // Predicated region
      $region49: #{dit_block_forward.20} parent=47 // pred_check
        %p938 = pneg %p143
      $region50: #{dit_block_forward.20} parent=47 // pred_check_branch
        %940 = sbr.rel (%p938) target = $region52
      $region51: #{dit_block_forward.20} parent=47 // pred_region
        %p941 = scmp.lt.s32.totalorder %s22, 1
        %s942 = scalar_select %p941, %s22, 1
        %p943 = scmp.lt.s32.totalorder %s23, 0
        %s944 = scalar_select %p943, %s23, 0
        %s945 = smul.addr %s944, 2
        %s946 = smul.addr %s942, 2
        %s947 = sadd.s32 %s945, %s946
        %s948 = smul.addr %s947, 4
        %s949 = scalar_lea.vmem %s3, %s948
      $region52: #{dit_block_forward.20} parent=47 // pred_fallthru
        _
    $region48: #{dit_block_forward.20} parent=5 // pred_fallthru
      _
  $region6: #{dit_block_forward.20} parent=0 // loop_footer
    %s13 = sadd.s32 1, %s9
  $region7: #{dit_block_forward.20} parent=0 // loop_footer_branch
    %8 = sbr.rel target = $region3
  $region8: #{dit_block_forward.20} parent=0 // loop_exit
    _

// kernel: dit_block_forward.22
$region0: #{dit_block_forward.22}
  #allocation0 [shape = 'u32[]', space=smem, size = 0x4, offset = 0x4, fixed_abs, tag = 'smem constant byte address 0x4 - core index']
  #allocation1 [shape = 'u32[144,128]{1,0:T(1,128)}', space=vmem, size = 0x12000, scoped, tag = 'internal scratch']
  #allocation2 [shape = 'bf16[8,32]{1,0:T(8,128)(2,1)}', space=vmem, size = 0x800, scoped, tag = 'scratch operand']
  %s0 = inlined_call_operand.vmem [shape: f32[2,8,32], index: 0, kind: input, shape index: {}]
  %s1 = inlined_call_operand.vmem [shape: f32[2,1,32], index: 1, kind: input, shape index: {}]
  %s2 = inlined_call_operand.vmem [shape: f32[2,1,32], index: 2, kind: input, shape index: {}]
  %s3 = inlined_call_operand.vmem [shape: bf16[32,128], index: 3, kind: input, shape index: {}]
  %s4 = inlined_call_operand.vmem [shape: f32[1,128], index: 4, kind: input, shape index: {}]
  %s5 = inlined_call_operand.vmem [shape: bf16[2,8,128], index: 5, kind: output, shape index: {}]
  %s6 = sld [smem:[#allocation0]]
  $region57: #{dit_block_forward.22} parent=0
    _
  %s8 = ssub.s32 1, %s6
  %s9 = scalar_select 0, %s8, %s6
  loop: start=0, step=1, limit=4
  $region2: #{dit_block_forward.22} parent=0 // loop_pre_header
    _
  $region3: #{dit_block_forward.22} parent=0 // loop_header
    %s11 = sphi 0, %s15
    %p12 = scmp.ge.s32.totalorder %s11, 4
    %s18 = sphi 0, %s37
    %s19 = sphi 0, %s33
    %s20 = sphi 0, %s29
    %s21 = sphi 0, %s18
    %s22 = sphi 0, %s19
    %s23 = sphi 0, %s20
    %s24 = sphi 0, %s21
    %s25 = sphi 0, %s22
    %s26 = sphi 0, %s23
    %s42 = sphi 0, %s44
    %s45 = sphi 0, %s42
    %s46 = sphi 0, %s45
    %s62 = sphi 0, %s46
    %s68 = sphi 0, %s70
    %s71 = sphi 0, %s68
    %s72 = sphi 0, %s71
    %s88 = sphi 0, %s72
    %s94 = sphi 0, %s96
    %s97 = sphi 0, %s94
    %s98 = sphi 0, %s97
    %s114 = sphi 0, %s98
    %s120 = sphi 0, %s122
    %s123 = sphi 0, %s120
    %s124 = sphi 0, %s123
    %s140 = sphi 0, %s124
    %s146 = sphi 0, %s148
    %s149 = sphi 0, %s146
    %s150 = sphi 0, %s149
    %s166 = sphi 0, %s150
    %s176 = sphi 0, %s178
    %s179 = sphi 0, %s176
    %s180 = sphi 0, %s179
    %s196 = sphi 0, %s180
  $region4: #{dit_block_forward.22} parent=0 // loop_header_branch
    %14 = sbr.rel (%p12) target = $region8
  $region5: #{dit_block_forward.22} parent=0 // loop_body
    %s16 = ssub.s32 %s11, 1
    %s17 = ssub.s32 %s11, 2
    %s27 = sadd.s32 1, %s20
    %p28 = scmp.ge.s32.totalorder %s27, 1
    %s29 = scalar_select %p28, 0, %s27
    %s30 = sadd.s32 1, %s19
    %s31 = scalar_select %p28, %s30, %s19
    %p32 = scmp.ge.s32.totalorder %s31, 1
    %s33 = scalar_select %p32, 0, %s31
    %s34 = sadd.s32 1, %s18
    %s35 = scalar_select %p32, %s34, %s18
    %p36 = scmp.ge.s32.totalorder %s35, 2
    %s37 = scalar_select %p36, 0, %s35
    %s38 = ssub.s32 %s18, %s37
    %s39 = ssub.s32 %s19, %s33
    %s40 = sor.u32 %s38, %s39
    %p41 = scmp.eq.s32.totalorder %s40, 0
    %s43 = sadd.s32 %s42, 1
    %s44 = scalar_select %p41, %s42, %s43
    %p47 = pneg %p41
    %p48 = scmp.eq.s32.totalorder %s11, 1
    %p49 = por %p47, %p48
    %p50 = scmp.ne.s32.totalorder %s42, %s45
    %p51 = scmp.eq.s32.totalorder %s11, 0
    %p52 = por %p50, %p51
    %p53 = scmp.ne.s32.totalorder %s42, %s45
    %p54 = scmp.eq.s32.totalorder %s16, 1
    %p55 = por %p53, %p54
    %p56 = scmp.ne.s32.totalorder %s45, %s46
    %p57 = scmp.eq.s32.totalorder %s16, 0
    %p58 = por %p56, %p57
    %p59 = scmp.ne.s32.totalorder %s45, %s46
    %p60 = scmp.eq.s32.totalorder %s17, 1
    %p61 = por %p59, %p60
    %p63 = scmp.ne.s32.totalorder %s46, %s62
    %p64 = scmp.eq.s32.totalorder %s17, 0
    %p65 = por %p63, %p64
    %s66 = ssub.s32 %s18, %s37
    %p67 = scmp.eq.s32.totalorder %s66, 0
    %s69 = sadd.s32 %s68, 1
    %s70 = scalar_select %p67, %s68, %s69
    %p73 = pneg %p67
    %p74 = scmp.eq.s32.totalorder %s11, 1
    %p75 = por %p73, %p74
    %p76 = scmp.ne.s32.totalorder %s68, %s71
    %p77 = scmp.eq.s32.totalorder %s11, 0
    %p78 = por %p76, %p77
    %p79 = scmp.ne.s32.totalorder %s68, %s71
    %p80 = scmp.eq.s32.totalorder %s16, 1
    %p81 = por %p79, %p80
    %p82 = scmp.ne.s32.totalorder %s71, %s72
    %p83 = scmp.eq.s32.totalorder %s16, 0
    %p84 = por %p82, %p83
    %p85 = scmp.ne.s32.totalorder %s71, %s72
    %p86 = scmp.eq.s32.totalorder %s17, 1
    %p87 = por %p85, %p86
    %p89 = scmp.ne.s32.totalorder %s72, %s88
    %p90 = scmp.eq.s32.totalorder %s17, 0
    %p91 = por %p89, %p90
    %s92 = ssub.s32 %s18, %s37
    %p93 = scmp.eq.s32.totalorder %s92, 0
    %s95 = sadd.s32 %s94, 1
    %s96 = scalar_select %p93, %s94, %s95
    %p99 = pneg %p93
    %p100 = scmp.eq.s32.totalorder %s11, 1
    %p101 = por %p99, %p100
    %p102 = scmp.ne.s32.totalorder %s94, %s97
    %p103 = scmp.eq.s32.totalorder %s11, 0
    %p104 = por %p102, %p103
    %p105 = scmp.ne.s32.totalorder %s94, %s97
    %p106 = scmp.eq.s32.totalorder %s16, 1
    %p107 = por %p105, %p106
    %p108 = scmp.ne.s32.totalorder %s97, %s98
    %p109 = scmp.eq.s32.totalorder %s16, 0
    %p110 = por %p108, %p109
    %p111 = scmp.ne.s32.totalorder %s97, %s98
    %p112 = scmp.eq.s32.totalorder %s17, 1
    %p113 = por %p111, %p112
    %p115 = scmp.ne.s32.totalorder %s98, %s114
    %p116 = scmp.eq.s32.totalorder %s17, 0
    %p117 = por %p115, %p116
    %s118 = ssub.s32 %s20, %s29
    %p119 = scmp.eq.s32.totalorder %s118, 0
    %s121 = sadd.s32 %s120, 1
    %s122 = scalar_select %p119, %s120, %s121
    %p125 = pneg %p119
    %p126 = scmp.eq.s32.totalorder %s11, 1
    %p127 = por %p125, %p126
    %p128 = scmp.ne.s32.totalorder %s120, %s123
    %p129 = scmp.eq.s32.totalorder %s11, 0
    %p130 = por %p128, %p129
    %p131 = scmp.ne.s32.totalorder %s120, %s123
    %p132 = scmp.eq.s32.totalorder %s16, 1
    %p133 = por %p131, %p132
    %p134 = scmp.ne.s32.totalorder %s123, %s124
    %p135 = scmp.eq.s32.totalorder %s16, 0
    %p136 = por %p134, %p135
    %p137 = scmp.ne.s32.totalorder %s123, %s124
    %p138 = scmp.eq.s32.totalorder %s17, 1
    %p139 = por %p137, %p138
    %p141 = scmp.ne.s32.totalorder %s124, %s140
    %p142 = scmp.eq.s32.totalorder %s17, 0
    %p143 = por %p141, %p142
    %s144 = ssub.s32 %s20, %s29
    %p145 = scmp.eq.s32.totalorder %s144, 0
    %s147 = sadd.s32 %s146, 1
    %s148 = scalar_select %p145, %s146, %s147
    %p151 = pneg %p145
    %p152 = scmp.eq.s32.totalorder %s11, 1
    %p153 = por %p151, %p152
    %p154 = scmp.ne.s32.totalorder %s146, %s149
    %p155 = scmp.eq.s32.totalorder %s11, 0
    %p156 = por %p154, %p155
    %p157 = scmp.ne.s32.totalorder %s146, %s149
    %p158 = scmp.eq.s32.totalorder %s16, 1
    %p159 = por %p157, %p158
    %p160 = scmp.ne.s32.totalorder %s149, %s150
    %p161 = scmp.eq.s32.totalorder %s16, 0
    %p162 = por %p160, %p161
    %p163 = scmp.ne.s32.totalorder %s149, %s150
    %p164 = scmp.eq.s32.totalorder %s17, 1
    %p165 = por %p163, %p164
    %p167 = scmp.ne.s32.totalorder %s150, %s166
    %p168 = scmp.eq.s32.totalorder %s17, 0
    %p169 = por %p167, %p168
    %s170 = ssub.s32 %s18, %s37
    %s171 = ssub.s32 %s19, %s33
    %s172 = sor.u32 %s170, %s171
    %s173 = ssub.s32 %s20, %s29
    %s174 = sor.u32 %s172, %s173
    %p175 = scmp.eq.s32.totalorder %s174, 0
    %s177 = sadd.s32 %s176, 1
    %s178 = scalar_select %p175, %s176, %s177
    %p181 = pneg %p175
    %p182 = scmp.eq.s32.totalorder %s11, 1
    %p183 = por %p181, %p182
    %p184 = scmp.ne.s32.totalorder %s176, %s179
    %p185 = scmp.eq.s32.totalorder %s11, 0
    %p186 = por %p184, %p185
    %p187 = scmp.ne.s32.totalorder %s176, %s179
    %p188 = scmp.eq.s32.totalorder %s16, 1
    %p189 = por %p187, %p188
    %p190 = scmp.ne.s32.totalorder %s179, %s180
    %p191 = scmp.eq.s32.totalorder %s16, 0
    %p192 = por %p190, %p191
    %p193 = scmp.ne.s32.totalorder %s179, %s180
    %p194 = scmp.eq.s32.totalorder %s17, 1
    %p195 = por %p193, %p194
    %p197 = scmp.ne.s32.totalorder %s180, %s196
    %p198 = scmp.eq.s32.totalorder %s17, 0
    %p199 = por %p197, %p198
    %p200 = scmp.le.s32.totalorder 1, %s11
    %p201 = scmp.lt.s32.totalorder %s11, 3
    %p202 = pnand %p200, %p201
    %p203 = pneg %p202
    // Predicated region
    $region9: #{dit_block_forward.22} parent=5 // pred_check
      _
    $region10: #{dit_block_forward.22} parent=5 // pred_check_branch
      %205 = sbr.rel (%p202) target = $region12
    $region11: #{dit_block_forward.22} parent=5 // pred_region
      %s206 = ssub.s32 %s11, 1
      // Predicated region
      $region13: #{dit_block_forward.22} parent=11 // pred_check
        %p207 = pneg %p136
      $region14: #{dit_block_forward.22} parent=11 // pred_check_branch
        %209 = sbr.rel (%p207) target = $region16
      $region15: #{dit_block_forward.22} parent=11 // pred_region
        %p210 = scmp.lt.s32.totalorder %s23, 0
        %s211 = scalar_select %p210, %s23, 0
        %s212 = smul.addr %s211, 4
        %s213 = scalar_lea.vmem %s3, %s212
      $region16: #{dit_block_forward.22} parent=11 // pred_fallthru
        _
      // Predicated region
      $region17: #{dit_block_forward.22} parent=11 // pred_check
        %p214 = pneg %p162
      $region18: #{dit_block_forward.22} parent=11 // pred_check_branch
        %216 = sbr.rel (%p214) target = $region20
      $region19: #{dit_block_forward.22} parent=11 // pred_region
        %p217 = scmp.lt.s32.totalorder %s23, 0
        %s218 = scalar_select %p217, %s23, 0
        %s219 = scalar_lea.vmem %s4, %s218
      $region20: #{dit_block_forward.22} parent=11 // pred_fallthru
        _
    $region12: #{dit_block_forward.22} parent=5 // pred_fallthru
      _
    %p220 = scmp.lt.s32.totalorder %s11, 2
    // Predicated region
    $region21: #{dit_block_forward.22} parent=5 // pred_check
      %p221 = pneg %p220
    $region22: #{dit_block_forward.22} parent=5 // pred_check_branch
      %223 = sbr.rel (%p221) target = $region24
    $region23: #{dit_block_forward.22} parent=5 // pred_region
      // Predicated region
      $region25: #{dit_block_forward.22} parent=23 // pred_check
        %p224 = pneg %p52
      $region26: #{dit_block_forward.22} parent=23 // pred_check_branch
        %226 = sbr.rel (%p224) target = $region28
      $region27: #{dit_block_forward.22} parent=23 // pred_region
        %p227 = scmp.lt.s32.totalorder %s18, 1
        %s228 = scalar_select %p227, %s18, 1
        %p229 = scmp.lt.s32.totalorder %s19, 0
        %s230 = scalar_select %p229, %s19, 0
        %s231 = sadd.s32 %s230, %s228
        %s232 = smul.addr %s231, 8
        %s233 = scalar_lea.vmem %s0, %s232
      $region28: #{dit_block_forward.22} parent=23 // pred_fallthru
        _
      // Predicated region
      $region29: #{dit_block_forward.22} parent=23 // pred_check
        %p234 = pneg %p78
      $region30: #{dit_block_forward.22} parent=23 // pred_check_branch
        %236 = sbr.rel (%p234) target = $region32
      $region31: #{dit_block_forward.22} parent=23 // pred_region
        %p237 = scmp.lt.s32.totalorder %s18, 1
        %s238 = scalar_select %p237, %s18, 1
        %s239 = scalar_lea.vmem %s1, %s238
      $region32: #{dit_block_forward.22} parent=23 // pred_fallthru
        _
      // Predicated region
      $region33: #{dit_block_forward.22} parent=23 // pred_check
        %p240 = pneg %p104
      $region34: #{dit_block_forward.22} parent=23 // pred_check_branch
        %242 = sbr.rel (%p240) target = $region36
      $region35: #{dit_block_forward.22} parent=23 // pred_region
        %p243 = scmp.lt.s32.totalorder %s18, 1
        %s244 = scalar_select %p243, %s18, 1
        %s245 = scalar_lea.vmem %s2, %s244
      $region36: #{dit_block_forward.22} parent=23 // pred_fallthru
        _
    $region24: #{dit_block_forward.22} parent=5 // pred_fallthru
      _
    %p246 = scmp.le.s32.totalorder 1, %s11
    %p247 = scmp.lt.s32.totalorder %s11, 3
    %p248 = pnand %p246, %p247
    %p249 = pneg %p248
    // Predicated region
    $region37: #{dit_block_forward.22} parent=5 // pred_check
      _
    $region38: #{dit_block_forward.22} parent=5 // pred_check_branch
      %251 = sbr.rel (%p248) target = $region40
    $region39: #{dit_block_forward.22} parent=5 // pred_region
      %s252 = ssub.s32 %s11, 1
      %p253 = scmp.lt.s32.totalorder %s21, 1
      %s254 = scalar_select %p253, %s21, 1
      %p255 = scmp.lt.s32.totalorder %s22, 0
      %s256 = scalar_select %p255, %s22, 0
      %s257 = sadd.s32 %s256, %s254
      %s258 = smul.addr %s257, 8
      %s259 = scalar_lea.vmem %s0, %s258
      %p260 = pneg %p58
      %p261 = pneg %p55
      %p262 = scmp.lt.s32.totalorder %s21, 1
      %s263 = scalar_select %p262, %s21, 1
      %s264 = scalar_lea.vmem %s1, %s263
      %p265 = pneg %p84
      %p266 = pneg %p81
      %p267 = scmp.lt.s32.totalorder %s21, 1
      %s268 = scalar_select %p267, %s21, 1
      %s269 = scalar_lea.vmem %s2, %s268
      %p270 = pneg %p110
      %p271 = pneg %p107
      %p272 = scmp.lt.s32.totalorder %s23, 0
      %s273 = scalar_select %p272, %s23, 0
      %s274 = smul.addr %s273, 4
      %s275 = scalar_lea.vmem %s3, %s274
      %p276 = pneg %p136
      %p277 = pneg %p133
      %p278 = scmp.lt.s32.totalorder %s23, 0
      %s279 = scalar_select %p278, %s23, 0
      %s280 = scalar_lea.vmem %s4, %s279
      %p281 = pneg %p162
      %p282 = pneg %p159
      %p283 = pneg %p192
      %p284 = pneg %p189
      %p285 = scmp.lt.s32.totalorder %s21, 1
      %s286 = scalar_select %p285, %s21, 1
      %p287 = scmp.lt.s32.totalorder %s22, 0
      %s288 = scalar_select %p287, %s22, 0
      %p289 = scmp.lt.s32.totalorder %s23, 0
      %s290 = scalar_select %p289, %s23, 0
      %s291 = sadd.s32 %s290, %s288
      %s292 = sadd.s32 %s291, %s286
      %s293 = smul.addr %s292, 4
      %s294 = scalar_lea.vmem %s5, %s293
      %p295 = scmp.lt.s32.totalorder %s21, 1
      %s296 = scalar_select %p295, %s21, 1
      %p297 = scmp.lt.s32.totalorder %s22, 0
      %s298 = scalar_select %p297, %s22, 0
      %s299 = sadd.s32 %s298, %s296
      %s300 = smul.addr %s299, 8
      %s301 = scalar_lea.vmem %s0, %s300
      %p302 = scmp.lt.s32.totalorder %s21, 1
      %s303 = scalar_select %p302, %s21, 1
      %s304 = scalar_lea.vmem %s1, %s303
      %p305 = scmp.lt.s32.totalorder %s21, 1
      %s306 = scalar_select %p305, %s21, 1
      %s307 = scalar_lea.vmem %s2, %s306
      %p308 = scmp.lt.s32.totalorder %s23, 0
      %s309 = scalar_select %p308, %s23, 0
      %s310 = smul.addr %s309, 4
      %s311 = scalar_lea.vmem %s3, %s310
      %p312 = scmp.lt.s32.totalorder %s23, 0
      %s313 = scalar_select %p312, %s23, 0
      %s314 = scalar_lea.vmem %s4, %s313
      %p315 = scmp.lt.s32.totalorder %s21, 1
      %s316 = scalar_select %p315, %s21, 1
      %p317 = scmp.lt.s32.totalorder %s22, 0
      %s318 = scalar_select %p317, %s22, 0
      %p319 = scmp.lt.s32.totalorder %s23, 0
      %s320 = scalar_select %p319, %s23, 0
      %s321 = sadd.s32 %s320, %s318
      %s322 = sadd.s32 %s321, %s316
      %s323 = smul.addr %s322, 4
      %s324 = scalar_lea.vmem %s5, %s323
      %p326 = scmp.eq.s32.totalorder %s23, 0
      // Predicated region
      $region41: #{dit_block_forward.22} parent=39 // pred_check
        %p327 = pneg %p326
      $region42: #{dit_block_forward.22} parent=39 // pred_check_branch
        %329 = sbr.rel (%p327) target = $region44
      $region43: #{dit_block_forward.22} parent=39 // pred_region
        %v330 = vld [vmem:[%s301] sm:$0xff]
        %vm331 = vcmask 261120
        %v332 = vsel %vm331, %v330, 0.0
        %333 = vadd.xlane.f32.xlu0 %v332
        %v334 = vpop.xlane.xlu0 %333
        %v335 = vrcp.pop 32.0
        %v336 = vmul.f32 %v334, %v335
        %v337 = vsub.f32 %v330, %v336
        %v338 = vmul.f32 %v337, %v337
        %v339 = vsel %vm331, %v338, 0.0
        %340 = vadd.xlane.f32.xlu0 %v339
        %v341 = vpop.xlane.xlu0 %340
        %v342 = vmul.f32 %v341, %v335
        %v343 = vadd.f32 %v342, 1e-06
        %v344 = vrsqrt.pop %v343
        %v345 = vmul.f32 %v337, %v344
        %v346 = vld [vmem:[%s307] sm:$0x1]
        %v347 = vadd.f32 %v346, 1.0
        %v349 = vlaneseq
        %v350 = vshrl.u32 %v349, 7
        %v351 = vsub.s32 0, %v350
        %v352 = vrot.slane %v347, %v351
        %v354 = vmul.f32 %v345, %v352
        %v355 = vld [vmem:[%s304] sm:$0x1]
        %v357 = vlaneseq
        %v358 = vshrl.u32 %v357, 7
        %v359 = vsub.s32 0, %v358
        %v360 = vrot.slane %v355, %v359
        %v362 = vadd.f32 %v354, %v360
        %v363 = vpack.c.bf16 %v362, %v362
        %vm364 = vcmask 257024
        %365 = vst.msk [vmem:[#allocation2] sm:$0xf] %vm364, %v363
      $region44: #{dit_block_forward.22} parent=39 // pred_fallthru
        _
      %v366 = vld [vmem:[#allocation2] sm:$0xf]
      %v367 = vld [vmem:[%s311] sm:$0xf]
      %v368 = vld [vmem:[%s311 + $0x4] sm:$0xf]
      %v369 = vld [vmem:[%s311 + $0x8] sm:$0xf]
      %v370 = vld [vmem:[%s311 + $0xc] sm:$0xf]
      %v371 = vld [vmem:[%s314] sm:$0x1]
      %v373 = vlaneseq
      %v374 = vshrl.u32 %v373, 7
      %v375 = vsub.s32 0, %v374
      %v376 = vrot.slane %v371, %v375
      %v382 = vunpack.c.l.b16 %v367
      %v383 = vunpack.c.l.b16 %v368
      %v384 = vunpack.c.l.b16 %v369
      %v385 = vunpack.c.l.b16 %v370
      %v386 = vpack.c.b16 %v383, %v382
      %v387 = vpack.c.b16 %v385, %v384
      %vm390 = vcmask 261120
      %v392 = vsel %vm390, %v366, 0
      %394 = vmatprep.subr.bf16.mxu0 0
      %395 = vmatpush1.bf16.msra.mxu0 %v386
      %396 = vmatprep.subr.bf16.mxu0 0
      %397 = vmatpush1.bf16.msra.mxu0 %v387
      %398 = vmatprep.subr.bf16.mxu0 0
      %399 = vmatpush1.bf16.msra.mxu0 0
      %400 = vmatprep.subr.bf16.mxu0 0
      %401 = vmatpush1.bf16.msra.mxu0 0
      %402 = vmatprep.subr.bf16.mxu0 0
      %403 = vmatpush1.bf16.msra.mxu0 0
      %404 = vmatprep.subr.bf16.mxu0 0
      %405 = vmatpush1.bf16.msra.mxu0 0
      %406 = vmatprep.subr.bf16.mxu0 0
      %407 = vmatpush1.bf16.msra.mxu0 0
      %408 = vmatprep.subr.bf16.mxu0 0
      %409 = vmatpush1.bf16.msra.mxu0 0
      %410 = vmatprep.subr.bf16.mxu0 0
      %411 = vmatpush1.bf16.msra.mxu0 0
      %412 = vmatprep.subr.bf16.mxu0 0
      %413 = vmatpush1.bf16.msra.mxu0 0
      %414 = vmatprep.subr.bf16.mxu0 0
      %415 = vmatpush1.bf16.msra.mxu0 0
      %416 = vmatprep.subr.bf16.mxu0 0
      %417 = vmatpush1.bf16.msra.mxu0 0
      %418 = vmatprep.subr.bf16.mxu0 0
      %419 = vmatpush1.bf16.msra.mxu0 0
      %420 = vmatprep.subr.bf16.mxu0 0
      %421 = vmatpush1.bf16.msra.mxu0 0
      %422 = vmatprep.subr.bf16.mxu0 0
      %423 = vmatpush1.bf16.msra.mxu0 0
      %424 = vmatprep.subr.bf16.mxu0 0
      %425 = vmatpush1.bf16.msra.mxu0 0
      %426 = vmatprep.mubr.bf16.mxu0 0
      %427 = vmatmul.mubr.bf16.gmra.mrb[0].mxu0 %v392
      %v428 = vpop.f32.mrb[0].mxu0
      %v429 = vadd.f32 %v376, %v428
      %v430 = vpop.f32.mrb[0].mxu0
      %v431 = vpop.f32.mrb[0].mxu0
      %v432 = vpop.f32.mrb[0].mxu0
      %433 = vdwg.mxu0
      %v434 = vmul.f32 %v429, 0.5
      %v435 = vmul.f32 %v429, 0.044715
      %v436 = vmul.f32 %v435, %v429
      %v437 = vmul.f32 %v436, %v429
      %v438 = vadd.f32 %v429, %v437
      %v439 = vmul.f32 %v438, 0.7978846
      %v440 = vtanh.pop %v439
      %v441 = vadd.f32 %v440, 1.0
      %v442 = vmul.f32 %v434, %v441
      %v443 = vpack.c.bf16 %v442, %v442
      %444 = vst [vmem:[%s324] sm:$0xf] %v443
      %p445 = scmp.lt.s32.totalorder %s21, 1
      %s446 = scalar_select %p445, %s21, 1
      %p447 = scmp.lt.s32.totalorder %s22, 0
      %s448 = scalar_select %p447, %s22, 0
      %p449 = scmp.lt.s32.totalorder %s23, 0
      %s450 = scalar_select %p449, %s23, 0
      %s451 = sadd.s32 %s450, %s448
      %s452 = sadd.s32 %s451, %s446
      %s453 = smul.addr %s452, 4
      %s454 = scalar_lea.vmem %s5, %s453
      // Predicated region
      $region45: #{dit_block_forward.22} parent=39 // pred_check
        %p455 = pneg %p189
      $region46: #{dit_block_forward.22} parent=39 // pred_check_branch
        %457 = sbr.rel (%p455) target = $region48
      $region47: #{dit_block_forward.22} parent=39 // pred_region
        _
      $region48: #{dit_block_forward.22} parent=39 // pred_fallthru
        _
    $region40: #{dit_block_forward.22} parent=5 // pred_fallthru
      _
    %p458 = scmp.le.s32.totalorder 2, %s11
    // Predicated region
    $region49: #{dit_block_forward.22} parent=5 // pred_check
      %p459 = pneg %p458
    $region50: #{dit_block_forward.22} parent=5 // pred_check_branch
      %461 = sbr.rel (%p459) target = $region52
    $region51: #{dit_block_forward.22} parent=5 // pred_region
      %s462 = ssub.s32 %s11, 2
      // Predicated region
      $region53: #{dit_block_forward.22} parent=51 // pred_check
        %p463 = pneg %p195
      $region54: #{dit_block_forward.22} parent=51 // pred_check_branch
        %465 = sbr.rel (%p463) target = $region56
      $region55: #{dit_block_forward.22} parent=51 // pred_region
        %p466 = scmp.lt.s32.totalorder %s24, 1
        %s467 = scalar_select %p466, %s24, 1
        %p468 = scmp.lt.s32.totalorder %s25, 0
        %s469 = scalar_select %p468, %s25, 0
        %p470 = scmp.lt.s32.totalorder %s26, 0
        %s471 = scalar_select %p470, %s26, 0
        %s472 = sadd.s32 %s471, %s469
        %s473 = sadd.s32 %s472, %s467
        %s474 = smul.addr %s473, 4
        %s475 = scalar_lea.vmem %s5, %s474
      $region56: #{dit_block_forward.22} parent=51 // pred_fallthru
        _
    $region52: #{dit_block_forward.22} parent=5 // pred_fallthru
      _
  $region6: #{dit_block_forward.22} parent=0 // loop_footer
    %s15 = sadd.s32 1, %s11
  $region7: #{dit_block_forward.22} parent=0 // loop_footer_branch
    %10 = sbr.rel target = $region3
  $region8: #{dit_block_forward.22} parent=0 // loop_exit
    _

// kernel: dit_block_forward.23
$region0: #{dit_block_forward.23}
  #allocation0 [shape = 'u32[]', space=smem, size = 0x4, offset = 0x4, fixed_abs, tag = 'smem constant byte address 0x4 - core index']
  #allocation1 [shape = 'u32[144,128]{1,0:T(1,128)}', space=vmem, size = 0x12000, scoped, tag = 'internal scratch']
  #allocation2 [shape = 'f32[8,32]{1,0:T(8,128)}', space=vmem, size = 0x1000, scoped, tag = 'scratch operand']
  %s0 = inlined_call_operand.vmem [shape: bf16[2,8,128], index: 0, kind: input, shape index: {}]
  %s1 = inlined_call_operand.vmem [shape: bf16[128,32], index: 1, kind: input, shape index: {}]
  %s2 = inlined_call_operand.vmem [shape: f32[1,32], index: 2, kind: input, shape index: {}]
  %s3 = inlined_call_operand.vmem [shape: f32[2,8,32], index: 3, kind: input, shape index: {}]
  %s4 = inlined_call_operand.hbm [shape: f32[2,8,32], index: 4, kind: output, shape index: {}]
  %s5 = sld [smem:[#allocation0]]
  $region57: #{dit_block_forward.23} parent=0
    _
  %s7 = ssub.s32 1, %s5
  %s8 = scalar_select 0, %s7, %s5
  $region1: #{dit_block_forward.23} parent=0
    #allocation3 [shape = 'u8[8192]{0}', space=vmem, size = 0x2000, scoped, tag = 'output window, operand 0']
    #allocation4 [shape = 's32[2]{0}', space=sflag, size = 0x8, scoped, tag = 'scoped memory for dit_block_forward.23']
    %9 = vsyncpa [#allocation4], 0
    %s10 = scalar_lea.sflag [#allocation4], 1
    %11 = vsyncpa %s10, 0
    loop: start=0, step=1, limit=4
    $region2: #{dit_block_forward.23} parent=1 // loop_pre_header
      _
    $region3: #{dit_block_forward.23} parent=1 // loop_header
      %s13 = sphi 0, %s17
      %p14 = scmp.ge.s32.totalorder %s13, 4
      %s20 = sphi 0, %s46
      %s21 = sphi 0, %s42
      %s22 = sphi 0, %s38
      %s23 = sphi 0, %s34
      %s24 = sphi 0, %s20
      %s25 = sphi 0, %s21
      %s26 = sphi 0, %s22
      %s27 = sphi 0, %s23
      %s28 = sphi 0, %s24
      %s29 = sphi 0, %s25
      %s30 = sphi 0, %s26
      %s31 = sphi 0, %s27
      %s53 = sphi 0, %s55
      %s56 = sphi 0, %s53
      %s57 = sphi 0, %s56
      %s73 = sphi 0, %s57
      %s81 = sphi 0, %s83
      %s84 = sphi 0, %s81
      %s85 = sphi 0, %s84
      %s101 = sphi 0, %s85
      %s107 = sphi 0, %s109
      %s110 = sphi 0, %s107
      %s111 = sphi 0, %s110
      %s127 = sphi 0, %s111
      %s137 = sphi 0, %s139
      %s140 = sphi 0, %s137
      %s141 = sphi 0, %s140
      %s157 = sphi 0, %s141
      %s167 = sphi 0, %s169
      %s170 = sphi 0, %s167
      %s171 = sphi 0, %s170
      %s187 = sphi 0, %s171
    $region4: #{dit_block_forward.23} parent=1 // loop_header_branch
      %16 = sbr.rel (%p14) target = $region8
    $region5: #{dit_block_forward.23} parent=1 // loop_body
      %s18 = ssub.s32 %s13, 1
      %s19 = ssub.s32 %s13, 2
      %s32 = sadd.s32 1, %s23
      %p33 = scmp.ge.s32.totalorder %s32, 1
      %s34 = scalar_select %p33, 0, %s32
      %s35 = sadd.s32 1, %s22
      %s36 = scalar_select %p33, %s35, %s22
      %p37 = scmp.ge.s32.totalorder %s36, 1
      %s38 = scalar_select %p37, 0, %s36
      %s39 = sadd.s32 1, %s21
      %s40 = scalar_select %p37, %s39, %s21
      %p41 = scmp.ge.s32.totalorder %s40, 1
      %s42 = scalar_select %p41, 0, %s40
      %s43 = sadd.s32 1, %s20
      %s44 = scalar_select %p41, %s43, %s20
      %p45 = scmp.ge.s32.totalorder %s44, 2
      %s46 = scalar_select %p45, 0, %s44
      %s47 = ssub.s32 %s20, %s46
      %s48 = ssub.s32 %s21, %s42
      %s49 = sor.u32 %s47, %s48
      %s50 = ssub.s32 %s23, %s34
      %s51 = sor.u32 %s49, %s50
      %p52 = scmp.eq.s32.totalorder %s51, 0
      %s54 = sadd.s32 %s53, 1
      %s55 = scalar_select %p52, %s53, %s54
      %p58 = pneg %p52
      %p59 = scmp.eq.s32.totalorder %s13, 1
      %p60 = por %p58, %p59
      %p61 = scmp.ne.s32.totalorder %s53, %s56
      %p62 = scmp.eq.s32.totalorder %s13, 0
      %p63 = por %p61, %p62
      %p64 = scmp.ne.s32.totalorder %s53, %s56
      %p65 = scmp.eq.s32.totalorder %s18, 1
      %p66 = por %p64, %p65
      %p67 = scmp.ne.s32.totalorder %s56, %s57
      %p68 = scmp.eq.s32.totalorder %s18, 0
      %p69 = por %p67, %p68
      %p70 = scmp.ne.s32.totalorder %s56, %s57
      %p71 = scmp.eq.s32.totalorder %s19, 1
      %p72 = por %p70, %p71
      %p74 = scmp.ne.s32.totalorder %s57, %s73
      %p75 = scmp.eq.s32.totalorder %s19, 0
      %p76 = por %p74, %p75
      %s77 = ssub.s32 %s23, %s34
      %s78 = ssub.s32 %s22, %s38
      %s79 = sor.u32 %s77, %s78
      %p80 = scmp.eq.s32.totalorder %s79, 0
      %s82 = sadd.s32 %s81, 1
      %s83 = scalar_select %p80, %s81, %s82
      %p86 = pneg %p80
      %p87 = scmp.eq.s32.totalorder %s13, 1
      %p88 = por %p86, %p87
      %p89 = scmp.ne.s32.totalorder %s81, %s84
      %p90 = scmp.eq.s32.totalorder %s13, 0
      %p91 = por %p89, %p90
      %p92 = scmp.ne.s32.totalorder %s81, %s84
      %p93 = scmp.eq.s32.totalorder %s18, 1
      %p94 = por %p92, %p93
      %p95 = scmp.ne.s32.totalorder %s84, %s85
      %p96 = scmp.eq.s32.totalorder %s18, 0
      %p97 = por %p95, %p96
      %p98 = scmp.ne.s32.totalorder %s84, %s85
      %p99 = scmp.eq.s32.totalorder %s19, 1
      %p100 = por %p98, %p99
      %p102 = scmp.ne.s32.totalorder %s85, %s101
      %p103 = scmp.eq.s32.totalorder %s19, 0
      %p104 = por %p102, %p103
      %s105 = ssub.s32 %s22, %s38
      %p106 = scmp.eq.s32.totalorder %s105, 0
      %s108 = sadd.s32 %s107, 1
      %s109 = scalar_select %p106, %s107, %s108
      %p112 = pneg %p106
      %p113 = scmp.eq.s32.totalorder %s13, 1
      %p114 = por %p112, %p113
      %p115 = scmp.ne.s32.totalorder %s107, %s110
      %p116 = scmp.eq.s32.totalorder %s13, 0
      %p117 = por %p115, %p116
      %p118 = scmp.ne.s32.totalorder %s107, %s110
      %p119 = scmp.eq.s32.totalorder %s18, 1
      %p120 = por %p118, %p119
      %p121 = scmp.ne.s32.totalorder %s110, %s111
      %p122 = scmp.eq.s32.totalorder %s18, 0
      %p123 = por %p121, %p122
      %p124 = scmp.ne.s32.totalorder %s110, %s111
      %p125 = scmp.eq.s32.totalorder %s19, 1
      %p126 = por %p124, %p125
      %p128 = scmp.ne.s32.totalorder %s111, %s127
      %p129 = scmp.eq.s32.totalorder %s19, 0
      %p130 = por %p128, %p129
      %s131 = ssub.s32 %s20, %s46
      %s132 = ssub.s32 %s21, %s42
      %s133 = sor.u32 %s131, %s132
      %s134 = ssub.s32 %s22, %s38
      %s135 = sor.u32 %s133, %s134
      %p136 = scmp.eq.s32.totalorder %s135, 0
      %s138 = sadd.s32 %s137, 1
      %s139 = scalar_select %p136, %s137, %s138
      %p142 = pneg %p136
      %p143 = scmp.eq.s32.totalorder %s13, 1
      %p144 = por %p142, %p143
      %p145 = scmp.ne.s32.totalorder %s137, %s140
      %p146 = scmp.eq.s32.totalorder %s13, 0
      %p147 = por %p145, %p146
      %p148 = scmp.ne.s32.totalorder %s137, %s140
      %p149 = scmp.eq.s32.totalorder %s18, 1
      %p150 = por %p148, %p149
      %p151 = scmp.ne.s32.totalorder %s140, %s141
      %p152 = scmp.eq.s32.totalorder %s18, 0
      %p153 = por %p151, %p152
      %p154 = scmp.ne.s32.totalorder %s140, %s141
      %p155 = scmp.eq.s32.totalorder %s19, 1
      %p156 = por %p154, %p155
      %p158 = scmp.ne.s32.totalorder %s141, %s157
      %p159 = scmp.eq.s32.totalorder %s19, 0
      %p160 = por %p158, %p159
      %s161 = ssub.s32 %s20, %s46
      %s162 = ssub.s32 %s21, %s42
      %s163 = sor.u32 %s161, %s162
      %s164 = ssub.s32 %s22, %s38
      %s165 = sor.u32 %s163, %s164
      %p166 = scmp.eq.s32.totalorder %s165, 0
      %s168 = sadd.s32 %s167, 1
      %s169 = scalar_select %p166, %s167, %s168
      %p172 = pneg %p166
      %p173 = scmp.eq.s32.totalorder %s13, 1
      %p174 = por %p172, %p173
      %p175 = scmp.ne.s32.totalorder %s167, %s170
      %p176 = scmp.eq.s32.totalorder %s13, 0
      %p177 = por %p175, %p176
      %p178 = scmp.ne.s32.totalorder %s167, %s170
      %p179 = scmp.eq.s32.totalorder %s18, 1
      %p180 = por %p178, %p179
      %p181 = scmp.ne.s32.totalorder %s170, %s171
      %p182 = scmp.eq.s32.totalorder %s18, 0
      %p183 = por %p181, %p182
      %p184 = scmp.ne.s32.totalorder %s170, %s171
      %p185 = scmp.eq.s32.totalorder %s19, 1
      %p186 = por %p184, %p185
      %p188 = scmp.ne.s32.totalorder %s171, %s187
      %p189 = scmp.eq.s32.totalorder %s19, 0
      %p190 = por %p188, %p189
      %p191 = scmp.le.s32.totalorder 1, %s13
      %p192 = scmp.lt.s32.totalorder %s13, 3
      %p193 = pnand %p191, %p192
      %p194 = pneg %p193
      // Predicated region
      $region9: #{dit_block_forward.23} parent=5 // pred_check
        _
      $region10: #{dit_block_forward.23} parent=5 // pred_check_branch
        %196 = sbr.rel (%p193) target = $region12
      $region11: #{dit_block_forward.23} parent=5 // pred_region
        %s197 = ssub.s32 %s13, 1
        // Predicated region
        $region13: #{dit_block_forward.23} parent=11 // pred_check
          %p198 = pneg %p97
        $region14: #{dit_block_forward.23} parent=11 // pred_check_branch
          %200 = sbr.rel (%p198) target = $region16
        $region15: #{dit_block_forward.23} parent=11 // pred_region
          %s201 = smul.u32 16, %s27
          %p202 = scmp.lt.s32.totalorder %s201, 15
          %s203 = scalar_select %p202, %s201, 15
          %p204 = scmp.lt.s32.totalorder %s26, 0
          %s205 = scalar_select %p204, %s26, 0
          %s206 = sadd.s32 %s205, %s203
          %s207 = smul.addr %s206, 4
          %s208 = scalar_lea.vmem %s1, %s207
          %s209 = smul.u32 16, %s27
        $region16: #{dit_block_forward.23} parent=11 // pred_fallthru
          _
        // Predicated region
        $region17: #{dit_block_forward.23} parent=11 // pred_check
          %p210 = pneg %p123
        $region18: #{dit_block_forward.23} parent=11 // pred_check_branch
          %212 = sbr.rel (%p210) target = $region20
        $region19: #{dit_block_forward.23} parent=11 // pred_region
          %p213 = scmp.lt.s32.totalorder %s26, 0
          %s214 = scalar_select %p213, %s26, 0
          %s215 = scalar_lea.vmem %s2, %s214
        $region20: #{dit_block_forward.23} parent=11 // pred_fallthru
          _
      $region12: #{dit_block_forward.23} parent=5 // pred_fallthru
        _
      %p216 = scmp.lt.s32.totalorder %s13, 2
      // Predicated region
      $region21: #{dit_block_forward.23} parent=5 // pred_check
        %p217 = pneg %p216
      $region22: #{dit_block_forward.23} parent=5 // pred_check_branch
        %219 = sbr.rel (%p217) target = $region24
      $region23: #{dit_block_forward.23} parent=5 // pred_region
        // Predicated region
        $region25: #{dit_block_forward.23} parent=23 // pred_check
          %p220 = pneg %p63
        $region26: #{dit_block_forward.23} parent=23 // pred_check_branch
          %222 = sbr.rel (%p220) target = $region28
        $region27: #{dit_block_forward.23} parent=23 // pred_region
          %p223 = scmp.lt.s32.totalorder %s20, 1
          %s224 = scalar_select %p223, %s20, 1
          %p225 = scmp.lt.s32.totalorder %s21, 0
          %s226 = scalar_select %p225, %s21, 0
          %p227 = scmp.lt.s32.totalorder %s23, 0
          %s228 = scalar_select %p227, %s23, 0
          %s229 = sadd.s32 %s228, %s226
          %s230 = sadd.s32 %s229, %s224
          %s231 = smul.addr %s230, 4
          %s232 = scalar_lea.vmem %s0, %s231
        $region28: #{dit_block_forward.23} parent=23 // pred_fallthru
          _
        // Predicated region
        $region29: #{dit_block_forward.23} parent=23 // pred_check
          %p233 = pneg %p147
        $region30: #{dit_block_forward.23} parent=23 // pred_check_branch
          %235 = sbr.rel (%p233) target = $region32
        $region31: #{dit_block_forward.23} parent=23 // pred_region
          %p236 = scmp.lt.s32.totalorder %s20, 1
          %s237 = scalar_select %p236, %s20, 1
          %p238 = scmp.lt.s32.totalorder %s21, 0
          %s239 = scalar_select %p238, %s21, 0
          %p240 = scmp.lt.s32.totalorder %s22, 0
          %s241 = scalar_select %p240, %s22, 0
          %s242 = sadd.s32 %s241, %s239
          %s243 = sadd.s32 %s242, %s237
          %s244 = smul.addr %s243, 8
          %s245 = scalar_lea.vmem %s3, %s244
        $region32: #{dit_block_forward.23} parent=23 // pred_fallthru
          _
      $region24: #{dit_block_forward.23} parent=5 // pred_fallthru
        _
      %p246 = scmp.le.s32.totalorder 1, %s13
      %p247 = scmp.lt.s32.totalorder %s13, 3
      %p248 = pnand %p246, %p247
      %p249 = pneg %p248
      // Predicated region
      $region33: #{dit_block_forward.23} parent=5 // pred_check
        _
      $region34: #{dit_block_forward.23} parent=5 // pred_check_branch
        %251 = sbr.rel (%p248) target = $region36
      $region35: #{dit_block_forward.23} parent=5 // pred_region
        %s252 = ssub.s32 %s13, 1
        %p253 = scmp.lt.s32.totalorder %s24, 1
        %s254 = scalar_select %p253, %s24, 1
        %p255 = scmp.lt.s32.totalorder %s25, 0
        %s256 = scalar_select %p255, %s25, 0
        %p257 = scmp.lt.s32.totalorder %s27, 0
        %s258 = scalar_select %p257, %s27, 0
        %s259 = sadd.s32 %s258, %s256
        %s260 = sadd.s32 %s259, %s254
        %s261 = smul.addr %s260, 4
        %s262 = scalar_lea.vmem %s0, %s261
        %p263 = pneg %p69
        %p264 = pneg %p66
        %s265 = smul.u32 16, %s27
        %p266 = scmp.lt.s32.totalorder %s265, 15
        %s267 = scalar_select %p266, %s265, 15
        %p268 = scmp.lt.s32.totalorder %s26, 0
        %s269 = scalar_select %p268, %s26, 0
        %s270 = sadd.s32 %s269, %s267
        %s271 = smul.addr %s270, 4
        %s272 = scalar_lea.vmem %s1, %s271
        %p273 = pneg %p97
        %p274 = pneg %p94
        %p275 = scmp.lt.s32.totalorder %s26, 0
        %s276 = scalar_select %p275, %s26, 0
        %s277 = scalar_lea.vmem %s2, %s276
        %p278 = pneg %p123
        %p279 = pneg %p120
        %p280 = scmp.lt.s32.totalorder %s24, 1
        %s281 = scalar_select %p280, %s24, 1
        %p282 = scmp.lt.s32.totalorder %s25, 0
        %s283 = scalar_select %p282, %s25, 0
        %p284 = scmp.lt.s32.totalorder %s26, 0
        %s285 = scalar_select %p284, %s26, 0
        %s286 = sadd.s32 %s285, %s283
        %s287 = sadd.s32 %s286, %s281
        %s288 = smul.addr %s287, 8
        %s289 = scalar_lea.vmem %s3, %s288
        %p290 = pneg %p153
        %p291 = pneg %p150
        %p292 = pneg %p183
        %p293 = pneg %p180
        %s294 = sand.u32 %s170, 1
        %s295 = scalar_lea.sflag [#allocation4], %s294
        %s296 = sand.u32 %s170, 1
        %s297 = smul.addr %s296, 8
        %s298 = scalar_lea.vmem [#allocation3], %s297
        %p299 = scmp.lt.s32.totalorder %s24, 1
        %s300 = scalar_select %p299, %s24, 1
        %p301 = scmp.lt.s32.totalorder %s25, 0
        %s302 = scalar_select %p301, %s25, 0
        %p303 = scmp.lt.s32.totalorder %s27, 0
        %s304 = scalar_select %p303, %s27, 0
        %s305 = sadd.s32 %s304, %s302
        %s306 = sadd.s32 %s305, %s300
        %s307 = smul.addr %s306, 4
        %s308 = scalar_lea.vmem %s0, %s307
        %s309 = smul.u32 16, %s27
        %p310 = scmp.lt.s32.totalorder %s309, 15
        %s311 = scalar_select %p310, %s309, 15
        %p312 = scmp.lt.s32.totalorder %s26, 0
        %s313 = scalar_select %p312, %s26, 0
        %s314 = sadd.s32 %s313, %s311
        %s315 = smul.addr %s314, 4
        %s316 = scalar_lea.vmem %s1, %s315
        %s317 = smul.u32 16, %s27
        %p318 = scmp.lt.s32.totalorder %s26, 0
        %s319 = scalar_select %p318, %s26, 0
        %s320 = scalar_lea.vmem %s2, %s319
        %p321 = scmp.lt.s32.totalorder %s24, 1
        %s322 = scalar_select %p321, %s24, 1
        %p323 = scmp.lt.s32.totalorder %s25, 0
        %s324 = scalar_select %p323, %s25, 0
        %p325 = scmp.lt.s32.totalorder %s26, 0
        %s326 = scalar_select %p325, %s26, 0
        %s327 = sadd.s32 %s326, %s324
        %s328 = sadd.s32 %s327, %s322
        %s329 = smul.addr %s328, 8
        %s330 = scalar_lea.vmem %s3, %s329
        %p332 = scmp.eq.s32.totalorder %s27, 0
        // Predicated region
        $region37: #{dit_block_forward.23} parent=35 // pred_check
          %p333 = pneg %p332
        $region38: #{dit_block_forward.23} parent=35 // pred_check_branch
          %335 = sbr.rel (%p333) target = $region40
        $region39: #{dit_block_forward.23} parent=35 // pred_region
          %vm336 = vcmask 261120
          %337 = vst.msk [vmem:[#allocation2] sm:$0xff] %vm336, 0.0
        $region40: #{dit_block_forward.23} parent=35 // pred_fallthru
          _
        %v338 = vld [vmem:[#allocation2] sm:$0xff]
        %v339 = vld [vmem:[%s308] sm:$0xf]
        %v340 = vld [vmem:[%s316] sm:$0xf]
        %v341 = vld [vmem:[%s316 + $0x4] sm:$0xf]
        %v342 = vld [vmem:[%s316 + $0x8] sm:$0xf]
        %v343 = vld [vmem:[%s316 + $0xc] sm:$0xf]
        %v344 = vld [vmem:[%s316 + $0x10] sm:$0xf]
        %v345 = vld [vmem:[%s316 + $0x14] sm:$0xf]
        %v346 = vld [vmem:[%s316 + $0x18] sm:$0xf]
        %v347 = vld [vmem:[%s316 + $0x1c] sm:$0xf]
        %v348 = vld [vmem:[%s316 + $0x20] sm:$0xf]
        %v349 = vld [vmem:[%s316 + $0x24] sm:$0xf]
        %v350 = vld [vmem:[%s316 + $0x28] sm:$0xf]
        %v351 = vld [vmem:[%s316 + $0x2c] sm:$0xf]
        %v352 = vld [vmem:[%s316 + $0x30] sm:$0xf]
        %v353 = vld [vmem:[%s316 + $0x34] sm:$0xf]
        %v354 = vld [vmem:[%s316 + $0x38] sm:$0xf]
        %v355 = vld [vmem:[%s316 + $0x3c] sm:$0xf]
        %v372 = vunpack.c.l.b16 %v340
        %v373 = vunpack.c.l.b16 %v341
        %v374 = vunpack.c.l.b16 %v342
        %v375 = vunpack.c.l.b16 %v343
        %v376 = vunpack.c.l.b16 %v344
        %v377 = vunpack.c.l.b16 %v345
        %v378 = vunpack.c.l.b16 %v346
        %v379 = vunpack.c.l.b16 %v347
        %v380 = vunpack.c.l.b16 %v348
        %v381 = vunpack.c.l.b16 %v349
        %v382 = vunpack.c.l.b16 %v350
        %v383 = vunpack.c.l.b16 %v351
        %v384 = vunpack.c.l.b16 %v352
        %v385 = vunpack.c.l.b16 %v353
        %v386 = vunpack.c.l.b16 %v354
        %v387 = vunpack.c.l.b16 %v355
        %v388 = vpack.c.b16 %v373, %v372
        %v389 = vpack.c.b16 %v375, %v374
        %v390 = vpack.c.b16 %v377, %v376
        %v391 = vpack.c.b16 %v379, %v378
        %v392 = vpack.c.b16 %v381, %v380
        %v393 = vpack.c.b16 %v383, %v382
        %v394 = vpack.c.b16 %v385, %v384
        %v395 = vpack.c.b16 %v387, %v386
        %404 = vmatprep.subr.bf16.mxu0 0
        %405 = vmatpush1.bf16.msra.mxu0 %v388
        %406 = vmatprep.subr.bf16.mxu0 0
        %407 = vmatpush1.bf16.msra.mxu0 %v389
        %408 = vmatprep.subr.bf16.mxu0 0
        %409 = vmatpush1.bf16.msra.mxu0 %v390
        %410 = vmatprep.subr.bf16.mxu0 0
        %411 = vmatpush1.bf16.msra.mxu0 %v391
        %412 = vmatprep.subr.bf16.mxu0 0
        %413 = vmatpush1.bf16.msra.mxu0 %v392
        %414 = vmatprep.subr.bf16.mxu0 0
        %415 = vmatpush1.bf16.msra.mxu0 %v393
        %416 = vmatprep.subr.bf16.mxu0 0
        %417 = vmatpush1.bf16.msra.mxu0 %v394
        %418 = vmatprep.subr.bf16.mxu0 0
        %419 = vmatpush1.bf16.msra.mxu0 %v395
        %420 = vmatprep.subr.bf16.mxu0 0
        %421 = vmatpush1.bf16.msra.mxu0 0
        %422 = vmatprep.subr.bf16.mxu0 0
        %423 = vmatpush1.bf16.msra.mxu0 0
        %424 = vmatprep.subr.bf16.mxu0 0
        %425 = vmatpush1.bf16.msra.mxu0 0
        %426 = vmatprep.subr.bf16.mxu0 0
        %427 = vmatpush1.bf16.msra.mxu0 0
        %428 = vmatprep.subr.bf16.mxu0 0
        %429 = vmatpush1.bf16.msra.mxu0 0
        %430 = vmatprep.subr.bf16.mxu0 0
        %431 = vmatpush1.bf16.msra.mxu0 0
        %432 = vmatprep.subr.bf16.mxu0 0
        %433 = vmatpush1.bf16.msra.mxu0 0
        %434 = vmatprep.subr.bf16.mxu0 0
        %435 = vmatpush1.bf16.msra.mxu0 0
        %436 = vmatprep.mubr.bf16.mxu0 0
        %437 = vmatmul.mubr.bf16.gmra.mrb[0].mxu0 %v339
        %v438 = vpop.f32.mrb[0].mxu0
        %v439 = vadd.f32 0.0, %v438
        %v440 = vpop.f32.mrb[0].mxu0
        %v441 = vpop.f32.mrb[0].mxu0
        %v442 = vpop.f32.mrb[0].mxu0
        %443 = vdwg.mxu0
        %v444 = vadd.f32 %v338, %v439
        %vm445 = vcmask 261120
        %446 = vst.msk [vmem:[#allocation2] sm:$0xff] %vm445, %v444
        // Predicated region
        $region41: #{dit_block_forward.23} parent=35 // pred_check
          %p447 = pneg %p332
        $region42: #{dit_block_forward.23} parent=35 // pred_check_branch
          %449 = sbr.rel (%p447) target = $region44
        $region43: #{dit_block_forward.23} parent=35 // pred_region
          %v450 = vld [vmem:[#allocation2] sm:$0xff]
          %v451 = vld [vmem:[%s320] sm:$0x1]
          %v453 = vlaneseq
          %v454 = vshrl.u32 %v453, 7
          %v455 = vsub.s32 0, %v454
          %v456 = vrot.slane %v451, %v455
          %v458 = vadd.f32 %v450, %v456
          %v459 = vld [vmem:[%s330] sm:$0xff]
          %v460 = vadd.f32 %v458, %v459
          %461 = vst.msk [vmem:[%s298] sm:$0xff] %vm445, %v460
        $region44: #{dit_block_forward.23} parent=35 // pred_fallthru
          _
        %s462 = sand.u32 %s170, 1
        %s463 = scalar_lea.sflag [#allocation4], %s462
        %s464 = sand.u32 %s170, 1
        %s465 = smul.addr %s464, 8
        %s466 = scalar_lea.vmem [#allocation3], %s465
        // Predicated region
        $region45: #{dit_block_forward.23} parent=35 // pred_check
          %p467 = pneg %p180
        $region46: #{dit_block_forward.23} parent=35 // pred_check_branch
          %469 = sbr.rel (%p467) target = $region48
        $region47: #{dit_block_forward.23} parent=35 // pred_region
          %s471 = ssub.s32 128, 128
          %472 = vsyncadd %s463, %s471
          %s473 = sadd.s32 %s26, %s25
          %s474 = sadd.s32 %s473, %s24
          %s475 = smul.addr %s474, 128
          %s476 = scalar_lea.hbm %s4, %s475
          %s478 = sshll.u32 %s466, 4
          %s479 = int_to_ptr.vmem [resolvable:$true] %s478
          %481 = dma.vmem_to_hbm [thread:$0]  %s479, 128, %s476, %s463
        $region48: #{dit_block_forward.23} parent=35 // pred_fallthru
          _
      $region36: #{dit_block_forward.23} parent=5 // pred_fallthru
        _
      %p482 = scmp.le.s32.totalorder 2, %s13
      // Predicated region
      $region49: #{dit_block_forward.23} parent=5 // pred_check
        %p483 = pneg %p482
      $region50: #{dit_block_forward.23} parent=5 // pred_check_branch
        %485 = sbr.rel (%p483) target = $region52
      $region51: #{dit_block_forward.23} parent=5 // pred_region
        %s486 = ssub.s32 %s13, 2
        // Predicated region
        $region53: #{dit_block_forward.23} parent=51 // pred_check
          %p487 = pneg %p186
        $region54: #{dit_block_forward.23} parent=51 // pred_check_branch
          %489 = sbr.rel (%p487) target = $region56
        $region55: #{dit_block_forward.23} parent=51 // pred_region
          %s490 = sand.u32 %s171, 1
          %s491 = scalar_lea.sflag [#allocation4], %s490
          %s492 = sand.u32 %s171, 1
          %s493 = smul.addr %s492, 8
          %s494 = scalar_lea.vmem [#allocation3], %s493
          %495 = dma.done %s491, 128
        $region56: #{dit_block_forward.23} parent=51 // pred_fallthru
          _
      $region52: #{dit_block_forward.23} parent=5 // pred_fallthru
        _
    $region6: #{dit_block_forward.23} parent=1 // loop_footer
      %s17 = sadd.s32 1, %s13
    $region7: #{dit_block_forward.23} parent=1 // loop_footer_branch
      %12 = sbr.rel target = $region3
    $region8: #{dit_block_forward.23} parent=1 // loop_exit
      _
    %496 = vsyncpa [#allocation4], 1
    %s497 = scalar_lea.sflag [#allocation4], 1
    %498 = vsyncpa %s497, 1

</llo_original>
